<compile_context>
chip_gen: v6e
topology: v6e:2x2x1
jax: 0.10.0
libtpu: 0.0.40
codegen_flags: <defaults>
</compile_context>

<pallas_src>
import functools

import jax
import jax.numpy as jnp
from jax.experimental import pallas as pl
from jax.experimental.pallas import tpu as pltpu

LANE = 128


def _round_up(x, m):
    return (x + m - 1) // m * m


def _conv_tile(xm_ref, xh_ref, w_ref, xwin_ref, col_ref, tap_offsets):
    """Shared conv tile: in-VMEM im2col + one MXU matmul.

    xm_ref:   (TR, Cin)         bf16  this tile's rows of the flat padded input
    xh_ref:   (HALO, Cin)       bf16  halo rows (start of the next tile)
    w_ref:    (KH*KW*Cin, Cp)   bf16  flattened conv weights (resident)
    xwin_ref: (TR+HALO, Cin)    bf16  scratch: contiguous tile + halo window
    col_ref:  (TR, KH*KW*Cin)   bf16  scratch: per-tile im2col
    returns   (TR, Cp)          f32   conv output for this tile
    """
    tr = xm_ref.shape[0]
    cin = xm_ref.shape[1]
    # Contiguous window, then 9 statically-unrolled shifted slice copies build
    # the im2col block entirely in VMEM (no 9x blow-up in HBM).
    xwin_ref[:tr, :] = xm_ref[...]
    xwin_ref[tr:, :] = xh_ref[...]
    for t, off in enumerate(tap_offsets):
        col_ref[:, t * cin:(t + 1) * cin] = xwin_ref[off:off + tr, :]
    # One large-K matmul; accumulation happens inside the MXU.
    return jnp.dot(col_ref[...], w_ref[...], preferred_element_type=jnp.float32)


def _stats_kernel(xm_ref, xh_ref, w_ref, mask_ref, stats_ref, xwin_ref, col_ref,
                  *, tap_offsets):
    """Pass 1: conv tile (recomputed, not stored) + BatchNorm partial stats.

    mask_ref:  (1, 1, TR) f32  lane-dense validity row (1 for valid output rows)
    stats_ref: (8, Cp)    f32  row 0 = channel sum, row 1 = channel sum of squares
    """
    acc = _conv_tile(xm_ref, xh_ref, w_ref, xwin_ref, col_ref, tap_offsets)
    m = mask_ref[0]                                                  # (1, TR)
    # Stats as MXU matvecs: keeps the sublane reductions off the VPU/XLU and
    # stays in f32 the whole way.
    s = jnp.dot(m, acc, preferred_element_type=jnp.float32)          # (1, Cp)
    sq = jnp.dot(m, acc * acc, preferred_element_type=jnp.float32)   # (1, Cp)
    row = jax.lax.broadcasted_iota(jnp.int32, (8, 1), 0)
    stats_ref[...] = jnp.where(row == 0, s, 0.0) + jnp.where(row == 1, sq, 0.0)


def _conv_bn_relu_kernel(xm_ref, xh_ref, w_ref, scale_ref, shift_ref, o_ref,
                         xwin_ref, col_ref, *, tap_offsets):
    """Pass 2: recompute conv tile, fused y = max(conv * scale + shift, 0)."""
    acc = _conv_tile(xm_ref, xh_ref, w_ref, xwin_ref, col_ref, tap_offsets)
    o_ref[...] = jnp.maximum(acc * scale_ref[...] + shift_ref[...], 0.0)


def _conv_block_forward(x_nchw, w_oihw, bias, gamma, beta, *,
                        padding=1, eps=1e-5, tile_rows=2048):
    """ConvBlock forward. x_nchw: (N, Cin, H, W) -> (N, Cout, Ho, Wo), f32.

    The conv bias is intentionally ignored: adding a per-channel constant
    before train-mode BatchNorm is cancelled exactly by the mean subtraction.
    """
    del bias
    N, Cin, H, W = x_nchw.shape
    Cout, cin_w, KH, KW = w_oihw.shape
    assert cin_w == Cin
    Hp, Wp = H + 2 * padding, W + 2 * padding
    Ho, Wo = Hp - KH + 1, Wp - KW + 1
    # Lane-dense channel axis (256-wide for large Cout: full MXU on v6e/v7x).
    cpad = _round_up(Cout, 256) if Cout > LANE else LANE
    ktot = KH * KW * Cin

    # ---- layout glue (pure JAX): NCHW -> NHWC, spatial zero pad, flatten ----
    x = jnp.transpose(x_nchw, (0, 2, 3, 1))
    xp = jnp.pad(x, ((0, 0), (padding, padding), (padding, padding), (0, 0)))
    rp = N * Hp * Wp                                     # rows of the flat padded image
    xf = xp.reshape(rp, Cin).astype(jnp.bfloat16)        # narrow bf16 MXU operand in HBM

    # Tap offsets (in flat rows) and a sublane-aligned halo that covers them.
    tap_offsets = tuple(kh * Wp + kw for kh in range(KH) for kw in range(KW))
    halo = _round_up(max(tap_offsets[-1], 8), 8)         # ~2 image rows, not pow-2
    # Tile size: big (amortize per-step overhead), multiple of the halo, but
    # keep >= 2 row tiles when possible so the grid shards across both v7x TCs.
    tr = _round_up(min(tile_rows, max(pl.cdiv(rp, 2), halo)), halo)
    nt = pl.cdiv(rp, tr)
    steps = tr // halo
    rows_pad = nt * tr + halo                            # zero tail: halo always in bounds
    xf = jnp.pad(xf, ((0, rows_pad - rp), (0, 0)))

    # Conv weights: OIHW -> (KH*KW*Cin, cpad) matching the im2col column order
    # (tap-major, Cin-minor), zero-padded channels, bf16.
    wmat = jnp.transpose(w_oihw, (2, 3, 1, 0)).reshape(ktot, Cout)
    wmat = jnp.pad(wmat, ((0, 0), (0, cpad - Cout))).astype(jnp.bfloat16)

    # Lane-dense validity row per tile (1.0 for rows inside the valid Ho x Wo
    # region of some image, 0.0 for spatial padding / rounding tail).  4 bytes
    # per row of HBM traffic, no (TR, 128) lane-padded VMEM buffer.
    rr = jnp.arange(nt * tr, dtype=jnp.int32)
    valid = ((rr % Wp) < Wo) & (((rr // Wp) % Hp) < Ho) & (rr < rp)
    mask = valid.astype(jnp.float32).reshape(nt, 1, tr)

    cparams = pltpu.CompilerParams(
        dimension_semantics=("parallel",),
        vmem_limit_bytes=32 * 1024 * 1024)
    scratch = [pltpu.VMEM((tr + halo, Cin), jnp.bfloat16),   # tile + halo window
               pltpu.VMEM((tr, ktot), jnp.bfloat16)]         # im2col block
    x_spec = pl.BlockSpec((tr, Cin), lambda i: (i, 0))
    halo_spec = pl.BlockSpec((halo, Cin), lambda i: ((i + 1) * steps, 0))
    w_spec = pl.BlockSpec((ktot, cpad), lambda i: (0, 0))

    conv_flops = 2 * nt * tr * ktot * cpad
    in_bytes = rows_pad * Cin * 2 + nt * halo * Cin * 2 + ktot * cpad * 2

    # ---- pass 1: per-tile channel sum / sum-of-squares (no conv intermediate) ----
    stats = pl.pallas_call(
        functools.partial(_stats_kernel, tap_offsets=tap_offsets),
        grid=(nt,),
        in_specs=[x_spec, halo_spec, w_spec,
                  pl.BlockSpec((1, 1, tr), lambda i: (i, 0, 0))],
        out_specs=pl.BlockSpec((8, cpad), lambda i: (i, 0)),
        out_shape=jax.ShapeDtypeStruct((nt * 8, cpad), jnp.float32),
        scratch_shapes=scratch,
        compiler_params=cparams,
        cost_estimate=pl.CostEstimate(
            flops=conv_flops + 4 * nt * tr * cpad,
            transcendentals=0,
            bytes_accessed=int(in_bytes + nt * tr * 4 + nt * 8 * cpad * 4)),
    )(xf, xf, wmat, mask)

    # ---- per-channel BN constants (tiny, plain JAX) ----
    count = float(N * Ho * Wo)
    stats = stats.reshape(nt, 8, cpad)
    ch_sum = jnp.sum(stats[:, 0, :], axis=0)
    ch_sq = jnp.sum(stats[:, 1, :], axis=0)
    mean = ch_sum / count
    var = jnp.maximum(ch_sq / count - mean * mean, 0.0)  # biased var (train-mode BN)
    inv_std = jax.lax.rsqrt(var + eps)
    gamma_p = jnp.pad(gamma.astype(jnp.float32), (0, cpad - Cout))
    beta_p = jnp.pad(beta.astype(jnp.float32), (0, cpad - Cout))
    scale = (gamma_p * inv_std).reshape(1, cpad)
    shift = (beta_p - mean * gamma_p * inv_std).reshape(1, cpad)

    # ---- pass 2: recompute conv tile, fused affine + ReLU, single HBM write ----
    out_flat = pl.pallas_call(
        functools.partial(_conv_bn_relu_kernel, tap_offsets=tap_offsets),
        grid=(nt,),
        in_specs=[x_spec, halo_spec, w_spec,
                  pl.BlockSpec((1, cpad), lambda i: (0, 0)),
                  pl.BlockSpec((1, cpad), lambda i: (0, 0))],
        out_specs=pl.BlockSpec((tr, cpad), lambda i: (i, 0)),
        out_shape=jax.ShapeDtypeStruct((nt * tr, cpad), jnp.float32),
        scratch_shapes=scratch,
        compiler_params=cparams,
        cost_estimate=pl.CostEstimate(
            flops=conv_flops + 2 * nt * tr * cpad,
            transcendentals=0,
            bytes_accessed=int(in_bytes + 2 * cpad * 4 + nt * tr * cpad * 4)),
    )(xf, xf, wmat, scale, shift)

    # TODO(synk): BatchNorm2d running_mean / running_var buffer updates (a
    # training-time side effect) are not produced; the forward output does not
    # depend on them in train mode.
    out = out_flat[:rp].reshape(N, Hp, Wp, cpad)[:, :Ho, :Wo, :Cout]
    return jnp.transpose(out, (0, 3, 1, 2))              # back to NCHW


conv_block_forward = jax.jit(
    _conv_block_forward, static_argnames=("padding", "eps", "tile_rows"))


if __name__ == "__main__":
    # Small deterministic example consistent with ConvBlock(in=4, out=8).
    N, Cin, H, W = 2, 4, 16, 16
    Cout, KH, KW = 8, 3, 3

    key = jax.random.PRNGKey(0)
    kx, kw_, kb = jax.random.split(key, 3)

    x = jax.random.normal(kx, (N, Cin, H, W), jnp.float32)

    # PyTorch-style init (uniform, bound = 1/sqrt(fan_in)); BN weight=1, bias=0.
    fan_in = Cin * KH * KW
    bound = 1.0 / (fan_in ** 0.5)
    w = jax.random.uniform(kw_, (Cout, Cin, KH, KW), jnp.float32, -bound, bound)
    b = jax.random.uniform(kb, (Cout,), jnp.float32, -bound, bound)
    gamma = jnp.ones((Cout,), jnp.float32)
    beta = jnp.zeros((Cout,), jnp.float32)

    out = jax.block_until_ready(conv_block_forward(x, w, b, gamma, beta))

    # Plain-JAX f32 reference of the same math (conv + bias -> train-mode BN -> ReLU).
    conv_ref = jax.lax.conv_general_dilated(
        x, w, window_strides=(1, 1), padding=((1, 1), (1, 1)),
        dimension_numbers=("NCHW", "OIHW", "NCHW")) + b.reshape(1, Cout, 1, 1)
    mean = conv_ref.mean(axis=(0, 2, 3), keepdims=True)
    var = conv_ref.var(axis=(0, 2, 3), keepdims=True)
    ref = jnp.maximum(
        (conv_ref - mean) * jax.lax.rsqrt(var + 1e-5) * gamma.reshape(1, Cout, 1, 1)
        + beta.reshape(1, Cout, 1, 1),
        0.0)

    assert out.shape == (N, Cout, H, W), out.shape
    max_err = float(jnp.max(jnp.abs(out - ref)))
    # bf16 MXU operands vs f32 reference conv: allow a few e-3 of slack on
    # unit-scale (post-BN) outputs.
    assert max_err < 3e-2, f"mismatch vs reference: {max_err}"
    print("KERNEL_OK")
</pallas_src>

<mosaic_0001>
module attributes {stable_mosaic.version = 11 : i64} {
  func.func @_stats_kernel(%arg0: i32, %arg1: memref<360x4xbf16, #tpu.memory_space<vmem>>, %arg2: memref<40x4xbf16, #tpu.memory_space<vmem>>, %arg3: memref<36x128xbf16, #tpu.memory_space<vmem>>, %arg4: memref<1x1x360xf32, #tpu.memory_space<vmem>>, %arg5: memref<8x128xf32, #tpu.memory_space<vmem>>, %arg6: memref<400x4xbf16, #tpu.memory_space<vmem>>, %arg7: memref<360x36xbf16, #tpu.memory_space<vmem>>) attributes {dimension_semantics = [#tpu.dimension_semantics<parallel>], iteration_bounds = array<i64: 2>, scalar_prefetch = 0 : i64, scratch_operands = 2 : i64, tpu.core_type = #tpu.core_type<tc>, window_params = [{transform_indices = @transform_0, window_bounds = array<i64: 360, 4>}, {transform_indices = @transform_1, window_bounds = array<i64: 40, 4>}, {pipeline_mode = #tpu.pipeline_mode<synchronous>, transform_indices = @transform_2, window_bounds = array<i64: 36, 128>}, {transform_indices = @transform_3, window_bounds = array<i64: 1, 1, 360>}, {transform_indices = @transform_4, window_bounds = array<i64: 8, 128>}]} {
    %c0 = arith.constant 0 : index
    %c0_0 = arith.constant 0 : index
    %0 = vector.load %arg1[%c0, %c0_0] : memref<360x4xbf16, #tpu.memory_space<vmem>>, vector<360x4xbf16>
    %c0_1 = arith.constant 0 : index
    %c0_2 = arith.constant 0 : index
    %1 = vector.load %arg6[%c0_1, %c0_2] : memref<400x4xbf16, #tpu.memory_space<vmem>>, vector<360x4xbf16>
    tpu.vector_store %arg6[%c0_1, %c0_2], %0 {strides = array<i32>} : memref<400x4xbf16, #tpu.memory_space<vmem>>, vector<360x4xbf16>,
    %c0_3 = arith.constant 0 : index
    %c0_4 = arith.constant 0 : index
    %2 = vector.load %arg2[%c0_3, %c0_4] : memref<40x4xbf16, #tpu.memory_space<vmem>>, vector<40x4xbf16>
    %c360 = arith.constant 360 : index
    %c0_5 = arith.constant 0 : index
    %3 = vector.load %arg6[%c360, %c0_5] : memref<400x4xbf16, #tpu.memory_space<vmem>>, vector<40x4xbf16>
    tpu.vector_store %arg6[%c360, %c0_5], %2 {strides = array<i32>} : memref<400x4xbf16, #tpu.memory_space<vmem>>, vector<40x4xbf16>,
    %c0_6 = arith.constant 0 : index
    %c0_7 = arith.constant 0 : index
    %4 = vector.load %arg6[%c0_6, %c0_7] : memref<400x4xbf16, #tpu.memory_space<vmem>>, vector<360x4xbf16>
    %c0_8 = arith.constant 0 : index
    %c0_9 = arith.constant 0 : index
    %5 = vector.load %arg7[%c0_8, %c0_9] : memref<360x36xbf16, #tpu.memory_space<vmem>>, vector<360x4xbf16>
    tpu.vector_store %arg7[%c0_8, %c0_9], %4 {strides = array<i32>} : memref<360x36xbf16, #tpu.memory_space<vmem>>, vector<360x4xbf16>,
    %c1 = arith.constant 1 : index
    %c0_10 = arith.constant 0 : index
    %6 = vector.load %arg6[%c1, %c0_10] : memref<400x4xbf16, #tpu.memory_space<vmem>>, vector<360x4xbf16>
    %c0_11 = arith.constant 0 : index
    %c4 = arith.constant 4 : index
    %7 = vector.load %arg7[%c0_11, %c4] : memref<360x36xbf16, #tpu.memory_space<vmem>>, vector<360x4xbf16>
    tpu.vector_store %arg7[%c0_11, %c4], %6 {strides = array<i32>} : memref<360x36xbf16, #tpu.memory_space<vmem>>, vector<360x4xbf16>,
    %c2 = arith.constant 2 : index
    %c0_12 = arith.constant 0 : index
    %8 = vector.load %arg6[%c2, %c0_12] : memref<400x4xbf16, #tpu.memory_space<vmem>>, vector<360x4xbf16>
    %c0_13 = arith.constant 0 : index
    %c8 = arith.constant 8 : index
    %9 = vector.load %arg7[%c0_13, %c8] : memref<360x36xbf16, #tpu.memory_space<vmem>>, vector<360x4xbf16>
    tpu.vector_store %arg7[%c0_13, %c8], %8 {strides = array<i32>} : memref<360x36xbf16, #tpu.memory_space<vmem>>, vector<360x4xbf16>,
    %c18 = arith.constant 18 : index
    %c0_14 = arith.constant 0 : index
    %10 = vector.load %arg6[%c18, %c0_14] : memref<400x4xbf16, #tpu.memory_space<vmem>>, vector<360x4xbf16>
    %c0_15 = arith.constant 0 : index
    %c12 = arith.constant 12 : index
    %11 = vector.load %arg7[%c0_15, %c12] : memref<360x36xbf16, #tpu.memory_space<vmem>>, vector<360x4xbf16>
    tpu.vector_store %arg7[%c0_15, %c12], %10 {strides = array<i32>} : memref<360x36xbf16, #tpu.memory_space<vmem>>, vector<360x4xbf16>,
    %c19 = arith.constant 19 : index
    %c0_16 = arith.constant 0 : index
    %12 = vector.load %arg6[%c19, %c0_16] : memref<400x4xbf16, #tpu.memory_space<vmem>>, vector<360x4xbf16>
    %c0_17 = arith.constant 0 : index
    %c16 = arith.constant 16 : index
    %13 = vector.load %arg7[%c0_17, %c16] : memref<360x36xbf16, #tpu.memory_space<vmem>>, vector<360x4xbf16>
    tpu.vector_store %arg7[%c0_17, %c16], %12 {strides = array<i32>} : memref<360x36xbf16, #tpu.memory_space<vmem>>, vector<360x4xbf16>,
    %c20 = arith.constant 20 : index
    %c0_18 = arith.constant 0 : index
    %14 = vector.load %arg6[%c20, %c0_18] : memref<400x4xbf16, #tpu.memory_space<vmem>>, vector<360x4xbf16>
    %c0_19 = arith.constant 0 : index
    %c20_20 = arith.constant 20 : index
    %15 = vector.load %arg7[%c0_19, %c20_20] : memref<360x36xbf16, #tpu.memory_space<vmem>>, vector<360x4xbf16>
    tpu.vector_store %arg7[%c0_19, %c20_20], %14 {strides = array<i32>} : memref<360x36xbf16, #tpu.memory_space<vmem>>, vector<360x4xbf16>,
    %c36 = arith.constant 36 : index
    %c0_21 = arith.constant 0 : index
    %16 = vector.load %arg6[%c36, %c0_21] : memref<400x4xbf16, #tpu.memory_space<vmem>>, vector<360x4xbf16>
    %c0_22 = arith.constant 0 : index
    %c24 = arith.constant 24 : index
    %17 = vector.load %arg7[%c0_22, %c24] : memref<360x36xbf16, #tpu.memory_space<vmem>>, vector<360x4xbf16>
    tpu.vector_store %arg7[%c0_22, %c24], %16 {strides = array<i32>} : memref<360x36xbf16, #tpu.memory_space<vmem>>, vector<360x4xbf16>,
    %c37 = arith.constant 37 : index
    %c0_23 = arith.constant 0 : index
    %18 = vector.load %arg6[%c37, %c0_23] : memref<400x4xbf16, #tpu.memory_space<vmem>>, vector<360x4xbf16>
    %c0_24 = arith.constant 0 : index
    %c28 = arith.constant 28 : index
    %19 = vector.load %arg7[%c0_24, %c28] : memref<360x36xbf16, #tpu.memory_space<vmem>>, vector<360x4xbf16>
    tpu.vector_store %arg7[%c0_24, %c28], %18 {strides = array<i32>} : memref<360x36xbf16, #tpu.memory_space<vmem>>, vector<360x4xbf16>,
    %c38 = arith.constant 38 : index
    %c0_25 = arith.constant 0 : index
    %20 = vector.load %arg6[%c38, %c0_25] : memref<400x4xbf16, #tpu.memory_space<vmem>>, vector<360x4xbf16>
    %c0_26 = arith.constant 0 : index
    %c32 = arith.constant 32 : index
    %21 = vector.load %arg7[%c0_26, %c32] : memref<360x36xbf16, #tpu.memory_space<vmem>>, vector<360x4xbf16>
    tpu.vector_store %arg7[%c0_26, %c32], %20 {strides = array<i32>} : memref<360x36xbf16, #tpu.memory_space<vmem>>, vector<360x4xbf16>,
    %c0_27 = arith.constant 0 : index
    %c0_28 = arith.constant 0 : index
    %22 = vector.load %arg7[%c0_27, %c0_28] : memref<360x36xbf16, #tpu.memory_space<vmem>>, vector<360x36xbf16>
    %c0_29 = arith.constant 0 : index
    %c0_30 = arith.constant 0 : index
    %23 = vector.load %arg3[%c0_29, %c0_30] : memref<36x128xbf16, #tpu.memory_space<vmem>>, vector<36x128xbf16>
    %cst = arith.constant dense<0.000000e+00> : vector<360x128xf32>
    %24 = tpu.matmul %22, %23, %cst {dimension_numbers = #tpu.dot_dimension_numbers<[1], [0], [0], [1], [0, 0, 1, 1], [], []>} : vector<360x36xbf16>, vector<36x128xbf16>, vector<360x128xf32> -> vector<360x128xf32>
    %c0_31 = arith.constant 0 : index
    %c0_32 = arith.constant 0 : index
    %c0_33 = arith.constant 0 : index
    %25 = vector.load %arg4[%c0_31, %c0_32, %c0_33] : memref<1x1x360xf32, #tpu.memory_space<vmem>>, vector<1x1x360xf32>
    %26 = vector.shape_cast %25 : vector<1x1x360xf32> to vector<1x360xf32>
    %cst_34 = arith.constant dense<0.000000e+00> : vector<1x128xf32>
    %27 = tpu.matmul %26, %24, %cst_34 {dimension_numbers = #tpu.dot_dimension_numbers<[1], [0], [0], [1], [0, 0, 1, 1], [], []>} : vector<1x360xf32>, vector<360x128xf32>, vector<1x128xf32> -> vector<1x128xf32>
    %28 = arith.mulf %24, %24 : vector<360x128xf32>
    %cst_35 = arith.constant dense<0.000000e+00> : vector<1x128xf32>
    %29 = tpu.matmul %26, %28, %cst_35 {dimension_numbers = #tpu.dot_dimension_numbers<[1], [0], [0], [1], [0, 0, 1, 1], [], []>} : vector<1x360xf32>, vector<360x128xf32>, vector<1x128xf32> -> vector<1x128xf32>
    %30 = tpu.iota {dimensions = array<i32: 0>} : vector<8x1xi32>
    %c0_i32 = arith.constant 0 : i32
    %31 = vector.broadcast %c0_i32 : i32 to vector<8x1xi32>
    %32 = arith.cmpi eq, %30, %31 : vector<8x1xi32>
    %cst_36 = arith.constant 0.000000e+00 : f32
    %33 = vector.shape_cast %32 : vector<8x1xi1> to vector<8x1xi1>
    %34 = vector.broadcast %33 : vector<8x1xi1> to vector<8x128xi1>
    %35 = vector.shape_cast %27 : vector<1x128xf32> to vector<1x128xf32>
    %36 = vector.broadcast %35 : vector<1x128xf32> to vector<8x128xf32>
    %37 = vector.broadcast %cst_36 : f32 to vector<8x128xf32>
    %38 = arith.select %34, %36, %37 : vector<8x128xi1>, vector<8x128xf32>
    %c1_i32 = arith.constant 1 : i32
    %39 = vector.broadcast %c1_i32 : i32 to vector<8x1xi32>
    %40 = arith.cmpi eq, %30, %39 : vector<8x1xi32>
    %cst_37 = arith.constant 0.000000e+00 : f32
    %41 = vector.shape_cast %40 : vector<8x1xi1> to vector<8x1xi1>
    %42 = vector.broadcast %41 : vector<8x1xi1> to vector<8x128xi1>
    %43 = vector.shape_cast %29 : vector<1x128xf32> to vector<1x128xf32>
    %44 = vector.broadcast %43 : vector<1x128xf32> to vector<8x128xf32>
    %45 = vector.broadcast %cst_37 : f32 to vector<8x128xf32>
    %46 = arith.select %42, %44, %45 : vector<8x128xi1>, vector<8x128xf32>
    %47 = arith.addf %38, %46 : vector<8x128xf32>
    %c0_38 = arith.constant 0 : index
    %c0_39 = arith.constant 0 : index
    %48 = vector.load %arg5[%c0_38, %c0_39] : memref<8x128xf32, #tpu.memory_space<vmem>>, vector<8x128xf32>
    tpu.vector_store %arg5[%c0_38, %c0_39], %47 {strides = array<i32>} : memref<8x128xf32, #tpu.memory_space<vmem>>, vector<8x128xf32>,
    return
  }
  func.func @transform_0(%arg0: i32) -> (i32, i32) {
    %c0_i32 = arith.constant 0 : i32
    %c0_i32_0 = arith.constant 0 : i32
    return %arg0, %c0_i32 : i32, i32
  }
  func.func @transform_1(%arg0: i32) -> (i32, i32) {
    %c1_i32 = arith.constant 1 : i32
    %0 = arith.addi %arg0, %c1_i32 : i32
    %c9_i32 = arith.constant 9 : i32
    %1 = arith.muli %0, %c9_i32 : i32
    %c0_i32 = arith.constant 0 : i32
    %c0_i32_0 = arith.constant 0 : i32
    return %1, %c0_i32 : i32, i32
  }
  func.func @transform_2(%arg0: i32) -> (i32, i32) {
    %c0_i32 = arith.constant 0 : i32
    %c0_i32_0 = arith.constant 0 : i32
    %c0_i32_1 = arith.constant 0 : i32
    return %c0_i32, %c0_i32_0 : i32, i32
  }
  func.func @transform_3(%arg0: i32) -> (i32, i32, i32) {
    %c0_i32 = arith.constant 0 : i32
    %c0_i32_0 = arith.constant 0 : i32
    %c0_i32_1 = arith.constant 0 : i32
    return %arg0, %c0_i32, %c0_i32_0 : i32, i32, i32
  }
  func.func @transform_4(%arg0: i32) -> (i32, i32) {
    %c0_i32 = arith.constant 0 : i32
    %c0_i32_0 = arith.constant 0 : i32
    return %arg0, %c0_i32 : i32, i32
  }
}

module attributes {stable_mosaic.version = 11 : i64} {
  func.func @_conv_bn_relu_kernel(%arg0: i32, %arg1: memref<360x4xbf16, #tpu.memory_space<vmem>>, %arg2: memref<40x4xbf16, #tpu.memory_space<vmem>>, %arg3: memref<36x128xbf16, #tpu.memory_space<vmem>>, %arg4: memref<1x128xf32, #tpu.memory_space<vmem>>, %arg5: memref<1x128xf32, #tpu.memory_space<vmem>>, %arg6: memref<360x128xf32, #tpu.memory_space<vmem>>, %arg7: memref<400x4xbf16, #tpu.memory_space<vmem>>, %arg8: memref<360x36xbf16, #tpu.memory_space<vmem>>) attributes {dimension_semantics = [#tpu.dimension_semantics<parallel>], iteration_bounds = array<i64: 2>, scalar_prefetch = 0 : i64, scratch_operands = 2 : i64, tpu.core_type = #tpu.core_type<tc>, window_params = [{transform_indices = @transform_0, window_bounds = array<i64: 360, 4>}, {transform_indices = @transform_1, window_bounds = array<i64: 40, 4>}, {pipeline_mode = #tpu.pipeline_mode<synchronous>, transform_indices = @transform_2, window_bounds = array<i64: 36, 128>}, {pipeline_mode = #tpu.pipeline_mode<synchronous>, transform_indices = @transform_3, window_bounds = array<i64: 1, 128>}, {pipeline_mode = #tpu.pipeline_mode<synchronous>, transform_indices = @transform_4, window_bounds = array<i64: 1, 128>}, {transform_indices = @transform_5, window_bounds = array<i64: 360, 128>}]} {
    %c0 = arith.constant 0 : index
    %c0_0 = arith.constant 0 : index
    %0 = vector.load %arg1[%c0, %c0_0] : memref<360x4xbf16, #tpu.memory_space<vmem>>, vector<360x4xbf16>
    %c0_1 = arith.constant 0 : index
    %c0_2 = arith.constant 0 : index
    %1 = vector.load %arg7[%c0_1, %c0_2] : memref<400x4xbf16, #tpu.memory_space<vmem>>, vector<360x4xbf16>
    tpu.vector_store %arg7[%c0_1, %c0_2], %0 {strides = array<i32>} : memref<400x4xbf16, #tpu.memory_space<vmem>>, vector<360x4xbf16>,
    %c0_3 = arith.constant 0 : index
    %c0_4 = arith.constant 0 : index
    %2 = vector.load %arg2[%c0_3, %c0_4] : memref<40x4xbf16, #tpu.memory_space<vmem>>, vector<40x4xbf16>
    %c360 = arith.constant 360 : index
    %c0_5 = arith.constant 0 : index
    %3 = vector.load %arg7[%c360, %c0_5] : memref<400x4xbf16, #tpu.memory_space<vmem>>, vector<40x4xbf16>
    tpu.vector_store %arg7[%c360, %c0_5], %2 {strides = array<i32>} : memref<400x4xbf16, #tpu.memory_space<vmem>>, vector<40x4xbf16>,
    %c0_6 = arith.constant 0 : index
    %c0_7 = arith.constant 0 : index
    %4 = vector.load %arg7[%c0_6, %c0_7] : memref<400x4xbf16, #tpu.memory_space<vmem>>, vector<360x4xbf16>
    %c0_8 = arith.constant 0 : index
    %c0_9 = arith.constant 0 : index
    %5 = vector.load %arg8[%c0_8, %c0_9] : memref<360x36xbf16, #tpu.memory_space<vmem>>, vector<360x4xbf16>
    tpu.vector_store %arg8[%c0_8, %c0_9], %4 {strides = array<i32>} : memref<360x36xbf16, #tpu.memory_space<vmem>>, vector<360x4xbf16>,
    %c1 = arith.constant 1 : index
    %c0_10 = arith.constant 0 : index
    %6 = vector.load %arg7[%c1, %c0_10] : memref<400x4xbf16, #tpu.memory_space<vmem>>, vector<360x4xbf16>
    %c0_11 = arith.constant 0 : index
    %c4 = arith.constant 4 : index
    %7 = vector.load %arg8[%c0_11, %c4] : memref<360x36xbf16, #tpu.memory_space<vmem>>, vector<360x4xbf16>
    tpu.vector_store %arg8[%c0_11, %c4], %6 {strides = array<i32>} : memref<360x36xbf16, #tpu.memory_space<vmem>>, vector<360x4xbf16>,
    %c2 = arith.constant 2 : index
    %c0_12 = arith.constant 0 : index
    %8 = vector.load %arg7[%c2, %c0_12] : memref<400x4xbf16, #tpu.memory_space<vmem>>, vector<360x4xbf16>
    %c0_13 = arith.constant 0 : index
    %c8 = arith.constant 8 : index
    %9 = vector.load %arg8[%c0_13, %c8] : memref<360x36xbf16, #tpu.memory_space<vmem>>, vector<360x4xbf16>
    tpu.vector_store %arg8[%c0_13, %c8], %8 {strides = array<i32>} : memref<360x36xbf16, #tpu.memory_space<vmem>>, vector<360x4xbf16>,
    %c18 = arith.constant 18 : index
    %c0_14 = arith.constant 0 : index
    %10 = vector.load %arg7[%c18, %c0_14] : memref<400x4xbf16, #tpu.memory_space<vmem>>, vector<360x4xbf16>
    %c0_15 = arith.constant 0 : index
    %c12 = arith.constant 12 : index
    %11 = vector.load %arg8[%c0_15, %c12] : memref<360x36xbf16, #tpu.memory_space<vmem>>, vector<360x4xbf16>
    tpu.vector_store %arg8[%c0_15, %c12], %10 {strides = array<i32>} : memref<360x36xbf16, #tpu.memory_space<vmem>>, vector<360x4xbf16>,
    %c19 = arith.constant 19 : index
    %c0_16 = arith.constant 0 : index
    %12 = vector.load %arg7[%c19, %c0_16] : memref<400x4xbf16, #tpu.memory_space<vmem>>, vector<360x4xbf16>
    %c0_17 = arith.constant 0 : index
    %c16 = arith.constant 16 : index
    %13 = vector.load %arg8[%c0_17, %c16] : memref<360x36xbf16, #tpu.memory_space<vmem>>, vector<360x4xbf16>
    tpu.vector_store %arg8[%c0_17, %c16], %12 {strides = array<i32>} : memref<360x36xbf16, #tpu.memory_space<vmem>>, vector<360x4xbf16>,
    %c20 = arith.constant 20 : index
    %c0_18 = arith.constant 0 : index
    %14 = vector.load %arg7[%c20, %c0_18] : memref<400x4xbf16, #tpu.memory_space<vmem>>, vector<360x4xbf16>
    %c0_19 = arith.constant 0 : index
    %c20_20 = arith.constant 20 : index
    %15 = vector.load %arg8[%c0_19, %c20_20] : memref<360x36xbf16, #tpu.memory_space<vmem>>, vector<360x4xbf16>
    tpu.vector_store %arg8[%c0_19, %c20_20], %14 {strides = array<i32>} : memref<360x36xbf16, #tpu.memory_space<vmem>>, vector<360x4xbf16>,
    %c36 = arith.constant 36 : index
    %c0_21 = arith.constant 0 : index
    %16 = vector.load %arg7[%c36, %c0_21] : memref<400x4xbf16, #tpu.memory_space<vmem>>, vector<360x4xbf16>
    %c0_22 = arith.constant 0 : index
    %c24 = arith.constant 24 : index
    %17 = vector.load %arg8[%c0_22, %c24] : memref<360x36xbf16, #tpu.memory_space<vmem>>, vector<360x4xbf16>
    tpu.vector_store %arg8[%c0_22, %c24], %16 {strides = array<i32>} : memref<360x36xbf16, #tpu.memory_space<vmem>>, vector<360x4xbf16>,
    %c37 = arith.constant 37 : index
    %c0_23 = arith.constant 0 : index
    %18 = vector.load %arg7[%c37, %c0_23] : memref<400x4xbf16, #tpu.memory_space<vmem>>, vector<360x4xbf16>
    %c0_24 = arith.constant 0 : index
    %c28 = arith.constant 28 : index
    %19 = vector.load %arg8[%c0_24, %c28] : memref<360x36xbf16, #tpu.memory_space<vmem>>, vector<360x4xbf16>
    tpu.vector_store %arg8[%c0_24, %c28], %18 {strides = array<i32>} : memref<360x36xbf16, #tpu.memory_space<vmem>>, vector<360x4xbf16>,
    %c38 = arith.constant 38 : index
    %c0_25 = arith.constant 0 : index
    %20 = vector.load %arg7[%c38, %c0_25] : memref<400x4xbf16, #tpu.memory_space<vmem>>, vector<360x4xbf16>
    %c0_26 = arith.constant 0 : index
    %c32 = arith.constant 32 : index
    %21 = vector.load %arg8[%c0_26, %c32] : memref<360x36xbf16, #tpu.memory_space<vmem>>, vector<360x4xbf16>
    tpu.vector_store %arg8[%c0_26, %c32], %20 {strides = array<i32>} : memref<360x36xbf16, #tpu.memory_space<vmem>>, vector<360x4xbf16>,
    %c0_27 = arith.constant 0 : index
    %c0_28 = arith.constant 0 : index
    %22 = vector.load %arg8[%c0_27, %c0_28] : memref<360x36xbf16, #tpu.memory_space<vmem>>, vector<360x36xbf16>
    %c0_29 = arith.constant 0 : index
    %c0_30 = arith.constant 0 : index
    %23 = vector.load %arg3[%c0_29, %c0_30] : memref<36x128xbf16, #tpu.memory_space<vmem>>, vector<36x128xbf16>
    %cst = arith.constant dense<0.000000e+00> : vector<360x128xf32>
    %24 = tpu.matmul %22, %23, %cst {dimension_numbers = #tpu.dot_dimension_numbers<[1], [0], [0], [1], [0, 0, 1, 1], [], []>} : vector<360x36xbf16>, vector<36x128xbf16>, vector<360x128xf32> -> vector<360x128xf32>
    %c0_31 = arith.constant 0 : index
    %c0_32 = arith.constant 0 : index
    %25 = vector.load %arg4[%c0_31, %c0_32] : memref<1x128xf32, #tpu.memory_space<vmem>>, vector<1x128xf32>
    %26 = vector.broadcast %25 : vector<1x128xf32> to vector<360x128xf32>
    %27 = arith.mulf %24, %26 : vector<360x128xf32>
    %c0_33 = arith.constant 0 : index
    %c0_34 = arith.constant 0 : index
    %28 = vector.load %arg5[%c0_33, %c0_34] : memref<1x128xf32, #tpu.memory_space<vmem>>, vector<1x128xf32>
    %29 = vector.broadcast %28 : vector<1x128xf32> to vector<360x128xf32>
    %30 = arith.addf %27, %29 : vector<360x128xf32>
    %cst_35 = arith.constant 0.000000e+00 : f32
    %31 = vector.broadcast %cst_35 : f32 to vector<360x128xf32>
    %32 = arith.maximumf %30, %31 : vector<360x128xf32>
    %c0_36 = arith.constant 0 : index
    %c0_37 = arith.constant 0 : index
    %33 = vector.load %arg6[%c0_36, %c0_37] : memref<360x128xf32, #tpu.memory_space<vmem>>, vector<360x128xf32>
    tpu.vector_store %arg6[%c0_36, %c0_37], %32 {strides = array<i32>} : memref<360x128xf32, #tpu.memory_space<vmem>>, vector<360x128xf32>,
    return
  }
  func.func @transform_0(%arg0: i32) -> (i32, i32) {
    %c0_i32 = arith.constant 0 : i32
    %c0_i32_0 = arith.constant 0 : i32
    return %arg0, %c0_i32 : i32, i32
  }
  func.func @transform_1(%arg0: i32) -> (i32, i32) {
    %c1_i32 = arith.constant 1 : i32
    %0 = arith.addi %arg0, %c1_i32 : i32
    %c9_i32 = arith.constant 9 : i32
    %1 = arith.muli %0, %c9_i32 : i32
    %c0_i32 = arith.constant 0 : i32
    %c0_i32_0 = arith.constant 0 : i32
    return %1, %c0_i32 : i32, i32
  }
  func.func @transform_2(%arg0: i32) -> (i32, i32) {
    %c0_i32 = arith.constant 0 : i32
    %c0_i32_0 = arith.constant 0 : i32
    %c0_i32_1 = arith.constant 0 : i32
    return %c0_i32, %c0_i32_0 : i32, i32
  }
  func.func @transform_3(%arg0: i32) -> (i32, i32) {
    %c0_i32 = arith.constant 0 : i32
    %c0_i32_0 = arith.constant 0 : i32
    %c0_i32_1 = arith.constant 0 : i32
    return %c0_i32, %c0_i32_0 : i32, i32
  }
  func.func @transform_4(%arg0: i32) -> (i32, i32) {
    %c0_i32 = arith.constant 0 : i32
    %c0_i32_0 = arith.constant 0 : i32
    %c0_i32_1 = arith.constant 0 : i32
    return %c0_i32, %c0_i32_0 : i32, i32
  }
  func.func @transform_5(%arg0: i32) -> (i32, i32) {
    %c0_i32 = arith.constant 0 : i32
    %c0_i32_0 = arith.constant 0 : i32
    return %arg0, %c0_i32 : i32, i32
  }
}

</mosaic_0001>

<llo_original>
// kernel: _conv_block_forward.3
$region0: #{_conv_block_forward.3}
  #allocation0 [shape = 'u32[]', space=smem, size = 0x4, offset = 0x4, fixed_abs, tag = 'smem constant byte address 0x4 - core index']
  #allocation1 [shape = 'u32[144,128]{1,0:T(1,128)}', space=vmem, size = 0x12000, scoped, tag = 'internal scratch']
  #allocation2 [shape = 'bf16[400,4]{1,0:T(8,128)(2,1)}', space=vmem, size = 0x19000, scoped, tag = 'scratch operand']
  #allocation3 [shape = 'bf16[360,36]{1,0:T(8,128)(2,1)}', space=vmem, size = 0x16800, scoped, tag = 'scratch operand']
  %s0 = inlined_call_operand.vmem [shape: bf16[760,4], index: 0, kind: input, shape index: {}, may-alias: {0,1}]
  %s1 = inlined_call_operand.vmem [shape: bf16[760,4], index: 1, kind: input, shape index: {}, may-alias: {0,1}]
  %s2 = inlined_call_operand.vmem [shape: bf16[36,128], index: 2, kind: input, shape index: {}]
  %s3 = inlined_call_operand.vmem [shape: f32[1,128], index: 3, kind: input, shape index: {}]
  %s4 = inlined_call_operand.vmem [shape: f32[1,128], index: 4, kind: input, shape index: {}]
  %s5 = inlined_call_operand.vmem [shape: f32[720,128], index: 5, kind: output, shape index: {}]
  %s6 = sld [smem:[#allocation0]]
  $region53: #{_conv_block_forward.3} parent=0
    _
  %s8 = ssub.s32 1, %s6
  %s9 = scalar_select 0, %s8, %s6
  loop: start=0, step=1, limit=4
  $region2: #{_conv_block_forward.3} parent=0 // loop_pre_header
    _
  $region3: #{_conv_block_forward.3} parent=0 // loop_header
    %s11 = sphi 0, %s15
    %p12 = scmp.ge.s32.totalorder %s11, 4
    %s21 = sphi 0, %s23
    %s24 = sphi 0, %s21
    %s25 = sphi 0, %s24
    %s41 = sphi 0, %s25
    %s51 = sphi 0, %s53
    %s54 = sphi 0, %s51
    %s55 = sphi 0, %s54
    %s71 = sphi 0, %s55
    %s75 = sphi 0, %s75
    %s77 = sphi 0, %s75
    %s78 = sphi 0, %s77
    %s92 = sphi 0, %s78
    %s96 = sphi 0, %s96
    %s98 = sphi 0, %s96
    %s99 = sphi 0, %s98
    %s113 = sphi 0, %s99
    %s117 = sphi 0, %s117
    %s119 = sphi 0, %s117
    %s120 = sphi 0, %s119
    %s134 = sphi 0, %s120
    %s140 = sphi 0, %s142
    %s143 = sphi 0, %s140
    %s144 = sphi 0, %s143
    %s160 = sphi 0, %s144
  $region4: #{_conv_block_forward.3} parent=0 // loop_header_branch
    %14 = sbr.rel (%p12) target = $region8
  $region5: #{_conv_block_forward.3} parent=0 // loop_body
    %s16 = ssub.s32 %s11, 1
    %s17 = ssub.s32 %s11, 2
    %s18 = sadd.s32 %s11, 1
    %s19 = ssub.s32 %s11, %s18
    %p20 = scmp.eq.s32.totalorder %s19, 0
    %s22 = sadd.s32 %s21, 1
    %s23 = scalar_select %p20, %s21, %s22
    %p26 = pneg %p20
    %p27 = scmp.eq.s32.totalorder %s11, 1
    %p28 = por %p26, %p27
    %p29 = scmp.ne.s32.totalorder %s21, %s24
    %p30 = scmp.eq.s32.totalorder %s11, 0
    %p31 = por %p29, %p30
    %p32 = scmp.ne.s32.totalorder %s21, %s24
    %p33 = scmp.eq.s32.totalorder %s16, 1
    %p34 = por %p32, %p33
    %p35 = scmp.ne.s32.totalorder %s24, %s25
    %p36 = scmp.eq.s32.totalorder %s16, 0
    %p37 = por %p35, %p36
    %p38 = scmp.ne.s32.totalorder %s24, %s25
    %p39 = scmp.eq.s32.totalorder %s17, 1
    %p40 = por %p38, %p39
    %p42 = scmp.ne.s32.totalorder %s25, %s41
    %p43 = scmp.eq.s32.totalorder %s17, 0
    %p44 = por %p42, %p43
    %s45 = sadd.s32 %s11, 1
    %s46 = smul.u32 %s45, 9
    %s47 = sadd.s32 %s18, 1
    %s48 = smul.u32 %s47, 9
    %s49 = ssub.s32 %s46, %s48
    %p50 = scmp.eq.s32.totalorder %s49, 0
    %s52 = sadd.s32 %s51, 1
    %s53 = scalar_select %p50, %s51, %s52
    %p56 = pneg %p50
    %p57 = scmp.eq.s32.totalorder %s11, 1
    %p58 = por %p56, %p57
    %p59 = scmp.ne.s32.totalorder %s51, %s54
    %p60 = scmp.eq.s32.totalorder %s11, 0
    %p61 = por %p59, %p60
    %p62 = scmp.ne.s32.totalorder %s51, %s54
    %p63 = scmp.eq.s32.totalorder %s16, 1
    %p64 = por %p62, %p63
    %p65 = scmp.ne.s32.totalorder %s54, %s55
    %p66 = scmp.eq.s32.totalorder %s16, 0
    %p67 = por %p65, %p66
    %p68 = scmp.ne.s32.totalorder %s54, %s55
    %p69 = scmp.eq.s32.totalorder %s17, 1
    %p70 = por %p68, %p69
    %p72 = scmp.ne.s32.totalorder %s55, %s71
    %p73 = scmp.eq.s32.totalorder %s17, 0
    %p74 = por %p72, %p73
    %s76 = sadd.s32 %s75, 1
    %p79 = scmp.eq.s32.totalorder %s11, 1
    %p80 = scmp.ne.s32.totalorder %s75, %s77
    %p81 = scmp.eq.s32.totalorder %s11, 0
    %p82 = por %p80, %p81
    %p83 = scmp.ne.s32.totalorder %s75, %s77
    %p84 = scmp.eq.s32.totalorder %s16, 1
    %p85 = por %p83, %p84
    %p86 = scmp.ne.s32.totalorder %s77, %s78
    %p87 = scmp.eq.s32.totalorder %s16, 0
    %p88 = por %p86, %p87
    %p89 = scmp.ne.s32.totalorder %s77, %s78
    %p90 = scmp.eq.s32.totalorder %s17, 1
    %p91 = por %p89, %p90
    %p93 = scmp.ne.s32.totalorder %s78, %s92
    %p94 = scmp.eq.s32.totalorder %s17, 0
    %p95 = por %p93, %p94
    %s97 = sadd.s32 %s96, 1
    %p100 = scmp.eq.s32.totalorder %s11, 1
    %p101 = scmp.ne.s32.totalorder %s96, %s98
    %p102 = scmp.eq.s32.totalorder %s11, 0
    %p103 = por %p101, %p102
    %p104 = scmp.ne.s32.totalorder %s96, %s98
    %p105 = scmp.eq.s32.totalorder %s16, 1
    %p106 = por %p104, %p105
    %p107 = scmp.ne.s32.totalorder %s98, %s99
    %p108 = scmp.eq.s32.totalorder %s16, 0
    %p109 = por %p107, %p108
    %p110 = scmp.ne.s32.totalorder %s98, %s99
    %p111 = scmp.eq.s32.totalorder %s17, 1
    %p112 = por %p110, %p111
    %p114 = scmp.ne.s32.totalorder %s99, %s113
    %p115 = scmp.eq.s32.totalorder %s17, 0
    %p116 = por %p114, %p115
    %s118 = sadd.s32 %s117, 1
    %p121 = scmp.eq.s32.totalorder %s11, 1
    %p122 = scmp.ne.s32.totalorder %s117, %s119
    %p123 = scmp.eq.s32.totalorder %s11, 0
    %p124 = por %p122, %p123
    %p125 = scmp.ne.s32.totalorder %s117, %s119
    %p126 = scmp.eq.s32.totalorder %s16, 1
    %p127 = por %p125, %p126
    %p128 = scmp.ne.s32.totalorder %s119, %s120
    %p129 = scmp.eq.s32.totalorder %s16, 0
    %p130 = por %p128, %p129
    %p131 = scmp.ne.s32.totalorder %s119, %s120
    %p132 = scmp.eq.s32.totalorder %s17, 1
    %p133 = por %p131, %p132
    %p135 = scmp.ne.s32.totalorder %s120, %s134
    %p136 = scmp.eq.s32.totalorder %s17, 0
    %p137 = por %p135, %p136
    %s138 = ssub.s32 %s11, %s18
    %p139 = scmp.eq.s32.totalorder %s138, 0
    %s141 = sadd.s32 %s140, 1
    %s142 = scalar_select %p139, %s140, %s141
    %p145 = pneg %p139
    %p146 = scmp.eq.s32.totalorder %s11, 1
    %p147 = por %p145, %p146
    %p148 = scmp.ne.s32.totalorder %s140, %s143
    %p149 = scmp.eq.s32.totalorder %s11, 0
    %p150 = por %p148, %p149
    %p151 = scmp.ne.s32.totalorder %s140, %s143
    %p152 = scmp.eq.s32.totalorder %s16, 1
    %p153 = por %p151, %p152
    %p154 = scmp.ne.s32.totalorder %s143, %s144
    %p155 = scmp.eq.s32.totalorder %s16, 0
    %p156 = por %p154, %p155
    %p157 = scmp.ne.s32.totalorder %s143, %s144
    %p158 = scmp.eq.s32.totalorder %s17, 1
    %p159 = por %p157, %p158
    %p161 = scmp.ne.s32.totalorder %s144, %s160
    %p162 = scmp.eq.s32.totalorder %s17, 0
    %p163 = por %p161, %p162
    %p164 = scmp.le.s32.totalorder 1, %s11
    %p165 = scmp.lt.s32.totalorder %s11, 3
    %p166 = pnand %p164, %p165
    %p167 = pneg %p166
    // Predicated region
    $region9: #{_conv_block_forward.3} parent=5 // pred_check
      _
    $region10: #{_conv_block_forward.3} parent=5 // pred_check_branch
      %169 = sbr.rel (%p166) target = $region12
    $region11: #{_conv_block_forward.3} parent=5 // pred_region
      %s170 = ssub.s32 %s11, 1
      // Predicated region
      $region13: #{_conv_block_forward.3} parent=11 // pred_check
        %p171 = pneg %p88
      $region14: #{_conv_block_forward.3} parent=11 // pred_check_branch
        %173 = sbr.rel (%p171) target = $region16
      $region15: #{_conv_block_forward.3} parent=11 // pred_region
        _
      $region16: #{_conv_block_forward.3} parent=11 // pred_fallthru
        _
      // Predicated region
      $region17: #{_conv_block_forward.3} parent=11 // pred_check
        %p174 = pneg %p109
      $region18: #{_conv_block_forward.3} parent=11 // pred_check_branch
        %176 = sbr.rel (%p174) target = $region20
      $region19: #{_conv_block_forward.3} parent=11 // pred_region
        _
      $region20: #{_conv_block_forward.3} parent=11 // pred_fallthru
        _
      // Predicated region
      $region21: #{_conv_block_forward.3} parent=11 // pred_check
        %p177 = pneg %p130
      $region22: #{_conv_block_forward.3} parent=11 // pred_check_branch
        %179 = sbr.rel (%p177) target = $region24
      $region23: #{_conv_block_forward.3} parent=11 // pred_region
        _
      $region24: #{_conv_block_forward.3} parent=11 // pred_fallthru
        _
    $region12: #{_conv_block_forward.3} parent=5 // pred_fallthru
      _
    %p180 = scmp.lt.s32.totalorder %s11, 2
    // Predicated region
    $region25: #{_conv_block_forward.3} parent=5 // pred_check
      %p181 = pneg %p180
    $region26: #{_conv_block_forward.3} parent=5 // pred_check_branch
      %183 = sbr.rel (%p181) target = $region28
    $region27: #{_conv_block_forward.3} parent=5 // pred_region
      // Predicated region
      $region29: #{_conv_block_forward.3} parent=27 // pred_check
        %p184 = pneg %p31
      $region30: #{_conv_block_forward.3} parent=27 // pred_check_branch
        %186 = sbr.rel (%p184) target = $region32
      $region31: #{_conv_block_forward.3} parent=27 // pred_region
        %s187 = smul.u32 45, %s11
        %s188 = ssub.s32 95, %s187
        %p189 = scmp.lt.s32.totalorder %s188, 45
        %s190 = scalar_select %p189, %s188, 45
        %s191 = smul.u32 64, %s190
        %p192 = scmp.lt.s32.totalorder %s187, 94
        %s193 = scalar_select %p192, %s187, 94
        %s194 = smul.addr %s193, 4
        %s195 = scalar_lea.vmem %s0, %s194
        %s196 = smul.u32 45, %s11
        %s197 = ssub.s32 95, %s196
        %p198 = scmp.lt.s32.totalorder %s197, 45
        %s199 = scalar_select %p198, %s197, 45
        %s200 = smul.u32 64, %s199
      $region32: #{_conv_block_forward.3} parent=27 // pred_fallthru
        _
      // Predicated region
      $region33: #{_conv_block_forward.3} parent=27 // pred_check
        %p201 = pneg %p61
      $region34: #{_conv_block_forward.3} parent=27 // pred_check_branch
        %203 = sbr.rel (%p201) target = $region36
      $region35: #{_conv_block_forward.3} parent=27 // pred_region
        %s204 = sadd.s32 %s11, 1
        %s205 = smul.u32 %s204, 9
        %s206 = smul.u32 5, %s205
        %p207 = scmp.lt.s32.totalorder %s206, 94
        %s208 = scalar_select %p207, %s206, 94
        %s209 = smul.addr %s208, 4
        %s210 = scalar_lea.vmem %s1, %s209
        %s211 = sadd.s32 %s11, 1
        %s212 = smul.u32 %s211, 9
        %s213 = smul.u32 5, %s212
      $region36: #{_conv_block_forward.3} parent=27 // pred_fallthru
        _
    $region28: #{_conv_block_forward.3} parent=5 // pred_fallthru
      _
    %p214 = scmp.le.s32.totalorder 1, %s11
    %p215 = scmp.lt.s32.totalorder %s11, 3
    %p216 = pnand %p214, %p215
    %p217 = pneg %p216
    // Predicated region
    $region37: #{_conv_block_forward.3} parent=5 // pred_check
      _
    $region38: #{_conv_block_forward.3} parent=5 // pred_check_branch
      %219 = sbr.rel (%p216) target = $region40
    $region39: #{_conv_block_forward.3} parent=5 // pred_region
      %s220 = ssub.s32 %s11, 1
      %s221 = smul.u32 45, %s16
      %s222 = ssub.s32 95, %s221
      %p223 = scmp.lt.s32.totalorder %s222, 45
      %s224 = scalar_select %p223, %s222, 45
      %s225 = smul.u32 64, %s224
      %p226 = scmp.lt.s32.totalorder %s221, 94
      %s227 = scalar_select %p226, %s221, 94
      %s228 = smul.addr %s227, 4
      %s229 = scalar_lea.vmem %s0, %s228
      %p230 = pneg %p37
      %p231 = pneg %p34
      %s232 = sadd.s32 %s16, 1
      %s233 = smul.u32 %s232, 9
      %s234 = smul.u32 5, %s233
      %p235 = scmp.lt.s32.totalorder %s234, 94
      %s236 = scalar_select %p235, %s234, 94
      %s237 = smul.addr %s236, 4
      %s238 = scalar_lea.vmem %s1, %s237
      %p239 = pneg %p67
      %p240 = pneg %p64
      %p241 = pneg %p88
      %p242 = pneg %p85
      %p243 = pneg %p109
      %p244 = pneg %p106
      %p245 = pneg %p130
      %p246 = pneg %p127
      %p247 = pneg %p156
      %p248 = pneg %p153
      %s249 = smul.u32 45, %s16
      %p250 = scmp.lt.s32.totalorder %s249, 89
      %s251 = scalar_select %p250, %s249, 89
      %s252 = smul.addr %s251, 8
      %s253 = scalar_lea.vmem %s5, %s252
      %s254 = smul.u32 45, %s16
      %s255 = ssub.s32 95, %s254
      %p256 = scmp.lt.s32.totalorder %s255, 45
      %s257 = scalar_select %p256, %s255, 45
      %s258 = smul.u32 64, %s257
      %p259 = scmp.lt.s32.totalorder %s254, 94
      %s260 = scalar_select %p259, %s254, 94
      %s261 = smul.addr %s260, 4
      %s262 = scalar_lea.vmem %s0, %s261
      %s263 = smul.u32 45, %s16
      %s264 = ssub.s32 95, %s263
      %p265 = scmp.lt.s32.totalorder %s264, 45
      %s266 = scalar_select %p265, %s264, 45
      %s267 = smul.u32 64, %s266
      %s268 = sadd.s32 %s16, 1
      %s269 = smul.u32 %s268, 9
      %s270 = smul.u32 5, %s269
      %p271 = scmp.lt.s32.totalorder %s270, 94
      %s272 = scalar_select %p271, %s270, 94
      %s273 = smul.addr %s272, 4
      %s274 = scalar_lea.vmem %s1, %s273
      %s275 = sadd.s32 %s16, 1
      %s276 = smul.u32 %s275, 9
      %s277 = smul.u32 5, %s276
      %s278 = smul.u32 45, %s16
      %p279 = scmp.lt.s32.totalorder %s278, 89
      %s280 = scalar_select %p279, %s278, 89
      %s281 = smul.addr %s280, 8
      %s282 = scalar_lea.vmem %s5, %s281
      %s283 = smul.u32 45, %s16
      %v285 = vld [vmem:[%s262] sm:$0xf]
      %v286 = vld [vmem:[%s262 + $0x4] sm:$0xf]
      %v287 = vld [vmem:[%s262 + $0x8] sm:$0xf]
      %v288 = vld [vmem:[%s262 + $0xc] sm:$0xf]
      %v289 = vld [vmem:[%s262 + $0x10] sm:$0xf]
      %v290 = vld [vmem:[%s262 + $0x14] sm:$0xf]
      %v291 = vld [vmem:[%s262 + $0x18] sm:$0xf]
      %v292 = vld [vmem:[%s262 + $0x1c] sm:$0xf]
      %v293 = vld [vmem:[%s262 + $0x20] sm:$0xf]
      %v294 = vld [vmem:[%s262 + $0x24] sm:$0xf]
      %v295 = vld [vmem:[%s262 + $0x28] sm:$0xf]
      %v296 = vld [vmem:[%s262 + $0x2c] sm:$0xf]
      %v297 = vld [vmem:[%s262 + $0x30] sm:$0xf]
      %v298 = vld [vmem:[%s262 + $0x34] sm:$0xf]
      %v299 = vld [vmem:[%s262 + $0x38] sm:$0xf]
      %v300 = vld [vmem:[%s262 + $0x3c] sm:$0xf]
      %v301 = vld [vmem:[%s262 + $0x40] sm:$0xf]
      %v302 = vld [vmem:[%s262 + $0x44] sm:$0xf]
      %v303 = vld [vmem:[%s262 + $0x48] sm:$0xf]
      %v304 = vld [vmem:[%s262 + $0x4c] sm:$0xf]
      %v305 = vld [vmem:[%s262 + $0x50] sm:$0xf]
      %v306 = vld [vmem:[%s262 + $0x54] sm:$0xf]
      %v307 = vld [vmem:[%s262 + $0x58] sm:$0xf]
      %v308 = vld [vmem:[%s262 + $0x5c] sm:$0xf]
      %v309 = vld [vmem:[%s262 + $0x60] sm:$0xf]
      %v310 = vld [vmem:[%s262 + $0x64] sm:$0xf]
      %v311 = vld [vmem:[%s262 + $0x68] sm:$0xf]
      %v312 = vld [vmem:[%s262 + $0x6c] sm:$0xf]
      %v313 = vld [vmem:[%s262 + $0x70] sm:$0xf]
      %v314 = vld [vmem:[%s262 + $0x74] sm:$0xf]
      %v315 = vld [vmem:[%s262 + $0x78] sm:$0xf]
      %v316 = vld [vmem:[%s262 + $0x7c] sm:$0xf]
      %v317 = vld [vmem:[%s262 + $0x80] sm:$0xf]
      %v318 = vld [vmem:[%s262 + $0x84] sm:$0xf]
      %v319 = vld [vmem:[%s262 + $0x88] sm:$0xf]
      %v320 = vld [vmem:[%s262 + $0x8c] sm:$0xf]
      %v321 = vld [vmem:[%s262 + $0x90] sm:$0xf]
      %v322 = vld [vmem:[%s262 + $0x94] sm:$0xf]
      %v323 = vld [vmem:[%s262 + $0x98] sm:$0xf]
      %v324 = vld [vmem:[%s262 + $0x9c] sm:$0xf]
      %v325 = vld [vmem:[%s262 + $0xa0] sm:$0xf]
      %v326 = vld [vmem:[%s262 + $0xa4] sm:$0xf]
      %v327 = vld [vmem:[%s262 + $0xa8] sm:$0xf]
      %v328 = vld [vmem:[%s262 + $0xac] sm:$0xf]
      %v329 = vld [vmem:[%s262 + $0xb0] sm:$0xf]
      %vm330 = vcmask 27648
      %331 = vst.msk [vmem:[#allocation2] sm:$0xf] %vm330, %v285
      %332 = vst.msk [vmem:[#allocation2 + $0x4] sm:$0xf] %vm330, %v286
      %333 = vst.msk [vmem:[#allocation2 + $0x8] sm:$0xf] %vm330, %v287
      %334 = vst.msk [vmem:[#allocation2 + $0xc] sm:$0xf] %vm330, %v288
      %335 = vst.msk [vmem:[#allocation2 + $0x10] sm:$0xf] %vm330, %v289
      %336 = vst.msk [vmem:[#allocation2 + $0x14] sm:$0xf] %vm330, %v290
      %337 = vst.msk [vmem:[#allocation2 + $0x18] sm:$0xf] %vm330, %v291
      %338 = vst.msk [vmem:[#allocation2 + $0x1c] sm:$0xf] %vm330, %v292
      %339 = vst.msk [vmem:[#allocation2 + $0x20] sm:$0xf] %vm330, %v293
      %340 = vst.msk [vmem:[#allocation2 + $0x24] sm:$0xf] %vm330, %v294
      %341 = vst.msk [vmem:[#allocation2 + $0x28] sm:$0xf] %vm330, %v295
      %342 = vst.msk [vmem:[#allocation2 + $0x2c] sm:$0xf] %vm330, %v296
      %343 = vst.msk [vmem:[#allocation2 + $0x30] sm:$0xf] %vm330, %v297
      %344 = vst.msk [vmem:[#allocation2 + $0x34] sm:$0xf] %vm330, %v298
      %345 = vst.msk [vmem:[#allocation2 + $0x38] sm:$0xf] %vm330, %v299
      %346 = vst.msk [vmem:[#allocation2 + $0x3c] sm:$0xf] %vm330, %v300
      %347 = vst.msk [vmem:[#allocation2 + $0x40] sm:$0xf] %vm330, %v301
      %348 = vst.msk [vmem:[#allocation2 + $0x44] sm:$0xf] %vm330, %v302
      %349 = vst.msk [vmem:[#allocation2 + $0x48] sm:$0xf] %vm330, %v303
      %350 = vst.msk [vmem:[#allocation2 + $0x4c] sm:$0xf] %vm330, %v304
      %351 = vst.msk [vmem:[#allocation2 + $0x50] sm:$0xf] %vm330, %v305
      %352 = vst.msk [vmem:[#allocation2 + $0x54] sm:$0xf] %vm330, %v306
      %353 = vst.msk [vmem:[#allocation2 + $0x58] sm:$0xf] %vm330, %v307
      %354 = vst.msk [vmem:[#allocation2 + $0x5c] sm:$0xf] %vm330, %v308
      %355 = vst.msk [vmem:[#allocation2 + $0x60] sm:$0xf] %vm330, %v309
      %356 = vst.msk [vmem:[#allocation2 + $0x64] sm:$0xf] %vm330, %v310
      %357 = vst.msk [vmem:[#allocation2 + $0x68] sm:$0xf] %vm330, %v311
      %358 = vst.msk [vmem:[#allocation2 + $0x6c] sm:$0xf] %vm330, %v312
      %359 = vst.msk [vmem:[#allocation2 + $0x70] sm:$0xf] %vm330, %v313
      %360 = vst.msk [vmem:[#allocation2 + $0x74] sm:$0xf] %vm330, %v314
      %361 = vst.msk [vmem:[#allocation2 + $0x78] sm:$0xf] %vm330, %v315
      %362 = vst.msk [vmem:[#allocation2 + $0x7c] sm:$0xf] %vm330, %v316
      %363 = vst.msk [vmem:[#allocation2 + $0x80] sm:$0xf] %vm330, %v317
      %364 = vst.msk [vmem:[#allocation2 + $0x84] sm:$0xf] %vm330, %v318
      %365 = vst.msk [vmem:[#allocation2 + $0x88] sm:$0xf] %vm330, %v319
      %366 = vst.msk [vmem:[#allocation2 + $0x8c] sm:$0xf] %vm330, %v320
      %367 = vst.msk [vmem:[#allocation2 + $0x90] sm:$0xf] %vm330, %v321
      %368 = vst.msk [vmem:[#allocation2 + $0x94] sm:$0xf] %vm330, %v322
      %369 = vst.msk [vmem:[#allocation2 + $0x98] sm:$0xf] %vm330, %v323
      %370 = vst.msk [vmem:[#allocation2 + $0x9c] sm:$0xf] %vm330, %v324
      %371 = vst.msk [vmem:[#allocation2 + $0xa0] sm:$0xf] %vm330, %v325
      %372 = vst.msk [vmem:[#allocation2 + $0xa4] sm:$0xf] %vm330, %v326
      %373 = vst.msk [vmem:[#allocation2 + $0xa8] sm:$0xf] %vm330, %v327
      %374 = vst.msk [vmem:[#allocation2 + $0xac] sm:$0xf] %vm330, %v328
      %375 = vst.msk [vmem:[#allocation2 + $0xb0] sm:$0xf] %vm330, %v329
      %v376 = vld [vmem:[%s274] sm:$0xf]
      %v377 = vld [vmem:[%s274 + $0x4] sm:$0xf]
      %v378 = vld [vmem:[%s274 + $0x8] sm:$0xf]
      %v379 = vld [vmem:[%s274 + $0xc] sm:$0xf]
      %v380 = vld [vmem:[%s274 + $0x10] sm:$0xf]
      %381 = vst.msk [vmem:[#allocation2 + $0xb4] sm:$0xf] %vm330, %v376
      %382 = vst.msk [vmem:[#allocation2 + $0xb8] sm:$0xf] %vm330, %v377
      %383 = vst.msk [vmem:[#allocation2 + $0xbc] sm:$0xf] %vm330, %v378
      %384 = vst.msk [vmem:[#allocation2 + $0xc0] sm:$0xf] %vm330, %v379
      %385 = vst.msk [vmem:[#allocation2 + $0xc4] sm:$0xf] %vm330, %v380
      %v386 = vld [vmem:[#allocation2] sm:$0xf]
      %v387 = vld [vmem:[#allocation2 + $0x4] sm:$0xf]
      %v388 = vld [vmem:[#allocation2 + $0x8] sm:$0xf]
      %v389 = vld [vmem:[#allocation2 + $0xc] sm:$0xf]
      %v390 = vld [vmem:[#allocation2 + $0x10] sm:$0xf]
      %v391 = vld [vmem:[#allocation2 + $0x14] sm:$0xf]
      %v392 = vld [vmem:[#allocation2 + $0x18] sm:$0xf]
      %v393 = vld [vmem:[#allocation2 + $0x1c] sm:$0xf]
      %v394 = vld [vmem:[#allocation2 + $0x20] sm:$0xf]
      %v395 = vld [vmem:[#allocation2 + $0x24] sm:$0xf]
      %v396 = vld [vmem:[#allocation2 + $0x28] sm:$0xf]
      %v397 = vld [vmem:[#allocation2 + $0x2c] sm:$0xf]
      %v398 = vld [vmem:[#allocation2 + $0x30] sm:$0xf]
      %v399 = vld [vmem:[#allocation2 + $0x34] sm:$0xf]
      %v400 = vld [vmem:[#allocation2 + $0x38] sm:$0xf]
      %v401 = vld [vmem:[#allocation2 + $0x3c] sm:$0xf]
      %v402 = vld [vmem:[#allocation2 + $0x40] sm:$0xf]
      %v403 = vld [vmem:[#allocation2 + $0x44] sm:$0xf]
      %v404 = vld [vmem:[#allocation2 + $0x48] sm:$0xf]
      %v405 = vld [vmem:[#allocation2 + $0x4c] sm:$0xf]
      %v406 = vld [vmem:[#allocation2 + $0x50] sm:$0xf]
      %v407 = vld [vmem:[#allocation2 + $0x54] sm:$0xf]
      %v408 = vld [vmem:[#allocation2 + $0x58] sm:$0xf]
      %v409 = vld [vmem:[#allocation2 + $0x5c] sm:$0xf]
      %v410 = vld [vmem:[#allocation2 + $0x60] sm:$0xf]
      %v411 = vld [vmem:[#allocation2 + $0x64] sm:$0xf]
      %v412 = vld [vmem:[#allocation2 + $0x68] sm:$0xf]
      %v413 = vld [vmem:[#allocation2 + $0x6c] sm:$0xf]
      %v414 = vld [vmem:[#allocation2 + $0x70] sm:$0xf]
      %v415 = vld [vmem:[#allocation2 + $0x74] sm:$0xf]
      %v416 = vld [vmem:[#allocation2 + $0x78] sm:$0xf]
      %v417 = vld [vmem:[#allocation2 + $0x7c] sm:$0xf]
      %v418 = vld [vmem:[#allocation2 + $0x80] sm:$0xf]
      %v419 = vld [vmem:[#allocation2 + $0x84] sm:$0xf]
      %v420 = vld [vmem:[#allocation2 + $0x88] sm:$0xf]
      %v421 = vld [vmem:[#allocation2 + $0x8c] sm:$0xf]
      %v422 = vld [vmem:[#allocation2 + $0x90] sm:$0xf]
      %v423 = vld [vmem:[#allocation2 + $0x94] sm:$0xf]
      %v424 = vld [vmem:[#allocation2 + $0x98] sm:$0xf]
      %v425 = vld [vmem:[#allocation2 + $0x9c] sm:$0xf]
      %v426 = vld [vmem:[#allocation2 + $0xa0] sm:$0xf]
      %v427 = vld [vmem:[#allocation2 + $0xa4] sm:$0xf]
      %v428 = vld [vmem:[#allocation2 + $0xa8] sm:$0xf]
      %v429 = vld [vmem:[#allocation2 + $0xac] sm:$0xf]
      %v430 = vld [vmem:[#allocation2 + $0xb0] sm:$0xf]
      %431 = vst.msk [vmem:[#allocation3] sm:$0xf] %vm330, %v386
      %432 = vst.msk [vmem:[#allocation3 + $0x4] sm:$0xf] %vm330, %v387
      %433 = vst.msk [vmem:[#allocation3 + $0x8] sm:$0xf] %vm330, %v388
      %434 = vst.msk [vmem:[#allocation3 + $0xc] sm:$0xf] %vm330, %v389
      %435 = vst.msk [vmem:[#allocation3 + $0x10] sm:$0xf] %vm330, %v390
      %436 = vst.msk [vmem:[#allocation3 + $0x14] sm:$0xf] %vm330, %v391
      %437 = vst.msk [vmem:[#allocation3 + $0x18] sm:$0xf] %vm330, %v392
      %438 = vst.msk [vmem:[#allocation3 + $0x1c] sm:$0xf] %vm330, %v393
      %439 = vst.msk [vmem:[#allocation3 + $0x20] sm:$0xf] %vm330, %v394
      %440 = vst.msk [vmem:[#allocation3 + $0x24] sm:$0xf] %vm330, %v395
      %441 = vst.msk [vmem:[#allocation3 + $0x28] sm:$0xf] %vm330, %v396
      %442 = vst.msk [vmem:[#allocation3 + $0x2c] sm:$0xf] %vm330, %v397
      %443 = vst.msk [vmem:[#allocation3 + $0x30] sm:$0xf] %vm330, %v398
      %444 = vst.msk [vmem:[#allocation3 + $0x34] sm:$0xf] %vm330, %v399
      %445 = vst.msk [vmem:[#allocation3 + $0x38] sm:$0xf] %vm330, %v400
      %446 = vst.msk [vmem:[#allocation3 + $0x3c] sm:$0xf] %vm330, %v401
      %447 = vst.msk [vmem:[#allocation3 + $0x40] sm:$0xf] %vm330, %v402
      %448 = vst.msk [vmem:[#allocation3 + $0x44] sm:$0xf] %vm330, %v403
      %449 = vst.msk [vmem:[#allocation3 + $0x48] sm:$0xf] %vm330, %v404
      %450 = vst.msk [vmem:[#allocation3 + $0x4c] sm:$0xf] %vm330, %v405
      %451 = vst.msk [vmem:[#allocation3 + $0x50] sm:$0xf] %vm330, %v406
      %452 = vst.msk [vmem:[#allocation3 + $0x54] sm:$0xf] %vm330, %v407
      %453 = vst.msk [vmem:[#allocation3 + $0x58] sm:$0xf] %vm330, %v408
      %454 = vst.msk [vmem:[#allocation3 + $0x5c] sm:$0xf] %vm330, %v409
      %455 = vst.msk [vmem:[#allocation3 + $0x60] sm:$0xf] %vm330, %v410
      %456 = vst.msk [vmem:[#allocation3 + $0x64] sm:$0xf] %vm330, %v411
      %457 = vst.msk [vmem:[#allocation3 + $0x68] sm:$0xf] %vm330, %v412
      %458 = vst.msk [vmem:[#allocation3 + $0x6c] sm:$0xf] %vm330, %v413
      %459 = vst.msk [vmem:[#allocation3 + $0x70] sm:$0xf] %vm330, %v414
      %460 = vst.msk [vmem:[#allocation3 + $0x74] sm:$0xf] %vm330, %v415
      %461 = vst.msk [vmem:[#allocation3 + $0x78] sm:$0xf] %vm330, %v416
      %462 = vst.msk [vmem:[#allocation3 + $0x7c] sm:$0xf] %vm330, %v417
      %463 = vst.msk [vmem:[#allocation3 + $0x80] sm:$0xf] %vm330, %v418
      %464 = vst.msk [vmem:[#allocation3 + $0x84] sm:$0xf] %vm330, %v419
      %465 = vst.msk [vmem:[#allocation3 + $0x88] sm:$0xf] %vm330, %v420
      %466 = vst.msk [vmem:[#allocation3 + $0x8c] sm:$0xf] %vm330, %v421
      %467 = vst.msk [vmem:[#allocation3 + $0x90] sm:$0xf] %vm330, %v422
      %468 = vst.msk [vmem:[#allocation3 + $0x94] sm:$0xf] %vm330, %v423
      %469 = vst.msk [vmem:[#allocation3 + $0x98] sm:$0xf] %vm330, %v424
      %470 = vst.msk [vmem:[#allocation3 + $0x9c] sm:$0xf] %vm330, %v425
      %471 = vst.msk [vmem:[#allocation3 + $0xa0] sm:$0xf] %vm330, %v426
      %472 = vst.msk [vmem:[#allocation3 + $0xa4] sm:$0xf] %vm330, %v427
      %473 = vst.msk [vmem:[#allocation3 + $0xa8] sm:$0xf] %vm330, %v428
      %474 = vst.msk [vmem:[#allocation3 + $0xac] sm:$0xf] %vm330, %v429
      %475 = vst.msk [vmem:[#allocation3 + $0xb0] sm:$0xf] %vm330, %v430
      %v476 = vld [vmem:[#allocation2] sm:$0xf]
      %v477 = vld [vmem:[#allocation2 + $0x4] sm:$0xf]
      %v478 = vld [vmem:[#allocation2 + $0x8] sm:$0xf]
      %v479 = vld [vmem:[#allocation2 + $0xc] sm:$0xf]
      %v480 = vld [vmem:[#allocation2 + $0x10] sm:$0xf]
      %v481 = vld [vmem:[#allocation2 + $0x14] sm:$0xf]
      %v482 = vld [vmem:[#allocation2 + $0x18] sm:$0xf]
      %v483 = vld [vmem:[#allocation2 + $0x1c] sm:$0xf]
      %v484 = vld [vmem:[#allocation2 + $0x20] sm:$0xf]
      %v485 = vld [vmem:[#allocation2 + $0x24] sm:$0xf]
      %v486 = vld [vmem:[#allocation2 + $0x28] sm:$0xf]
      %v487 = vld [vmem:[#allocation2 + $0x2c] sm:$0xf]
      %v488 = vld [vmem:[#allocation2 + $0x30] sm:$0xf]
      %v489 = vld [vmem:[#allocation2 + $0x34] sm:$0xf]
      %v490 = vld [vmem:[#allocation2 + $0x38] sm:$0xf]
      %v491 = vld [vmem:[#allocation2 + $0x3c] sm:$0xf]
      %v492 = vld [vmem:[#allocation2 + $0x40] sm:$0xf]
      %v493 = vld [vmem:[#allocation2 + $0x44] sm:$0xf]
      %v494 = vld [vmem:[#allocation2 + $0x48] sm:$0xf]
      %v495 = vld [vmem:[#allocation2 + $0x4c] sm:$0xf]
      %v496 = vld [vmem:[#allocation2 + $0x50] sm:$0xf]
      %v497 = vld [vmem:[#allocation2 + $0x54] sm:$0xf]
      %v498 = vld [vmem:[#allocation2 + $0x58] sm:$0xf]
      %v499 = vld [vmem:[#allocation2 + $0x5c] sm:$0xf]
      %v500 = vld [vmem:[#allocation2 + $0x60] sm:$0xf]
      %v501 = vld [vmem:[#allocation2 + $0x64] sm:$0xf]
      %v502 = vld [vmem:[#allocation2 + $0x68] sm:$0xf]
      %v503 = vld [vmem:[#allocation2 + $0x6c] sm:$0xf]
      %v504 = vld [vmem:[#allocation2 + $0x70] sm:$0xf]
      %v505 = vld [vmem:[#allocation2 + $0x74] sm:$0xf]
      %v506 = vld [vmem:[#allocation2 + $0x78] sm:$0xf]
      %v507 = vld [vmem:[#allocation2 + $0x7c] sm:$0xf]
      %v508 = vld [vmem:[#allocation2 + $0x80] sm:$0xf]
      %v509 = vld [vmem:[#allocation2 + $0x84] sm:$0xf]
      %v510 = vld [vmem:[#allocation2 + $0x88] sm:$0xf]
      %v511 = vld [vmem:[#allocation2 + $0x8c] sm:$0xf]
      %v512 = vld [vmem:[#allocation2 + $0x90] sm:$0xf]
      %v513 = vld [vmem:[#allocation2 + $0x94] sm:$0xf]
      %v514 = vld [vmem:[#allocation2 + $0x98] sm:$0xf]
      %v515 = vld [vmem:[#allocation2 + $0x9c] sm:$0xf]
      %v516 = vld [vmem:[#allocation2 + $0xa0] sm:$0xf]
      %v517 = vld [vmem:[#allocation2 + $0xa4] sm:$0xf]
      %v518 = vld [vmem:[#allocation2 + $0xa8] sm:$0xf]
      %v519 = vld [vmem:[#allocation2 + $0xac] sm:$0xf]
      %v520 = vld [vmem:[#allocation2 + $0xb0] sm:$0xf]
      %v521 = vld [vmem:[#allocation2 + $0xb4] sm:$0x1]
      %vm522 = vsmask.f32 3328
      %vm523 = vsmask.f32 7440
      %vm524 = vmor %vm522, %vm523
      %v526 = vshrl.u32 %v476, 16
      %v528 = vrot.slane %v526, 4
      %v529 = vshll.u32 %v476, 16
      %v531 = vrot.slane %v529, 5
      %v532 = vor.u32 %v528, %v531
      %v533 = vrot.slane %v532, 4
      %v535 = vshll.u32 %v477, 16
      %v537 = vrot.slane %v535, 5
      %v538 = vsel %vm524, %v533, %v537
      %v539 = vshrl.u32 %v477, 16
      %v541 = vrot.slane %v539, 4
      %v542 = vor.u32 %v541, %v537
      %v543 = vrot.slane %v542, 4
      %v545 = vshll.u32 %v478, 16
      %v547 = vrot.slane %v545, 5
      %v548 = vsel %vm524, %v543, %v547
      %v549 = vshrl.u32 %v478, 16
      %v551 = vrot.slane %v549, 4
      %v552 = vor.u32 %v551, %v547
      %v553 = vrot.slane %v552, 4
      %v555 = vshll.u32 %v479, 16
      %v557 = vrot.slane %v555, 5
      %v558 = vsel %vm524, %v553, %v557
      %v559 = vshrl.u32 %v479, 16
      %v561 = vrot.slane %v559, 4
      %v562 = vor.u32 %v561, %v557
      %v563 = vrot.slane %v562, 4
      %v565 = vshll.u32 %v480, 16
      %v567 = vrot.slane %v565, 5
      %v568 = vsel %vm524, %v563, %v567
      %v569 = vshrl.u32 %v480, 16
      %v571 = vrot.slane %v569, 4
      %v572 = vor.u32 %v571, %v567
      %v573 = vrot.slane %v572, 4
      %v575 = vshll.u32 %v481, 16
      %v577 = vrot.slane %v575, 5
      %v578 = vsel %vm524, %v573, %v577
      %v579 = vshrl.u32 %v481, 16
      %v581 = vrot.slane %v579, 4
      %v582 = vor.u32 %v581, %v577
      %v583 = vrot.slane %v582, 4
      %v585 = vshll.u32 %v482, 16
      %v587 = vrot.slane %v585, 5
      %v588 = vsel %vm524, %v583, %v587
      %v589 = vshrl.u32 %v482, 16
      %v591 = vrot.slane %v589, 4
      %v592 = vor.u32 %v591, %v587
      %v593 = vrot.slane %v592, 4
      %v595 = vshll.u32 %v483, 16
      %v597 = vrot.slane %v595, 5
      %v598 = vsel %vm524, %v593, %v597
      %v599 = vshrl.u32 %v483, 16
      %v601 = vrot.slane %v599, 4
      %v602 = vor.u32 %v601, %v597
      %v603 = vrot.slane %v602, 4
      %v605 = vshll.u32 %v484, 16
      %v607 = vrot.slane %v605, 5
      %v608 = vsel %vm524, %v603, %v607
      %v609 = vshrl.u32 %v484, 16
      %v611 = vrot.slane %v609, 4
      %v612 = vor.u32 %v611, %v607
      %v613 = vrot.slane %v612, 4
      %v615 = vshll.u32 %v485, 16
      %v617 = vrot.slane %v615, 5
      %v618 = vsel %vm524, %v613, %v617
      %v619 = vshrl.u32 %v485, 16
      %v621 = vrot.slane %v619, 4
      %v622 = vor.u32 %v621, %v617
      %v623 = vrot.slane %v622, 4
      %v625 = vshll.u32 %v486, 16
      %v627 = vrot.slane %v625, 5
      %v628 = vsel %vm524, %v623, %v627
      %v629 = vshrl.u32 %v486, 16
      %v631 = vrot.slane %v629, 4
      %v632 = vor.u32 %v631, %v627
      %v633 = vrot.slane %v632, 4
      %v635 = vshll.u32 %v487, 16
      %v637 = vrot.slane %v635, 5
      %v638 = vsel %vm524, %v633, %v637
      %v639 = vshrl.u32 %v487, 16
      %v641 = vrot.slane %v639, 4
      %v642 = vor.u32 %v641, %v637
      %v643 = vrot.slane %v642, 4
      %v645 = vshll.u32 %v488, 16
      %v647 = vrot.slane %v645, 5
      %v648 = vsel %vm524, %v643, %v647
      %v649 = vshrl.u32 %v488, 16
      %v651 = vrot.slane %v649, 4
      %v652 = vor.u32 %v651, %v647
      %v653 = vrot.slane %v652, 4
      %v655 = vshll.u32 %v489, 16
      %v657 = vrot.slane %v655, 5
      %v658 = vsel %vm524, %v653, %v657
      %v659 = vshrl.u32 %v489, 16
      %v661 = vrot.slane %v659, 4
      %v662 = vor.u32 %v661, %v657
      %v663 = vrot.slane %v662, 4
      %v665 = vshll.u32 %v490, 16
      %v667 = vrot.slane %v665, 5
      %v668 = vsel %vm524, %v663, %v667
      %v669 = vshrl.u32 %v490, 16
      %v671 = vrot.slane %v669, 4
      %v672 = vor.u32 %v671, %v667
      %v673 = vrot.slane %v672, 4
      %v675 = vshll.u32 %v491, 16
      %v677 = vrot.slane %v675, 5
      %v678 = vsel %vm524, %v673, %v677
      %v679 = vshrl.u32 %v491, 16
      %v681 = vrot.slane %v679, 4
      %v682 = vor.u32 %v681, %v677
      %v683 = vrot.slane %v682, 4
      %v685 = vshll.u32 %v492, 16
      %v687 = vrot.slane %v685, 5
      %v688 = vsel %vm524, %v683, %v687
      %v689 = vshrl.u32 %v492, 16
      %v691 = vrot.slane %v689, 4
      %v692 = vor.u32 %v691, %v687
      %v693 = vrot.slane %v692, 4
      %v695 = vshll.u32 %v493, 16
      %v697 = vrot.slane %v695, 5
      %v698 = vsel %vm524, %v693, %v697
      %v699 = vshrl.u32 %v493, 16
      %v701 = vrot.slane %v699, 4
      %v702 = vor.u32 %v701, %v697
      %v703 = vrot.slane %v702, 4
      %v705 = vshll.u32 %v494, 16
      %v707 = vrot.slane %v705, 5
      %v708 = vsel %vm524, %v703, %v707
      %v709 = vshrl.u32 %v494, 16
      %v711 = vrot.slane %v709, 4
      %v712 = vor.u32 %v711, %v707
      %v713 = vrot.slane %v712, 4
      %v715 = vshll.u32 %v495, 16
      %v717 = vrot.slane %v715, 5
      %v718 = vsel %vm524, %v713, %v717
      %v719 = vshrl.u32 %v495, 16
      %v721 = vrot.slane %v719, 4
      %v722 = vor.u32 %v721, %v717
      %v723 = vrot.slane %v722, 4
      %v725 = vshll.u32 %v496, 16
      %v727 = vrot.slane %v725, 5
      %v728 = vsel %vm524, %v723, %v727
      %v729 = vshrl.u32 %v496, 16
      %v731 = vrot.slane %v729, 4
      %v732 = vor.u32 %v731, %v727
      %v733 = vrot.slane %v732, 4
      %v735 = vshll.u32 %v497, 16
      %v737 = vrot.slane %v735, 5
      %v738 = vsel %vm524, %v733, %v737
      %v739 = vshrl.u32 %v497, 16
      %v741 = vrot.slane %v739, 4
      %v742 = vor.u32 %v741, %v737
      %v743 = vrot.slane %v742, 4
      %v745 = vshll.u32 %v498, 16
      %v747 = vrot.slane %v745, 5
      %v748 = vsel %vm524, %v743, %v747
      %v749 = vshrl.u32 %v498, 16
      %v751 = vrot.slane %v749, 4
      %v752 = vor.u32 %v751, %v747
      %v753 = vrot.slane %v752, 4
      %v755 = vshll.u32 %v499, 16
      %v757 = vrot.slane %v755, 5
      %v758 = vsel %vm524, %v753, %v757
      %v759 = vshrl.u32 %v499, 16
      %v761 = vrot.slane %v759, 4
      %v762 = vor.u32 %v761, %v757
      %v763 = vrot.slane %v762, 4
      %v765 = vshll.u32 %v500, 16
      %v767 = vrot.slane %v765, 5
      %v768 = vsel %vm524, %v763, %v767
      %v769 = vshrl.u32 %v500, 16
      %v771 = vrot.slane %v769, 4
      %v772 = vor.u32 %v771, %v767
      %v773 = vrot.slane %v772, 4
      %v775 = vshll.u32 %v501, 16
      %v777 = vrot.slane %v775, 5
      %v778 = vsel %vm524, %v773, %v777
      %v779 = vshrl.u32 %v501, 16
      %v781 = vrot.slane %v779, 4
      %v782 = vor.u32 %v781, %v777
      %v783 = vrot.slane %v782, 4
      %v785 = vshll.u32 %v502, 16
      %v787 = vrot.slane %v785, 5
      %v788 = vsel %vm524, %v783, %v787
      %v789 = vshrl.u32 %v502, 16
      %v791 = vrot.slane %v789, 4
      %v792 = vor.u32 %v791, %v787
      %v793 = vrot.slane %v792, 4
      %v795 = vshll.u32 %v503, 16
      %v797 = vrot.slane %v795, 5
      %v798 = vsel %vm524, %v793, %v797
      %v799 = vshrl.u32 %v503, 16
      %v801 = vrot.slane %v799, 4
      %v802 = vor.u32 %v801, %v797
      %v803 = vrot.slane %v802, 4
      %v805 = vshll.u32 %v504, 16
      %v807 = vrot.slane %v805, 5
      %v808 = vsel %vm524, %v803, %v807
      %v809 = vshrl.u32 %v504, 16
      %v811 = vrot.slane %v809, 4
      %v812 = vor.u32 %v811, %v807
      %v813 = vrot.slane %v812, 4
      %v815 = vshll.u32 %v505, 16
      %v817 = vrot.slane %v815, 5
      %v818 = vsel %vm524, %v813, %v817
      %v819 = vshrl.u32 %v505, 16
      %v821 = vrot.slane %v819, 4
      %v822 = vor.u32 %v821, %v817
      %v823 = vrot.slane %v822, 4
      %v825 = vshll.u32 %v506, 16
      %v827 = vrot.slane %v825, 5
      %v828 = vsel %vm524, %v823, %v827
      %v829 = vshrl.u32 %v506, 16
      %v831 = vrot.slane %v829, 4
      %v832 = vor.u32 %v831, %v827
      %v833 = vrot.slane %v832, 4
      %v835 = vshll.u32 %v507, 16
      %v837 = vrot.slane %v835, 5
      %v838 = vsel %vm524, %v833, %v837
      %v839 = vshrl.u32 %v507, 16
      %v841 = vrot.slane %v839, 4
      %v842 = vor.u32 %v841, %v837
      %v843 = vrot.slane %v842, 4
      %v845 = vshll.u32 %v508, 16
      %v847 = vrot.slane %v845, 5
      %v848 = vsel %vm524, %v843, %v847
      %v849 = vshrl.u32 %v508, 16
      %v851 = vrot.slane %v849, 4
      %v852 = vor.u32 %v851, %v847
      %v853 = vrot.slane %v852, 4
      %v855 = vshll.u32 %v509, 16
      %v857 = vrot.slane %v855, 5
      %v858 = vsel %vm524, %v853, %v857
      %v859 = vshrl.u32 %v509, 16
      %v861 = vrot.slane %v859, 4
      %v862 = vor.u32 %v861, %v857
      %v863 = vrot.slane %v862, 4
      %v865 = vshll.u32 %v510, 16
      %v867 = vrot.slane %v865, 5
      %v868 = vsel %vm524, %v863, %v867
      %v869 = vshrl.u32 %v510, 16
      %v871 = vrot.slane %v869, 4
      %v872 = vor.u32 %v871, %v867
      %v873 = vrot.slane %v872, 4
      %v875 = vshll.u32 %v511, 16
      %v877 = vrot.slane %v875, 5
      %v878 = vsel %vm524, %v873, %v877
      %v879 = vshrl.u32 %v511, 16
      %v881 = vrot.slane %v879, 4
      %v882 = vor.u32 %v881, %v877
      %v883 = vrot.slane %v882, 4
      %v885 = vshll.u32 %v512, 16
      %v887 = vrot.slane %v885, 5
      %v888 = vsel %vm524, %v883, %v887
      %v889 = vshrl.u32 %v512, 16
      %v891 = vrot.slane %v889, 4
      %v892 = vor.u32 %v891, %v887
      %v893 = vrot.slane %v892, 4
      %v895 = vshll.u32 %v513, 16
      %v897 = vrot.slane %v895, 5
      %v898 = vsel %vm524, %v893, %v897
      %v899 = vshrl.u32 %v513, 16
      %v901 = vrot.slane %v899, 4
      %v902 = vor.u32 %v901, %v897
      %v903 = vrot.slane %v902, 4
      %v905 = vshll.u32 %v514, 16
      %v907 = vrot.slane %v905, 5
      %v908 = vsel %vm524, %v903, %v907
      %v909 = vshrl.u32 %v514, 16
      %v911 = vrot.slane %v909, 4
      %v912 = vor.u32 %v911, %v907
      %v913 = vrot.slane %v912, 4
      %v915 = vshll.u32 %v515, 16
      %v917 = vrot.slane %v915, 5
      %v918 = vsel %vm524, %v913, %v917
      %v919 = vshrl.u32 %v515, 16
      %v921 = vrot.slane %v919, 4
      %v922 = vor.u32 %v921, %v917
      %v923 = vrot.slane %v922, 4
      %v925 = vshll.u32 %v516, 16
      %v927 = vrot.slane %v925, 5
      %v928 = vsel %vm524, %v923, %v927
      %v929 = vshrl.u32 %v516, 16
      %v931 = vrot.slane %v929, 4
      %v932 = vor.u32 %v931, %v927
      %v933 = vrot.slane %v932, 4
      %v935 = vshll.u32 %v517, 16
      %v937 = vrot.slane %v935, 5
      %v938 = vsel %vm524, %v933, %v937
      %v939 = vshrl.u32 %v517, 16
      %v941 = vrot.slane %v939, 4
      %v942 = vor.u32 %v941, %v937
      %v943 = vrot.slane %v942, 4
      %v945 = vshll.u32 %v518, 16
      %v947 = vrot.slane %v945, 5
      %v948 = vsel %vm524, %v943, %v947
      %v949 = vshrl.u32 %v518, 16
      %v951 = vrot.slane %v949, 4
      %v952 = vor.u32 %v951, %v947
      %v953 = vrot.slane %v952, 4
      %v955 = vshll.u32 %v519, 16
      %v957 = vrot.slane %v955, 5
      %v958 = vsel %vm524, %v953, %v957
      %v959 = vshrl.u32 %v519, 16
      %v961 = vrot.slane %v959, 4
      %v962 = vor.u32 %v961, %v957
      %v963 = vrot.slane %v962, 4
      %v965 = vshll.u32 %v520, 16
      %v967 = vrot.slane %v965, 5
      %v968 = vsel %vm524, %v963, %v967
      %v969 = vshrl.u32 %v520, 16
      %v971 = vrot.slane %v969, 4
      %v972 = vor.u32 %v971, %v967
      %v973 = vrot.slane %v972, 4
      %v975 = vshll.u32 %v521, 16
      %v977 = vrot.slane %v975, 5
      %v978 = vsel %vm524, %v973, %v977
      %979 = vrot.lane.b32.xlu0 %v538, 4
      %v980 = vpop.permute.xlu0 %979
      %981 = vrot.lane.b32.xlu0 %v548, 4
      %v982 = vpop.permute.xlu0 %981
      %983 = vrot.lane.b32.xlu0 %v558, 4
      %v984 = vpop.permute.xlu0 %983
      %985 = vrot.lane.b32.xlu0 %v568, 4
      %v986 = vpop.permute.xlu0 %985
      %987 = vrot.lane.b32.xlu0 %v578, 4
      %v988 = vpop.permute.xlu0 %987
      %989 = vrot.lane.b32.xlu0 %v588, 4
      %v990 = vpop.permute.xlu0 %989
      %991 = vrot.lane.b32.xlu0 %v598, 4
      %v992 = vpop.permute.xlu0 %991
      %993 = vrot.lane.b32.xlu0 %v608, 4
      %v994 = vpop.permute.xlu0 %993
      %995 = vrot.lane.b32.xlu0 %v618, 4
      %v996 = vpop.permute.xlu0 %995
      %997 = vrot.lane.b32.xlu0 %v628, 4
      %v998 = vpop.permute.xlu0 %997
      %999 = vrot.lane.b32.xlu0 %v638, 4
      %v1000 = vpop.permute.xlu0 %999
      %1001 = vrot.lane.b32.xlu0 %v648, 4
      %v1002 = vpop.permute.xlu0 %1001
      %1003 = vrot.lane.b32.xlu0 %v658, 4
      %v1004 = vpop.permute.xlu0 %1003
      %1005 = vrot.lane.b32.xlu0 %v668, 4
      %v1006 = vpop.permute.xlu0 %1005
      %1007 = vrot.lane.b32.xlu0 %v678, 4
      %v1008 = vpop.permute.xlu0 %1007
      %1009 = vrot.lane.b32.xlu0 %v688, 4
      %v1010 = vpop.permute.xlu0 %1009
      %1011 = vrot.lane.b32.xlu0 %v698, 4
      %v1012 = vpop.permute.xlu0 %1011
      %1013 = vrot.lane.b32.xlu0 %v708, 4
      %v1014 = vpop.permute.xlu0 %1013
      %1015 = vrot.lane.b32.xlu0 %v718, 4
      %v1016 = vpop.permute.xlu0 %1015
      %1017 = vrot.lane.b32.xlu0 %v728, 4
      %v1018 = vpop.permute.xlu0 %1017
      %1019 = vrot.lane.b32.xlu0 %v738, 4
      %v1020 = vpop.permute.xlu0 %1019
      %1021 = vrot.lane.b32.xlu0 %v748, 4
      %v1022 = vpop.permute.xlu0 %1021
      %1023 = vrot.lane.b32.xlu0 %v758, 4
      %v1024 = vpop.permute.xlu0 %1023
      %1025 = vrot.lane.b32.xlu0 %v768, 4
      %v1026 = vpop.permute.xlu0 %1025
      %1027 = vrot.lane.b32.xlu0 %v778, 4
      %v1028 = vpop.permute.xlu0 %1027
      %1029 = vrot.lane.b32.xlu0 %v788, 4
      %v1030 = vpop.permute.xlu0 %1029
      %1031 = vrot.lane.b32.xlu0 %v798, 4
      %v1032 = vpop.permute.xlu0 %1031
      %1033 = vrot.lane.b32.xlu0 %v808, 4
      %v1034 = vpop.permute.xlu0 %1033
      %1035 = vrot.lane.b32.xlu0 %v818, 4
      %v1036 = vpop.permute.xlu0 %1035
      %1037 = vrot.lane.b32.xlu0 %v828, 4
      %v1038 = vpop.permute.xlu0 %1037
      %1039 = vrot.lane.b32.xlu0 %v838, 4
      %v1040 = vpop.permute.xlu0 %1039
      %1041 = vrot.lane.b32.xlu0 %v848, 4
      %v1042 = vpop.permute.xlu0 %1041
      %1043 = vrot.lane.b32.xlu0 %v858, 4
      %v1044 = vpop.permute.xlu0 %1043
      %1045 = vrot.lane.b32.xlu0 %v868, 4
      %v1046 = vpop.permute.xlu0 %1045
      %1047 = vrot.lane.b32.xlu0 %v878, 4
      %v1048 = vpop.permute.xlu0 %1047
      %1049 = vrot.lane.b32.xlu0 %v888, 4
      %v1050 = vpop.permute.xlu0 %1049
      %1051 = vrot.lane.b32.xlu0 %v898, 4
      %v1052 = vpop.permute.xlu0 %1051
      %1053 = vrot.lane.b32.xlu0 %v908, 4
      %v1054 = vpop.permute.xlu0 %1053
      %1055 = vrot.lane.b32.xlu0 %v918, 4
      %v1056 = vpop.permute.xlu0 %1055
      %1057 = vrot.lane.b32.xlu0 %v928, 4
      %v1058 = vpop.permute.xlu0 %1057
      %1059 = vrot.lane.b32.xlu0 %v938, 4
      %v1060 = vpop.permute.xlu0 %1059
      %1061 = vrot.lane.b32.xlu0 %v948, 4
      %v1062 = vpop.permute.xlu0 %1061
      %1063 = vrot.lane.b32.xlu0 %v958, 4
      %v1064 = vpop.permute.xlu0 %1063
      %1065 = vrot.lane.b32.xlu0 %v968, 4
      %v1066 = vpop.permute.xlu0 %1065
      %1067 = vrot.lane.b32.xlu0 %v978, 4
      %v1068 = vpop.permute.xlu0 %1067
      %vm1114 = vcmask 60448
      %1115 = vst.msk [vmem:[#allocation3] sm:$0xf] %vm1114, %v980
      %1116 = vst.msk [vmem:[#allocation3 + $0x4] sm:$0xf] %vm1114, %v982
      %1117 = vst.msk [vmem:[#allocation3 + $0x8] sm:$0xf] %vm1114, %v984
      %1118 = vst.msk [vmem:[#allocation3 + $0xc] sm:$0xf] %vm1114, %v986
      %1119 = vst.msk [vmem:[#allocation3 + $0x10] sm:$0xf] %vm1114, %v988
      %1120 = vst.msk [vmem:[#allocation3 + $0x14] sm:$0xf] %vm1114, %v990
      %1121 = vst.msk [vmem:[#allocation3 + $0x18] sm:$0xf] %vm1114, %v992
      %1122 = vst.msk [vmem:[#allocation3 + $0x1c] sm:$0xf] %vm1114, %v994
      %1123 = vst.msk [vmem:[#allocation3 + $0x20] sm:$0xf] %vm1114, %v996
      %1124 = vst.msk [vmem:[#allocation3 + $0x24] sm:$0xf] %vm1114, %v998
      %1125 = vst.msk [vmem:[#allocation3 + $0x28] sm:$0xf] %vm1114, %v1000
      %1126 = vst.msk [vmem:[#allocation3 + $0x2c] sm:$0xf] %vm1114, %v1002
      %1127 = vst.msk [vmem:[#allocation3 + $0x30] sm:$0xf] %vm1114, %v1004
      %1128 = vst.msk [vmem:[#allocation3 + $0x34] sm:$0xf] %vm1114, %v1006
      %1129 = vst.msk [vmem:[#allocation3 + $0x38] sm:$0xf] %vm1114, %v1008
      %1130 = vst.msk [vmem:[#allocation3 + $0x3c] sm:$0xf] %vm1114, %v1010
      %1131 = vst.msk [vmem:[#allocation3 + $0x40] sm:$0xf] %vm1114, %v1012
      %1132 = vst.msk [vmem:[#allocation3 + $0x44] sm:$0xf] %vm1114, %v1014
      %1133 = vst.msk [vmem:[#allocation3 + $0x48] sm:$0xf] %vm1114, %v1016
      %1134 = vst.msk [vmem:[#allocation3 + $0x4c] sm:$0xf] %vm1114, %v1018
      %1135 = vst.msk [vmem:[#allocation3 + $0x50] sm:$0xf] %vm1114, %v1020
      %1136 = vst.msk [vmem:[#allocation3 + $0x54] sm:$0xf] %vm1114, %v1022
      %1137 = vst.msk [vmem:[#allocation3 + $0x58] sm:$0xf] %vm1114, %v1024
      %1138 = vst.msk [vmem:[#allocation3 + $0x5c] sm:$0xf] %vm1114, %v1026
      %1139 = vst.msk [vmem:[#allocation3 + $0x60] sm:$0xf] %vm1114, %v1028
      %1140 = vst.msk [vmem:[#allocation3 + $0x64] sm:$0xf] %vm1114, %v1030
      %1141 = vst.msk [vmem:[#allocation3 + $0x68] sm:$0xf] %vm1114, %v1032
      %1142 = vst.msk [vmem:[#allocation3 + $0x6c] sm:$0xf] %vm1114, %v1034
      %1143 = vst.msk [vmem:[#allocation3 + $0x70] sm:$0xf] %vm1114, %v1036
      %1144 = vst.msk [vmem:[#allocation3 + $0x74] sm:$0xf] %vm1114, %v1038
      %1145 = vst.msk [vmem:[#allocation3 + $0x78] sm:$0xf] %vm1114, %v1040
      %1146 = vst.msk [vmem:[#allocation3 + $0x7c] sm:$0xf] %vm1114, %v1042
      %1147 = vst.msk [vmem:[#allocation3 + $0x80] sm:$0xf] %vm1114, %v1044
      %1148 = vst.msk [vmem:[#allocation3 + $0x84] sm:$0xf] %vm1114, %v1046
      %1149 = vst.msk [vmem:[#allocation3 + $0x88] sm:$0xf] %vm1114, %v1048
      %1150 = vst.msk [vmem:[#allocation3 + $0x8c] sm:$0xf] %vm1114, %v1050
      %1151 = vst.msk [vmem:[#allocation3 + $0x90] sm:$0xf] %vm1114, %v1052
      %1152 = vst.msk [vmem:[#allocation3 + $0x94] sm:$0xf] %vm1114, %v1054
      %1153 = vst.msk [vmem:[#allocation3 + $0x98] sm:$0xf] %vm1114, %v1056
      %1154 = vst.msk [vmem:[#allocation3 + $0x9c] sm:$0xf] %vm1114, %v1058
      %1155 = vst.msk [vmem:[#allocation3 + $0xa0] sm:$0xf] %vm1114, %v1060
      %1156 = vst.msk [vmem:[#allocation3 + $0xa4] sm:$0xf] %vm1114, %v1062
      %1157 = vst.msk [vmem:[#allocation3 + $0xa8] sm:$0xf] %vm1114, %v1064
      %1158 = vst.msk [vmem:[#allocation3 + $0xac] sm:$0xf] %vm1114, %v1066
      %1159 = vst.msk [vmem:[#allocation3 + $0xb0] sm:$0xf] %vm1114, %v1068
      %v1160 = vld [vmem:[#allocation2] sm:$0xe]
      %v1161 = vld [vmem:[#allocation2 + $0x4] sm:$0xf]
      %v1162 = vld [vmem:[#allocation2 + $0x8] sm:$0xf]
      %v1163 = vld [vmem:[#allocation2 + $0xc] sm:$0xf]
      %v1164 = vld [vmem:[#allocation2 + $0x10] sm:$0xf]
      %v1165 = vld [vmem:[#allocation2 + $0x14] sm:$0xf]
      %v1166 = vld [vmem:[#allocation2 + $0x18] sm:$0xf]
      %v1167 = vld [vmem:[#allocation2 + $0x1c] sm:$0xf]
      %v1168 = vld [vmem:[#allocation2 + $0x20] sm:$0xf]
      %v1169 = vld [vmem:[#allocation2 + $0x24] sm:$0xf]
      %v1170 = vld [vmem:[#allocation2 + $0x28] sm:$0xf]
      %v1171 = vld [vmem:[#allocation2 + $0x2c] sm:$0xf]
      %v1172 = vld [vmem:[#allocation2 + $0x30] sm:$0xf]
      %v1173 = vld [vmem:[#allocation2 + $0x34] sm:$0xf]
      %v1174 = vld [vmem:[#allocation2 + $0x38] sm:$0xf]
      %v1175 = vld [vmem:[#allocation2 + $0x3c] sm:$0xf]
      %v1176 = vld [vmem:[#allocation2 + $0x40] sm:$0xf]
      %v1177 = vld [vmem:[#allocation2 + $0x44] sm:$0xf]
      %v1178 = vld [vmem:[#allocation2 + $0x48] sm:$0xf]
      %v1179 = vld [vmem:[#allocation2 + $0x4c] sm:$0xf]
      %v1180 = vld [vmem:[#allocation2 + $0x50] sm:$0xf]
      %v1181 = vld [vmem:[#allocation2 + $0x54] sm:$0xf]
      %v1182 = vld [vmem:[#allocation2 + $0x58] sm:$0xf]
      %v1183 = vld [vmem:[#allocation2 + $0x5c] sm:$0xf]
      %v1184 = vld [vmem:[#allocation2 + $0x60] sm:$0xf]
      %v1185 = vld [vmem:[#allocation2 + $0x64] sm:$0xf]
      %v1186 = vld [vmem:[#allocation2 + $0x68] sm:$0xf]
      %v1187 = vld [vmem:[#allocation2 + $0x6c] sm:$0xf]
      %v1188 = vld [vmem:[#allocation2 + $0x70] sm:$0xf]
      %v1189 = vld [vmem:[#allocation2 + $0x74] sm:$0xf]
      %v1190 = vld [vmem:[#allocation2 + $0x78] sm:$0xf]
      %v1191 = vld [vmem:[#allocation2 + $0x7c] sm:$0xf]
      %v1192 = vld [vmem:[#allocation2 + $0x80] sm:$0xf]
      %v1193 = vld [vmem:[#allocation2 + $0x84] sm:$0xf]
      %v1194 = vld [vmem:[#allocation2 + $0x88] sm:$0xf]
      %v1195 = vld [vmem:[#allocation2 + $0x8c] sm:$0xf]
      %v1196 = vld [vmem:[#allocation2 + $0x90] sm:$0xf]
      %v1197 = vld [vmem:[#allocation2 + $0x94] sm:$0xf]
      %v1198 = vld [vmem:[#allocation2 + $0x98] sm:$0xf]
      %v1199 = vld [vmem:[#allocation2 + $0x9c] sm:$0xf]
      %v1200 = vld [vmem:[#allocation2 + $0xa0] sm:$0xf]
      %v1201 = vld [vmem:[#allocation2 + $0xa4] sm:$0xf]
      %v1202 = vld [vmem:[#allocation2 + $0xa8] sm:$0xf]
      %v1203 = vld [vmem:[#allocation2 + $0xac] sm:$0xf]
      %v1204 = vld [vmem:[#allocation2 + $0xb0] sm:$0xf]
      %v1205 = vld [vmem:[#allocation2 + $0xb4] sm:$0x1]
      %vm1252 = vcmask 1042432
      %vm1253 = vcmask 1046532
      %vm1254 = vmor %vm1252, %vm1253
      %v1255 = vrot.slane %v1160, 5
      %v1256 = vrot.slane %v1255, 4
      %v1257 = vrot.slane %v1161, 5
      %v1258 = vsel %vm1254, %v1256, %v1257
      %v1259 = vrot.slane %v1257, 4
      %v1260 = vrot.slane %v1162, 5
      %v1261 = vsel %vm1254, %v1259, %v1260
      %v1262 = vrot.slane %v1260, 4
      %v1263 = vrot.slane %v1163, 5
      %v1264 = vsel %vm1254, %v1262, %v1263
      %v1265 = vrot.slane %v1263, 4
      %v1266 = vrot.slane %v1164, 5
      %v1267 = vsel %vm1254, %v1265, %v1266
      %v1268 = vrot.slane %v1266, 4
      %v1269 = vrot.slane %v1165, 5
      %v1270 = vsel %vm1254, %v1268, %v1269
      %v1271 = vrot.slane %v1269, 4
      %v1272 = vrot.slane %v1166, 5
      %v1273 = vsel %vm1254, %v1271, %v1272
      %v1274 = vrot.slane %v1272, 4
      %v1275 = vrot.slane %v1167, 5
      %v1276 = vsel %vm1254, %v1274, %v1275
      %v1277 = vrot.slane %v1275, 4
      %v1278 = vrot.slane %v1168, 5
      %v1279 = vsel %vm1254, %v1277, %v1278
      %v1280 = vrot.slane %v1278, 4
      %v1281 = vrot.slane %v1169, 5
      %v1282 = vsel %vm1254, %v1280, %v1281
      %v1283 = vrot.slane %v1281, 4
      %v1284 = vrot.slane %v1170, 5
      %v1285 = vsel %vm1254, %v1283, %v1284
      %v1286 = vrot.slane %v1284, 4
      %v1287 = vrot.slane %v1171, 5
      %v1288 = vsel %vm1254, %v1286, %v1287
      %v1289 = vrot.slane %v1287, 4
      %v1290 = vrot.slane %v1172, 5
      %v1291 = vsel %vm1254, %v1289, %v1290
      %v1292 = vrot.slane %v1290, 4
      %v1293 = vrot.slane %v1173, 5
      %v1294 = vsel %vm1254, %v1292, %v1293
      %v1295 = vrot.slane %v1293, 4
      %v1296 = vrot.slane %v1174, 5
      %v1297 = vsel %vm1254, %v1295, %v1296
      %v1298 = vrot.slane %v1296, 4
      %v1299 = vrot.slane %v1175, 5
      %v1300 = vsel %vm1254, %v1298, %v1299
      %v1301 = vrot.slane %v1299, 4
      %v1302 = vrot.slane %v1176, 5
      %v1303 = vsel %vm1254, %v1301, %v1302
      %v1304 = vrot.slane %v1302, 4
      %v1305 = vrot.slane %v1177, 5
      %v1306 = vsel %vm1254, %v1304, %v1305
      %v1307 = vrot.slane %v1305, 4
      %v1308 = vrot.slane %v1178, 5
      %v1309 = vsel %vm1254, %v1307, %v1308
      %v1310 = vrot.slane %v1308, 4
      %v1311 = vrot.slane %v1179, 5
      %v1312 = vsel %vm1254, %v1310, %v1311
      %v1313 = vrot.slane %v1311, 4
      %v1314 = vrot.slane %v1180, 5
      %v1315 = vsel %vm1254, %v1313, %v1314
      %v1316 = vrot.slane %v1314, 4
      %v1317 = vrot.slane %v1181, 5
      %v1318 = vsel %vm1254, %v1316, %v1317
      %v1319 = vrot.slane %v1317, 4
      %v1320 = vrot.slane %v1182, 5
      %v1321 = vsel %vm1254, %v1319, %v1320
      %v1322 = vrot.slane %v1320, 4
      %v1323 = vrot.slane %v1183, 5
      %v1324 = vsel %vm1254, %v1322, %v1323
      %v1325 = vrot.slane %v1323, 4
      %v1326 = vrot.slane %v1184, 5
      %v1327 = vsel %vm1254, %v1325, %v1326
      %v1328 = vrot.slane %v1326, 4
      %v1329 = vrot.slane %v1185, 5
      %v1330 = vsel %vm1254, %v1328, %v1329
      %v1331 = vrot.slane %v1329, 4
      %v1332 = vrot.slane %v1186, 5
      %v1333 = vsel %vm1254, %v1331, %v1332
      %v1334 = vrot.slane %v1332, 4
      %v1335 = vrot.slane %v1187, 5
      %v1336 = vsel %vm1254, %v1334, %v1335
      %v1337 = vrot.slane %v1335, 4
      %v1338 = vrot.slane %v1188, 5
      %v1339 = vsel %vm1254, %v1337, %v1338
      %v1340 = vrot.slane %v1338, 4
      %v1341 = vrot.slane %v1189, 5
      %v1342 = vsel %vm1254, %v1340, %v1341
      %v1343 = vrot.slane %v1341, 4
      %v1344 = vrot.slane %v1190, 5
      %v1345 = vsel %vm1254, %v1343, %v1344
      %v1346 = vrot.slane %v1344, 4
      %v1347 = vrot.slane %v1191, 5
      %v1348 = vsel %vm1254, %v1346, %v1347
      %v1349 = vrot.slane %v1347, 4
      %v1350 = vrot.slane %v1192, 5
      %v1351 = vsel %vm1254, %v1349, %v1350
      %v1352 = vrot.slane %v1350, 4
      %v1353 = vrot.slane %v1193, 5
      %v1354 = vsel %vm1254, %v1352, %v1353
      %v1355 = vrot.slane %v1353, 4
      %v1356 = vrot.slane %v1194, 5
      %v1357 = vsel %vm1254, %v1355, %v1356
      %v1358 = vrot.slane %v1356, 4
      %v1359 = vrot.slane %v1195, 5
      %v1360 = vsel %vm1254, %v1358, %v1359
      %v1361 = vrot.slane %v1359, 4
      %v1362 = vrot.slane %v1196, 5
      %v1363 = vsel %vm1254, %v1361, %v1362
      %v1364 = vrot.slane %v1362, 4
      %v1365 = vrot.slane %v1197, 5
      %v1366 = vsel %vm1254, %v1364, %v1365
      %v1367 = vrot.slane %v1365, 4
      %v1368 = vrot.slane %v1198, 5
      %v1369 = vsel %vm1254, %v1367, %v1368
      %v1370 = vrot.slane %v1368, 4
      %v1371 = vrot.slane %v1199, 5
      %v1372 = vsel %vm1254, %v1370, %v1371
      %v1373 = vrot.slane %v1371, 4
      %v1374 = vrot.slane %v1200, 5
      %v1375 = vsel %vm1254, %v1373, %v1374
      %v1376 = vrot.slane %v1374, 4
      %v1377 = vrot.slane %v1201, 5
      %v1378 = vsel %vm1254, %v1376, %v1377
      %v1379 = vrot.slane %v1377, 4
      %v1380 = vrot.slane %v1202, 5
      %v1381 = vsel %vm1254, %v1379, %v1380
      %v1382 = vrot.slane %v1380, 4
      %v1383 = vrot.slane %v1203, 5
      %v1384 = vsel %vm1254, %v1382, %v1383
      %v1385 = vrot.slane %v1383, 4
      %v1386 = vrot.slane %v1204, 5
      %v1387 = vsel %vm1254, %v1385, %v1386
      %v1388 = vrot.slane %v1386, 4
      %v1389 = vrot.slane %v1205, 5
      %v1390 = vsel %vm1254, %v1388, %v1389
      %1391 = vrot.lane.b32.xlu0 %v1258, 8
      %v1392 = vpop.permute.xlu0 %1391
      %1393 = vrot.lane.b32.xlu0 %v1261, 8
      %v1394 = vpop.permute.xlu0 %1393
      %1395 = vrot.lane.b32.xlu0 %v1264, 8
      %v1396 = vpop.permute.xlu0 %1395
      %1397 = vrot.lane.b32.xlu0 %v1267, 8
      %v1398 = vpop.permute.xlu0 %1397
      %1399 = vrot.lane.b32.xlu0 %v1270, 8
      %v1400 = vpop.permute.xlu0 %1399
      %1401 = vrot.lane.b32.xlu0 %v1273, 8
      %v1402 = vpop.permute.xlu0 %1401
      %1403 = vrot.lane.b32.xlu0 %v1276, 8
      %v1404 = vpop.permute.xlu0 %1403
      %1405 = vrot.lane.b32.xlu0 %v1279, 8
      %v1406 = vpop.permute.xlu0 %1405
      %1407 = vrot.lane.b32.xlu0 %v1282, 8
      %v1408 = vpop.permute.xlu0 %1407
      %1409 = vrot.lane.b32.xlu0 %v1285, 8
      %v1410 = vpop.permute.xlu0 %1409
      %1411 = vrot.lane.b32.xlu0 %v1288, 8
      %v1412 = vpop.permute.xlu0 %1411
      %1413 = vrot.lane.b32.xlu0 %v1291, 8
      %v1414 = vpop.permute.xlu0 %1413
      %1415 = vrot.lane.b32.xlu0 %v1294, 8
      %v1416 = vpop.permute.xlu0 %1415
      %1417 = vrot.lane.b32.xlu0 %v1297, 8
      %v1418 = vpop.permute.xlu0 %1417
      %1419 = vrot.lane.b32.xlu0 %v1300, 8
      %v1420 = vpop.permute.xlu0 %1419
      %1421 = vrot.lane.b32.xlu0 %v1303, 8
      %v1422 = vpop.permute.xlu0 %1421
      %1423 = vrot.lane.b32.xlu0 %v1306, 8
      %v1424 = vpop.permute.xlu0 %1423
      %1425 = vrot.lane.b32.xlu0 %v1309, 8
      %v1426 = vpop.permute.xlu0 %1425
      %1427 = vrot.lane.b32.xlu0 %v1312, 8
      %v1428 = vpop.permute.xlu0 %1427
      %1429 = vrot.lane.b32.xlu0 %v1315, 8
      %v1430 = vpop.permute.xlu0 %1429
      %1431 = vrot.lane.b32.xlu0 %v1318, 8
      %v1432 = vpop.permute.xlu0 %1431
      %1433 = vrot.lane.b32.xlu0 %v1321, 8
      %v1434 = vpop.permute.xlu0 %1433
      %1435 = vrot.lane.b32.xlu0 %v1324, 8
      %v1436 = vpop.permute.xlu0 %1435
      %1437 = vrot.lane.b32.xlu0 %v1327, 8
      %v1438 = vpop.permute.xlu0 %1437
      %1439 = vrot.lane.b32.xlu0 %v1330, 8
      %v1440 = vpop.permute.xlu0 %1439
      %1441 = vrot.lane.b32.xlu0 %v1333, 8
      %v1442 = vpop.permute.xlu0 %1441
      %1443 = vrot.lane.b32.xlu0 %v1336, 8
      %v1444 = vpop.permute.xlu0 %1443
      %1445 = vrot.lane.b32.xlu0 %v1339, 8
      %v1446 = vpop.permute.xlu0 %1445
      %1447 = vrot.lane.b32.xlu0 %v1342, 8
      %v1448 = vpop.permute.xlu0 %1447
      %1449 = vrot.lane.b32.xlu0 %v1345, 8
      %v1450 = vpop.permute.xlu0 %1449
      %1451 = vrot.lane.b32.xlu0 %v1348, 8
      %v1452 = vpop.permute.xlu0 %1451
      %1453 = vrot.lane.b32.xlu0 %v1351, 8
      %v1454 = vpop.permute.xlu0 %1453
      %1455 = vrot.lane.b32.xlu0 %v1354, 8
      %v1456 = vpop.permute.xlu0 %1455
      %1457 = vrot.lane.b32.xlu0 %v1357, 8
      %v1458 = vpop.permute.xlu0 %1457
      %1459 = vrot.lane.b32.xlu0 %v1360, 8
      %v1460 = vpop.permute.xlu0 %1459
      %1461 = vrot.lane.b32.xlu0 %v1363, 8
      %v1462 = vpop.permute.xlu0 %1461
      %1463 = vrot.lane.b32.xlu0 %v1366, 8
      %v1464 = vpop.permute.xlu0 %1463
      %1465 = vrot.lane.b32.xlu0 %v1369, 8
      %v1466 = vpop.permute.xlu0 %1465
      %1467 = vrot.lane.b32.xlu0 %v1372, 8
      %v1468 = vpop.permute.xlu0 %1467
      %1469 = vrot.lane.b32.xlu0 %v1375, 8
      %v1470 = vpop.permute.xlu0 %1469
      %1471 = vrot.lane.b32.xlu0 %v1378, 8
      %v1472 = vpop.permute.xlu0 %1471
      %1473 = vrot.lane.b32.xlu0 %v1381, 8
      %v1474 = vpop.permute.xlu0 %1473
      %1475 = vrot.lane.b32.xlu0 %v1384, 8
      %v1476 = vpop.permute.xlu0 %1475
      %1477 = vrot.lane.b32.xlu0 %v1387, 8
      %v1478 = vpop.permute.xlu0 %1477
      %1479 = vrot.lane.b32.xlu0 %v1390, 8
      %v1480 = vpop.permute.xlu0 %1479
      %vm1526 = vcmask 93248
      %1527 = vst.msk [vmem:[#allocation3] sm:$0xf] %vm1526, %v1392
      %1528 = vst.msk [vmem:[#allocation3 + $0x4] sm:$0xf] %vm1526, %v1394
      %1529 = vst.msk [vmem:[#allocation3 + $0x8] sm:$0xf] %vm1526, %v1396
      %1530 = vst.msk [vmem:[#allocation3 + $0xc] sm:$0xf] %vm1526, %v1398
      %1531 = vst.msk [vmem:[#allocation3 + $0x10] sm:$0xf] %vm1526, %v1400
      %1532 = vst.msk [vmem:[#allocation3 + $0x14] sm:$0xf] %vm1526, %v1402
      %1533 = vst.msk [vmem:[#allocation3 + $0x18] sm:$0xf] %vm1526, %v1404
      %1534 = vst.msk [vmem:[#allocation3 + $0x1c] sm:$0xf] %vm1526, %v1406
      %1535 = vst.msk [vmem:[#allocation3 + $0x20] sm:$0xf] %vm1526, %v1408
      %1536 = vst.msk [vmem:[#allocation3 + $0x24] sm:$0xf] %vm1526, %v1410
      %1537 = vst.msk [vmem:[#allocation3 + $0x28] sm:$0xf] %vm1526, %v1412
      %1538 = vst.msk [vmem:[#allocation3 + $0x2c] sm:$0xf] %vm1526, %v1414
      %1539 = vst.msk [vmem:[#allocation3 + $0x30] sm:$0xf] %vm1526, %v1416
      %1540 = vst.msk [vmem:[#allocation3 + $0x34] sm:$0xf] %vm1526, %v1418
      %1541 = vst.msk [vmem:[#allocation3 + $0x38] sm:$0xf] %vm1526, %v1420
      %1542 = vst.msk [vmem:[#allocation3 + $0x3c] sm:$0xf] %vm1526, %v1422
      %1543 = vst.msk [vmem:[#allocation3 + $0x40] sm:$0xf] %vm1526, %v1424
      %1544 = vst.msk [vmem:[#allocation3 + $0x44] sm:$0xf] %vm1526, %v1426
      %1545 = vst.msk [vmem:[#allocation3 + $0x48] sm:$0xf] %vm1526, %v1428
      %1546 = vst.msk [vmem:[#allocation3 + $0x4c] sm:$0xf] %vm1526, %v1430
      %1547 = vst.msk [vmem:[#allocation3 + $0x50] sm:$0xf] %vm1526, %v1432
      %1548 = vst.msk [vmem:[#allocation3 + $0x54] sm:$0xf] %vm1526, %v1434
      %1549 = vst.msk [vmem:[#allocation3 + $0x58] sm:$0xf] %vm1526, %v1436
      %1550 = vst.msk [vmem:[#allocation3 + $0x5c] sm:$0xf] %vm1526, %v1438
      %1551 = vst.msk [vmem:[#allocation3 + $0x60] sm:$0xf] %vm1526, %v1440
      %1552 = vst.msk [vmem:[#allocation3 + $0x64] sm:$0xf] %vm1526, %v1442
      %1553 = vst.msk [vmem:[#allocation3 + $0x68] sm:$0xf] %vm1526, %v1444
      %1554 = vst.msk [vmem:[#allocation3 + $0x6c] sm:$0xf] %vm1526, %v1446
      %1555 = vst.msk [vmem:[#allocation3 + $0x70] sm:$0xf] %vm1526, %v1448
      %1556 = vst.msk [vmem:[#allocation3 + $0x74] sm:$0xf] %vm1526, %v1450
      %1557 = vst.msk [vmem:[#allocation3 + $0x78] sm:$0xf] %vm1526, %v1452
      %1558 = vst.msk [vmem:[#allocation3 + $0x7c] sm:$0xf] %vm1526, %v1454
      %1559 = vst.msk [vmem:[#allocation3 + $0x80] sm:$0xf] %vm1526, %v1456
      %1560 = vst.msk [vmem:[#allocation3 + $0x84] sm:$0xf] %vm1526, %v1458
      %1561 = vst.msk [vmem:[#allocation3 + $0x88] sm:$0xf] %vm1526, %v1460
      %1562 = vst.msk [vmem:[#allocation3 + $0x8c] sm:$0xf] %vm1526, %v1462
      %1563 = vst.msk [vmem:[#allocation3 + $0x90] sm:$0xf] %vm1526, %v1464
      %1564 = vst.msk [vmem:[#allocation3 + $0x94] sm:$0xf] %vm1526, %v1466
      %1565 = vst.msk [vmem:[#allocation3 + $0x98] sm:$0xf] %vm1526, %v1468
      %1566 = vst.msk [vmem:[#allocation3 + $0x9c] sm:$0xf] %vm1526, %v1470
      %1567 = vst.msk [vmem:[#allocation3 + $0xa0] sm:$0xf] %vm1526, %v1472
      %1568 = vst.msk [vmem:[#allocation3 + $0xa4] sm:$0xf] %vm1526, %v1474
      %1569 = vst.msk [vmem:[#allocation3 + $0xa8] sm:$0xf] %vm1526, %v1476
      %1570 = vst.msk [vmem:[#allocation3 + $0xac] sm:$0xf] %vm1526, %v1478
      %1571 = vst.msk [vmem:[#allocation3 + $0xb0] sm:$0xf] %vm1526, %v1480
      %v1572 = vld [vmem:[#allocation2 + $0x8] sm:$0xe]
      %v1573 = vld [vmem:[#allocation2 + $0xc] sm:$0xf]
      %v1574 = vld [vmem:[#allocation2 + $0x10] sm:$0xf]
      %v1575 = vld [vmem:[#allocation2 + $0x14] sm:$0xf]
      %v1576 = vld [vmem:[#allocation2 + $0x18] sm:$0xf]
      %v1577 = vld [vmem:[#allocation2 + $0x1c] sm:$0xf]
      %v1578 = vld [vmem:[#allocation2 + $0x20] sm:$0xf]
      %v1579 = vld [vmem:[#allocation2 + $0x24] sm:$0xf]
      %v1580 = vld [vmem:[#allocation2 + $0x28] sm:$0xf]
      %v1581 = vld [vmem:[#allocation2 + $0x2c] sm:$0xf]
      %v1582 = vld [vmem:[#allocation2 + $0x30] sm:$0xf]
      %v1583 = vld [vmem:[#allocation2 + $0x34] sm:$0xf]
      %v1584 = vld [vmem:[#allocation2 + $0x38] sm:$0xf]
      %v1585 = vld [vmem:[#allocation2 + $0x3c] sm:$0xf]
      %v1586 = vld [vmem:[#allocation2 + $0x40] sm:$0xf]
      %v1587 = vld [vmem:[#allocation2 + $0x44] sm:$0xf]
      %v1588 = vld [vmem:[#allocation2 + $0x48] sm:$0xf]
      %v1589 = vld [vmem:[#allocation2 + $0x4c] sm:$0xf]
      %v1590 = vld [vmem:[#allocation2 + $0x50] sm:$0xf]
      %v1591 = vld [vmem:[#allocation2 + $0x54] sm:$0xf]
      %v1592 = vld [vmem:[#allocation2 + $0x58] sm:$0xf]
      %v1593 = vld [vmem:[#allocation2 + $0x5c] sm:$0xf]
      %v1594 = vld [vmem:[#allocation2 + $0x60] sm:$0xf]
      %v1595 = vld [vmem:[#allocation2 + $0x64] sm:$0xf]
      %v1596 = vld [vmem:[#allocation2 + $0x68] sm:$0xf]
      %v1597 = vld [vmem:[#allocation2 + $0x6c] sm:$0xf]
      %v1598 = vld [vmem:[#allocation2 + $0x70] sm:$0xf]
      %v1599 = vld [vmem:[#allocation2 + $0x74] sm:$0xf]
      %v1600 = vld [vmem:[#allocation2 + $0x78] sm:$0xf]
      %v1601 = vld [vmem:[#allocation2 + $0x7c] sm:$0xf]
      %v1602 = vld [vmem:[#allocation2 + $0x80] sm:$0xf]
      %v1603 = vld [vmem:[#allocation2 + $0x84] sm:$0xf]
      %v1604 = vld [vmem:[#allocation2 + $0x88] sm:$0xf]
      %v1605 = vld [vmem:[#allocation2 + $0x8c] sm:$0xf]
      %v1606 = vld [vmem:[#allocation2 + $0x90] sm:$0xf]
      %v1607 = vld [vmem:[#allocation2 + $0x94] sm:$0xf]
      %v1608 = vld [vmem:[#allocation2 + $0x98] sm:$0xf]
      %v1609 = vld [vmem:[#allocation2 + $0x9c] sm:$0xf]
      %v1610 = vld [vmem:[#allocation2 + $0xa0] sm:$0xf]
      %v1611 = vld [vmem:[#allocation2 + $0xa4] sm:$0xf]
      %v1612 = vld [vmem:[#allocation2 + $0xa8] sm:$0xf]
      %v1613 = vld [vmem:[#allocation2 + $0xac] sm:$0xf]
      %v1614 = vld [vmem:[#allocation2 + $0xb0] sm:$0xf]
      %v1615 = vld [vmem:[#allocation2 + $0xb4] sm:$0xf]
      %v1616 = vld [vmem:[#allocation2 + $0xb8] sm:$0xf]
      %v1617 = vld [vmem:[#allocation2 + $0xbc] sm:$0x1]
      %v1664 = vrot.slane %v1572, 5
      %v1665 = vrot.slane %v1664, 4
      %v1666 = vrot.slane %v1573, 5
      %v1667 = vsel %vm1254, %v1665, %v1666
      %v1668 = vrot.slane %v1666, 4
      %v1669 = vrot.slane %v1574, 5
      %v1670 = vsel %vm1254, %v1668, %v1669
      %v1671 = vrot.slane %v1669, 4
      %v1672 = vrot.slane %v1575, 5
      %v1673 = vsel %vm1254, %v1671, %v1672
      %v1674 = vrot.slane %v1672, 4
      %v1675 = vrot.slane %v1576, 5
      %v1676 = vsel %vm1254, %v1674, %v1675
      %v1677 = vrot.slane %v1675, 4
      %v1678 = vrot.slane %v1577, 5
      %v1679 = vsel %vm1254, %v1677, %v1678
      %v1680 = vrot.slane %v1678, 4
      %v1681 = vrot.slane %v1578, 5
      %v1682 = vsel %vm1254, %v1680, %v1681
      %v1683 = vrot.slane %v1681, 4
      %v1684 = vrot.slane %v1579, 5
      %v1685 = vsel %vm1254, %v1683, %v1684
      %v1686 = vrot.slane %v1684, 4
      %v1687 = vrot.slane %v1580, 5
      %v1688 = vsel %vm1254, %v1686, %v1687
      %v1689 = vrot.slane %v1687, 4
      %v1690 = vrot.slane %v1581, 5
      %v1691 = vsel %vm1254, %v1689, %v1690
      %v1692 = vrot.slane %v1690, 4
      %v1693 = vrot.slane %v1582, 5
      %v1694 = vsel %vm1254, %v1692, %v1693
      %v1695 = vrot.slane %v1693, 4
      %v1696 = vrot.slane %v1583, 5
      %v1697 = vsel %vm1254, %v1695, %v1696
      %v1698 = vrot.slane %v1696, 4
      %v1699 = vrot.slane %v1584, 5
      %v1700 = vsel %vm1254, %v1698, %v1699
      %v1701 = vrot.slane %v1699, 4
      %v1702 = vrot.slane %v1585, 5
      %v1703 = vsel %vm1254, %v1701, %v1702
      %v1704 = vrot.slane %v1702, 4
      %v1705 = vrot.slane %v1586, 5
      %v1706 = vsel %vm1254, %v1704, %v1705
      %v1707 = vrot.slane %v1705, 4
      %v1708 = vrot.slane %v1587, 5
      %v1709 = vsel %vm1254, %v1707, %v1708
      %v1710 = vrot.slane %v1708, 4
      %v1711 = vrot.slane %v1588, 5
      %v1712 = vsel %vm1254, %v1710, %v1711
      %v1713 = vrot.slane %v1711, 4
      %v1714 = vrot.slane %v1589, 5
      %v1715 = vsel %vm1254, %v1713, %v1714
      %v1716 = vrot.slane %v1714, 4
      %v1717 = vrot.slane %v1590, 5
      %v1718 = vsel %vm1254, %v1716, %v1717
      %v1719 = vrot.slane %v1717, 4
      %v1720 = vrot.slane %v1591, 5
      %v1721 = vsel %vm1254, %v1719, %v1720
      %v1722 = vrot.slane %v1720, 4
      %v1723 = vrot.slane %v1592, 5
      %v1724 = vsel %vm1254, %v1722, %v1723
      %v1725 = vrot.slane %v1723, 4
      %v1726 = vrot.slane %v1593, 5
      %v1727 = vsel %vm1254, %v1725, %v1726
      %v1728 = vrot.slane %v1726, 4
      %v1729 = vrot.slane %v1594, 5
      %v1730 = vsel %vm1254, %v1728, %v1729
      %v1731 = vrot.slane %v1729, 4
      %v1732 = vrot.slane %v1595, 5
      %v1733 = vsel %vm1254, %v1731, %v1732
      %v1734 = vrot.slane %v1732, 4
      %v1735 = vrot.slane %v1596, 5
      %v1736 = vsel %vm1254, %v1734, %v1735
      %v1737 = vrot.slane %v1735, 4
      %v1738 = vrot.slane %v1597, 5
      %v1739 = vsel %vm1254, %v1737, %v1738
      %v1740 = vrot.slane %v1738, 4
      %v1741 = vrot.slane %v1598, 5
      %v1742 = vsel %vm1254, %v1740, %v1741
      %v1743 = vrot.slane %v1741, 4
      %v1744 = vrot.slane %v1599, 5
      %v1745 = vsel %vm1254, %v1743, %v1744
      %v1746 = vrot.slane %v1744, 4
      %v1747 = vrot.slane %v1600, 5
      %v1748 = vsel %vm1254, %v1746, %v1747
      %v1749 = vrot.slane %v1747, 4
      %v1750 = vrot.slane %v1601, 5
      %v1751 = vsel %vm1254, %v1749, %v1750
      %v1752 = vrot.slane %v1750, 4
      %v1753 = vrot.slane %v1602, 5
      %v1754 = vsel %vm1254, %v1752, %v1753
      %v1755 = vrot.slane %v1753, 4
      %v1756 = vrot.slane %v1603, 5
      %v1757 = vsel %vm1254, %v1755, %v1756
      %v1758 = vrot.slane %v1756, 4
      %v1759 = vrot.slane %v1604, 5
      %v1760 = vsel %vm1254, %v1758, %v1759
      %v1761 = vrot.slane %v1759, 4
      %v1762 = vrot.slane %v1605, 5
      %v1763 = vsel %vm1254, %v1761, %v1762
      %v1764 = vrot.slane %v1762, 4
      %v1765 = vrot.slane %v1606, 5
      %v1766 = vsel %vm1254, %v1764, %v1765
      %v1767 = vrot.slane %v1765, 4
      %v1768 = vrot.slane %v1607, 5
      %v1769 = vsel %vm1254, %v1767, %v1768
      %v1770 = vrot.slane %v1768, 4
      %v1771 = vrot.slane %v1608, 5
      %v1772 = vsel %vm1254, %v1770, %v1771
      %v1773 = vrot.slane %v1771, 4
      %v1774 = vrot.slane %v1609, 5
      %v1775 = vsel %vm1254, %v1773, %v1774
      %v1776 = vrot.slane %v1774, 4
      %v1777 = vrot.slane %v1610, 5
      %v1778 = vsel %vm1254, %v1776, %v1777
      %v1779 = vrot.slane %v1777, 4
      %v1780 = vrot.slane %v1611, 5
      %v1781 = vsel %vm1254, %v1779, %v1780
      %v1782 = vrot.slane %v1780, 4
      %v1783 = vrot.slane %v1612, 5
      %v1784 = vsel %vm1254, %v1782, %v1783
      %v1785 = vrot.slane %v1783, 4
      %v1786 = vrot.slane %v1613, 5
      %v1787 = vsel %vm1254, %v1785, %v1786
      %v1788 = vrot.slane %v1786, 4
      %v1789 = vrot.slane %v1614, 5
      %v1790 = vsel %vm1254, %v1788, %v1789
      %v1791 = vrot.slane %v1789, 4
      %v1792 = vrot.slane %v1615, 5
      %v1793 = vsel %vm1254, %v1791, %v1792
      %v1794 = vrot.slane %v1792, 4
      %v1795 = vrot.slane %v1616, 5
      %v1796 = vsel %vm1254, %v1794, %v1795
      %v1797 = vrot.slane %v1795, 4
      %v1798 = vrot.slane %v1617, 5
      %v1799 = vsel %vm1254, %v1797, %v1798
      %1800 = vrot.lane.b32.xlu0 %v1667, 12
      %v1801 = vpop.permute.xlu0 %1800
      %1802 = vrot.lane.b32.xlu0 %v1670, 12
      %v1803 = vpop.permute.xlu0 %1802
      %1804 = vrot.lane.b32.xlu0 %v1673, 12
      %v1805 = vpop.permute.xlu0 %1804
      %1806 = vrot.lane.b32.xlu0 %v1676, 12
      %v1807 = vpop.permute.xlu0 %1806
      %1808 = vrot.lane.b32.xlu0 %v1679, 12
      %v1809 = vpop.permute.xlu0 %1808
      %1810 = vrot.lane.b32.xlu0 %v1682, 12
      %v1811 = vpop.permute.xlu0 %1810
      %1812 = vrot.lane.b32.xlu0 %v1685, 12
      %v1813 = vpop.permute.xlu0 %1812
      %1814 = vrot.lane.b32.xlu0 %v1688, 12
      %v1815 = vpop.permute.xlu0 %1814
      %1816 = vrot.lane.b32.xlu0 %v1691, 12
      %v1817 = vpop.permute.xlu0 %1816
      %1818 = vrot.lane.b32.xlu0 %v1694, 12
      %v1819 = vpop.permute.xlu0 %1818
      %1820 = vrot.lane.b32.xlu0 %v1697, 12
      %v1821 = vpop.permute.xlu0 %1820
      %1822 = vrot.lane.b32.xlu0 %v1700, 12
      %v1823 = vpop.permute.xlu0 %1822
      %1824 = vrot.lane.b32.xlu0 %v1703, 12
      %v1825 = vpop.permute.xlu0 %1824
      %1826 = vrot.lane.b32.xlu0 %v1706, 12
      %v1827 = vpop.permute.xlu0 %1826
      %1828 = vrot.lane.b32.xlu0 %v1709, 12
      %v1829 = vpop.permute.xlu0 %1828
      %1830 = vrot.lane.b32.xlu0 %v1712, 12
      %v1831 = vpop.permute.xlu0 %1830
      %1832 = vrot.lane.b32.xlu0 %v1715, 12
      %v1833 = vpop.permute.xlu0 %1832
      %1834 = vrot.lane.b32.xlu0 %v1718, 12
      %v1835 = vpop.permute.xlu0 %1834
      %1836 = vrot.lane.b32.xlu0 %v1721, 12
      %v1837 = vpop.permute.xlu0 %1836
      %1838 = vrot.lane.b32.xlu0 %v1724, 12
      %v1839 = vpop.permute.xlu0 %1838
      %1840 = vrot.lane.b32.xlu0 %v1727, 12
      %v1841 = vpop.permute.xlu0 %1840
      %1842 = vrot.lane.b32.xlu0 %v1730, 12
      %v1843 = vpop.permute.xlu0 %1842
      %1844 = vrot.lane.b32.xlu0 %v1733, 12
      %v1845 = vpop.permute.xlu0 %1844
      %1846 = vrot.lane.b32.xlu0 %v1736, 12
      %v1847 = vpop.permute.xlu0 %1846
      %1848 = vrot.lane.b32.xlu0 %v1739, 12
      %v1849 = vpop.permute.xlu0 %1848
      %1850 = vrot.lane.b32.xlu0 %v1742, 12
      %v1851 = vpop.permute.xlu0 %1850
      %1852 = vrot.lane.b32.xlu0 %v1745, 12
      %v1853 = vpop.permute.xlu0 %1852
      %1854 = vrot.lane.b32.xlu0 %v1748, 12
      %v1855 = vpop.permute.xlu0 %1854
      %1856 = vrot.lane.b32.xlu0 %v1751, 12
      %v1857 = vpop.permute.xlu0 %1856
      %1858 = vrot.lane.b32.xlu0 %v1754, 12
      %v1859 = vpop.permute.xlu0 %1858
      %1860 = vrot.lane.b32.xlu0 %v1757, 12
      %v1861 = vpop.permute.xlu0 %1860
      %1862 = vrot.lane.b32.xlu0 %v1760, 12
      %v1863 = vpop.permute.xlu0 %1862
      %1864 = vrot.lane.b32.xlu0 %v1763, 12
      %v1865 = vpop.permute.xlu0 %1864
      %1866 = vrot.lane.b32.xlu0 %v1766, 12
      %v1867 = vpop.permute.xlu0 %1866
      %1868 = vrot.lane.b32.xlu0 %v1769, 12
      %v1869 = vpop.permute.xlu0 %1868
      %1870 = vrot.lane.b32.xlu0 %v1772, 12
      %v1871 = vpop.permute.xlu0 %1870
      %1872 = vrot.lane.b32.xlu0 %v1775, 12
      %v1873 = vpop.permute.xlu0 %1872
      %1874 = vrot.lane.b32.xlu0 %v1778, 12
      %v1875 = vpop.permute.xlu0 %1874
      %1876 = vrot.lane.b32.xlu0 %v1781, 12
      %v1877 = vpop.permute.xlu0 %1876
      %1878 = vrot.lane.b32.xlu0 %v1784, 12
      %v1879 = vpop.permute.xlu0 %1878
      %1880 = vrot.lane.b32.xlu0 %v1787, 12
      %v1881 = vpop.permute.xlu0 %1880
      %1882 = vrot.lane.b32.xlu0 %v1790, 12
      %v1883 = vpop.permute.xlu0 %1882
      %1884 = vrot.lane.b32.xlu0 %v1793, 12
      %v1885 = vpop.permute.xlu0 %1884
      %1886 = vrot.lane.b32.xlu0 %v1796, 12
      %v1887 = vpop.permute.xlu0 %1886
      %1888 = vrot.lane.b32.xlu0 %v1799, 12
      %v1889 = vpop.permute.xlu0 %1888
      %vm1935 = vcmask 126048
      %1936 = vst.msk [vmem:[#allocation3] sm:$0xf] %vm1935, %v1801
      %1937 = vst.msk [vmem:[#allocation3 + $0x4] sm:$0xf] %vm1935, %v1803
      %1938 = vst.msk [vmem:[#allocation3 + $0x8] sm:$0xf] %vm1935, %v1805
      %1939 = vst.msk [vmem:[#allocation3 + $0xc] sm:$0xf] %vm1935, %v1807
      %1940 = vst.msk [vmem:[#allocation3 + $0x10] sm:$0xf] %vm1935, %v1809
      %1941 = vst.msk [vmem:[#allocation3 + $0x14] sm:$0xf] %vm1935, %v1811
      %1942 = vst.msk [vmem:[#allocation3 + $0x18] sm:$0xf] %vm1935, %v1813
      %1943 = vst.msk [vmem:[#allocation3 + $0x1c] sm:$0xf] %vm1935, %v1815
      %1944 = vst.msk [vmem:[#allocation3 + $0x20] sm:$0xf] %vm1935, %v1817
      %1945 = vst.msk [vmem:[#allocation3 + $0x24] sm:$0xf] %vm1935, %v1819
      %1946 = vst.msk [vmem:[#allocation3 + $0x28] sm:$0xf] %vm1935, %v1821
      %1947 = vst.msk [vmem:[#allocation3 + $0x2c] sm:$0xf] %vm1935, %v1823
      %1948 = vst.msk [vmem:[#allocation3 + $0x30] sm:$0xf] %vm1935, %v1825
      %1949 = vst.msk [vmem:[#allocation3 + $0x34] sm:$0xf] %vm1935, %v1827
      %1950 = vst.msk [vmem:[#allocation3 + $0x38] sm:$0xf] %vm1935, %v1829
      %1951 = vst.msk [vmem:[#allocation3 + $0x3c] sm:$0xf] %vm1935, %v1831
      %1952 = vst.msk [vmem:[#allocation3 + $0x40] sm:$0xf] %vm1935, %v1833
      %1953 = vst.msk [vmem:[#allocation3 + $0x44] sm:$0xf] %vm1935, %v1835
      %1954 = vst.msk [vmem:[#allocation3 + $0x48] sm:$0xf] %vm1935, %v1837
      %1955 = vst.msk [vmem:[#allocation3 + $0x4c] sm:$0xf] %vm1935, %v1839
      %1956 = vst.msk [vmem:[#allocation3 + $0x50] sm:$0xf] %vm1935, %v1841
      %1957 = vst.msk [vmem:[#allocation3 + $0x54] sm:$0xf] %vm1935, %v1843
      %1958 = vst.msk [vmem:[#allocation3 + $0x58] sm:$0xf] %vm1935, %v1845
      %1959 = vst.msk [vmem:[#allocation3 + $0x5c] sm:$0xf] %vm1935, %v1847
      %1960 = vst.msk [vmem:[#allocation3 + $0x60] sm:$0xf] %vm1935, %v1849
      %1961 = vst.msk [vmem:[#allocation3 + $0x64] sm:$0xf] %vm1935, %v1851
      %1962 = vst.msk [vmem:[#allocation3 + $0x68] sm:$0xf] %vm1935, %v1853
      %1963 = vst.msk [vmem:[#allocation3 + $0x6c] sm:$0xf] %vm1935, %v1855
      %1964 = vst.msk [vmem:[#allocation3 + $0x70] sm:$0xf] %vm1935, %v1857
      %1965 = vst.msk [vmem:[#allocation3 + $0x74] sm:$0xf] %vm1935, %v1859
      %1966 = vst.msk [vmem:[#allocation3 + $0x78] sm:$0xf] %vm1935, %v1861
      %1967 = vst.msk [vmem:[#allocation3 + $0x7c] sm:$0xf] %vm1935, %v1863
      %1968 = vst.msk [vmem:[#allocation3 + $0x80] sm:$0xf] %vm1935, %v1865
      %1969 = vst.msk [vmem:[#allocation3 + $0x84] sm:$0xf] %vm1935, %v1867
      %1970 = vst.msk [vmem:[#allocation3 + $0x88] sm:$0xf] %vm1935, %v1869
      %1971 = vst.msk [vmem:[#allocation3 + $0x8c] sm:$0xf] %vm1935, %v1871
      %1972 = vst.msk [vmem:[#allocation3 + $0x90] sm:$0xf] %vm1935, %v1873
      %1973 = vst.msk [vmem:[#allocation3 + $0x94] sm:$0xf] %vm1935, %v1875
      %1974 = vst.msk [vmem:[#allocation3 + $0x98] sm:$0xf] %vm1935, %v1877
      %1975 = vst.msk [vmem:[#allocation3 + $0x9c] sm:$0xf] %vm1935, %v1879
      %1976 = vst.msk [vmem:[#allocation3 + $0xa0] sm:$0xf] %vm1935, %v1881
      %1977 = vst.msk [vmem:[#allocation3 + $0xa4] sm:$0xf] %vm1935, %v1883
      %1978 = vst.msk [vmem:[#allocation3 + $0xa8] sm:$0xf] %vm1935, %v1885
      %1979 = vst.msk [vmem:[#allocation3 + $0xac] sm:$0xf] %vm1935, %v1887
      %1980 = vst.msk [vmem:[#allocation3 + $0xb0] sm:$0xf] %vm1935, %v1889
      %v1981 = vld [vmem:[#allocation2 + $0x8] sm:$0xe]
      %v1982 = vld [vmem:[#allocation2 + $0xc] sm:$0xf]
      %v1983 = vld [vmem:[#allocation2 + $0x10] sm:$0xf]
      %v1984 = vld [vmem:[#allocation2 + $0x14] sm:$0xf]
      %v1985 = vld [vmem:[#allocation2 + $0x18] sm:$0xf]
      %v1986 = vld [vmem:[#allocation2 + $0x1c] sm:$0xf]
      %v1987 = vld [vmem:[#allocation2 + $0x20] sm:$0xf]
      %v1988 = vld [vmem:[#allocation2 + $0x24] sm:$0xf]
      %v1989 = vld [vmem:[#allocation2 + $0x28] sm:$0xf]
      %v1990 = vld [vmem:[#allocation2 + $0x2c] sm:$0xf]
      %v1991 = vld [vmem:[#allocation2 + $0x30] sm:$0xf]
      %v1992 = vld [vmem:[#allocation2 + $0x34] sm:$0xf]
      %v1993 = vld [vmem:[#allocation2 + $0x38] sm:$0xf]
      %v1994 = vld [vmem:[#allocation2 + $0x3c] sm:$0xf]
      %v1995 = vld [vmem:[#allocation2 + $0x40] sm:$0xf]
      %v1996 = vld [vmem:[#allocation2 + $0x44] sm:$0xf]
      %v1997 = vld [vmem:[#allocation2 + $0x48] sm:$0xf]
      %v1998 = vld [vmem:[#allocation2 + $0x4c] sm:$0xf]
      %v1999 = vld [vmem:[#allocation2 + $0x50] sm:$0xf]
      %v2000 = vld [vmem:[#allocation2 + $0x54] sm:$0xf]
      %v2001 = vld [vmem:[#allocation2 + $0x58] sm:$0xf]
      %v2002 = vld [vmem:[#allocation2 + $0x5c] sm:$0xf]
      %v2003 = vld [vmem:[#allocation2 + $0x60] sm:$0xf]
      %v2004 = vld [vmem:[#allocation2 + $0x64] sm:$0xf]
      %v2005 = vld [vmem:[#allocation2 + $0x68] sm:$0xf]
      %v2006 = vld [vmem:[#allocation2 + $0x6c] sm:$0xf]
      %v2007 = vld [vmem:[#allocation2 + $0x70] sm:$0xf]
      %v2008 = vld [vmem:[#allocation2 + $0x74] sm:$0xf]
      %v2009 = vld [vmem:[#allocation2 + $0x78] sm:$0xf]
      %v2010 = vld [vmem:[#allocation2 + $0x7c] sm:$0xf]
      %v2011 = vld [vmem:[#allocation2 + $0x80] sm:$0xf]
      %v2012 = vld [vmem:[#allocation2 + $0x84] sm:$0xf]
      %v2013 = vld [vmem:[#allocation2 + $0x88] sm:$0xf]
      %v2014 = vld [vmem:[#allocation2 + $0x8c] sm:$0xf]
      %v2015 = vld [vmem:[#allocation2 + $0x90] sm:$0xf]
      %v2016 = vld [vmem:[#allocation2 + $0x94] sm:$0xf]
      %v2017 = vld [vmem:[#allocation2 + $0x98] sm:$0xf]
      %v2018 = vld [vmem:[#allocation2 + $0x9c] sm:$0xf]
      %v2019 = vld [vmem:[#allocation2 + $0xa0] sm:$0xf]
      %v2020 = vld [vmem:[#allocation2 + $0xa4] sm:$0xf]
      %v2021 = vld [vmem:[#allocation2 + $0xa8] sm:$0xf]
      %v2022 = vld [vmem:[#allocation2 + $0xac] sm:$0xf]
      %v2023 = vld [vmem:[#allocation2 + $0xb0] sm:$0xf]
      %v2024 = vld [vmem:[#allocation2 + $0xb4] sm:$0xf]
      %v2025 = vld [vmem:[#allocation2 + $0xb8] sm:$0xf]
      %v2026 = vld [vmem:[#allocation2 + $0xbc] sm:$0x3]
      %vm2027 = vsmask.f32 2304
      %vm2028 = vsmask.f32 6416
      %vm2029 = vmor %vm2027, %vm2028
      %v2031 = vshrl.u32 %v1981, 16
      %v2033 = vrot.slane %v2031, 5
      %v2034 = vshll.u32 %v1981, 16
      %v2036 = vrot.slane %v2034, 6
      %v2037 = vor.u32 %v2033, %v2036
      %v2038 = vrot.slane %v2037, 4
      %v2040 = vshrl.u32 %v1982, 16
      %v2042 = vrot.slane %v2040, 5
      %v2043 = vshll.u32 %v1982, 16
      %v2045 = vrot.slane %v2043, 6
      %v2046 = vor.u32 %v2042, %v2045
      %v2047 = vsel %vm2029, %v2038, %v2046
      %v2048 = vrot.slane %v2046, 4
      %v2050 = vshrl.u32 %v1983, 16
      %v2052 = vrot.slane %v2050, 5
      %v2053 = vshll.u32 %v1983, 16
      %v2055 = vrot.slane %v2053, 6
      %v2056 = vor.u32 %v2052, %v2055
      %v2057 = vsel %vm2029, %v2048, %v2056
      %v2058 = vrot.slane %v2056, 4
      %v2060 = vshrl.u32 %v1984, 16
      %v2062 = vrot.slane %v2060, 5
      %v2063 = vshll.u32 %v1984, 16
      %v2065 = vrot.slane %v2063, 6
      %v2066 = vor.u32 %v2062, %v2065
      %v2067 = vsel %vm2029, %v2058, %v2066
      %v2068 = vrot.slane %v2066, 4
      %v2070 = vshrl.u32 %v1985, 16
      %v2072 = vrot.slane %v2070, 5
      %v2073 = vshll.u32 %v1985, 16
      %v2075 = vrot.slane %v2073, 6
      %v2076 = vor.u32 %v2072, %v2075
      %v2077 = vsel %vm2029, %v2068, %v2076
      %v2078 = vrot.slane %v2076, 4
      %v2080 = vshrl.u32 %v1986, 16
      %v2082 = vrot.slane %v2080, 5
      %v2083 = vshll.u32 %v1986, 16
      %v2085 = vrot.slane %v2083, 6
      %v2086 = vor.u32 %v2082, %v2085
      %v2087 = vsel %vm2029, %v2078, %v2086
      %v2088 = vrot.slane %v2086, 4
      %v2090 = vshrl.u32 %v1987, 16
      %v2092 = vrot.slane %v2090, 5
      %v2093 = vshll.u32 %v1987, 16
      %v2095 = vrot.slane %v2093, 6
      %v2096 = vor.u32 %v2092, %v2095
      %v2097 = vsel %vm2029, %v2088, %v2096
      %v2098 = vrot.slane %v2096, 4
      %v2100 = vshrl.u32 %v1988, 16
      %v2102 = vrot.slane %v2100, 5
      %v2103 = vshll.u32 %v1988, 16
      %v2105 = vrot.slane %v2103, 6
      %v2106 = vor.u32 %v2102, %v2105
      %v2107 = vsel %vm2029, %v2098, %v2106
      %v2108 = vrot.slane %v2106, 4
      %v2110 = vshrl.u32 %v1989, 16
      %v2112 = vrot.slane %v2110, 5
      %v2113 = vshll.u32 %v1989, 16
      %v2115 = vrot.slane %v2113, 6
      %v2116 = vor.u32 %v2112, %v2115
      %v2117 = vsel %vm2029, %v2108, %v2116
      %v2118 = vrot.slane %v2116, 4
      %v2120 = vshrl.u32 %v1990, 16
      %v2122 = vrot.slane %v2120, 5
      %v2123 = vshll.u32 %v1990, 16
      %v2125 = vrot.slane %v2123, 6
      %v2126 = vor.u32 %v2122, %v2125
      %v2127 = vsel %vm2029, %v2118, %v2126
      %v2128 = vrot.slane %v2126, 4
      %v2130 = vshrl.u32 %v1991, 16
      %v2132 = vrot.slane %v2130, 5
      %v2133 = vshll.u32 %v1991, 16
      %v2135 = vrot.slane %v2133, 6
      %v2136 = vor.u32 %v2132, %v2135
      %v2137 = vsel %vm2029, %v2128, %v2136
      %v2138 = vrot.slane %v2136, 4
      %v2140 = vshrl.u32 %v1992, 16
      %v2142 = vrot.slane %v2140, 5
      %v2143 = vshll.u32 %v1992, 16
      %v2145 = vrot.slane %v2143, 6
      %v2146 = vor.u32 %v2142, %v2145
      %v2147 = vsel %vm2029, %v2138, %v2146
      %v2148 = vrot.slane %v2146, 4
      %v2150 = vshrl.u32 %v1993, 16
      %v2152 = vrot.slane %v2150, 5
      %v2153 = vshll.u32 %v1993, 16
      %v2155 = vrot.slane %v2153, 6
      %v2156 = vor.u32 %v2152, %v2155
      %v2157 = vsel %vm2029, %v2148, %v2156
      %v2158 = vrot.slane %v2156, 4
      %v2160 = vshrl.u32 %v1994, 16
      %v2162 = vrot.slane %v2160, 5
      %v2163 = vshll.u32 %v1994, 16
      %v2165 = vrot.slane %v2163, 6
      %v2166 = vor.u32 %v2162, %v2165
      %v2167 = vsel %vm2029, %v2158, %v2166
      %v2168 = vrot.slane %v2166, 4
      %v2170 = vshrl.u32 %v1995, 16
      %v2172 = vrot.slane %v2170, 5
      %v2173 = vshll.u32 %v1995, 16
      %v2175 = vrot.slane %v2173, 6
      %v2176 = vor.u32 %v2172, %v2175
      %v2177 = vsel %vm2029, %v2168, %v2176
      %v2178 = vrot.slane %v2176, 4
      %v2180 = vshrl.u32 %v1996, 16
      %v2182 = vrot.slane %v2180, 5
      %v2183 = vshll.u32 %v1996, 16
      %v2185 = vrot.slane %v2183, 6
      %v2186 = vor.u32 %v2182, %v2185
      %v2187 = vsel %vm2029, %v2178, %v2186
      %v2188 = vrot.slane %v2186, 4
      %v2190 = vshrl.u32 %v1997, 16
      %v2192 = vrot.slane %v2190, 5
      %v2193 = vshll.u32 %v1997, 16
      %v2195 = vrot.slane %v2193, 6
      %v2196 = vor.u32 %v2192, %v2195
      %v2197 = vsel %vm2029, %v2188, %v2196
      %v2198 = vrot.slane %v2196, 4
      %v2200 = vshrl.u32 %v1998, 16
      %v2202 = vrot.slane %v2200, 5
      %v2203 = vshll.u32 %v1998, 16
      %v2205 = vrot.slane %v2203, 6
      %v2206 = vor.u32 %v2202, %v2205
      %v2207 = vsel %vm2029, %v2198, %v2206
      %v2208 = vrot.slane %v2206, 4
      %v2210 = vshrl.u32 %v1999, 16
      %v2212 = vrot.slane %v2210, 5
      %v2213 = vshll.u32 %v1999, 16
      %v2215 = vrot.slane %v2213, 6
      %v2216 = vor.u32 %v2212, %v2215
      %v2217 = vsel %vm2029, %v2208, %v2216
      %v2218 = vrot.slane %v2216, 4
      %v2220 = vshrl.u32 %v2000, 16
      %v2222 = vrot.slane %v2220, 5
      %v2223 = vshll.u32 %v2000, 16
      %v2225 = vrot.slane %v2223, 6
      %v2226 = vor.u32 %v2222, %v2225
      %v2227 = vsel %vm2029, %v2218, %v2226
      %v2228 = vrot.slane %v2226, 4
      %v2230 = vshrl.u32 %v2001, 16
      %v2232 = vrot.slane %v2230, 5
      %v2233 = vshll.u32 %v2001, 16
      %v2235 = vrot.slane %v2233, 6
      %v2236 = vor.u32 %v2232, %v2235
      %v2237 = vsel %vm2029, %v2228, %v2236
      %v2238 = vrot.slane %v2236, 4
      %v2240 = vshrl.u32 %v2002, 16
      %v2242 = vrot.slane %v2240, 5
      %v2243 = vshll.u32 %v2002, 16
      %v2245 = vrot.slane %v2243, 6
      %v2246 = vor.u32 %v2242, %v2245
      %v2247 = vsel %vm2029, %v2238, %v2246
      %v2248 = vrot.slane %v2246, 4
      %v2250 = vshrl.u32 %v2003, 16
      %v2252 = vrot.slane %v2250, 5
      %v2253 = vshll.u32 %v2003, 16
      %v2255 = vrot.slane %v2253, 6
      %v2256 = vor.u32 %v2252, %v2255
      %v2257 = vsel %vm2029, %v2248, %v2256
      %v2258 = vrot.slane %v2256, 4
      %v2260 = vshrl.u32 %v2004, 16
      %v2262 = vrot.slane %v2260, 5
      %v2263 = vshll.u32 %v2004, 16
      %v2265 = vrot.slane %v2263, 6
      %v2266 = vor.u32 %v2262, %v2265
      %v2267 = vsel %vm2029, %v2258, %v2266
      %v2268 = vrot.slane %v2266, 4
      %v2270 = vshrl.u32 %v2005, 16
      %v2272 = vrot.slane %v2270, 5
      %v2273 = vshll.u32 %v2005, 16
      %v2275 = vrot.slane %v2273, 6
      %v2276 = vor.u32 %v2272, %v2275
      %v2277 = vsel %vm2029, %v2268, %v2276
      %v2278 = vrot.slane %v2276, 4
      %v2280 = vshrl.u32 %v2006, 16
      %v2282 = vrot.slane %v2280, 5
      %v2283 = vshll.u32 %v2006, 16
      %v2285 = vrot.slane %v2283, 6
      %v2286 = vor.u32 %v2282, %v2285
      %v2287 = vsel %vm2029, %v2278, %v2286
      %v2288 = vrot.slane %v2286, 4
      %v2290 = vshrl.u32 %v2007, 16
      %v2292 = vrot.slane %v2290, 5
      %v2293 = vshll.u32 %v2007, 16
      %v2295 = vrot.slane %v2293, 6
      %v2296 = vor.u32 %v2292, %v2295
      %v2297 = vsel %vm2029, %v2288, %v2296
      %v2298 = vrot.slane %v2296, 4
      %v2300 = vshrl.u32 %v2008, 16
      %v2302 = vrot.slane %v2300, 5
      %v2303 = vshll.u32 %v2008, 16
      %v2305 = vrot.slane %v2303, 6
      %v2306 = vor.u32 %v2302, %v2305
      %v2307 = vsel %vm2029, %v2298, %v2306
      %v2308 = vrot.slane %v2306, 4
      %v2310 = vshrl.u32 %v2009, 16
      %v2312 = vrot.slane %v2310, 5
      %v2313 = vshll.u32 %v2009, 16
      %v2315 = vrot.slane %v2313, 6
      %v2316 = vor.u32 %v2312, %v2315
      %v2317 = vsel %vm2029, %v2308, %v2316
      %v2318 = vrot.slane %v2316, 4
      %v2320 = vshrl.u32 %v2010, 16
      %v2322 = vrot.slane %v2320, 5
      %v2323 = vshll.u32 %v2010, 16
      %v2325 = vrot.slane %v2323, 6
      %v2326 = vor.u32 %v2322, %v2325
      %v2327 = vsel %vm2029, %v2318, %v2326
      %v2328 = vrot.slane %v2326, 4
      %v2330 = vshrl.u32 %v2011, 16
      %v2332 = vrot.slane %v2330, 5
      %v2333 = vshll.u32 %v2011, 16
      %v2335 = vrot.slane %v2333, 6
      %v2336 = vor.u32 %v2332, %v2335
      %v2337 = vsel %vm2029, %v2328, %v2336
      %v2338 = vrot.slane %v2336, 4
      %v2340 = vshrl.u32 %v2012, 16
      %v2342 = vrot.slane %v2340, 5
      %v2343 = vshll.u32 %v2012, 16
      %v2345 = vrot.slane %v2343, 6
      %v2346 = vor.u32 %v2342, %v2345
      %v2347 = vsel %vm2029, %v2338, %v2346
      %v2348 = vrot.slane %v2346, 4
      %v2350 = vshrl.u32 %v2013, 16
      %v2352 = vrot.slane %v2350, 5
      %v2353 = vshll.u32 %v2013, 16
      %v2355 = vrot.slane %v2353, 6
      %v2356 = vor.u32 %v2352, %v2355
      %v2357 = vsel %vm2029, %v2348, %v2356
      %v2358 = vrot.slane %v2356, 4
      %v2360 = vshrl.u32 %v2014, 16
      %v2362 = vrot.slane %v2360, 5
      %v2363 = vshll.u32 %v2014, 16
      %v2365 = vrot.slane %v2363, 6
      %v2366 = vor.u32 %v2362, %v2365
      %v2367 = vsel %vm2029, %v2358, %v2366
      %v2368 = vrot.slane %v2366, 4
      %v2370 = vshrl.u32 %v2015, 16
      %v2372 = vrot.slane %v2370, 5
      %v2373 = vshll.u32 %v2015, 16
      %v2375 = vrot.slane %v2373, 6
      %v2376 = vor.u32 %v2372, %v2375
      %v2377 = vsel %vm2029, %v2368, %v2376
      %v2378 = vrot.slane %v2376, 4
      %v2380 = vshrl.u32 %v2016, 16
      %v2382 = vrot.slane %v2380, 5
      %v2383 = vshll.u32 %v2016, 16
      %v2385 = vrot.slane %v2383, 6
      %v2386 = vor.u32 %v2382, %v2385
      %v2387 = vsel %vm2029, %v2378, %v2386
      %v2388 = vrot.slane %v2386, 4
      %v2390 = vshrl.u32 %v2017, 16
      %v2392 = vrot.slane %v2390, 5
      %v2393 = vshll.u32 %v2017, 16
      %v2395 = vrot.slane %v2393, 6
      %v2396 = vor.u32 %v2392, %v2395
      %v2397 = vsel %vm2029, %v2388, %v2396
      %v2398 = vrot.slane %v2396, 4
      %v2400 = vshrl.u32 %v2018, 16
      %v2402 = vrot.slane %v2400, 5
      %v2403 = vshll.u32 %v2018, 16
      %v2405 = vrot.slane %v2403, 6
      %v2406 = vor.u32 %v2402, %v2405
      %v2407 = vsel %vm2029, %v2398, %v2406
      %v2408 = vrot.slane %v2406, 4
      %v2410 = vshrl.u32 %v2019, 16
      %v2412 = vrot.slane %v2410, 5
      %v2413 = vshll.u32 %v2019, 16
      %v2415 = vrot.slane %v2413, 6
      %v2416 = vor.u32 %v2412, %v2415
      %v2417 = vsel %vm2029, %v2408, %v2416
      %v2418 = vrot.slane %v2416, 4
      %v2420 = vshrl.u32 %v2020, 16
      %v2422 = vrot.slane %v2420, 5
      %v2423 = vshll.u32 %v2020, 16
      %v2425 = vrot.slane %v2423, 6
      %v2426 = vor.u32 %v2422, %v2425
      %v2427 = vsel %vm2029, %v2418, %v2426
      %v2428 = vrot.slane %v2426, 4
      %v2430 = vshrl.u32 %v2021, 16
      %v2432 = vrot.slane %v2430, 5
      %v2433 = vshll.u32 %v2021, 16
      %v2435 = vrot.slane %v2433, 6
      %v2436 = vor.u32 %v2432, %v2435
      %v2437 = vsel %vm2029, %v2428, %v2436
      %v2438 = vrot.slane %v2436, 4
      %v2440 = vshrl.u32 %v2022, 16
      %v2442 = vrot.slane %v2440, 5
      %v2443 = vshll.u32 %v2022, 16
      %v2445 = vrot.slane %v2443, 6
      %v2446 = vor.u32 %v2442, %v2445
      %v2447 = vsel %vm2029, %v2438, %v2446
      %v2448 = vrot.slane %v2446, 4
      %v2450 = vshrl.u32 %v2023, 16
      %v2452 = vrot.slane %v2450, 5
      %v2453 = vshll.u32 %v2023, 16
      %v2455 = vrot.slane %v2453, 6
      %v2456 = vor.u32 %v2452, %v2455
      %v2457 = vsel %vm2029, %v2448, %v2456
      %v2458 = vrot.slane %v2456, 4
      %v2460 = vshrl.u32 %v2024, 16
      %v2462 = vrot.slane %v2460, 5
      %v2463 = vshll.u32 %v2024, 16
      %v2465 = vrot.slane %v2463, 6
      %v2466 = vor.u32 %v2462, %v2465
      %v2467 = vsel %vm2029, %v2458, %v2466
      %v2468 = vrot.slane %v2466, 4
      %v2470 = vshrl.u32 %v2025, 16
      %v2472 = vrot.slane %v2470, 5
      %v2473 = vshll.u32 %v2025, 16
      %v2475 = vrot.slane %v2473, 6
      %v2476 = vor.u32 %v2472, %v2475
      %v2477 = vsel %vm2029, %v2468, %v2476
      %v2478 = vrot.slane %v2476, 4
      %v2480 = vshrl.u32 %v2026, 16
      %v2482 = vrot.slane %v2480, 5
      %v2483 = vshll.u32 %v2026, 16
      %v2485 = vrot.slane %v2483, 6
      %v2486 = vor.u32 %v2482, %v2485
      %v2487 = vsel %vm2029, %v2478, %v2486
      %2488 = vrot.lane.b32.xlu0 %v2047, 16
      %v2489 = vpop.permute.xlu0 %2488
      %2490 = vrot.lane.b32.xlu0 %v2057, 16
      %v2491 = vpop.permute.xlu0 %2490
      %2492 = vrot.lane.b32.xlu0 %v2067, 16
      %v2493 = vpop.permute.xlu0 %2492
      %2494 = vrot.lane.b32.xlu0 %v2077, 16
      %v2495 = vpop.permute.xlu0 %2494
      %2496 = vrot.lane.b32.xlu0 %v2087, 16
      %v2497 = vpop.permute.xlu0 %2496
      %2498 = vrot.lane.b32.xlu0 %v2097, 16
      %v2499 = vpop.permute.xlu0 %2498
      %2500 = vrot.lane.b32.xlu0 %v2107, 16
      %v2501 = vpop.permute.xlu0 %2500
      %2502 = vrot.lane.b32.xlu0 %v2117, 16
      %v2503 = vpop.permute.xlu0 %2502
      %2504 = vrot.lane.b32.xlu0 %v2127, 16
      %v2505 = vpop.permute.xlu0 %2504
      %2506 = vrot.lane.b32.xlu0 %v2137, 16
      %v2507 = vpop.permute.xlu0 %2506
      %2508 = vrot.lane.b32.xlu0 %v2147, 16
      %v2509 = vpop.permute.xlu0 %2508
      %2510 = vrot.lane.b32.xlu0 %v2157, 16
      %v2511 = vpop.permute.xlu0 %2510
      %2512 = vrot.lane.b32.xlu0 %v2167, 16
      %v2513 = vpop.permute.xlu0 %2512
      %2514 = vrot.lane.b32.xlu0 %v2177, 16
      %v2515 = vpop.permute.xlu0 %2514
      %2516 = vrot.lane.b32.xlu0 %v2187, 16
      %v2517 = vpop.permute.xlu0 %2516
      %2518 = vrot.lane.b32.xlu0 %v2197, 16
      %v2519 = vpop.permute.xlu0 %2518
      %2520 = vrot.lane.b32.xlu0 %v2207, 16
      %v2521 = vpop.permute.xlu0 %2520
      %2522 = vrot.lane.b32.xlu0 %v2217, 16
      %v2523 = vpop.permute.xlu0 %2522
      %2524 = vrot.lane.b32.xlu0 %v2227, 16
      %v2525 = vpop.permute.xlu0 %2524
      %2526 = vrot.lane.b32.xlu0 %v2237, 16
      %v2527 = vpop.permute.xlu0 %2526
      %2528 = vrot.lane.b32.xlu0 %v2247, 16
      %v2529 = vpop.permute.xlu0 %2528
      %2530 = vrot.lane.b32.xlu0 %v2257, 16
      %v2531 = vpop.permute.xlu0 %2530
      %2532 = vrot.lane.b32.xlu0 %v2267, 16
      %v2533 = vpop.permute.xlu0 %2532
      %2534 = vrot.lane.b32.xlu0 %v2277, 16
      %v2535 = vpop.permute.xlu0 %2534
      %2536 = vrot.lane.b32.xlu0 %v2287, 16
      %v2537 = vpop.permute.xlu0 %2536
      %2538 = vrot.lane.b32.xlu0 %v2297, 16
      %v2539 = vpop.permute.xlu0 %2538
      %2540 = vrot.lane.b32.xlu0 %v2307, 16
      %v2541 = vpop.permute.xlu0 %2540
      %2542 = vrot.lane.b32.xlu0 %v2317, 16
      %v2543 = vpop.permute.xlu0 %2542
      %2544 = vrot.lane.b32.xlu0 %v2327, 16
      %v2545 = vpop.permute.xlu0 %2544
      %2546 = vrot.lane.b32.xlu0 %v2337, 16
      %v2547 = vpop.permute.xlu0 %2546
      %2548 = vrot.lane.b32.xlu0 %v2347, 16
      %v2549 = vpop.permute.xlu0 %2548
      %2550 = vrot.lane.b32.xlu0 %v2357, 16
      %v2551 = vpop.permute.xlu0 %2550
      %2552 = vrot.lane.b32.xlu0 %v2367, 16
      %v2553 = vpop.permute.xlu0 %2552
      %2554 = vrot.lane.b32.xlu0 %v2377, 16
      %v2555 = vpop.permute.xlu0 %2554
      %2556 = vrot.lane.b32.xlu0 %v2387, 16
      %v2557 = vpop.permute.xlu0 %2556
      %2558 = vrot.lane.b32.xlu0 %v2397, 16
      %v2559 = vpop.permute.xlu0 %2558
      %2560 = vrot.lane.b32.xlu0 %v2407, 16
      %v2561 = vpop.permute.xlu0 %2560
      %2562 = vrot.lane.b32.xlu0 %v2417, 16
      %v2563 = vpop.permute.xlu0 %2562
      %2564 = vrot.lane.b32.xlu0 %v2427, 16
      %v2565 = vpop.permute.xlu0 %2564
      %2566 = vrot.lane.b32.xlu0 %v2437, 16
      %v2567 = vpop.permute.xlu0 %2566
      %2568 = vrot.lane.b32.xlu0 %v2447, 16
      %v2569 = vpop.permute.xlu0 %2568
      %2570 = vrot.lane.b32.xlu0 %v2457, 16
      %v2571 = vpop.permute.xlu0 %2570
      %2572 = vrot.lane.b32.xlu0 %v2467, 16
      %v2573 = vpop.permute.xlu0 %2572
      %2574 = vrot.lane.b32.xlu0 %v2477, 16
      %v2575 = vpop.permute.xlu0 %2574
      %2576 = vrot.lane.b32.xlu0 %v2487, 16
      %v2577 = vpop.permute.xlu0 %2576
      %vm2623 = vcmask 158848
      %2624 = vst.msk [vmem:[#allocation3] sm:$0xf] %vm2623, %v2489
      %2625 = vst.msk [vmem:[#allocation3 + $0x4] sm:$0xf] %vm2623, %v2491
      %2626 = vst.msk [vmem:[#allocation3 + $0x8] sm:$0xf] %vm2623, %v2493
      %2627 = vst.msk [vmem:[#allocation3 + $0xc] sm:$0xf] %vm2623, %v2495
      %2628 = vst.msk [vmem:[#allocation3 + $0x10] sm:$0xf] %vm2623, %v2497
      %2629 = vst.msk [vmem:[#allocation3 + $0x14] sm:$0xf] %vm2623, %v2499
      %2630 = vst.msk [vmem:[#allocation3 + $0x18] sm:$0xf] %vm2623, %v2501
      %2631 = vst.msk [vmem:[#allocation3 + $0x1c] sm:$0xf] %vm2623, %v2503
      %2632 = vst.msk [vmem:[#allocation3 + $0x20] sm:$0xf] %vm2623, %v2505
      %2633 = vst.msk [vmem:[#allocation3 + $0x24] sm:$0xf] %vm2623, %v2507
      %2634 = vst.msk [vmem:[#allocation3 + $0x28] sm:$0xf] %vm2623, %v2509
      %2635 = vst.msk [vmem:[#allocation3 + $0x2c] sm:$0xf] %vm2623, %v2511
      %2636 = vst.msk [vmem:[#allocation3 + $0x30] sm:$0xf] %vm2623, %v2513
      %2637 = vst.msk [vmem:[#allocation3 + $0x34] sm:$0xf] %vm2623, %v2515
      %2638 = vst.msk [vmem:[#allocation3 + $0x38] sm:$0xf] %vm2623, %v2517
      %2639 = vst.msk [vmem:[#allocation3 + $0x3c] sm:$0xf] %vm2623, %v2519
      %2640 = vst.msk [vmem:[#allocation3 + $0x40] sm:$0xf] %vm2623, %v2521
      %2641 = vst.msk [vmem:[#allocation3 + $0x44] sm:$0xf] %vm2623, %v2523
      %2642 = vst.msk [vmem:[#allocation3 + $0x48] sm:$0xf] %vm2623, %v2525
      %2643 = vst.msk [vmem:[#allocation3 + $0x4c] sm:$0xf] %vm2623, %v2527
      %2644 = vst.msk [vmem:[#allocation3 + $0x50] sm:$0xf] %vm2623, %v2529
      %2645 = vst.msk [vmem:[#allocation3 + $0x54] sm:$0xf] %vm2623, %v2531
      %2646 = vst.msk [vmem:[#allocation3 + $0x58] sm:$0xf] %vm2623, %v2533
      %2647 = vst.msk [vmem:[#allocation3 + $0x5c] sm:$0xf] %vm2623, %v2535
      %2648 = vst.msk [vmem:[#allocation3 + $0x60] sm:$0xf] %vm2623, %v2537
      %2649 = vst.msk [vmem:[#allocation3 + $0x64] sm:$0xf] %vm2623, %v2539
      %2650 = vst.msk [vmem:[#allocation3 + $0x68] sm:$0xf] %vm2623, %v2541
      %2651 = vst.msk [vmem:[#allocation3 + $0x6c] sm:$0xf] %vm2623, %v2543
      %2652 = vst.msk [vmem:[#allocation3 + $0x70] sm:$0xf] %vm2623, %v2545
      %2653 = vst.msk [vmem:[#allocation3 + $0x74] sm:$0xf] %vm2623, %v2547
      %2654 = vst.msk [vmem:[#allocation3 + $0x78] sm:$0xf] %vm2623, %v2549
      %2655 = vst.msk [vmem:[#allocation3 + $0x7c] sm:$0xf] %vm2623, %v2551
      %2656 = vst.msk [vmem:[#allocation3 + $0x80] sm:$0xf] %vm2623, %v2553
      %2657 = vst.msk [vmem:[#allocation3 + $0x84] sm:$0xf] %vm2623, %v2555
      %2658 = vst.msk [vmem:[#allocation3 + $0x88] sm:$0xf] %vm2623, %v2557
      %2659 = vst.msk [vmem:[#allocation3 + $0x8c] sm:$0xf] %vm2623, %v2559
      %2660 = vst.msk [vmem:[#allocation3 + $0x90] sm:$0xf] %vm2623, %v2561
      %2661 = vst.msk [vmem:[#allocation3 + $0x94] sm:$0xf] %vm2623, %v2563
      %2662 = vst.msk [vmem:[#allocation3 + $0x98] sm:$0xf] %vm2623, %v2565
      %2663 = vst.msk [vmem:[#allocation3 + $0x9c] sm:$0xf] %vm2623, %v2567
      %2664 = vst.msk [vmem:[#allocation3 + $0xa0] sm:$0xf] %vm2623, %v2569
      %2665 = vst.msk [vmem:[#allocation3 + $0xa4] sm:$0xf] %vm2623, %v2571
      %2666 = vst.msk [vmem:[#allocation3 + $0xa8] sm:$0xf] %vm2623, %v2573
      %2667 = vst.msk [vmem:[#allocation3 + $0xac] sm:$0xf] %vm2623, %v2575
      %2668 = vst.msk [vmem:[#allocation3 + $0xb0] sm:$0xf] %vm2623, %v2577
      %v2669 = vld [vmem:[#allocation2 + $0x8] sm:$0xc]
      %v2670 = vld [vmem:[#allocation2 + $0xc] sm:$0xf]
      %v2671 = vld [vmem:[#allocation2 + $0x10] sm:$0xf]
      %v2672 = vld [vmem:[#allocation2 + $0x14] sm:$0xf]
      %v2673 = vld [vmem:[#allocation2 + $0x18] sm:$0xf]
      %v2674 = vld [vmem:[#allocation2 + $0x1c] sm:$0xf]
      %v2675 = vld [vmem:[#allocation2 + $0x20] sm:$0xf]
      %v2676 = vld [vmem:[#allocation2 + $0x24] sm:$0xf]
      %v2677 = vld [vmem:[#allocation2 + $0x28] sm:$0xf]
      %v2678 = vld [vmem:[#allocation2 + $0x2c] sm:$0xf]
      %v2679 = vld [vmem:[#allocation2 + $0x30] sm:$0xf]
      %v2680 = vld [vmem:[#allocation2 + $0x34] sm:$0xf]
      %v2681 = vld [vmem:[#allocation2 + $0x38] sm:$0xf]
      %v2682 = vld [vmem:[#allocation2 + $0x3c] sm:$0xf]
      %v2683 = vld [vmem:[#allocation2 + $0x40] sm:$0xf]
      %v2684 = vld [vmem:[#allocation2 + $0x44] sm:$0xf]
      %v2685 = vld [vmem:[#allocation2 + $0x48] sm:$0xf]
      %v2686 = vld [vmem:[#allocation2 + $0x4c] sm:$0xf]
      %v2687 = vld [vmem:[#allocation2 + $0x50] sm:$0xf]
      %v2688 = vld [vmem:[#allocation2 + $0x54] sm:$0xf]
      %v2689 = vld [vmem:[#allocation2 + $0x58] sm:$0xf]
      %v2690 = vld [vmem:[#allocation2 + $0x5c] sm:$0xf]
      %v2691 = vld [vmem:[#allocation2 + $0x60] sm:$0xf]
      %v2692 = vld [vmem:[#allocation2 + $0x64] sm:$0xf]
      %v2693 = vld [vmem:[#allocation2 + $0x68] sm:$0xf]
      %v2694 = vld [vmem:[#allocation2 + $0x6c] sm:$0xf]
      %v2695 = vld [vmem:[#allocation2 + $0x70] sm:$0xf]
      %v2696 = vld [vmem:[#allocation2 + $0x74] sm:$0xf]
      %v2697 = vld [vmem:[#allocation2 + $0x78] sm:$0xf]
      %v2698 = vld [vmem:[#allocation2 + $0x7c] sm:$0xf]
      %v2699 = vld [vmem:[#allocation2 + $0x80] sm:$0xf]
      %v2700 = vld [vmem:[#allocation2 + $0x84] sm:$0xf]
      %v2701 = vld [vmem:[#allocation2 + $0x88] sm:$0xf]
      %v2702 = vld [vmem:[#allocation2 + $0x8c] sm:$0xf]
      %v2703 = vld [vmem:[#allocation2 + $0x90] sm:$0xf]
      %v2704 = vld [vmem:[#allocation2 + $0x94] sm:$0xf]
      %v2705 = vld [vmem:[#allocation2 + $0x98] sm:$0xf]
      %v2706 = vld [vmem:[#allocation2 + $0x9c] sm:$0xf]
      %v2707 = vld [vmem:[#allocation2 + $0xa0] sm:$0xf]
      %v2708 = vld [vmem:[#allocation2 + $0xa4] sm:$0xf]
      %v2709 = vld [vmem:[#allocation2 + $0xa8] sm:$0xf]
      %v2710 = vld [vmem:[#allocation2 + $0xac] sm:$0xf]
      %v2711 = vld [vmem:[#allocation2 + $0xb0] sm:$0xf]
      %v2712 = vld [vmem:[#allocation2 + $0xb4] sm:$0xf]
      %v2713 = vld [vmem:[#allocation2 + $0xb8] sm:$0xf]
      %v2714 = vld [vmem:[#allocation2 + $0xbc] sm:$0x3]
      %vm2761 = vcmask 1041408
      %vm2762 = vcmask 1045508
      %vm2763 = vmor %vm2761, %vm2762
      %v2764 = vrot.slane %v2669, 6
      %v2765 = vrot.slane %v2764, 4
      %v2766 = vrot.slane %v2670, 6
      %v2767 = vsel %vm2763, %v2765, %v2766
      %v2768 = vrot.slane %v2766, 4
      %v2769 = vrot.slane %v2671, 6
      %v2770 = vsel %vm2763, %v2768, %v2769
      %v2771 = vrot.slane %v2769, 4
      %v2772 = vrot.slane %v2672, 6
      %v2773 = vsel %vm2763, %v2771, %v2772
      %v2774 = vrot.slane %v2772, 4
      %v2775 = vrot.slane %v2673, 6
      %v2776 = vsel %vm2763, %v2774, %v2775
      %v2777 = vrot.slane %v2775, 4
      %v2778 = vrot.slane %v2674, 6
      %v2779 = vsel %vm2763, %v2777, %v2778
      %v2780 = vrot.slane %v2778, 4
      %v2781 = vrot.slane %v2675, 6
      %v2782 = vsel %vm2763, %v2780, %v2781
      %v2783 = vrot.slane %v2781, 4
      %v2784 = vrot.slane %v2676, 6
      %v2785 = vsel %vm2763, %v2783, %v2784
      %v2786 = vrot.slane %v2784, 4
      %v2787 = vrot.slane %v2677, 6
      %v2788 = vsel %vm2763, %v2786, %v2787
      %v2789 = vrot.slane %v2787, 4
      %v2790 = vrot.slane %v2678, 6
      %v2791 = vsel %vm2763, %v2789, %v2790
      %v2792 = vrot.slane %v2790, 4
      %v2793 = vrot.slane %v2679, 6
      %v2794 = vsel %vm2763, %v2792, %v2793
      %v2795 = vrot.slane %v2793, 4
      %v2796 = vrot.slane %v2680, 6
      %v2797 = vsel %vm2763, %v2795, %v2796
      %v2798 = vrot.slane %v2796, 4
      %v2799 = vrot.slane %v2681, 6
      %v2800 = vsel %vm2763, %v2798, %v2799
      %v2801 = vrot.slane %v2799, 4
      %v2802 = vrot.slane %v2682, 6
      %v2803 = vsel %vm2763, %v2801, %v2802
      %v2804 = vrot.slane %v2802, 4
      %v2805 = vrot.slane %v2683, 6
      %v2806 = vsel %vm2763, %v2804, %v2805
      %v2807 = vrot.slane %v2805, 4
      %v2808 = vrot.slane %v2684, 6
      %v2809 = vsel %vm2763, %v2807, %v2808
      %v2810 = vrot.slane %v2808, 4
      %v2811 = vrot.slane %v2685, 6
      %v2812 = vsel %vm2763, %v2810, %v2811
      %v2813 = vrot.slane %v2811, 4
      %v2814 = vrot.slane %v2686, 6
      %v2815 = vsel %vm2763, %v2813, %v2814
      %v2816 = vrot.slane %v2814, 4
      %v2817 = vrot.slane %v2687, 6
      %v2818 = vsel %vm2763, %v2816, %v2817
      %v2819 = vrot.slane %v2817, 4
      %v2820 = vrot.slane %v2688, 6
      %v2821 = vsel %vm2763, %v2819, %v2820
      %v2822 = vrot.slane %v2820, 4
      %v2823 = vrot.slane %v2689, 6
      %v2824 = vsel %vm2763, %v2822, %v2823
      %v2825 = vrot.slane %v2823, 4
      %v2826 = vrot.slane %v2690, 6
      %v2827 = vsel %vm2763, %v2825, %v2826
      %v2828 = vrot.slane %v2826, 4
      %v2829 = vrot.slane %v2691, 6
      %v2830 = vsel %vm2763, %v2828, %v2829
      %v2831 = vrot.slane %v2829, 4
      %v2832 = vrot.slane %v2692, 6
      %v2833 = vsel %vm2763, %v2831, %v2832
      %v2834 = vrot.slane %v2832, 4
      %v2835 = vrot.slane %v2693, 6
      %v2836 = vsel %vm2763, %v2834, %v2835
      %v2837 = vrot.slane %v2835, 4
      %v2838 = vrot.slane %v2694, 6
      %v2839 = vsel %vm2763, %v2837, %v2838
      %v2840 = vrot.slane %v2838, 4
      %v2841 = vrot.slane %v2695, 6
      %v2842 = vsel %vm2763, %v2840, %v2841
      %v2843 = vrot.slane %v2841, 4
      %v2844 = vrot.slane %v2696, 6
      %v2845 = vsel %vm2763, %v2843, %v2844
      %v2846 = vrot.slane %v2844, 4
      %v2847 = vrot.slane %v2697, 6
      %v2848 = vsel %vm2763, %v2846, %v2847
      %v2849 = vrot.slane %v2847, 4
      %v2850 = vrot.slane %v2698, 6
      %v2851 = vsel %vm2763, %v2849, %v2850
      %v2852 = vrot.slane %v2850, 4
      %v2853 = vrot.slane %v2699, 6
      %v2854 = vsel %vm2763, %v2852, %v2853
      %v2855 = vrot.slane %v2853, 4
      %v2856 = vrot.slane %v2700, 6
      %v2857 = vsel %vm2763, %v2855, %v2856
      %v2858 = vrot.slane %v2856, 4
      %v2859 = vrot.slane %v2701, 6
      %v2860 = vsel %vm2763, %v2858, %v2859
      %v2861 = vrot.slane %v2859, 4
      %v2862 = vrot.slane %v2702, 6
      %v2863 = vsel %vm2763, %v2861, %v2862
      %v2864 = vrot.slane %v2862, 4
      %v2865 = vrot.slane %v2703, 6
      %v2866 = vsel %vm2763, %v2864, %v2865
      %v2867 = vrot.slane %v2865, 4
      %v2868 = vrot.slane %v2704, 6
      %v2869 = vsel %vm2763, %v2867, %v2868
      %v2870 = vrot.slane %v2868, 4
      %v2871 = vrot.slane %v2705, 6
      %v2872 = vsel %vm2763, %v2870, %v2871
      %v2873 = vrot.slane %v2871, 4
      %v2874 = vrot.slane %v2706, 6
      %v2875 = vsel %vm2763, %v2873, %v2874
      %v2876 = vrot.slane %v2874, 4
      %v2877 = vrot.slane %v2707, 6
      %v2878 = vsel %vm2763, %v2876, %v2877
      %v2879 = vrot.slane %v2877, 4
      %v2880 = vrot.slane %v2708, 6
      %v2881 = vsel %vm2763, %v2879, %v2880
      %v2882 = vrot.slane %v2880, 4
      %v2883 = vrot.slane %v2709, 6
      %v2884 = vsel %vm2763, %v2882, %v2883
      %v2885 = vrot.slane %v2883, 4
      %v2886 = vrot.slane %v2710, 6
      %v2887 = vsel %vm2763, %v2885, %v2886
      %v2888 = vrot.slane %v2886, 4
      %v2889 = vrot.slane %v2711, 6
      %v2890 = vsel %vm2763, %v2888, %v2889
      %v2891 = vrot.slane %v2889, 4
      %v2892 = vrot.slane %v2712, 6
      %v2893 = vsel %vm2763, %v2891, %v2892
      %v2894 = vrot.slane %v2892, 4
      %v2895 = vrot.slane %v2713, 6
      %v2896 = vsel %vm2763, %v2894, %v2895
      %v2897 = vrot.slane %v2895, 4
      %v2898 = vrot.slane %v2714, 6
      %v2899 = vsel %vm2763, %v2897, %v2898
      %2900 = vrot.lane.b32.xlu0 %v2767, 20
      %v2901 = vpop.permute.xlu0 %2900
      %2902 = vrot.lane.b32.xlu0 %v2770, 20
      %v2903 = vpop.permute.xlu0 %2902
      %2904 = vrot.lane.b32.xlu0 %v2773, 20
      %v2905 = vpop.permute.xlu0 %2904
      %2906 = vrot.lane.b32.xlu0 %v2776, 20
      %v2907 = vpop.permute.xlu0 %2906
      %2908 = vrot.lane.b32.xlu0 %v2779, 20
      %v2909 = vpop.permute.xlu0 %2908
      %2910 = vrot.lane.b32.xlu0 %v2782, 20
      %v2911 = vpop.permute.xlu0 %2910
      %2912 = vrot.lane.b32.xlu0 %v2785, 20
      %v2913 = vpop.permute.xlu0 %2912
      %2914 = vrot.lane.b32.xlu0 %v2788, 20
      %v2915 = vpop.permute.xlu0 %2914
      %2916 = vrot.lane.b32.xlu0 %v2791, 20
      %v2917 = vpop.permute.xlu0 %2916
      %2918 = vrot.lane.b32.xlu0 %v2794, 20
      %v2919 = vpop.permute.xlu0 %2918
      %2920 = vrot.lane.b32.xlu0 %v2797, 20
      %v2921 = vpop.permute.xlu0 %2920
      %2922 = vrot.lane.b32.xlu0 %v2800, 20
      %v2923 = vpop.permute.xlu0 %2922
      %2924 = vrot.lane.b32.xlu0 %v2803, 20
      %v2925 = vpop.permute.xlu0 %2924
      %2926 = vrot.lane.b32.xlu0 %v2806, 20
      %v2927 = vpop.permute.xlu0 %2926
      %2928 = vrot.lane.b32.xlu0 %v2809, 20
      %v2929 = vpop.permute.xlu0 %2928
      %2930 = vrot.lane.b32.xlu0 %v2812, 20
      %v2931 = vpop.permute.xlu0 %2930
      %2932 = vrot.lane.b32.xlu0 %v2815, 20
      %v2933 = vpop.permute.xlu0 %2932
      %2934 = vrot.lane.b32.xlu0 %v2818, 20
      %v2935 = vpop.permute.xlu0 %2934
      %2936 = vrot.lane.b32.xlu0 %v2821, 20
      %v2937 = vpop.permute.xlu0 %2936
      %2938 = vrot.lane.b32.xlu0 %v2824, 20
      %v2939 = vpop.permute.xlu0 %2938
      %2940 = vrot.lane.b32.xlu0 %v2827, 20
      %v2941 = vpop.permute.xlu0 %2940
      %2942 = vrot.lane.b32.xlu0 %v2830, 20
      %v2943 = vpop.permute.xlu0 %2942
      %2944 = vrot.lane.b32.xlu0 %v2833, 20
      %v2945 = vpop.permute.xlu0 %2944
      %2946 = vrot.lane.b32.xlu0 %v2836, 20
      %v2947 = vpop.permute.xlu0 %2946
      %2948 = vrot.lane.b32.xlu0 %v2839, 20
      %v2949 = vpop.permute.xlu0 %2948
      %2950 = vrot.lane.b32.xlu0 %v2842, 20
      %v2951 = vpop.permute.xlu0 %2950
      %2952 = vrot.lane.b32.xlu0 %v2845, 20
      %v2953 = vpop.permute.xlu0 %2952
      %2954 = vrot.lane.b32.xlu0 %v2848, 20
      %v2955 = vpop.permute.xlu0 %2954
      %2956 = vrot.lane.b32.xlu0 %v2851, 20
      %v2957 = vpop.permute.xlu0 %2956
      %2958 = vrot.lane.b32.xlu0 %v2854, 20
      %v2959 = vpop.permute.xlu0 %2958
      %2960 = vrot.lane.b32.xlu0 %v2857, 20
      %v2961 = vpop.permute.xlu0 %2960
      %2962 = vrot.lane.b32.xlu0 %v2860, 20
      %v2963 = vpop.permute.xlu0 %2962
      %2964 = vrot.lane.b32.xlu0 %v2863, 20
      %v2965 = vpop.permute.xlu0 %2964
      %2966 = vrot.lane.b32.xlu0 %v2866, 20
      %v2967 = vpop.permute.xlu0 %2966
      %2968 = vrot.lane.b32.xlu0 %v2869, 20
      %v2969 = vpop.permute.xlu0 %2968
      %2970 = vrot.lane.b32.xlu0 %v2872, 20
      %v2971 = vpop.permute.xlu0 %2970
      %2972 = vrot.lane.b32.xlu0 %v2875, 20
      %v2973 = vpop.permute.xlu0 %2972
      %2974 = vrot.lane.b32.xlu0 %v2878, 20
      %v2975 = vpop.permute.xlu0 %2974
      %2976 = vrot.lane.b32.xlu0 %v2881, 20
      %v2977 = vpop.permute.xlu0 %2976
      %2978 = vrot.lane.b32.xlu0 %v2884, 20
      %v2979 = vpop.permute.xlu0 %2978
      %2980 = vrot.lane.b32.xlu0 %v2887, 20
      %v2981 = vpop.permute.xlu0 %2980
      %2982 = vrot.lane.b32.xlu0 %v2890, 20
      %v2983 = vpop.permute.xlu0 %2982
      %2984 = vrot.lane.b32.xlu0 %v2893, 20
      %v2985 = vpop.permute.xlu0 %2984
      %2986 = vrot.lane.b32.xlu0 %v2896, 20
      %v2987 = vpop.permute.xlu0 %2986
      %2988 = vrot.lane.b32.xlu0 %v2899, 20
      %v2989 = vpop.permute.xlu0 %2988
      %vm3035 = vcmask 191648
      %3036 = vst.msk [vmem:[#allocation3] sm:$0xf] %vm3035, %v2901
      %3037 = vst.msk [vmem:[#allocation3 + $0x4] sm:$0xf] %vm3035, %v2903
      %3038 = vst.msk [vmem:[#allocation3 + $0x8] sm:$0xf] %vm3035, %v2905
      %3039 = vst.msk [vmem:[#allocation3 + $0xc] sm:$0xf] %vm3035, %v2907
      %3040 = vst.msk [vmem:[#allocation3 + $0x10] sm:$0xf] %vm3035, %v2909
      %3041 = vst.msk [vmem:[#allocation3 + $0x14] sm:$0xf] %vm3035, %v2911
      %3042 = vst.msk [vmem:[#allocation3 + $0x18] sm:$0xf] %vm3035, %v2913
      %3043 = vst.msk [vmem:[#allocation3 + $0x1c] sm:$0xf] %vm3035, %v2915
      %3044 = vst.msk [vmem:[#allocation3 + $0x20] sm:$0xf] %vm3035, %v2917
      %3045 = vst.msk [vmem:[#allocation3 + $0x24] sm:$0xf] %vm3035, %v2919
      %3046 = vst.msk [vmem:[#allocation3 + $0x28] sm:$0xf] %vm3035, %v2921
      %3047 = vst.msk [vmem:[#allocation3 + $0x2c] sm:$0xf] %vm3035, %v2923
      %3048 = vst.msk [vmem:[#allocation3 + $0x30] sm:$0xf] %vm3035, %v2925
      %3049 = vst.msk [vmem:[#allocation3 + $0x34] sm:$0xf] %vm3035, %v2927
      %3050 = vst.msk [vmem:[#allocation3 + $0x38] sm:$0xf] %vm3035, %v2929
      %3051 = vst.msk [vmem:[#allocation3 + $0x3c] sm:$0xf] %vm3035, %v2931
      %3052 = vst.msk [vmem:[#allocation3 + $0x40] sm:$0xf] %vm3035, %v2933
      %3053 = vst.msk [vmem:[#allocation3 + $0x44] sm:$0xf] %vm3035, %v2935
      %3054 = vst.msk [vmem:[#allocation3 + $0x48] sm:$0xf] %vm3035, %v2937
      %3055 = vst.msk [vmem:[#allocation3 + $0x4c] sm:$0xf] %vm3035, %v2939
      %3056 = vst.msk [vmem:[#allocation3 + $0x50] sm:$0xf] %vm3035, %v2941
      %3057 = vst.msk [vmem:[#allocation3 + $0x54] sm:$0xf] %vm3035, %v2943
      %3058 = vst.msk [vmem:[#allocation3 + $0x58] sm:$0xf] %vm3035, %v2945
      %3059 = vst.msk [vmem:[#allocation3 + $0x5c] sm:$0xf] %vm3035, %v2947
      %3060 = vst.msk [vmem:[#allocation3 + $0x60] sm:$0xf] %vm3035, %v2949
      %3061 = vst.msk [vmem:[#allocation3 + $0x64] sm:$0xf] %vm3035, %v2951
      %3062 = vst.msk [vmem:[#allocation3 + $0x68] sm:$0xf] %vm3035, %v2953
      %3063 = vst.msk [vmem:[#allocation3 + $0x6c] sm:$0xf] %vm3035, %v2955
      %3064 = vst.msk [vmem:[#allocation3 + $0x70] sm:$0xf] %vm3035, %v2957
      %3065 = vst.msk [vmem:[#allocation3 + $0x74] sm:$0xf] %vm3035, %v2959
      %3066 = vst.msk [vmem:[#allocation3 + $0x78] sm:$0xf] %vm3035, %v2961
      %3067 = vst.msk [vmem:[#allocation3 + $0x7c] sm:$0xf] %vm3035, %v2963
      %3068 = vst.msk [vmem:[#allocation3 + $0x80] sm:$0xf] %vm3035, %v2965
      %3069 = vst.msk [vmem:[#allocation3 + $0x84] sm:$0xf] %vm3035, %v2967
      %3070 = vst.msk [vmem:[#allocation3 + $0x88] sm:$0xf] %vm3035, %v2969
      %3071 = vst.msk [vmem:[#allocation3 + $0x8c] sm:$0xf] %vm3035, %v2971
      %3072 = vst.msk [vmem:[#allocation3 + $0x90] sm:$0xf] %vm3035, %v2973
      %3073 = vst.msk [vmem:[#allocation3 + $0x94] sm:$0xf] %vm3035, %v2975
      %3074 = vst.msk [vmem:[#allocation3 + $0x98] sm:$0xf] %vm3035, %v2977
      %3075 = vst.msk [vmem:[#allocation3 + $0x9c] sm:$0xf] %vm3035, %v2979
      %3076 = vst.msk [vmem:[#allocation3 + $0xa0] sm:$0xf] %vm3035, %v2981
      %3077 = vst.msk [vmem:[#allocation3 + $0xa4] sm:$0xf] %vm3035, %v2983
      %3078 = vst.msk [vmem:[#allocation3 + $0xa8] sm:$0xf] %vm3035, %v2985
      %3079 = vst.msk [vmem:[#allocation3 + $0xac] sm:$0xf] %vm3035, %v2987
      %3080 = vst.msk [vmem:[#allocation3 + $0xb0] sm:$0xf] %vm3035, %v2989
      %v3081 = vld [vmem:[#allocation2 + $0x10] sm:$0xc]
      %v3082 = vld [vmem:[#allocation2 + $0x14] sm:$0xf]
      %v3083 = vld [vmem:[#allocation2 + $0x18] sm:$0xf]
      %v3084 = vld [vmem:[#allocation2 + $0x1c] sm:$0xf]
      %v3085 = vld [vmem:[#allocation2 + $0x20] sm:$0xf]
      %v3086 = vld [vmem:[#allocation2 + $0x24] sm:$0xf]
      %v3087 = vld [vmem:[#allocation2 + $0x28] sm:$0xf]
      %v3088 = vld [vmem:[#allocation2 + $0x2c] sm:$0xf]
      %v3089 = vld [vmem:[#allocation2 + $0x30] sm:$0xf]
      %v3090 = vld [vmem:[#allocation2 + $0x34] sm:$0xf]
      %v3091 = vld [vmem:[#allocation2 + $0x38] sm:$0xf]
      %v3092 = vld [vmem:[#allocation2 + $0x3c] sm:$0xf]
      %v3093 = vld [vmem:[#allocation2 + $0x40] sm:$0xf]
      %v3094 = vld [vmem:[#allocation2 + $0x44] sm:$0xf]
      %v3095 = vld [vmem:[#allocation2 + $0x48] sm:$0xf]
      %v3096 = vld [vmem:[#allocation2 + $0x4c] sm:$0xf]
      %v3097 = vld [vmem:[#allocation2 + $0x50] sm:$0xf]
      %v3098 = vld [vmem:[#allocation2 + $0x54] sm:$0xf]
      %v3099 = vld [vmem:[#allocation2 + $0x58] sm:$0xf]
      %v3100 = vld [vmem:[#allocation2 + $0x5c] sm:$0xf]
      %v3101 = vld [vmem:[#allocation2 + $0x60] sm:$0xf]
      %v3102 = vld [vmem:[#allocation2 + $0x64] sm:$0xf]
      %v3103 = vld [vmem:[#allocation2 + $0x68] sm:$0xf]
      %v3104 = vld [vmem:[#allocation2 + $0x6c] sm:$0xf]
      %v3105 = vld [vmem:[#allocation2 + $0x70] sm:$0xf]
      %v3106 = vld [vmem:[#allocation2 + $0x74] sm:$0xf]
      %v3107 = vld [vmem:[#allocation2 + $0x78] sm:$0xf]
      %v3108 = vld [vmem:[#allocation2 + $0x7c] sm:$0xf]
      %v3109 = vld [vmem:[#allocation2 + $0x80] sm:$0xf]
      %v3110 = vld [vmem:[#allocation2 + $0x84] sm:$0xf]
      %v3111 = vld [vmem:[#allocation2 + $0x88] sm:$0xf]
      %v3112 = vld [vmem:[#allocation2 + $0x8c] sm:$0xf]
      %v3113 = vld [vmem:[#allocation2 + $0x90] sm:$0xf]
      %v3114 = vld [vmem:[#allocation2 + $0x94] sm:$0xf]
      %v3115 = vld [vmem:[#allocation2 + $0x98] sm:$0xf]
      %v3116 = vld [vmem:[#allocation2 + $0x9c] sm:$0xf]
      %v3117 = vld [vmem:[#allocation2 + $0xa0] sm:$0xf]
      %v3118 = vld [vmem:[#allocation2 + $0xa4] sm:$0xf]
      %v3119 = vld [vmem:[#allocation2 + $0xa8] sm:$0xf]
      %v3120 = vld [vmem:[#allocation2 + $0xac] sm:$0xf]
      %v3121 = vld [vmem:[#allocation2 + $0xb0] sm:$0xf]
      %v3122 = vld [vmem:[#allocation2 + $0xb4] sm:$0xf]
      %v3123 = vld [vmem:[#allocation2 + $0xb8] sm:$0xf]
      %v3124 = vld [vmem:[#allocation2 + $0xbc] sm:$0xf]
      %v3125 = vld [vmem:[#allocation2 + $0xc0] sm:$0xf]
      %v3126 = vld [vmem:[#allocation2 + $0xc4] sm:$0x3]
      %v3173 = vrot.slane %v3081, 6
      %v3174 = vrot.slane %v3173, 4
      %v3175 = vrot.slane %v3082, 6
      %v3176 = vsel %vm2763, %v3174, %v3175
      %v3177 = vrot.slane %v3175, 4
      %v3178 = vrot.slane %v3083, 6
      %v3179 = vsel %vm2763, %v3177, %v3178
      %v3180 = vrot.slane %v3178, 4
      %v3181 = vrot.slane %v3084, 6
      %v3182 = vsel %vm2763, %v3180, %v3181
      %v3183 = vrot.slane %v3181, 4
      %v3184 = vrot.slane %v3085, 6
      %v3185 = vsel %vm2763, %v3183, %v3184
      %v3186 = vrot.slane %v3184, 4
      %v3187 = vrot.slane %v3086, 6
      %v3188 = vsel %vm2763, %v3186, %v3187
      %v3189 = vrot.slane %v3187, 4
      %v3190 = vrot.slane %v3087, 6
      %v3191 = vsel %vm2763, %v3189, %v3190
      %v3192 = vrot.slane %v3190, 4
      %v3193 = vrot.slane %v3088, 6
      %v3194 = vsel %vm2763, %v3192, %v3193
      %v3195 = vrot.slane %v3193, 4
      %v3196 = vrot.slane %v3089, 6
      %v3197 = vsel %vm2763, %v3195, %v3196
      %v3198 = vrot.slane %v3196, 4
      %v3199 = vrot.slane %v3090, 6
      %v3200 = vsel %vm2763, %v3198, %v3199
      %v3201 = vrot.slane %v3199, 4
      %v3202 = vrot.slane %v3091, 6
      %v3203 = vsel %vm2763, %v3201, %v3202
      %v3204 = vrot.slane %v3202, 4
      %v3205 = vrot.slane %v3092, 6
      %v3206 = vsel %vm2763, %v3204, %v3205
      %v3207 = vrot.slane %v3205, 4
      %v3208 = vrot.slane %v3093, 6
      %v3209 = vsel %vm2763, %v3207, %v3208
      %v3210 = vrot.slane %v3208, 4
      %v3211 = vrot.slane %v3094, 6
      %v3212 = vsel %vm2763, %v3210, %v3211
      %v3213 = vrot.slane %v3211, 4
      %v3214 = vrot.slane %v3095, 6
      %v3215 = vsel %vm2763, %v3213, %v3214
      %v3216 = vrot.slane %v3214, 4
      %v3217 = vrot.slane %v3096, 6
      %v3218 = vsel %vm2763, %v3216, %v3217
      %v3219 = vrot.slane %v3217, 4
      %v3220 = vrot.slane %v3097, 6
      %v3221 = vsel %vm2763, %v3219, %v3220
      %v3222 = vrot.slane %v3220, 4
      %v3223 = vrot.slane %v3098, 6
      %v3224 = vsel %vm2763, %v3222, %v3223
      %v3225 = vrot.slane %v3223, 4
      %v3226 = vrot.slane %v3099, 6
      %v3227 = vsel %vm2763, %v3225, %v3226
      %v3228 = vrot.slane %v3226, 4
      %v3229 = vrot.slane %v3100, 6
      %v3230 = vsel %vm2763, %v3228, %v3229
      %v3231 = vrot.slane %v3229, 4
      %v3232 = vrot.slane %v3101, 6
      %v3233 = vsel %vm2763, %v3231, %v3232
      %v3234 = vrot.slane %v3232, 4
      %v3235 = vrot.slane %v3102, 6
      %v3236 = vsel %vm2763, %v3234, %v3235
      %v3237 = vrot.slane %v3235, 4
      %v3238 = vrot.slane %v3103, 6
      %v3239 = vsel %vm2763, %v3237, %v3238
      %v3240 = vrot.slane %v3238, 4
      %v3241 = vrot.slane %v3104, 6
      %v3242 = vsel %vm2763, %v3240, %v3241
      %v3243 = vrot.slane %v3241, 4
      %v3244 = vrot.slane %v3105, 6
      %v3245 = vsel %vm2763, %v3243, %v3244
      %v3246 = vrot.slane %v3244, 4
      %v3247 = vrot.slane %v3106, 6
      %v3248 = vsel %vm2763, %v3246, %v3247
      %v3249 = vrot.slane %v3247, 4
      %v3250 = vrot.slane %v3107, 6
      %v3251 = vsel %vm2763, %v3249, %v3250
      %v3252 = vrot.slane %v3250, 4
      %v3253 = vrot.slane %v3108, 6
      %v3254 = vsel %vm2763, %v3252, %v3253
      %v3255 = vrot.slane %v3253, 4
      %v3256 = vrot.slane %v3109, 6
      %v3257 = vsel %vm2763, %v3255, %v3256
      %v3258 = vrot.slane %v3256, 4
      %v3259 = vrot.slane %v3110, 6
      %v3260 = vsel %vm2763, %v3258, %v3259
      %v3261 = vrot.slane %v3259, 4
      %v3262 = vrot.slane %v3111, 6
      %v3263 = vsel %vm2763, %v3261, %v3262
      %v3264 = vrot.slane %v3262, 4
      %v3265 = vrot.slane %v3112, 6
      %v3266 = vsel %vm2763, %v3264, %v3265
      %v3267 = vrot.slane %v3265, 4
      %v3268 = vrot.slane %v3113, 6
      %v3269 = vsel %vm2763, %v3267, %v3268
      %v3270 = vrot.slane %v3268, 4
      %v3271 = vrot.slane %v3114, 6
      %v3272 = vsel %vm2763, %v3270, %v3271
      %v3273 = vrot.slane %v3271, 4
      %v3274 = vrot.slane %v3115, 6
      %v3275 = vsel %vm2763, %v3273, %v3274
      %v3276 = vrot.slane %v3274, 4
      %v3277 = vrot.slane %v3116, 6
      %v3278 = vsel %vm2763, %v3276, %v3277
      %v3279 = vrot.slane %v3277, 4
      %v3280 = vrot.slane %v3117, 6
      %v3281 = vsel %vm2763, %v3279, %v3280
      %v3282 = vrot.slane %v3280, 4
      %v3283 = vrot.slane %v3118, 6
      %v3284 = vsel %vm2763, %v3282, %v3283
      %v3285 = vrot.slane %v3283, 4
      %v3286 = vrot.slane %v3119, 6
      %v3287 = vsel %vm2763, %v3285, %v3286
      %v3288 = vrot.slane %v3286, 4
      %v3289 = vrot.slane %v3120, 6
      %v3290 = vsel %vm2763, %v3288, %v3289
      %v3291 = vrot.slane %v3289, 4
      %v3292 = vrot.slane %v3121, 6
      %v3293 = vsel %vm2763, %v3291, %v3292
      %v3294 = vrot.slane %v3292, 4
      %v3295 = vrot.slane %v3122, 6
      %v3296 = vsel %vm2763, %v3294, %v3295
      %v3297 = vrot.slane %v3295, 4
      %v3298 = vrot.slane %v3123, 6
      %v3299 = vsel %vm2763, %v3297, %v3298
      %v3300 = vrot.slane %v3298, 4
      %v3301 = vrot.slane %v3124, 6
      %v3302 = vsel %vm2763, %v3300, %v3301
      %v3303 = vrot.slane %v3301, 4
      %v3304 = vrot.slane %v3125, 6
      %v3305 = vsel %vm2763, %v3303, %v3304
      %v3306 = vrot.slane %v3304, 4
      %v3307 = vrot.slane %v3126, 6
      %v3308 = vsel %vm2763, %v3306, %v3307
      %3309 = vrot.lane.b32.xlu0 %v3176, 24
      %v3310 = vpop.permute.xlu0 %3309
      %3311 = vrot.lane.b32.xlu0 %v3179, 24
      %v3312 = vpop.permute.xlu0 %3311
      %3313 = vrot.lane.b32.xlu0 %v3182, 24
      %v3314 = vpop.permute.xlu0 %3313
      %3315 = vrot.lane.b32.xlu0 %v3185, 24
      %v3316 = vpop.permute.xlu0 %3315
      %3317 = vrot.lane.b32.xlu0 %v3188, 24
      %v3318 = vpop.permute.xlu0 %3317
      %3319 = vrot.lane.b32.xlu0 %v3191, 24
      %v3320 = vpop.permute.xlu0 %3319
      %3321 = vrot.lane.b32.xlu0 %v3194, 24
      %v3322 = vpop.permute.xlu0 %3321
      %3323 = vrot.lane.b32.xlu0 %v3197, 24
      %v3324 = vpop.permute.xlu0 %3323
      %3325 = vrot.lane.b32.xlu0 %v3200, 24
      %v3326 = vpop.permute.xlu0 %3325
      %3327 = vrot.lane.b32.xlu0 %v3203, 24
      %v3328 = vpop.permute.xlu0 %3327
      %3329 = vrot.lane.b32.xlu0 %v3206, 24
      %v3330 = vpop.permute.xlu0 %3329
      %3331 = vrot.lane.b32.xlu0 %v3209, 24
      %v3332 = vpop.permute.xlu0 %3331
      %3333 = vrot.lane.b32.xlu0 %v3212, 24
      %v3334 = vpop.permute.xlu0 %3333
      %3335 = vrot.lane.b32.xlu0 %v3215, 24
      %v3336 = vpop.permute.xlu0 %3335
      %3337 = vrot.lane.b32.xlu0 %v3218, 24
      %v3338 = vpop.permute.xlu0 %3337
      %3339 = vrot.lane.b32.xlu0 %v3221, 24
      %v3340 = vpop.permute.xlu0 %3339
      %3341 = vrot.lane.b32.xlu0 %v3224, 24
      %v3342 = vpop.permute.xlu0 %3341
      %3343 = vrot.lane.b32.xlu0 %v3227, 24
      %v3344 = vpop.permute.xlu0 %3343
      %3345 = vrot.lane.b32.xlu0 %v3230, 24
      %v3346 = vpop.permute.xlu0 %3345
      %3347 = vrot.lane.b32.xlu0 %v3233, 24
      %v3348 = vpop.permute.xlu0 %3347
      %3349 = vrot.lane.b32.xlu0 %v3236, 24
      %v3350 = vpop.permute.xlu0 %3349
      %3351 = vrot.lane.b32.xlu0 %v3239, 24
      %v3352 = vpop.permute.xlu0 %3351
      %3353 = vrot.lane.b32.xlu0 %v3242, 24
      %v3354 = vpop.permute.xlu0 %3353
      %3355 = vrot.lane.b32.xlu0 %v3245, 24
      %v3356 = vpop.permute.xlu0 %3355
      %3357 = vrot.lane.b32.xlu0 %v3248, 24
      %v3358 = vpop.permute.xlu0 %3357
      %3359 = vrot.lane.b32.xlu0 %v3251, 24
      %v3360 = vpop.permute.xlu0 %3359
      %3361 = vrot.lane.b32.xlu0 %v3254, 24
      %v3362 = vpop.permute.xlu0 %3361
      %3363 = vrot.lane.b32.xlu0 %v3257, 24
      %v3364 = vpop.permute.xlu0 %3363
      %3365 = vrot.lane.b32.xlu0 %v3260, 24
      %v3366 = vpop.permute.xlu0 %3365
      %3367 = vrot.lane.b32.xlu0 %v3263, 24
      %v3368 = vpop.permute.xlu0 %3367
      %3369 = vrot.lane.b32.xlu0 %v3266, 24
      %v3370 = vpop.permute.xlu0 %3369
      %3371 = vrot.lane.b32.xlu0 %v3269, 24
      %v3372 = vpop.permute.xlu0 %3371
      %3373 = vrot.lane.b32.xlu0 %v3272, 24
      %v3374 = vpop.permute.xlu0 %3373
      %3375 = vrot.lane.b32.xlu0 %v3275, 24
      %v3376 = vpop.permute.xlu0 %3375
      %3377 = vrot.lane.b32.xlu0 %v3278, 24
      %v3378 = vpop.permute.xlu0 %3377
      %3379 = vrot.lane.b32.xlu0 %v3281, 24
      %v3380 = vpop.permute.xlu0 %3379
      %3381 = vrot.lane.b32.xlu0 %v3284, 24
      %v3382 = vpop.permute.xlu0 %3381
      %3383 = vrot.lane.b32.xlu0 %v3287, 24
      %v3384 = vpop.permute.xlu0 %3383
      %3385 = vrot.lane.b32.xlu0 %v3290, 24
      %v3386 = vpop.permute.xlu0 %3385
      %3387 = vrot.lane.b32.xlu0 %v3293, 24
      %v3388 = vpop.permute.xlu0 %3387
      %3389 = vrot.lane.b32.xlu0 %v3296, 24
      %v3390 = vpop.permute.xlu0 %3389
      %3391 = vrot.lane.b32.xlu0 %v3299, 24
      %v3392 = vpop.permute.xlu0 %3391
      %3393 = vrot.lane.b32.xlu0 %v3302, 24
      %v3394 = vpop.permute.xlu0 %3393
      %3395 = vrot.lane.b32.xlu0 %v3305, 24
      %v3396 = vpop.permute.xlu0 %3395
      %3397 = vrot.lane.b32.xlu0 %v3308, 24
      %v3398 = vpop.permute.xlu0 %3397
      %vm3444 = vcmask 224448
      %3445 = vst.msk [vmem:[#allocation3] sm:$0xf] %vm3444, %v3310
      %3446 = vst.msk [vmem:[#allocation3 + $0x4] sm:$0xf] %vm3444, %v3312
      %3447 = vst.msk [vmem:[#allocation3 + $0x8] sm:$0xf] %vm3444, %v3314
      %3448 = vst.msk [vmem:[#allocation3 + $0xc] sm:$0xf] %vm3444, %v3316
      %3449 = vst.msk [vmem:[#allocation3 + $0x10] sm:$0xf] %vm3444, %v3318
      %3450 = vst.msk [vmem:[#allocation3 + $0x14] sm:$0xf] %vm3444, %v3320
      %3451 = vst.msk [vmem:[#allocation3 + $0x18] sm:$0xf] %vm3444, %v3322
      %3452 = vst.msk [vmem:[#allocation3 + $0x1c] sm:$0xf] %vm3444, %v3324
      %3453 = vst.msk [vmem:[#allocation3 + $0x20] sm:$0xf] %vm3444, %v3326
      %3454 = vst.msk [vmem:[#allocation3 + $0x24] sm:$0xf] %vm3444, %v3328
      %3455 = vst.msk [vmem:[#allocation3 + $0x28] sm:$0xf] %vm3444, %v3330
      %3456 = vst.msk [vmem:[#allocation3 + $0x2c] sm:$0xf] %vm3444, %v3332
      %3457 = vst.msk [vmem:[#allocation3 + $0x30] sm:$0xf] %vm3444, %v3334
      %3458 = vst.msk [vmem:[#allocation3 + $0x34] sm:$0xf] %vm3444, %v3336
      %3459 = vst.msk [vmem:[#allocation3 + $0x38] sm:$0xf] %vm3444, %v3338
      %3460 = vst.msk [vmem:[#allocation3 + $0x3c] sm:$0xf] %vm3444, %v3340
      %3461 = vst.msk [vmem:[#allocation3 + $0x40] sm:$0xf] %vm3444, %v3342
      %3462 = vst.msk [vmem:[#allocation3 + $0x44] sm:$0xf] %vm3444, %v3344
      %3463 = vst.msk [vmem:[#allocation3 + $0x48] sm:$0xf] %vm3444, %v3346
      %3464 = vst.msk [vmem:[#allocation3 + $0x4c] sm:$0xf] %vm3444, %v3348
      %3465 = vst.msk [vmem:[#allocation3 + $0x50] sm:$0xf] %vm3444, %v3350
      %3466 = vst.msk [vmem:[#allocation3 + $0x54] sm:$0xf] %vm3444, %v3352
      %3467 = vst.msk [vmem:[#allocation3 + $0x58] sm:$0xf] %vm3444, %v3354
      %3468 = vst.msk [vmem:[#allocation3 + $0x5c] sm:$0xf] %vm3444, %v3356
      %3469 = vst.msk [vmem:[#allocation3 + $0x60] sm:$0xf] %vm3444, %v3358
      %3470 = vst.msk [vmem:[#allocation3 + $0x64] sm:$0xf] %vm3444, %v3360
      %3471 = vst.msk [vmem:[#allocation3 + $0x68] sm:$0xf] %vm3444, %v3362
      %3472 = vst.msk [vmem:[#allocation3 + $0x6c] sm:$0xf] %vm3444, %v3364
      %3473 = vst.msk [vmem:[#allocation3 + $0x70] sm:$0xf] %vm3444, %v3366
      %3474 = vst.msk [vmem:[#allocation3 + $0x74] sm:$0xf] %vm3444, %v3368
      %3475 = vst.msk [vmem:[#allocation3 + $0x78] sm:$0xf] %vm3444, %v3370
      %3476 = vst.msk [vmem:[#allocation3 + $0x7c] sm:$0xf] %vm3444, %v3372
      %3477 = vst.msk [vmem:[#allocation3 + $0x80] sm:$0xf] %vm3444, %v3374
      %3478 = vst.msk [vmem:[#allocation3 + $0x84] sm:$0xf] %vm3444, %v3376
      %3479 = vst.msk [vmem:[#allocation3 + $0x88] sm:$0xf] %vm3444, %v3378
      %3480 = vst.msk [vmem:[#allocation3 + $0x8c] sm:$0xf] %vm3444, %v3380
      %3481 = vst.msk [vmem:[#allocation3 + $0x90] sm:$0xf] %vm3444, %v3382
      %3482 = vst.msk [vmem:[#allocation3 + $0x94] sm:$0xf] %vm3444, %v3384
      %3483 = vst.msk [vmem:[#allocation3 + $0x98] sm:$0xf] %vm3444, %v3386
      %3484 = vst.msk [vmem:[#allocation3 + $0x9c] sm:$0xf] %vm3444, %v3388
      %3485 = vst.msk [vmem:[#allocation3 + $0xa0] sm:$0xf] %vm3444, %v3390
      %3486 = vst.msk [vmem:[#allocation3 + $0xa4] sm:$0xf] %vm3444, %v3392
      %3487 = vst.msk [vmem:[#allocation3 + $0xa8] sm:$0xf] %vm3444, %v3394
      %3488 = vst.msk [vmem:[#allocation3 + $0xac] sm:$0xf] %vm3444, %v3396
      %3489 = vst.msk [vmem:[#allocation3 + $0xb0] sm:$0xf] %vm3444, %v3398
      %v3490 = vld [vmem:[#allocation2 + $0x10] sm:$0xc]
      %v3491 = vld [vmem:[#allocation2 + $0x14] sm:$0xf]
      %v3492 = vld [vmem:[#allocation2 + $0x18] sm:$0xf]
      %v3493 = vld [vmem:[#allocation2 + $0x1c] sm:$0xf]
      %v3494 = vld [vmem:[#allocation2 + $0x20] sm:$0xf]
      %v3495 = vld [vmem:[#allocation2 + $0x24] sm:$0xf]
      %v3496 = vld [vmem:[#allocation2 + $0x28] sm:$0xf]
      %v3497 = vld [vmem:[#allocation2 + $0x2c] sm:$0xf]
      %v3498 = vld [vmem:[#allocation2 + $0x30] sm:$0xf]
      %v3499 = vld [vmem:[#allocation2 + $0x34] sm:$0xf]
      %v3500 = vld [vmem:[#allocation2 + $0x38] sm:$0xf]
      %v3501 = vld [vmem:[#allocation2 + $0x3c] sm:$0xf]
      %v3502 = vld [vmem:[#allocation2 + $0x40] sm:$0xf]
      %v3503 = vld [vmem:[#allocation2 + $0x44] sm:$0xf]
      %v3504 = vld [vmem:[#allocation2 + $0x48] sm:$0xf]
      %v3505 = vld [vmem:[#allocation2 + $0x4c] sm:$0xf]
      %v3506 = vld [vmem:[#allocation2 + $0x50] sm:$0xf]
      %v3507 = vld [vmem:[#allocation2 + $0x54] sm:$0xf]
      %v3508 = vld [vmem:[#allocation2 + $0x58] sm:$0xf]
      %v3509 = vld [vmem:[#allocation2 + $0x5c] sm:$0xf]
      %v3510 = vld [vmem:[#allocation2 + $0x60] sm:$0xf]
      %v3511 = vld [vmem:[#allocation2 + $0x64] sm:$0xf]
      %v3512 = vld [vmem:[#allocation2 + $0x68] sm:$0xf]
      %v3513 = vld [vmem:[#allocation2 + $0x6c] sm:$0xf]
      %v3514 = vld [vmem:[#allocation2 + $0x70] sm:$0xf]
      %v3515 = vld [vmem:[#allocation2 + $0x74] sm:$0xf]
      %v3516 = vld [vmem:[#allocation2 + $0x78] sm:$0xf]
      %v3517 = vld [vmem:[#allocation2 + $0x7c] sm:$0xf]
      %v3518 = vld [vmem:[#allocation2 + $0x80] sm:$0xf]
      %v3519 = vld [vmem:[#allocation2 + $0x84] sm:$0xf]
      %v3520 = vld [vmem:[#allocation2 + $0x88] sm:$0xf]
      %v3521 = vld [vmem:[#allocation2 + $0x8c] sm:$0xf]
      %v3522 = vld [vmem:[#allocation2 + $0x90] sm:$0xf]
      %v3523 = vld [vmem:[#allocation2 + $0x94] sm:$0xf]
      %v3524 = vld [vmem:[#allocation2 + $0x98] sm:$0xf]
      %v3525 = vld [vmem:[#allocation2 + $0x9c] sm:$0xf]
      %v3526 = vld [vmem:[#allocation2 + $0xa0] sm:$0xf]
      %v3527 = vld [vmem:[#allocation2 + $0xa4] sm:$0xf]
      %v3528 = vld [vmem:[#allocation2 + $0xa8] sm:$0xf]
      %v3529 = vld [vmem:[#allocation2 + $0xac] sm:$0xf]
      %v3530 = vld [vmem:[#allocation2 + $0xb0] sm:$0xf]
      %v3531 = vld [vmem:[#allocation2 + $0xb4] sm:$0xf]
      %v3532 = vld [vmem:[#allocation2 + $0xb8] sm:$0xf]
      %v3533 = vld [vmem:[#allocation2 + $0xbc] sm:$0xf]
      %v3534 = vld [vmem:[#allocation2 + $0xc0] sm:$0xf]
      %v3535 = vld [vmem:[#allocation2 + $0xc4] sm:$0x7]
      %vm3536 = vsmask.f32 1280
      %vm3537 = vsmask.f32 5392
      %vm3538 = vmor %vm3536, %vm3537
      %v3540 = vshrl.u32 %v3490, 16
      %v3542 = vrot.slane %v3540, 6
      %v3543 = vshll.u32 %v3490, 16
      %v3545 = vrot.slane %v3543, 7
      %v3546 = vor.u32 %v3542, %v3545
      %v3547 = vrot.slane %v3546, 4
      %v3549 = vshrl.u32 %v3491, 16
      %v3551 = vrot.slane %v3549, 6
      %v3552 = vshll.u32 %v3491, 16
      %v3554 = vrot.slane %v3552, 7
      %v3555 = vor.u32 %v3551, %v3554
      %v3556 = vsel %vm3538, %v3547, %v3555
      %v3557 = vrot.slane %v3555, 4
      %v3559 = vshrl.u32 %v3492, 16
      %v3561 = vrot.slane %v3559, 6
      %v3562 = vshll.u32 %v3492, 16
      %v3564 = vrot.slane %v3562, 7
      %v3565 = vor.u32 %v3561, %v3564
      %v3566 = vsel %vm3538, %v3557, %v3565
      %v3567 = vrot.slane %v3565, 4
      %v3569 = vshrl.u32 %v3493, 16
      %v3571 = vrot.slane %v3569, 6
      %v3572 = vshll.u32 %v3493, 16
      %v3574 = vrot.slane %v3572, 7
      %v3575 = vor.u32 %v3571, %v3574
      %v3576 = vsel %vm3538, %v3567, %v3575
      %v3577 = vrot.slane %v3575, 4
      %v3579 = vshrl.u32 %v3494, 16
      %v3581 = vrot.slane %v3579, 6
      %v3582 = vshll.u32 %v3494, 16
      %v3584 = vrot.slane %v3582, 7
      %v3585 = vor.u32 %v3581, %v3584
      %v3586 = vsel %vm3538, %v3577, %v3585
      %v3587 = vrot.slane %v3585, 4
      %v3589 = vshrl.u32 %v3495, 16
      %v3591 = vrot.slane %v3589, 6
      %v3592 = vshll.u32 %v3495, 16
      %v3594 = vrot.slane %v3592, 7
      %v3595 = vor.u32 %v3591, %v3594
      %v3596 = vsel %vm3538, %v3587, %v3595
      %v3597 = vrot.slane %v3595, 4
      %v3599 = vshrl.u32 %v3496, 16
      %v3601 = vrot.slane %v3599, 6
      %v3602 = vshll.u32 %v3496, 16
      %v3604 = vrot.slane %v3602, 7
      %v3605 = vor.u32 %v3601, %v3604
      %v3606 = vsel %vm3538, %v3597, %v3605
      %v3607 = vrot.slane %v3605, 4
      %v3609 = vshrl.u32 %v3497, 16
      %v3611 = vrot.slane %v3609, 6
      %v3612 = vshll.u32 %v3497, 16
      %v3614 = vrot.slane %v3612, 7
      %v3615 = vor.u32 %v3611, %v3614
      %v3616 = vsel %vm3538, %v3607, %v3615
      %v3617 = vrot.slane %v3615, 4
      %v3619 = vshrl.u32 %v3498, 16
      %v3621 = vrot.slane %v3619, 6
      %v3622 = vshll.u32 %v3498, 16
      %v3624 = vrot.slane %v3622, 7
      %v3625 = vor.u32 %v3621, %v3624
      %v3626 = vsel %vm3538, %v3617, %v3625
      %v3627 = vrot.slane %v3625, 4
      %v3629 = vshrl.u32 %v3499, 16
      %v3631 = vrot.slane %v3629, 6
      %v3632 = vshll.u32 %v3499, 16
      %v3634 = vrot.slane %v3632, 7
      %v3635 = vor.u32 %v3631, %v3634
      %v3636 = vsel %vm3538, %v3627, %v3635
      %v3637 = vrot.slane %v3635, 4
      %v3639 = vshrl.u32 %v3500, 16
      %v3641 = vrot.slane %v3639, 6
      %v3642 = vshll.u32 %v3500, 16
      %v3644 = vrot.slane %v3642, 7
      %v3645 = vor.u32 %v3641, %v3644
      %v3646 = vsel %vm3538, %v3637, %v3645
      %v3647 = vrot.slane %v3645, 4
      %v3649 = vshrl.u32 %v3501, 16
      %v3651 = vrot.slane %v3649, 6
      %v3652 = vshll.u32 %v3501, 16
      %v3654 = vrot.slane %v3652, 7
      %v3655 = vor.u32 %v3651, %v3654
      %v3656 = vsel %vm3538, %v3647, %v3655
      %v3657 = vrot.slane %v3655, 4
      %v3659 = vshrl.u32 %v3502, 16
      %v3661 = vrot.slane %v3659, 6
      %v3662 = vshll.u32 %v3502, 16
      %v3664 = vrot.slane %v3662, 7
      %v3665 = vor.u32 %v3661, %v3664
      %v3666 = vsel %vm3538, %v3657, %v3665
      %v3667 = vrot.slane %v3665, 4
      %v3669 = vshrl.u32 %v3503, 16
      %v3671 = vrot.slane %v3669, 6
      %v3672 = vshll.u32 %v3503, 16
      %v3674 = vrot.slane %v3672, 7
      %v3675 = vor.u32 %v3671, %v3674
      %v3676 = vsel %vm3538, %v3667, %v3675
      %v3677 = vrot.slane %v3675, 4
      %v3679 = vshrl.u32 %v3504, 16
      %v3681 = vrot.slane %v3679, 6
      %v3682 = vshll.u32 %v3504, 16
      %v3684 = vrot.slane %v3682, 7
      %v3685 = vor.u32 %v3681, %v3684
      %v3686 = vsel %vm3538, %v3677, %v3685
      %v3687 = vrot.slane %v3685, 4
      %v3689 = vshrl.u32 %v3505, 16
      %v3691 = vrot.slane %v3689, 6
      %v3692 = vshll.u32 %v3505, 16
      %v3694 = vrot.slane %v3692, 7
      %v3695 = vor.u32 %v3691, %v3694
      %v3696 = vsel %vm3538, %v3687, %v3695
      %v3697 = vrot.slane %v3695, 4
      %v3699 = vshrl.u32 %v3506, 16
      %v3701 = vrot.slane %v3699, 6
      %v3702 = vshll.u32 %v3506, 16
      %v3704 = vrot.slane %v3702, 7
      %v3705 = vor.u32 %v3701, %v3704
      %v3706 = vsel %vm3538, %v3697, %v3705
      %v3707 = vrot.slane %v3705, 4
      %v3709 = vshrl.u32 %v3507, 16
      %v3711 = vrot.slane %v3709, 6
      %v3712 = vshll.u32 %v3507, 16
      %v3714 = vrot.slane %v3712, 7
      %v3715 = vor.u32 %v3711, %v3714
      %v3716 = vsel %vm3538, %v3707, %v3715
      %v3717 = vrot.slane %v3715, 4
      %v3719 = vshrl.u32 %v3508, 16
      %v3721 = vrot.slane %v3719, 6
      %v3722 = vshll.u32 %v3508, 16
      %v3724 = vrot.slane %v3722, 7
      %v3725 = vor.u32 %v3721, %v3724
      %v3726 = vsel %vm3538, %v3717, %v3725
      %v3727 = vrot.slane %v3725, 4
      %v3729 = vshrl.u32 %v3509, 16
      %v3731 = vrot.slane %v3729, 6
      %v3732 = vshll.u32 %v3509, 16
      %v3734 = vrot.slane %v3732, 7
      %v3735 = vor.u32 %v3731, %v3734
      %v3736 = vsel %vm3538, %v3727, %v3735
      %v3737 = vrot.slane %v3735, 4
      %v3739 = vshrl.u32 %v3510, 16
      %v3741 = vrot.slane %v3739, 6
      %v3742 = vshll.u32 %v3510, 16
      %v3744 = vrot.slane %v3742, 7
      %v3745 = vor.u32 %v3741, %v3744
      %v3746 = vsel %vm3538, %v3737, %v3745
      %v3747 = vrot.slane %v3745, 4
      %v3749 = vshrl.u32 %v3511, 16
      %v3751 = vrot.slane %v3749, 6
      %v3752 = vshll.u32 %v3511, 16
      %v3754 = vrot.slane %v3752, 7
      %v3755 = vor.u32 %v3751, %v3754
      %v3756 = vsel %vm3538, %v3747, %v3755
      %v3757 = vrot.slane %v3755, 4
      %v3759 = vshrl.u32 %v3512, 16
      %v3761 = vrot.slane %v3759, 6
      %v3762 = vshll.u32 %v3512, 16
      %v3764 = vrot.slane %v3762, 7
      %v3765 = vor.u32 %v3761, %v3764
      %v3766 = vsel %vm3538, %v3757, %v3765
      %v3767 = vrot.slane %v3765, 4
      %v3769 = vshrl.u32 %v3513, 16
      %v3771 = vrot.slane %v3769, 6
      %v3772 = vshll.u32 %v3513, 16
      %v3774 = vrot.slane %v3772, 7
      %v3775 = vor.u32 %v3771, %v3774
      %v3776 = vsel %vm3538, %v3767, %v3775
      %v3777 = vrot.slane %v3775, 4
      %v3779 = vshrl.u32 %v3514, 16
      %v3781 = vrot.slane %v3779, 6
      %v3782 = vshll.u32 %v3514, 16
      %v3784 = vrot.slane %v3782, 7
      %v3785 = vor.u32 %v3781, %v3784
      %v3786 = vsel %vm3538, %v3777, %v3785
      %v3787 = vrot.slane %v3785, 4
      %v3789 = vshrl.u32 %v3515, 16
      %v3791 = vrot.slane %v3789, 6
      %v3792 = vshll.u32 %v3515, 16
      %v3794 = vrot.slane %v3792, 7
      %v3795 = vor.u32 %v3791, %v3794
      %v3796 = vsel %vm3538, %v3787, %v3795
      %v3797 = vrot.slane %v3795, 4
      %v3799 = vshrl.u32 %v3516, 16
      %v3801 = vrot.slane %v3799, 6
      %v3802 = vshll.u32 %v3516, 16
      %v3804 = vrot.slane %v3802, 7
      %v3805 = vor.u32 %v3801, %v3804
      %v3806 = vsel %vm3538, %v3797, %v3805
      %v3807 = vrot.slane %v3805, 4
      %v3809 = vshrl.u32 %v3517, 16
      %v3811 = vrot.slane %v3809, 6
      %v3812 = vshll.u32 %v3517, 16
      %v3814 = vrot.slane %v3812, 7
      %v3815 = vor.u32 %v3811, %v3814
      %v3816 = vsel %vm3538, %v3807, %v3815
      %v3817 = vrot.slane %v3815, 4
      %v3819 = vshrl.u32 %v3518, 16
      %v3821 = vrot.slane %v3819, 6
      %v3822 = vshll.u32 %v3518, 16
      %v3824 = vrot.slane %v3822, 7
      %v3825 = vor.u32 %v3821, %v3824
      %v3826 = vsel %vm3538, %v3817, %v3825
      %v3827 = vrot.slane %v3825, 4
      %v3829 = vshrl.u32 %v3519, 16
      %v3831 = vrot.slane %v3829, 6
      %v3832 = vshll.u32 %v3519, 16
      %v3834 = vrot.slane %v3832, 7
      %v3835 = vor.u32 %v3831, %v3834
      %v3836 = vsel %vm3538, %v3827, %v3835
      %v3837 = vrot.slane %v3835, 4
      %v3839 = vshrl.u32 %v3520, 16
      %v3841 = vrot.slane %v3839, 6
      %v3842 = vshll.u32 %v3520, 16
      %v3844 = vrot.slane %v3842, 7
      %v3845 = vor.u32 %v3841, %v3844
      %v3846 = vsel %vm3538, %v3837, %v3845
      %v3847 = vrot.slane %v3845, 4
      %v3849 = vshrl.u32 %v3521, 16
      %v3851 = vrot.slane %v3849, 6
      %v3852 = vshll.u32 %v3521, 16
      %v3854 = vrot.slane %v3852, 7
      %v3855 = vor.u32 %v3851, %v3854
      %v3856 = vsel %vm3538, %v3847, %v3855
      %v3857 = vrot.slane %v3855, 4
      %v3859 = vshrl.u32 %v3522, 16
      %v3861 = vrot.slane %v3859, 6
      %v3862 = vshll.u32 %v3522, 16
      %v3864 = vrot.slane %v3862, 7
      %v3865 = vor.u32 %v3861, %v3864
      %v3866 = vsel %vm3538, %v3857, %v3865
      %v3867 = vrot.slane %v3865, 4
      %v3869 = vshrl.u32 %v3523, 16
      %v3871 = vrot.slane %v3869, 6
      %v3872 = vshll.u32 %v3523, 16
      %v3874 = vrot.slane %v3872, 7
      %v3875 = vor.u32 %v3871, %v3874
      %v3876 = vsel %vm3538, %v3867, %v3875
      %v3877 = vrot.slane %v3875, 4
      %v3879 = vshrl.u32 %v3524, 16
      %v3881 = vrot.slane %v3879, 6
      %v3882 = vshll.u32 %v3524, 16
      %v3884 = vrot.slane %v3882, 7
      %v3885 = vor.u32 %v3881, %v3884
      %v3886 = vsel %vm3538, %v3877, %v3885
      %v3887 = vrot.slane %v3885, 4
      %v3889 = vshrl.u32 %v3525, 16
      %v3891 = vrot.slane %v3889, 6
      %v3892 = vshll.u32 %v3525, 16
      %v3894 = vrot.slane %v3892, 7
      %v3895 = vor.u32 %v3891, %v3894
      %v3896 = vsel %vm3538, %v3887, %v3895
      %v3897 = vrot.slane %v3895, 4
      %v3899 = vshrl.u32 %v3526, 16
      %v3901 = vrot.slane %v3899, 6
      %v3902 = vshll.u32 %v3526, 16
      %v3904 = vrot.slane %v3902, 7
      %v3905 = vor.u32 %v3901, %v3904
      %v3906 = vsel %vm3538, %v3897, %v3905
      %v3907 = vrot.slane %v3905, 4
      %v3909 = vshrl.u32 %v3527, 16
      %v3911 = vrot.slane %v3909, 6
      %v3912 = vshll.u32 %v3527, 16
      %v3914 = vrot.slane %v3912, 7
      %v3915 = vor.u32 %v3911, %v3914
      %v3916 = vsel %vm3538, %v3907, %v3915
      %v3917 = vrot.slane %v3915, 4
      %v3919 = vshrl.u32 %v3528, 16
      %v3921 = vrot.slane %v3919, 6
      %v3922 = vshll.u32 %v3528, 16
      %v3924 = vrot.slane %v3922, 7
      %v3925 = vor.u32 %v3921, %v3924
      %v3926 = vsel %vm3538, %v3917, %v3925
      %v3927 = vrot.slane %v3925, 4
      %v3929 = vshrl.u32 %v3529, 16
      %v3931 = vrot.slane %v3929, 6
      %v3932 = vshll.u32 %v3529, 16
      %v3934 = vrot.slane %v3932, 7
      %v3935 = vor.u32 %v3931, %v3934
      %v3936 = vsel %vm3538, %v3927, %v3935
      %v3937 = vrot.slane %v3935, 4
      %v3939 = vshrl.u32 %v3530, 16
      %v3941 = vrot.slane %v3939, 6
      %v3942 = vshll.u32 %v3530, 16
      %v3944 = vrot.slane %v3942, 7
      %v3945 = vor.u32 %v3941, %v3944
      %v3946 = vsel %vm3538, %v3937, %v3945
      %v3947 = vrot.slane %v3945, 4
      %v3949 = vshrl.u32 %v3531, 16
      %v3951 = vrot.slane %v3949, 6
      %v3952 = vshll.u32 %v3531, 16
      %v3954 = vrot.slane %v3952, 7
      %v3955 = vor.u32 %v3951, %v3954
      %v3956 = vsel %vm3538, %v3947, %v3955
      %v3957 = vrot.slane %v3955, 4
      %v3959 = vshrl.u32 %v3532, 16
      %v3961 = vrot.slane %v3959, 6
      %v3962 = vshll.u32 %v3532, 16
      %v3964 = vrot.slane %v3962, 7
      %v3965 = vor.u32 %v3961, %v3964
      %v3966 = vsel %vm3538, %v3957, %v3965
      %v3967 = vrot.slane %v3965, 4
      %v3969 = vshrl.u32 %v3533, 16
      %v3971 = vrot.slane %v3969, 6
      %v3972 = vshll.u32 %v3533, 16
      %v3974 = vrot.slane %v3972, 7
      %v3975 = vor.u32 %v3971, %v3974
      %v3976 = vsel %vm3538, %v3967, %v3975
      %v3977 = vrot.slane %v3975, 4
      %v3979 = vshrl.u32 %v3534, 16
      %v3981 = vrot.slane %v3979, 6
      %v3982 = vshll.u32 %v3534, 16
      %v3984 = vrot.slane %v3982, 7
      %v3985 = vor.u32 %v3981, %v3984
      %v3986 = vsel %vm3538, %v3977, %v3985
      %v3987 = vrot.slane %v3985, 4
      %v3989 = vshrl.u32 %v3535, 16
      %v3991 = vrot.slane %v3989, 6
      %v3992 = vshll.u32 %v3535, 16
      %v3994 = vrot.slane %v3992, 7
      %v3995 = vor.u32 %v3991, %v3994
      %v3996 = vsel %vm3538, %v3987, %v3995
      %3997 = vrot.lane.b32.xlu0 %v3556, 28
      %v3998 = vpop.permute.xlu0 %3997
      %3999 = vrot.lane.b32.xlu0 %v3566, 28
      %v4000 = vpop.permute.xlu0 %3999
      %4001 = vrot.lane.b32.xlu0 %v3576, 28
      %v4002 = vpop.permute.xlu0 %4001
      %4003 = vrot.lane.b32.xlu0 %v3586, 28
      %v4004 = vpop.permute.xlu0 %4003
      %4005 = vrot.lane.b32.xlu0 %v3596, 28
      %v4006 = vpop.permute.xlu0 %4005
      %4007 = vrot.lane.b32.xlu0 %v3606, 28
      %v4008 = vpop.permute.xlu0 %4007
      %4009 = vrot.lane.b32.xlu0 %v3616, 28
      %v4010 = vpop.permute.xlu0 %4009
      %4011 = vrot.lane.b32.xlu0 %v3626, 28
      %v4012 = vpop.permute.xlu0 %4011
      %4013 = vrot.lane.b32.xlu0 %v3636, 28
      %v4014 = vpop.permute.xlu0 %4013
      %4015 = vrot.lane.b32.xlu0 %v3646, 28
      %v4016 = vpop.permute.xlu0 %4015
      %4017 = vrot.lane.b32.xlu0 %v3656, 28
      %v4018 = vpop.permute.xlu0 %4017
      %4019 = vrot.lane.b32.xlu0 %v3666, 28
      %v4020 = vpop.permute.xlu0 %4019
      %4021 = vrot.lane.b32.xlu0 %v3676, 28
      %v4022 = vpop.permute.xlu0 %4021
      %4023 = vrot.lane.b32.xlu0 %v3686, 28
      %v4024 = vpop.permute.xlu0 %4023
      %4025 = vrot.lane.b32.xlu0 %v3696, 28
      %v4026 = vpop.permute.xlu0 %4025
      %4027 = vrot.lane.b32.xlu0 %v3706, 28
      %v4028 = vpop.permute.xlu0 %4027
      %4029 = vrot.lane.b32.xlu0 %v3716, 28
      %v4030 = vpop.permute.xlu0 %4029
      %4031 = vrot.lane.b32.xlu0 %v3726, 28
      %v4032 = vpop.permute.xlu0 %4031
      %4033 = vrot.lane.b32.xlu0 %v3736, 28
      %v4034 = vpop.permute.xlu0 %4033
      %4035 = vrot.lane.b32.xlu0 %v3746, 28
      %v4036 = vpop.permute.xlu0 %4035
      %4037 = vrot.lane.b32.xlu0 %v3756, 28
      %v4038 = vpop.permute.xlu0 %4037
      %4039 = vrot.lane.b32.xlu0 %v3766, 28
      %v4040 = vpop.permute.xlu0 %4039
      %4041 = vrot.lane.b32.xlu0 %v3776, 28
      %v4042 = vpop.permute.xlu0 %4041
      %4043 = vrot.lane.b32.xlu0 %v3786, 28
      %v4044 = vpop.permute.xlu0 %4043
      %4045 = vrot.lane.b32.xlu0 %v3796, 28
      %v4046 = vpop.permute.xlu0 %4045
      %4047 = vrot.lane.b32.xlu0 %v3806, 28
      %v4048 = vpop.permute.xlu0 %4047
      %4049 = vrot.lane.b32.xlu0 %v3816, 28
      %v4050 = vpop.permute.xlu0 %4049
      %4051 = vrot.lane.b32.xlu0 %v3826, 28
      %v4052 = vpop.permute.xlu0 %4051
      %4053 = vrot.lane.b32.xlu0 %v3836, 28
      %v4054 = vpop.permute.xlu0 %4053
      %4055 = vrot.lane.b32.xlu0 %v3846, 28
      %v4056 = vpop.permute.xlu0 %4055
      %4057 = vrot.lane.b32.xlu0 %v3856, 28
      %v4058 = vpop.permute.xlu0 %4057
      %4059 = vrot.lane.b32.xlu0 %v3866, 28
      %v4060 = vpop.permute.xlu0 %4059
      %4061 = vrot.lane.b32.xlu0 %v3876, 28
      %v4062 = vpop.permute.xlu0 %4061
      %4063 = vrot.lane.b32.xlu0 %v3886, 28
      %v4064 = vpop.permute.xlu0 %4063
      %4065 = vrot.lane.b32.xlu0 %v3896, 28
      %v4066 = vpop.permute.xlu0 %4065
      %4067 = vrot.lane.b32.xlu0 %v3906, 28
      %v4068 = vpop.permute.xlu0 %4067
      %4069 = vrot.lane.b32.xlu0 %v3916, 28
      %v4070 = vpop.permute.xlu0 %4069
      %4071 = vrot.lane.b32.xlu0 %v3926, 28
      %v4072 = vpop.permute.xlu0 %4071
      %4073 = vrot.lane.b32.xlu0 %v3936, 28
      %v4074 = vpop.permute.xlu0 %4073
      %4075 = vrot.lane.b32.xlu0 %v3946, 28
      %v4076 = vpop.permute.xlu0 %4075
      %4077 = vrot.lane.b32.xlu0 %v3956, 28
      %v4078 = vpop.permute.xlu0 %4077
      %4079 = vrot.lane.b32.xlu0 %v3966, 28
      %v4080 = vpop.permute.xlu0 %4079
      %4081 = vrot.lane.b32.xlu0 %v3976, 28
      %v4082 = vpop.permute.xlu0 %4081
      %4083 = vrot.lane.b32.xlu0 %v3986, 28
      %v4084 = vpop.permute.xlu0 %4083
      %4085 = vrot.lane.b32.xlu0 %v3996, 28
      %v4086 = vpop.permute.xlu0 %4085
      %vm4132 = vcmask 257248
      %4133 = vst.msk [vmem:[#allocation3] sm:$0xf] %vm4132, %v3998
      %4134 = vst.msk [vmem:[#allocation3 + $0x4] sm:$0xf] %vm4132, %v4000
      %4135 = vst.msk [vmem:[#allocation3 + $0x8] sm:$0xf] %vm4132, %v4002
      %4136 = vst.msk [vmem:[#allocation3 + $0xc] sm:$0xf] %vm4132, %v4004
      %4137 = vst.msk [vmem:[#allocation3 + $0x10] sm:$0xf] %vm4132, %v4006
      %4138 = vst.msk [vmem:[#allocation3 + $0x14] sm:$0xf] %vm4132, %v4008
      %4139 = vst.msk [vmem:[#allocation3 + $0x18] sm:$0xf] %vm4132, %v4010
      %4140 = vst.msk [vmem:[#allocation3 + $0x1c] sm:$0xf] %vm4132, %v4012
      %4141 = vst.msk [vmem:[#allocation3 + $0x20] sm:$0xf] %vm4132, %v4014
      %4142 = vst.msk [vmem:[#allocation3 + $0x24] sm:$0xf] %vm4132, %v4016
      %4143 = vst.msk [vmem:[#allocation3 + $0x28] sm:$0xf] %vm4132, %v4018
      %4144 = vst.msk [vmem:[#allocation3 + $0x2c] sm:$0xf] %vm4132, %v4020
      %4145 = vst.msk [vmem:[#allocation3 + $0x30] sm:$0xf] %vm4132, %v4022
      %4146 = vst.msk [vmem:[#allocation3 + $0x34] sm:$0xf] %vm4132, %v4024
      %4147 = vst.msk [vmem:[#allocation3 + $0x38] sm:$0xf] %vm4132, %v4026
      %4148 = vst.msk [vmem:[#allocation3 + $0x3c] sm:$0xf] %vm4132, %v4028
      %4149 = vst.msk [vmem:[#allocation3 + $0x40] sm:$0xf] %vm4132, %v4030
      %4150 = vst.msk [vmem:[#allocation3 + $0x44] sm:$0xf] %vm4132, %v4032
      %4151 = vst.msk [vmem:[#allocation3 + $0x48] sm:$0xf] %vm4132, %v4034
      %4152 = vst.msk [vmem:[#allocation3 + $0x4c] sm:$0xf] %vm4132, %v4036
      %4153 = vst.msk [vmem:[#allocation3 + $0x50] sm:$0xf] %vm4132, %v4038
      %4154 = vst.msk [vmem:[#allocation3 + $0x54] sm:$0xf] %vm4132, %v4040
      %4155 = vst.msk [vmem:[#allocation3 + $0x58] sm:$0xf] %vm4132, %v4042
      %4156 = vst.msk [vmem:[#allocation3 + $0x5c] sm:$0xf] %vm4132, %v4044
      %4157 = vst.msk [vmem:[#allocation3 + $0x60] sm:$0xf] %vm4132, %v4046
      %4158 = vst.msk [vmem:[#allocation3 + $0x64] sm:$0xf] %vm4132, %v4048
      %4159 = vst.msk [vmem:[#allocation3 + $0x68] sm:$0xf] %vm4132, %v4050
      %4160 = vst.msk [vmem:[#allocation3 + $0x6c] sm:$0xf] %vm4132, %v4052
      %4161 = vst.msk [vmem:[#allocation3 + $0x70] sm:$0xf] %vm4132, %v4054
      %4162 = vst.msk [vmem:[#allocation3 + $0x74] sm:$0xf] %vm4132, %v4056
      %4163 = vst.msk [vmem:[#allocation3 + $0x78] sm:$0xf] %vm4132, %v4058
      %4164 = vst.msk [vmem:[#allocation3 + $0x7c] sm:$0xf] %vm4132, %v4060
      %4165 = vst.msk [vmem:[#allocation3 + $0x80] sm:$0xf] %vm4132, %v4062
      %4166 = vst.msk [vmem:[#allocation3 + $0x84] sm:$0xf] %vm4132, %v4064
      %4167 = vst.msk [vmem:[#allocation3 + $0x88] sm:$0xf] %vm4132, %v4066
      %4168 = vst.msk [vmem:[#allocation3 + $0x8c] sm:$0xf] %vm4132, %v4068
      %4169 = vst.msk [vmem:[#allocation3 + $0x90] sm:$0xf] %vm4132, %v4070
      %4170 = vst.msk [vmem:[#allocation3 + $0x94] sm:$0xf] %vm4132, %v4072
      %4171 = vst.msk [vmem:[#allocation3 + $0x98] sm:$0xf] %vm4132, %v4074
      %4172 = vst.msk [vmem:[#allocation3 + $0x9c] sm:$0xf] %vm4132, %v4076
      %4173 = vst.msk [vmem:[#allocation3 + $0xa0] sm:$0xf] %vm4132, %v4078
      %4174 = vst.msk [vmem:[#allocation3 + $0xa4] sm:$0xf] %vm4132, %v4080
      %4175 = vst.msk [vmem:[#allocation3 + $0xa8] sm:$0xf] %vm4132, %v4082
      %4176 = vst.msk [vmem:[#allocation3 + $0xac] sm:$0xf] %vm4132, %v4084
      %4177 = vst.msk [vmem:[#allocation3 + $0xb0] sm:$0xf] %vm4132, %v4086
      %v4178 = vld [vmem:[#allocation2 + $0x10] sm:$0x8]
      %v4179 = vld [vmem:[#allocation2 + $0x14] sm:$0xf]
      %v4180 = vld [vmem:[#allocation2 + $0x18] sm:$0xf]
      %v4181 = vld [vmem:[#allocation2 + $0x1c] sm:$0xf]
      %v4182 = vld [vmem:[#allocation2 + $0x20] sm:$0xf]
      %v4183 = vld [vmem:[#allocation2 + $0x24] sm:$0xf]
      %v4184 = vld [vmem:[#allocation2 + $0x28] sm:$0xf]
      %v4185 = vld [vmem:[#allocation2 + $0x2c] sm:$0xf]
      %v4186 = vld [vmem:[#allocation2 + $0x30] sm:$0xf]
      %v4187 = vld [vmem:[#allocation2 + $0x34] sm:$0xf]
      %v4188 = vld [vmem:[#allocation2 + $0x38] sm:$0xf]
      %v4189 = vld [vmem:[#allocation2 + $0x3c] sm:$0xf]
      %v4190 = vld [vmem:[#allocation2 + $0x40] sm:$0xf]
      %v4191 = vld [vmem:[#allocation2 + $0x44] sm:$0xf]
      %v4192 = vld [vmem:[#allocation2 + $0x48] sm:$0xf]
      %v4193 = vld [vmem:[#allocation2 + $0x4c] sm:$0xf]
      %v4194 = vld [vmem:[#allocation2 + $0x50] sm:$0xf]
      %v4195 = vld [vmem:[#allocation2 + $0x54] sm:$0xf]
      %v4196 = vld [vmem:[#allocation2 + $0x58] sm:$0xf]
      %v4197 = vld [vmem:[#allocation2 + $0x5c] sm:$0xf]
      %v4198 = vld [vmem:[#allocation2 + $0x60] sm:$0xf]
      %v4199 = vld [vmem:[#allocation2 + $0x64] sm:$0xf]
      %v4200 = vld [vmem:[#allocation2 + $0x68] sm:$0xf]
      %v4201 = vld [vmem:[#allocation2 + $0x6c] sm:$0xf]
      %v4202 = vld [vmem:[#allocation2 + $0x70] sm:$0xf]
      %v4203 = vld [vmem:[#allocation2 + $0x74] sm:$0xf]
      %v4204 = vld [vmem:[#allocation2 + $0x78] sm:$0xf]
      %v4205 = vld [vmem:[#allocation2 + $0x7c] sm:$0xf]
      %v4206 = vld [vmem:[#allocation2 + $0x80] sm:$0xf]
      %v4207 = vld [vmem:[#allocation2 + $0x84] sm:$0xf]
      %v4208 = vld [vmem:[#allocation2 + $0x88] sm:$0xf]
      %v4209 = vld [vmem:[#allocation2 + $0x8c] sm:$0xf]
      %v4210 = vld [vmem:[#allocation2 + $0x90] sm:$0xf]
      %v4211 = vld [vmem:[#allocation2 + $0x94] sm:$0xf]
      %v4212 = vld [vmem:[#allocation2 + $0x98] sm:$0xf]
      %v4213 = vld [vmem:[#allocation2 + $0x9c] sm:$0xf]
      %v4214 = vld [vmem:[#allocation2 + $0xa0] sm:$0xf]
      %v4215 = vld [vmem:[#allocation2 + $0xa4] sm:$0xf]
      %v4216 = vld [vmem:[#allocation2 + $0xa8] sm:$0xf]
      %v4217 = vld [vmem:[#allocation2 + $0xac] sm:$0xf]
      %v4218 = vld [vmem:[#allocation2 + $0xb0] sm:$0xf]
      %v4219 = vld [vmem:[#allocation2 + $0xb4] sm:$0xf]
      %v4220 = vld [vmem:[#allocation2 + $0xb8] sm:$0xf]
      %v4221 = vld [vmem:[#allocation2 + $0xbc] sm:$0xf]
      %v4222 = vld [vmem:[#allocation2 + $0xc0] sm:$0xf]
      %v4223 = vld [vmem:[#allocation2 + $0xc4] sm:$0x7]
      %vm4270 = vcmask 1040384
      %vm4271 = vcmask 1044484
      %vm4272 = vmor %vm4270, %vm4271
      %v4273 = vrot.slane %v4178, 7
      %v4274 = vrot.slane %v4273, 4
      %v4275 = vrot.slane %v4179, 7
      %v4276 = vsel %vm4272, %v4274, %v4275
      %v4277 = vrot.slane %v4275, 4
      %v4278 = vrot.slane %v4180, 7
      %v4279 = vsel %vm4272, %v4277, %v4278
      %v4280 = vrot.slane %v4278, 4
      %v4281 = vrot.slane %v4181, 7
      %v4282 = vsel %vm4272, %v4280, %v4281
      %v4283 = vrot.slane %v4281, 4
      %v4284 = vrot.slane %v4182, 7
      %v4285 = vsel %vm4272, %v4283, %v4284
      %v4286 = vrot.slane %v4284, 4
      %v4287 = vrot.slane %v4183, 7
      %v4288 = vsel %vm4272, %v4286, %v4287
      %v4289 = vrot.slane %v4287, 4
      %v4290 = vrot.slane %v4184, 7
      %v4291 = vsel %vm4272, %v4289, %v4290
      %v4292 = vrot.slane %v4290, 4
      %v4293 = vrot.slane %v4185, 7
      %v4294 = vsel %vm4272, %v4292, %v4293
      %v4295 = vrot.slane %v4293, 4
      %v4296 = vrot.slane %v4186, 7
      %v4297 = vsel %vm4272, %v4295, %v4296
      %v4298 = vrot.slane %v4296, 4
      %v4299 = vrot.slane %v4187, 7
      %v4300 = vsel %vm4272, %v4298, %v4299
      %v4301 = vrot.slane %v4299, 4
      %v4302 = vrot.slane %v4188, 7
      %v4303 = vsel %vm4272, %v4301, %v4302
      %v4304 = vrot.slane %v4302, 4
      %v4305 = vrot.slane %v4189, 7
      %v4306 = vsel %vm4272, %v4304, %v4305
      %v4307 = vrot.slane %v4305, 4
      %v4308 = vrot.slane %v4190, 7
      %v4309 = vsel %vm4272, %v4307, %v4308
      %v4310 = vrot.slane %v4308, 4
      %v4311 = vrot.slane %v4191, 7
      %v4312 = vsel %vm4272, %v4310, %v4311
      %v4313 = vrot.slane %v4311, 4
      %v4314 = vrot.slane %v4192, 7
      %v4315 = vsel %vm4272, %v4313, %v4314
      %v4316 = vrot.slane %v4314, 4
      %v4317 = vrot.slane %v4193, 7
      %v4318 = vsel %vm4272, %v4316, %v4317
      %v4319 = vrot.slane %v4317, 4
      %v4320 = vrot.slane %v4194, 7
      %v4321 = vsel %vm4272, %v4319, %v4320
      %v4322 = vrot.slane %v4320, 4
      %v4323 = vrot.slane %v4195, 7
      %v4324 = vsel %vm4272, %v4322, %v4323
      %v4325 = vrot.slane %v4323, 4
      %v4326 = vrot.slane %v4196, 7
      %v4327 = vsel %vm4272, %v4325, %v4326
      %v4328 = vrot.slane %v4326, 4
      %v4329 = vrot.slane %v4197, 7
      %v4330 = vsel %vm4272, %v4328, %v4329
      %v4331 = vrot.slane %v4329, 4
      %v4332 = vrot.slane %v4198, 7
      %v4333 = vsel %vm4272, %v4331, %v4332
      %v4334 = vrot.slane %v4332, 4
      %v4335 = vrot.slane %v4199, 7
      %v4336 = vsel %vm4272, %v4334, %v4335
      %v4337 = vrot.slane %v4335, 4
      %v4338 = vrot.slane %v4200, 7
      %v4339 = vsel %vm4272, %v4337, %v4338
      %v4340 = vrot.slane %v4338, 4
      %v4341 = vrot.slane %v4201, 7
      %v4342 = vsel %vm4272, %v4340, %v4341
      %v4343 = vrot.slane %v4341, 4
      %v4344 = vrot.slane %v4202, 7
      %v4345 = vsel %vm4272, %v4343, %v4344
      %v4346 = vrot.slane %v4344, 4
      %v4347 = vrot.slane %v4203, 7
      %v4348 = vsel %vm4272, %v4346, %v4347
      %v4349 = vrot.slane %v4347, 4
      %v4350 = vrot.slane %v4204, 7
      %v4351 = vsel %vm4272, %v4349, %v4350
      %v4352 = vrot.slane %v4350, 4
      %v4353 = vrot.slane %v4205, 7
      %v4354 = vsel %vm4272, %v4352, %v4353
      %v4355 = vrot.slane %v4353, 4
      %v4356 = vrot.slane %v4206, 7
      %v4357 = vsel %vm4272, %v4355, %v4356
      %v4358 = vrot.slane %v4356, 4
      %v4359 = vrot.slane %v4207, 7
      %v4360 = vsel %vm4272, %v4358, %v4359
      %v4361 = vrot.slane %v4359, 4
      %v4362 = vrot.slane %v4208, 7
      %v4363 = vsel %vm4272, %v4361, %v4362
      %v4364 = vrot.slane %v4362, 4
      %v4365 = vrot.slane %v4209, 7
      %v4366 = vsel %vm4272, %v4364, %v4365
      %v4367 = vrot.slane %v4365, 4
      %v4368 = vrot.slane %v4210, 7
      %v4369 = vsel %vm4272, %v4367, %v4368
      %v4370 = vrot.slane %v4368, 4
      %v4371 = vrot.slane %v4211, 7
      %v4372 = vsel %vm4272, %v4370, %v4371
      %v4373 = vrot.slane %v4371, 4
      %v4374 = vrot.slane %v4212, 7
      %v4375 = vsel %vm4272, %v4373, %v4374
      %v4376 = vrot.slane %v4374, 4
      %v4377 = vrot.slane %v4213, 7
      %v4378 = vsel %vm4272, %v4376, %v4377
      %v4379 = vrot.slane %v4377, 4
      %v4380 = vrot.slane %v4214, 7
      %v4381 = vsel %vm4272, %v4379, %v4380
      %v4382 = vrot.slane %v4380, 4
      %v4383 = vrot.slane %v4215, 7
      %v4384 = vsel %vm4272, %v4382, %v4383
      %v4385 = vrot.slane %v4383, 4
      %v4386 = vrot.slane %v4216, 7
      %v4387 = vsel %vm4272, %v4385, %v4386
      %v4388 = vrot.slane %v4386, 4
      %v4389 = vrot.slane %v4217, 7
      %v4390 = vsel %vm4272, %v4388, %v4389
      %v4391 = vrot.slane %v4389, 4
      %v4392 = vrot.slane %v4218, 7
      %v4393 = vsel %vm4272, %v4391, %v4392
      %v4394 = vrot.slane %v4392, 4
      %v4395 = vrot.slane %v4219, 7
      %v4396 = vsel %vm4272, %v4394, %v4395
      %v4397 = vrot.slane %v4395, 4
      %v4398 = vrot.slane %v4220, 7
      %v4399 = vsel %vm4272, %v4397, %v4398
      %v4400 = vrot.slane %v4398, 4
      %v4401 = vrot.slane %v4221, 7
      %v4402 = vsel %vm4272, %v4400, %v4401
      %v4403 = vrot.slane %v4401, 4
      %v4404 = vrot.slane %v4222, 7
      %v4405 = vsel %vm4272, %v4403, %v4404
      %v4406 = vrot.slane %v4404, 4
      %v4407 = vrot.slane %v4223, 7
      %v4408 = vsel %vm4272, %v4406, %v4407
      %4409 = vrot.lane.b32.xlu0 %v4276, 32
      %v4410 = vpop.permute.xlu0 %4409
      %4411 = vrot.lane.b32.xlu0 %v4279, 32
      %v4412 = vpop.permute.xlu0 %4411
      %4413 = vrot.lane.b32.xlu0 %v4282, 32
      %v4414 = vpop.permute.xlu0 %4413
      %4415 = vrot.lane.b32.xlu0 %v4285, 32
      %v4416 = vpop.permute.xlu0 %4415
      %4417 = vrot.lane.b32.xlu0 %v4288, 32
      %v4418 = vpop.permute.xlu0 %4417
      %4419 = vrot.lane.b32.xlu0 %v4291, 32
      %v4420 = vpop.permute.xlu0 %4419
      %4421 = vrot.lane.b32.xlu0 %v4294, 32
      %v4422 = vpop.permute.xlu0 %4421
      %4423 = vrot.lane.b32.xlu0 %v4297, 32
      %v4424 = vpop.permute.xlu0 %4423
      %4425 = vrot.lane.b32.xlu0 %v4300, 32
      %v4426 = vpop.permute.xlu0 %4425
      %4427 = vrot.lane.b32.xlu0 %v4303, 32
      %v4428 = vpop.permute.xlu0 %4427
      %4429 = vrot.lane.b32.xlu0 %v4306, 32
      %v4430 = vpop.permute.xlu0 %4429
      %4431 = vrot.lane.b32.xlu0 %v4309, 32
      %v4432 = vpop.permute.xlu0 %4431
      %4433 = vrot.lane.b32.xlu0 %v4312, 32
      %v4434 = vpop.permute.xlu0 %4433
      %4435 = vrot.lane.b32.xlu0 %v4315, 32
      %v4436 = vpop.permute.xlu0 %4435
      %4437 = vrot.lane.b32.xlu0 %v4318, 32
      %v4438 = vpop.permute.xlu0 %4437
      %4439 = vrot.lane.b32.xlu0 %v4321, 32
      %v4440 = vpop.permute.xlu0 %4439
      %4441 = vrot.lane.b32.xlu0 %v4324, 32
      %v4442 = vpop.permute.xlu0 %4441
      %4443 = vrot.lane.b32.xlu0 %v4327, 32
      %v4444 = vpop.permute.xlu0 %4443
      %4445 = vrot.lane.b32.xlu0 %v4330, 32
      %v4446 = vpop.permute.xlu0 %4445
      %4447 = vrot.lane.b32.xlu0 %v4333, 32
      %v4448 = vpop.permute.xlu0 %4447
      %4449 = vrot.lane.b32.xlu0 %v4336, 32
      %v4450 = vpop.permute.xlu0 %4449
      %4451 = vrot.lane.b32.xlu0 %v4339, 32
      %v4452 = vpop.permute.xlu0 %4451
      %4453 = vrot.lane.b32.xlu0 %v4342, 32
      %v4454 = vpop.permute.xlu0 %4453
      %4455 = vrot.lane.b32.xlu0 %v4345, 32
      %v4456 = vpop.permute.xlu0 %4455
      %4457 = vrot.lane.b32.xlu0 %v4348, 32
      %v4458 = vpop.permute.xlu0 %4457
      %4459 = vrot.lane.b32.xlu0 %v4351, 32
      %v4460 = vpop.permute.xlu0 %4459
      %4461 = vrot.lane.b32.xlu0 %v4354, 32
      %v4462 = vpop.permute.xlu0 %4461
      %4463 = vrot.lane.b32.xlu0 %v4357, 32
      %v4464 = vpop.permute.xlu0 %4463
      %4465 = vrot.lane.b32.xlu0 %v4360, 32
      %v4466 = vpop.permute.xlu0 %4465
      %4467 = vrot.lane.b32.xlu0 %v4363, 32
      %v4468 = vpop.permute.xlu0 %4467
      %4469 = vrot.lane.b32.xlu0 %v4366, 32
      %v4470 = vpop.permute.xlu0 %4469
      %4471 = vrot.lane.b32.xlu0 %v4369, 32
      %v4472 = vpop.permute.xlu0 %4471
      %4473 = vrot.lane.b32.xlu0 %v4372, 32
      %v4474 = vpop.permute.xlu0 %4473
      %4475 = vrot.lane.b32.xlu0 %v4375, 32
      %v4476 = vpop.permute.xlu0 %4475
      %4477 = vrot.lane.b32.xlu0 %v4378, 32
      %v4478 = vpop.permute.xlu0 %4477
      %4479 = vrot.lane.b32.xlu0 %v4381, 32
      %v4480 = vpop.permute.xlu0 %4479
      %4481 = vrot.lane.b32.xlu0 %v4384, 32
      %v4482 = vpop.permute.xlu0 %4481
      %4483 = vrot.lane.b32.xlu0 %v4387, 32
      %v4484 = vpop.permute.xlu0 %4483
      %4485 = vrot.lane.b32.xlu0 %v4390, 32
      %v4486 = vpop.permute.xlu0 %4485
      %4487 = vrot.lane.b32.xlu0 %v4393, 32
      %v4488 = vpop.permute.xlu0 %4487
      %4489 = vrot.lane.b32.xlu0 %v4396, 32
      %v4490 = vpop.permute.xlu0 %4489
      %4491 = vrot.lane.b32.xlu0 %v4399, 32
      %v4492 = vpop.permute.xlu0 %4491
      %4493 = vrot.lane.b32.xlu0 %v4402, 32
      %v4494 = vpop.permute.xlu0 %4493
      %4495 = vrot.lane.b32.xlu0 %v4405, 32
      %v4496 = vpop.permute.xlu0 %4495
      %4497 = vrot.lane.b32.xlu0 %v4408, 32
      %v4498 = vpop.permute.xlu0 %4497
      %vm4544 = vcmask 290048
      %4545 = vst.msk [vmem:[#allocation3] sm:$0xf] %vm4544, %v4410
      %4546 = vst.msk [vmem:[#allocation3 + $0x4] sm:$0xf] %vm4544, %v4412
      %4547 = vst.msk [vmem:[#allocation3 + $0x8] sm:$0xf] %vm4544, %v4414
      %4548 = vst.msk [vmem:[#allocation3 + $0xc] sm:$0xf] %vm4544, %v4416
      %4549 = vst.msk [vmem:[#allocation3 + $0x10] sm:$0xf] %vm4544, %v4418
      %4550 = vst.msk [vmem:[#allocation3 + $0x14] sm:$0xf] %vm4544, %v4420
      %4551 = vst.msk [vmem:[#allocation3 + $0x18] sm:$0xf] %vm4544, %v4422
      %4552 = vst.msk [vmem:[#allocation3 + $0x1c] sm:$0xf] %vm4544, %v4424
      %4553 = vst.msk [vmem:[#allocation3 + $0x20] sm:$0xf] %vm4544, %v4426
      %4554 = vst.msk [vmem:[#allocation3 + $0x24] sm:$0xf] %vm4544, %v4428
      %4555 = vst.msk [vmem:[#allocation3 + $0x28] sm:$0xf] %vm4544, %v4430
      %4556 = vst.msk [vmem:[#allocation3 + $0x2c] sm:$0xf] %vm4544, %v4432
      %4557 = vst.msk [vmem:[#allocation3 + $0x30] sm:$0xf] %vm4544, %v4434
      %4558 = vst.msk [vmem:[#allocation3 + $0x34] sm:$0xf] %vm4544, %v4436
      %4559 = vst.msk [vmem:[#allocation3 + $0x38] sm:$0xf] %vm4544, %v4438
      %4560 = vst.msk [vmem:[#allocation3 + $0x3c] sm:$0xf] %vm4544, %v4440
      %4561 = vst.msk [vmem:[#allocation3 + $0x40] sm:$0xf] %vm4544, %v4442
      %4562 = vst.msk [vmem:[#allocation3 + $0x44] sm:$0xf] %vm4544, %v4444
      %4563 = vst.msk [vmem:[#allocation3 + $0x48] sm:$0xf] %vm4544, %v4446
      %4564 = vst.msk [vmem:[#allocation3 + $0x4c] sm:$0xf] %vm4544, %v4448
      %4565 = vst.msk [vmem:[#allocation3 + $0x50] sm:$0xf] %vm4544, %v4450
      %4566 = vst.msk [vmem:[#allocation3 + $0x54] sm:$0xf] %vm4544, %v4452
      %4567 = vst.msk [vmem:[#allocation3 + $0x58] sm:$0xf] %vm4544, %v4454
      %4568 = vst.msk [vmem:[#allocation3 + $0x5c] sm:$0xf] %vm4544, %v4456
      %4569 = vst.msk [vmem:[#allocation3 + $0x60] sm:$0xf] %vm4544, %v4458
      %4570 = vst.msk [vmem:[#allocation3 + $0x64] sm:$0xf] %vm4544, %v4460
      %4571 = vst.msk [vmem:[#allocation3 + $0x68] sm:$0xf] %vm4544, %v4462
      %4572 = vst.msk [vmem:[#allocation3 + $0x6c] sm:$0xf] %vm4544, %v4464
      %4573 = vst.msk [vmem:[#allocation3 + $0x70] sm:$0xf] %vm4544, %v4466
      %4574 = vst.msk [vmem:[#allocation3 + $0x74] sm:$0xf] %vm4544, %v4468
      %4575 = vst.msk [vmem:[#allocation3 + $0x78] sm:$0xf] %vm4544, %v4470
      %4576 = vst.msk [vmem:[#allocation3 + $0x7c] sm:$0xf] %vm4544, %v4472
      %4577 = vst.msk [vmem:[#allocation3 + $0x80] sm:$0xf] %vm4544, %v4474
      %4578 = vst.msk [vmem:[#allocation3 + $0x84] sm:$0xf] %vm4544, %v4476
      %4579 = vst.msk [vmem:[#allocation3 + $0x88] sm:$0xf] %vm4544, %v4478
      %4580 = vst.msk [vmem:[#allocation3 + $0x8c] sm:$0xf] %vm4544, %v4480
      %4581 = vst.msk [vmem:[#allocation3 + $0x90] sm:$0xf] %vm4544, %v4482
      %4582 = vst.msk [vmem:[#allocation3 + $0x94] sm:$0xf] %vm4544, %v4484
      %4583 = vst.msk [vmem:[#allocation3 + $0x98] sm:$0xf] %vm4544, %v4486
      %4584 = vst.msk [vmem:[#allocation3 + $0x9c] sm:$0xf] %vm4544, %v4488
      %4585 = vst.msk [vmem:[#allocation3 + $0xa0] sm:$0xf] %vm4544, %v4490
      %4586 = vst.msk [vmem:[#allocation3 + $0xa4] sm:$0xf] %vm4544, %v4492
      %4587 = vst.msk [vmem:[#allocation3 + $0xa8] sm:$0xf] %vm4544, %v4494
      %4588 = vst.msk [vmem:[#allocation3 + $0xac] sm:$0xf] %vm4544, %v4496
      %4589 = vst.msk [vmem:[#allocation3 + $0xb0] sm:$0xf] %vm4544, %v4498
      %v4590 = vld [vmem:[#allocation3] sm:$0xf]
      %v4591 = vld [vmem:[#allocation3 + $0x4] sm:$0xf]
      %v4592 = vld [vmem:[#allocation3 + $0x8] sm:$0xf]
      %v4593 = vld [vmem:[#allocation3 + $0xc] sm:$0xf]
      %v4594 = vld [vmem:[#allocation3 + $0x10] sm:$0xf]
      %v4595 = vld [vmem:[#allocation3 + $0x14] sm:$0xf]
      %v4596 = vld [vmem:[#allocation3 + $0x18] sm:$0xf]
      %v4597 = vld [vmem:[#allocation3 + $0x1c] sm:$0xf]
      %v4598 = vld [vmem:[#allocation3 + $0x20] sm:$0xf]
      %v4599 = vld [vmem:[#allocation3 + $0x24] sm:$0xf]
      %v4600 = vld [vmem:[#allocation3 + $0x28] sm:$0xf]
      %v4601 = vld [vmem:[#allocation3 + $0x2c] sm:$0xf]
      %v4602 = vld [vmem:[#allocation3 + $0x30] sm:$0xf]
      %v4603 = vld [vmem:[#allocation3 + $0x34] sm:$0xf]
      %v4604 = vld [vmem:[#allocation3 + $0x38] sm:$0xf]
      %v4605 = vld [vmem:[#allocation3 + $0x3c] sm:$0xf]
      %v4606 = vld [vmem:[#allocation3 + $0x40] sm:$0xf]
      %v4607 = vld [vmem:[#allocation3 + $0x44] sm:$0xf]
      %v4608 = vld [vmem:[#allocation3 + $0x48] sm:$0xf]
      %v4609 = vld [vmem:[#allocation3 + $0x4c] sm:$0xf]
      %v4610 = vld [vmem:[#allocation3 + $0x50] sm:$0xf]
      %v4611 = vld [vmem:[#allocation3 + $0x54] sm:$0xf]
      %v4612 = vld [vmem:[#allocation3 + $0x58] sm:$0xf]
      %v4613 = vld [vmem:[#allocation3 + $0x5c] sm:$0xf]
      %v4614 = vld [vmem:[#allocation3 + $0x60] sm:$0xf]
      %v4615 = vld [vmem:[#allocation3 + $0x64] sm:$0xf]
      %v4616 = vld [vmem:[#allocation3 + $0x68] sm:$0xf]
      %v4617 = vld [vmem:[#allocation3 + $0x6c] sm:$0xf]
      %v4618 = vld [vmem:[#allocation3 + $0x70] sm:$0xf]
      %v4619 = vld [vmem:[#allocation3 + $0x74] sm:$0xf]
      %v4620 = vld [vmem:[#allocation3 + $0x78] sm:$0xf]
      %v4621 = vld [vmem:[#allocation3 + $0x7c] sm:$0xf]
      %v4622 = vld [vmem:[#allocation3 + $0x80] sm:$0xf]
      %v4623 = vld [vmem:[#allocation3 + $0x84] sm:$0xf]
      %v4624 = vld [vmem:[#allocation3 + $0x88] sm:$0xf]
      %v4625 = vld [vmem:[#allocation3 + $0x8c] sm:$0xf]
      %v4626 = vld [vmem:[#allocation3 + $0x90] sm:$0xf]
      %v4627 = vld [vmem:[#allocation3 + $0x94] sm:$0xf]
      %v4628 = vld [vmem:[#allocation3 + $0x98] sm:$0xf]
      %v4629 = vld [vmem:[#allocation3 + $0x9c] sm:$0xf]
      %v4630 = vld [vmem:[#allocation3 + $0xa0] sm:$0xf]
      %v4631 = vld [vmem:[#allocation3 + $0xa4] sm:$0xf]
      %v4632 = vld [vmem:[#allocation3 + $0xa8] sm:$0xf]
      %v4633 = vld [vmem:[#allocation3 + $0xac] sm:$0xf]
      %v4634 = vld [vmem:[#allocation3 + $0xb0] sm:$0xf]
      %v4635 = vld [vmem:[%s2] sm:$0xf]
      %v4636 = vld [vmem:[%s2 + $0x4] sm:$0xf]
      %v4637 = vld [vmem:[%s2 + $0x8] sm:$0xf]
      %v4638 = vld [vmem:[%s2 + $0xc] sm:$0xf]
      %v4639 = vld [vmem:[%s2 + $0x10] sm:$0x3]
      %v4685 = vunpack.c.l.b16 %v4590
      %v4686 = vunpack.c.l.b16 %v4591
      %v4687 = vunpack.c.l.b16 %v4592
      %v4688 = vunpack.c.l.b16 %v4593
      %v4689 = vunpack.c.l.b16 %v4594
      %v4690 = vunpack.c.l.b16 %v4595
      %v4691 = vunpack.c.l.b16 %v4596
      %v4692 = vunpack.c.l.b16 %v4597
      %v4693 = vunpack.c.l.b16 %v4598
      %v4694 = vunpack.c.l.b16 %v4599
      %v4695 = vunpack.c.l.b16 %v4600
      %v4696 = vunpack.c.l.b16 %v4601
      %v4697 = vunpack.c.l.b16 %v4602
      %v4698 = vunpack.c.l.b16 %v4603
      %v4699 = vunpack.c.l.b16 %v4604
      %v4700 = vunpack.c.l.b16 %v4605
      %v4701 = vunpack.c.l.b16 %v4606
      %v4702 = vunpack.c.l.b16 %v4607
      %v4703 = vunpack.c.l.b16 %v4608
      %v4704 = vunpack.c.l.b16 %v4609
      %v4705 = vunpack.c.l.b16 %v4610
      %v4706 = vunpack.c.l.b16 %v4611
      %v4707 = vunpack.c.l.b16 %v4612
      %v4708 = vunpack.c.l.b16 %v4613
      %v4709 = vunpack.c.l.b16 %v4614
      %v4710 = vunpack.c.l.b16 %v4615
      %v4711 = vunpack.c.l.b16 %v4616
      %v4712 = vunpack.c.l.b16 %v4617
      %v4713 = vunpack.c.l.b16 %v4618
      %v4714 = vunpack.c.l.b16 %v4619
      %v4715 = vunpack.c.l.b16 %v4620
      %v4716 = vunpack.c.l.b16 %v4621
      %v4717 = vunpack.c.l.b16 %v4622
      %v4718 = vunpack.c.l.b16 %v4623
      %v4719 = vunpack.c.l.b16 %v4624
      %v4720 = vunpack.c.l.b16 %v4625
      %v4721 = vunpack.c.l.b16 %v4626
      %v4722 = vunpack.c.l.b16 %v4627
      %v4723 = vunpack.c.l.b16 %v4628
      %v4724 = vunpack.c.l.b16 %v4629
      %v4725 = vunpack.c.l.b16 %v4630
      %v4726 = vunpack.c.l.b16 %v4631
      %v4727 = vunpack.c.l.b16 %v4632
      %v4728 = vunpack.c.l.b16 %v4633
      %v4729 = vunpack.c.l.b16 %v4634
      %v4730 = vpack.c.b16 %v4686, %v4685
      %v4731 = vpack.c.b16 %v4688, %v4687
      %v4732 = vpack.c.b16 %v4690, %v4689
      %v4733 = vpack.c.b16 %v4692, %v4691
      %v4734 = vpack.c.b16 %v4694, %v4693
      %v4735 = vpack.c.b16 %v4696, %v4695
      %v4736 = vpack.c.b16 %v4698, %v4697
      %v4737 = vpack.c.b16 %v4700, %v4699
      %v4738 = vpack.c.b16 %v4702, %v4701
      %v4739 = vpack.c.b16 %v4704, %v4703
      %v4740 = vpack.c.b16 %v4706, %v4705
      %v4741 = vpack.c.b16 %v4708, %v4707
      %v4742 = vpack.c.b16 %v4710, %v4709
      %v4743 = vpack.c.b16 %v4712, %v4711
      %v4744 = vpack.c.b16 %v4714, %v4713
      %v4745 = vpack.c.b16 %v4716, %v4715
      %v4746 = vpack.c.b16 %v4718, %v4717
      %v4747 = vpack.c.b16 %v4720, %v4719
      %v4748 = vpack.c.b16 %v4722, %v4721
      %v4749 = vpack.c.b16 %v4724, %v4723
      %v4750 = vpack.c.b16 %v4726, %v4725
      %v4751 = vpack.c.b16 %v4728, %v4727
      %v4752 = vpack.c.b16 %v4729, %v4729
      %v4758 = vunpack.c.l.b16 %v4635
      %v4759 = vunpack.c.l.b16 %v4636
      %v4760 = vunpack.c.l.b16 %v4637
      %v4761 = vunpack.c.l.b16 %v4638
      %v4762 = vunpack.c.l.b16 %v4639
      %v4763 = vpack.c.b16 %v4759, %v4758
      %v4764 = vpack.c.b16 %v4761, %v4760
      %v4765 = vpack.c.b16 %v4762, %v4762
      %vm4768 = vcmask 293888
      %v4770 = vsel %vm4768, %v4730, 0
      %v4773 = vsel %vm4768, %v4731, 0
      %v4776 = vsel %vm4768, %v4732, 0
      %v4779 = vsel %vm4768, %v4733, 0
      %v4782 = vsel %vm4768, %v4734, 0
      %v4785 = vsel %vm4768, %v4735, 0
      %v4788 = vsel %vm4768, %v4736, 0
      %v4791 = vsel %vm4768, %v4737, 0
      %v4794 = vsel %vm4768, %v4738, 0
      %v4797 = vsel %vm4768, %v4739, 0
      %v4800 = vsel %vm4768, %v4740, 0
      %v4803 = vsel %vm4768, %v4741, 0
      %v4806 = vsel %vm4768, %v4742, 0
      %v4809 = vsel %vm4768, %v4743, 0
      %v4812 = vsel %vm4768, %v4744, 0
      %v4815 = vsel %vm4768, %v4745, 0
      %v4818 = vsel %vm4768, %v4746, 0
      %v4821 = vsel %vm4768, %v4747, 0
      %v4824 = vsel %vm4768, %v4748, 0
      %v4827 = vsel %vm4768, %v4749, 0
      %v4830 = vsel %vm4768, %v4750, 0
      %v4833 = vsel %vm4768, %v4751, 0
      %v4836 = vsel %vm4768, %v4752, 0
      %vm4838 = vcmask 1041408
      %v4840 = vsel %vm4838, %v4765, 0
      %4842 = vmatprep.subr.bf16.mxu0 0
      %4843 = vmatpush1.bf16.msra.mxu0 0
      %4844 = vmatprep.subr.bf16.mxu0 0
      %4845 = vmatpush1.bf16.msra.mxu0 0
      %4846 = vmatprep.subr.bf16.mxu0 0
      %4847 = vmatpush1.bf16.msra.mxu0 0
      %4848 = vmatprep.subr.bf16.mxu0 0
      %4849 = vmatpush1.bf16.msra.mxu0 0
      %4850 = vmatprep.subr.bf16.mxu0 0
      %4851 = vmatpush1.bf16.msra.mxu0 0
      %4852 = vmatprep.subr.bf16.mxu0 0
      %4853 = vmatpush1.bf16.msra.mxu0 %v4840
      %4854 = vmatprep.subr.bf16.mxu0 0
      %4855 = vmatpush1.bf16.msra.mxu0 %v4764
      %4856 = vmatprep.subr.bf16.mxu0 0
      %4857 = vmatpush1.bf16.msra.mxu0 %v4763
      %4858 = vmatprep.subr.bf16.mxu0 0
      %4859 = vmatpush2.bf16.msra.mxu0 0
      %4860 = vmatprep.subr.bf16.mxu0 0
      %4861 = vmatpush2.bf16.msra.mxu0 0
      %4862 = vmatprep.subr.bf16.mxu0 0
      %4863 = vmatpush2.bf16.msra.mxu0 0
      %4864 = vmatprep.subr.bf16.mxu0 0
      %4865 = vmatpush2.bf16.msra.mxu0 0
      %4866 = vmatprep.subr.bf16.mxu0 0
      %4867 = vmatpush2.bf16.msra.mxu0 0
      %4868 = vmatprep.subr.bf16.mxu0 0
      %4869 = vmatpush2.bf16.msra.mxu0 0
      %4870 = vmatprep.subr.bf16.mxu0 0
      %4871 = vmatpush2.bf16.msra.mxu0 0
      %4872 = vmatprep.subr.bf16.mxu0 0
      %4873 = vmatpush2.bf16.msra.mxu0 0
      %4874 = vmatprep.mubr.bf16.mxu0 0
      %4875 = vmatmul.mubr.bf16.gmra.mxu0 %v4770
      %v4876 = vpop.f32.mrf.mxu0
      %v4877 = vadd.f32 0.0, %v4876
      %v4878 = vpop.f32.mrf.mxu0
      %v4879 = vpop.f32.mrf.mxu0
      %v4880 = vadd.f32 0.0, %v4879
      %v4881 = vpop.f32.mrf.mxu0
      %4882 = vmatprep.mubr.bf16.mxu0 0
      %4883 = vmatmul.mubr.bf16.gmra.mxu0 %v4773
      %v4884 = vpop.f32.mrf.mxu0
      %v4885 = vadd.f32 0.0, %v4884
      %v4886 = vpop.f32.mrf.mxu0
      %v4887 = vpop.f32.mrf.mxu0
      %v4888 = vadd.f32 0.0, %v4887
      %v4889 = vpop.f32.mrf.mxu0
      %4890 = vmatprep.mubr.bf16.mxu0 0
      %4891 = vmatmul.mubr.bf16.gmra.mxu0 %v4776
      %v4892 = vpop.f32.mrf.mxu0
      %v4893 = vadd.f32 0.0, %v4892
      %v4894 = vpop.f32.mrf.mxu0
      %v4895 = vpop.f32.mrf.mxu0
      %v4896 = vadd.f32 0.0, %v4895
      %v4897 = vpop.f32.mrf.mxu0
      %4898 = vmatprep.mubr.bf16.mxu0 0
      %4899 = vmatmul.mubr.bf16.gmra.mxu0 %v4779
      %v4900 = vpop.f32.mrf.mxu0
      %v4901 = vadd.f32 0.0, %v4900
      %v4902 = vpop.f32.mrf.mxu0
      %v4903 = vpop.f32.mrf.mxu0
      %v4904 = vadd.f32 0.0, %v4903
      %v4905 = vpop.f32.mrf.mxu0
      %4906 = vmatprep.mubr.bf16.mxu0 0
      %4907 = vmatmul.mubr.bf16.gmra.mxu0 %v4782
      %v4908 = vpop.f32.mrf.mxu0
      %v4909 = vadd.f32 0.0, %v4908
      %v4910 = vpop.f32.mrf.mxu0
      %v4911 = vpop.f32.mrf.mxu0
      %v4912 = vadd.f32 0.0, %v4911
      %v4913 = vpop.f32.mrf.mxu0
      %4914 = vmatprep.mubr.bf16.mxu0 0
      %4915 = vmatmul.mubr.bf16.gmra.mxu0 %v4785
      %v4916 = vpop.f32.mrf.mxu0
      %v4917 = vadd.f32 0.0, %v4916
      %v4918 = vpop.f32.mrf.mxu0
      %v4919 = vpop.f32.mrf.mxu0
      %v4920 = vadd.f32 0.0, %v4919
      %v4921 = vpop.f32.mrf.mxu0
      %4922 = vmatprep.mubr.bf16.mxu0 0
      %4923 = vmatmul.mubr.bf16.gmra.mxu0 %v4788
      %v4924 = vpop.f32.mrf.mxu0
      %v4925 = vadd.f32 0.0, %v4924
      %v4926 = vpop.f32.mrf.mxu0
      %v4927 = vpop.f32.mrf.mxu0
      %v4928 = vadd.f32 0.0, %v4927
      %v4929 = vpop.f32.mrf.mxu0
      %4930 = vmatprep.mubr.bf16.mxu0 0
      %4931 = vmatmul.mubr.bf16.gmra.mxu0 %v4791
      %v4932 = vpop.f32.mrf.mxu0
      %v4933 = vadd.f32 0.0, %v4932
      %v4934 = vpop.f32.mrf.mxu0
      %v4935 = vpop.f32.mrf.mxu0
      %v4936 = vadd.f32 0.0, %v4935
      %v4937 = vpop.f32.mrf.mxu0
      %4938 = vmatprep.mubr.bf16.mxu0 0
      %4939 = vmatmul.mubr.bf16.gmra.mxu0 %v4794
      %v4940 = vpop.f32.mrf.mxu0
      %v4941 = vadd.f32 0.0, %v4940
      %v4942 = vpop.f32.mrf.mxu0
      %v4943 = vpop.f32.mrf.mxu0
      %v4944 = vadd.f32 0.0, %v4943
      %v4945 = vpop.f32.mrf.mxu0
      %4946 = vmatprep.mubr.bf16.mxu0 0
      %4947 = vmatmul.mubr.bf16.gmra.mxu0 %v4797
      %v4948 = vpop.f32.mrf.mxu0
      %v4949 = vadd.f32 0.0, %v4948
      %v4950 = vpop.f32.mrf.mxu0
      %v4951 = vpop.f32.mrf.mxu0
      %v4952 = vadd.f32 0.0, %v4951
      %v4953 = vpop.f32.mrf.mxu0
      %4954 = vmatprep.mubr.bf16.mxu0 0
      %4955 = vmatmul.mubr.bf16.gmra.mxu0 %v4800
      %v4956 = vpop.f32.mrf.mxu0
      %v4957 = vadd.f32 0.0, %v4956
      %v4958 = vpop.f32.mrf.mxu0
      %v4959 = vpop.f32.mrf.mxu0
      %v4960 = vadd.f32 0.0, %v4959
      %v4961 = vpop.f32.mrf.mxu0
      %4962 = vmatprep.mubr.bf16.mxu0 0
      %4963 = vmatmul.mubr.bf16.gmra.mxu0 %v4803
      %v4964 = vpop.f32.mrf.mxu0
      %v4965 = vadd.f32 0.0, %v4964
      %v4966 = vpop.f32.mrf.mxu0
      %v4967 = vpop.f32.mrf.mxu0
      %v4968 = vadd.f32 0.0, %v4967
      %v4969 = vpop.f32.mrf.mxu0
      %4970 = vmatprep.mubr.bf16.mxu0 0
      %4971 = vmatmul.mubr.bf16.gmra.mxu0 %v4806
      %v4972 = vpop.f32.mrf.mxu0
      %v4973 = vadd.f32 0.0, %v4972
      %v4974 = vpop.f32.mrf.mxu0
      %v4975 = vpop.f32.mrf.mxu0
      %v4976 = vadd.f32 0.0, %v4975
      %v4977 = vpop.f32.mrf.mxu0
      %4978 = vmatprep.mubr.bf16.mxu0 0
      %4979 = vmatmul.mubr.bf16.gmra.mxu0 %v4809
      %v4980 = vpop.f32.mrf.mxu0
      %v4981 = vadd.f32 0.0, %v4980
      %v4982 = vpop.f32.mrf.mxu0
      %v4983 = vpop.f32.mrf.mxu0
      %v4984 = vadd.f32 0.0, %v4983
      %v4985 = vpop.f32.mrf.mxu0
      %4986 = vmatprep.mubr.bf16.mxu0 0
      %4987 = vmatmul.mubr.bf16.gmra.mxu0 %v4812
      %v4988 = vpop.f32.mrf.mxu0
      %v4989 = vadd.f32 0.0, %v4988
      %v4990 = vpop.f32.mrf.mxu0
      %v4991 = vpop.f32.mrf.mxu0
      %v4992 = vadd.f32 0.0, %v4991
      %v4993 = vpop.f32.mrf.mxu0
      %4994 = vmatprep.mubr.bf16.mxu0 0
      %4995 = vmatmul.mubr.bf16.gmra.mxu0 %v4815
      %v4996 = vpop.f32.mrf.mxu0
      %v4997 = vadd.f32 0.0, %v4996
      %v4998 = vpop.f32.mrf.mxu0
      %v4999 = vpop.f32.mrf.mxu0
      %v5000 = vadd.f32 0.0, %v4999
      %v5001 = vpop.f32.mrf.mxu0
      %5002 = vmatprep.mubr.bf16.mxu0 0
      %5003 = vmatmul.mubr.bf16.gmra.mxu0 %v4818
      %v5004 = vpop.f32.mrf.mxu0
      %v5005 = vadd.f32 0.0, %v5004
      %v5006 = vpop.f32.mrf.mxu0
      %v5007 = vpop.f32.mrf.mxu0
      %v5008 = vadd.f32 0.0, %v5007
      %v5009 = vpop.f32.mrf.mxu0
      %5010 = vmatprep.mubr.bf16.mxu0 0
      %5011 = vmatmul.mubr.bf16.gmra.mxu0 %v4821
      %v5012 = vpop.f32.mrf.mxu0
      %v5013 = vadd.f32 0.0, %v5012
      %v5014 = vpop.f32.mrf.mxu0
      %v5015 = vpop.f32.mrf.mxu0
      %v5016 = vadd.f32 0.0, %v5015
      %v5017 = vpop.f32.mrf.mxu0
      %5018 = vmatprep.mubr.bf16.mxu0 0
      %5019 = vmatmul.mubr.bf16.gmra.mxu0 %v4824
      %v5020 = vpop.f32.mrf.mxu0
      %v5021 = vadd.f32 0.0, %v5020
      %v5022 = vpop.f32.mrf.mxu0
      %v5023 = vpop.f32.mrf.mxu0
      %v5024 = vadd.f32 0.0, %v5023
      %v5025 = vpop.f32.mrf.mxu0
      %5026 = vmatprep.mubr.bf16.mxu0 0
      %5027 = vmatmul.mubr.bf16.gmra.mxu0 %v4827
      %v5028 = vpop.f32.mrf.mxu0
      %v5029 = vadd.f32 0.0, %v5028
      %v5030 = vpop.f32.mrf.mxu0
      %v5031 = vpop.f32.mrf.mxu0
      %v5032 = vadd.f32 0.0, %v5031
      %v5033 = vpop.f32.mrf.mxu0
      %5034 = vmatprep.mubr.bf16.mxu0 0
      %5035 = vmatmul.mubr.bf16.gmra.mxu0 %v4830
      %v5036 = vpop.f32.mrf.mxu0
      %v5037 = vadd.f32 0.0, %v5036
      %v5038 = vpop.f32.mrf.mxu0
      %v5039 = vpop.f32.mrf.mxu0
      %v5040 = vadd.f32 0.0, %v5039
      %v5041 = vpop.f32.mrf.mxu0
      %5042 = vmatprep.mubr.bf16.mxu0 0
      %5043 = vmatmul.mubr.bf16.gmra.mxu0 %v4833
      %v5044 = vpop.f32.mrf.mxu0
      %v5045 = vadd.f32 0.0, %v5044
      %v5046 = vpop.f32.mrf.mxu0
      %v5047 = vpop.f32.mrf.mxu0
      %v5048 = vadd.f32 0.0, %v5047
      %v5049 = vpop.f32.mrf.mxu0
      %5050 = vmatprep.mubr.bf16.mxu0 0
      %5051 = vmatmul.mubr.bf16.gmra.mxu0 %v4836
      %v5052 = vpop.f32.mrf.mxu0
      %v5053 = vadd.f32 0.0, %v5052
      %v5054 = vpop.f32.mrf.mxu0
      %v5055 = vpop.f32.mrf.mxu0
      %v5056 = vpop.f32.mrf.mxu0
      %5057 = vdwg.mxu0
      %v5058 = vld [vmem:[%s3] sm:$0x1]
      %v5060 = vlaneseq
      %v5061 = vshrl.u32 %v5060, 7
      %v5062 = vsub.s32 0, %v5061
      %v5063 = vrot.slane %v5058, %v5062
      %v5065 = vmul.f32 %v4877, %v5063
      %v5066 = vmul.f32 %v4880, %v5063
      %v5067 = vmul.f32 %v4885, %v5063
      %v5068 = vmul.f32 %v4888, %v5063
      %v5069 = vmul.f32 %v4893, %v5063
      %v5070 = vmul.f32 %v4896, %v5063
      %v5071 = vmul.f32 %v4901, %v5063
      %v5072 = vmul.f32 %v4904, %v5063
      %v5073 = vmul.f32 %v4909, %v5063
      %v5074 = vmul.f32 %v4912, %v5063
      %v5075 = vmul.f32 %v4917, %v5063
      %v5076 = vmul.f32 %v4920, %v5063
      %v5077 = vmul.f32 %v4925, %v5063
      %v5078 = vmul.f32 %v4928, %v5063
      %v5079 = vmul.f32 %v4933, %v5063
      %v5080 = vmul.f32 %v4936, %v5063
      %v5081 = vmul.f32 %v4941, %v5063
      %v5082 = vmul.f32 %v4944, %v5063
      %v5083 = vmul.f32 %v4949, %v5063
      %v5084 = vmul.f32 %v4952, %v5063
      %v5085 = vmul.f32 %v4957, %v5063
      %v5086 = vmul.f32 %v4960, %v5063
      %v5087 = vmul.f32 %v4965, %v5063
      %v5088 = vmul.f32 %v4968, %v5063
      %v5089 = vmul.f32 %v4973, %v5063
      %v5090 = vmul.f32 %v4976, %v5063
      %v5091 = vmul.f32 %v4981, %v5063
      %v5092 = vmul.f32 %v4984, %v5063
      %v5093 = vmul.f32 %v4989, %v5063
      %v5094 = vmul.f32 %v4992, %v5063
      %v5095 = vmul.f32 %v4997, %v5063
      %v5096 = vmul.f32 %v5000, %v5063
      %v5097 = vmul.f32 %v5005, %v5063
      %v5098 = vmul.f32 %v5008, %v5063
      %v5099 = vmul.f32 %v5013, %v5063
      %v5100 = vmul.f32 %v5016, %v5063
      %v5101 = vmul.f32 %v5021, %v5063
      %v5102 = vmul.f32 %v5024, %v5063
      %v5103 = vmul.f32 %v5029, %v5063
      %v5104 = vmul.f32 %v5032, %v5063
      %v5105 = vmul.f32 %v5037, %v5063
      %v5106 = vmul.f32 %v5040, %v5063
      %v5107 = vmul.f32 %v5045, %v5063
      %v5108 = vmul.f32 %v5048, %v5063
      %v5109 = vmul.f32 %v5053, %v5063
      %v5110 = vld [vmem:[%s4] sm:$0x1]
      %v5112 = vlaneseq
      %v5113 = vshrl.u32 %v5112, 7
      %v5114 = vsub.s32 0, %v5113
      %v5115 = vrot.slane %v5110, %v5114
      %v5117 = vadd.f32 %v5065, %v5115
      %v5118 = vadd.f32 %v5066, %v5115
      %v5119 = vadd.f32 %v5067, %v5115
      %v5120 = vadd.f32 %v5068, %v5115
      %v5121 = vadd.f32 %v5069, %v5115
      %v5122 = vadd.f32 %v5070, %v5115
      %v5123 = vadd.f32 %v5071, %v5115
      %v5124 = vadd.f32 %v5072, %v5115
      %v5125 = vadd.f32 %v5073, %v5115
      %v5126 = vadd.f32 %v5074, %v5115
      %v5127 = vadd.f32 %v5075, %v5115
      %v5128 = vadd.f32 %v5076, %v5115
      %v5129 = vadd.f32 %v5077, %v5115
      %v5130 = vadd.f32 %v5078, %v5115
      %v5131 = vadd.f32 %v5079, %v5115
      %v5132 = vadd.f32 %v5080, %v5115
      %v5133 = vadd.f32 %v5081, %v5115
      %v5134 = vadd.f32 %v5082, %v5115
      %v5135 = vadd.f32 %v5083, %v5115
      %v5136 = vadd.f32 %v5084, %v5115
      %v5137 = vadd.f32 %v5085, %v5115
      %v5138 = vadd.f32 %v5086, %v5115
      %v5139 = vadd.f32 %v5087, %v5115
      %v5140 = vadd.f32 %v5088, %v5115
      %v5141 = vadd.f32 %v5089, %v5115
      %v5142 = vadd.f32 %v5090, %v5115
      %v5143 = vadd.f32 %v5091, %v5115
      %v5144 = vadd.f32 %v5092, %v5115
      %v5145 = vadd.f32 %v5093, %v5115
      %v5146 = vadd.f32 %v5094, %v5115
      %v5147 = vadd.f32 %v5095, %v5115
      %v5148 = vadd.f32 %v5096, %v5115
      %v5149 = vadd.f32 %v5097, %v5115
      %v5150 = vadd.f32 %v5098, %v5115
      %v5151 = vadd.f32 %v5099, %v5115
      %v5152 = vadd.f32 %v5100, %v5115
      %v5153 = vadd.f32 %v5101, %v5115
      %v5154 = vadd.f32 %v5102, %v5115
      %v5155 = vadd.f32 %v5103, %v5115
      %v5156 = vadd.f32 %v5104, %v5115
      %v5157 = vadd.f32 %v5105, %v5115
      %v5158 = vadd.f32 %v5106, %v5115
      %v5159 = vadd.f32 %v5107, %v5115
      %v5160 = vadd.f32 %v5108, %v5115
      %v5161 = vadd.f32 %v5109, %v5115
      %v5162 = vmax.f32 %v5117, 0.0
      %v5163 = vmax.f32 %v5118, 0.0
      %v5164 = vmax.f32 %v5119, 0.0
      %v5165 = vmax.f32 %v5120, 0.0
      %v5166 = vmax.f32 %v5121, 0.0
      %v5167 = vmax.f32 %v5122, 0.0
      %v5168 = vmax.f32 %v5123, 0.0
      %v5169 = vmax.f32 %v5124, 0.0
      %v5170 = vmax.f32 %v5125, 0.0
      %v5171 = vmax.f32 %v5126, 0.0
      %v5172 = vmax.f32 %v5127, 0.0
      %v5173 = vmax.f32 %v5128, 0.0
      %v5174 = vmax.f32 %v5129, 0.0
      %v5175 = vmax.f32 %v5130, 0.0
      %v5176 = vmax.f32 %v5131, 0.0
      %v5177 = vmax.f32 %v5132, 0.0
      %v5178 = vmax.f32 %v5133, 0.0
      %v5179 = vmax.f32 %v5134, 0.0
      %v5180 = vmax.f32 %v5135, 0.0
      %v5181 = vmax.f32 %v5136, 0.0
      %v5182 = vmax.f32 %v5137, 0.0
      %v5183 = vmax.f32 %v5138, 0.0
      %v5184 = vmax.f32 %v5139, 0.0
      %v5185 = vmax.f32 %v5140, 0.0
      %v5186 = vmax.f32 %v5141, 0.0
      %v5187 = vmax.f32 %v5142, 0.0
      %v5188 = vmax.f32 %v5143, 0.0
      %v5189 = vmax.f32 %v5144, 0.0
      %v5190 = vmax.f32 %v5145, 0.0
      %v5191 = vmax.f32 %v5146, 0.0
      %v5192 = vmax.f32 %v5147, 0.0
      %v5193 = vmax.f32 %v5148, 0.0
      %v5194 = vmax.f32 %v5149, 0.0
      %v5195 = vmax.f32 %v5150, 0.0
      %v5196 = vmax.f32 %v5151, 0.0
      %v5197 = vmax.f32 %v5152, 0.0
      %v5198 = vmax.f32 %v5153, 0.0
      %v5199 = vmax.f32 %v5154, 0.0
      %v5200 = vmax.f32 %v5155, 0.0
      %v5201 = vmax.f32 %v5156, 0.0
      %v5202 = vmax.f32 %v5157, 0.0
      %v5203 = vmax.f32 %v5158, 0.0
      %v5204 = vmax.f32 %v5159, 0.0
      %v5205 = vmax.f32 %v5160, 0.0
      %v5206 = vmax.f32 %v5161, 0.0
      %5207 = vst [vmem:[%s282] sm:$0xff] %v5162
      %5208 = vst [vmem:[%s282 + $0x8] sm:$0xff] %v5163
      %5209 = vst [vmem:[%s282 + $0x10] sm:$0xff] %v5164
      %5210 = vst [vmem:[%s282 + $0x18] sm:$0xff] %v5165
      %5211 = vst [vmem:[%s282 + $0x20] sm:$0xff] %v5166
      %5212 = vst [vmem:[%s282 + $0x28] sm:$0xff] %v5167
      %5213 = vst [vmem:[%s282 + $0x30] sm:$0xff] %v5168
      %5214 = vst [vmem:[%s282 + $0x38] sm:$0xff] %v5169
      %5215 = vst [vmem:[%s282 + $0x40] sm:$0xff] %v5170
      %5216 = vst [vmem:[%s282 + $0x48] sm:$0xff] %v5171
      %5217 = vst [vmem:[%s282 + $0x50] sm:$0xff] %v5172
      %5218 = vst [vmem:[%s282 + $0x58] sm:$0xff] %v5173
      %5219 = vst [vmem:[%s282 + $0x60] sm:$0xff] %v5174
      %5220 = vst [vmem:[%s282 + $0x68] sm:$0xff] %v5175
      %5221 = vst [vmem:[%s282 + $0x70] sm:$0xff] %v5176
      %5222 = vst [vmem:[%s282 + $0x78] sm:$0xff] %v5177
      %5223 = vst [vmem:[%s282 + $0x80] sm:$0xff] %v5178
      %5224 = vst [vmem:[%s282 + $0x88] sm:$0xff] %v5179
      %5225 = vst [vmem:[%s282 + $0x90] sm:$0xff] %v5180
      %5226 = vst [vmem:[%s282 + $0x98] sm:$0xff] %v5181
      %5227 = vst [vmem:[%s282 + $0xa0] sm:$0xff] %v5182
      %5228 = vst [vmem:[%s282 + $0xa8] sm:$0xff] %v5183
      %5229 = vst [vmem:[%s282 + $0xb0] sm:$0xff] %v5184
      %5230 = vst [vmem:[%s282 + $0xb8] sm:$0xff] %v5185
      %5231 = vst [vmem:[%s282 + $0xc0] sm:$0xff] %v5186
      %5232 = vst [vmem:[%s282 + $0xc8] sm:$0xff] %v5187
      %5233 = vst [vmem:[%s282 + $0xd0] sm:$0xff] %v5188
      %5234 = vst [vmem:[%s282 + $0xd8] sm:$0xff] %v5189
      %5235 = vst [vmem:[%s282 + $0xe0] sm:$0xff] %v5190
      %5236 = vst [vmem:[%s282 + $0xe8] sm:$0xff] %v5191
      %5237 = vst [vmem:[%s282 + $0xf0] sm:$0xff] %v5192
      %5238 = vst [vmem:[%s282 + $0xf8] sm:$0xff] %v5193
      %5239 = vst [vmem:[%s282 + $0x100] sm:$0xff] %v5194
      %5240 = vst [vmem:[%s282 + $0x108] sm:$0xff] %v5195
      %5241 = vst [vmem:[%s282 + $0x110] sm:$0xff] %v5196
      %5242 = vst [vmem:[%s282 + $0x118] sm:$0xff] %v5197
      %5243 = vst [vmem:[%s282 + $0x120] sm:$0xff] %v5198
      %5244 = vst [vmem:[%s282 + $0x128] sm:$0xff] %v5199
      %5245 = vst [vmem:[%s282 + $0x130] sm:$0xff] %v5200
      %5246 = vst [vmem:[%s282 + $0x138] sm:$0xff] %v5201
      %5247 = vst [vmem:[%s282 + $0x140] sm:$0xff] %v5202
      %5248 = vst [vmem:[%s282 + $0x148] sm:$0xff] %v5203
      %5249 = vst [vmem:[%s282 + $0x150] sm:$0xff] %v5204
      %5250 = vst [vmem:[%s282 + $0x158] sm:$0xff] %v5205
      %5251 = vst [vmem:[%s282 + $0x160] sm:$0xff] %v5206
      %s5252 = smul.u32 45, %s16
      %p5253 = scmp.lt.s32.totalorder %s5252, 89
      %s5254 = scalar_select %p5253, %s5252, 89
      %s5255 = smul.addr %s5254, 8
      %s5256 = scalar_lea.vmem %s5, %s5255
      // Predicated region
      $region41: #{_conv_block_forward.3} parent=39 // pred_check
        %p5257 = pneg %p153
      $region42: #{_conv_block_forward.3} parent=39 // pred_check_branch
        %5259 = sbr.rel (%p5257) target = $region44
      $region43: #{_conv_block_forward.3} parent=39 // pred_region
        %s5260 = smul.u32 45, %s16
      $region44: #{_conv_block_forward.3} parent=39 // pred_fallthru
        _
    $region40: #{_conv_block_forward.3} parent=5 // pred_fallthru
      _
    %p5261 = scmp.le.s32.totalorder 2, %s11
    // Predicated region
    $region45: #{_conv_block_forward.3} parent=5 // pred_check
      %p5262 = pneg %p5261
    $region46: #{_conv_block_forward.3} parent=5 // pred_check_branch
      %5264 = sbr.rel (%p5262) target = $region48
    $region47: #{_conv_block_forward.3} parent=5 // pred_region
      %s5265 = ssub.s32 %s11, 2
      // Predicated region
      $region49: #{_conv_block_forward.3} parent=47 // pred_check
        %p5266 = pneg %p159
      $region50: #{_conv_block_forward.3} parent=47 // pred_check_branch
        %5268 = sbr.rel (%p5266) target = $region52
      $region51: #{_conv_block_forward.3} parent=47 // pred_region
        %s5269 = smul.u32 45, %s17
        %p5270 = scmp.lt.s32.totalorder %s5269, 89
        %s5271 = scalar_select %p5270, %s5269, 89
        %s5272 = smul.addr %s5271, 8
        %s5273 = scalar_lea.vmem %s5, %s5272
      $region52: #{_conv_block_forward.3} parent=47 // pred_fallthru
        _
    $region48: #{_conv_block_forward.3} parent=5 // pred_fallthru
      _
  $region6: #{_conv_block_forward.3} parent=0 // loop_footer
    %s15 = sadd.s32 1, %s11
  $region7: #{_conv_block_forward.3} parent=0 // loop_footer_branch
    %10 = sbr.rel target = $region3
  $region8: #{_conv_block_forward.3} parent=0 // loop_exit
    _

// kernel: _conv_block_forward.2
$region0: #{_conv_block_forward.2}
  #allocation0 [shape = 'u32[]', space=smem, size = 0x4, offset = 0x4, fixed_abs, tag = 'smem constant byte address 0x4 - core index']
  #allocation1 [shape = 'u32[144,128]{1,0:T(1,128)}', space=vmem, size = 0x12000, scoped, tag = 'internal scratch']
  #allocation2 [shape = 'bf16[400,4]{1,0:T(8,128)(2,1)}', space=vmem, size = 0x19000, scoped, tag = 'scratch operand']
  #allocation3 [shape = 'bf16[360,36]{1,0:T(8,128)(2,1)}', space=vmem, size = 0x16800, scoped, tag = 'scratch operand']
  %s0 = inlined_call_operand.vmem [shape: bf16[760,4], index: 0, kind: input, shape index: {}, may-alias: {0,1}]
  %s1 = inlined_call_operand.vmem [shape: bf16[760,4], index: 1, kind: input, shape index: {}, may-alias: {0,1}]
  %s2 = inlined_call_operand.vmem [shape: bf16[36,128], index: 2, kind: input, shape index: {}]
  %s3 = inlined_call_operand.vmem [shape: f32[2,1,360], index: 3, kind: input, shape index: {}]
  %s4 = inlined_call_operand.vmem [shape: f32[16,128], index: 4, kind: output, shape index: {}]
  %s5 = sld [smem:[#allocation0]]
  $region49: #{_conv_block_forward.2} parent=0
    _
  %s7 = ssub.s32 1, %s5
  %s8 = scalar_select 0, %s7, %s5
  loop: start=0, step=1, limit=4
  $region2: #{_conv_block_forward.2} parent=0 // loop_pre_header
    _
  $region3: #{_conv_block_forward.2} parent=0 // loop_header
    %s10 = sphi 0, %s14
    %p11 = scmp.ge.s32.totalorder %s10, 4
    %s20 = sphi 0, %s22
    %s23 = sphi 0, %s20
    %s24 = sphi 0, %s23
    %s40 = sphi 0, %s24
    %s50 = sphi 0, %s52
    %s53 = sphi 0, %s50
    %s54 = sphi 0, %s53
    %s70 = sphi 0, %s54
    %s74 = sphi 0, %s74
    %s76 = sphi 0, %s74
    %s77 = sphi 0, %s76
    %s91 = sphi 0, %s77
    %s97 = sphi 0, %s99
    %s100 = sphi 0, %s97
    %s101 = sphi 0, %s100
    %s117 = sphi 0, %s101
    %s123 = sphi 0, %s125
    %s126 = sphi 0, %s123
    %s127 = sphi 0, %s126
    %s143 = sphi 0, %s127
  $region4: #{_conv_block_forward.2} parent=0 // loop_header_branch
    %13 = sbr.rel (%p11) target = $region8
  $region5: #{_conv_block_forward.2} parent=0 // loop_body
    %s15 = ssub.s32 %s10, 1
    %s16 = ssub.s32 %s10, 2
    %s17 = sadd.s32 %s10, 1
    %s18 = ssub.s32 %s10, %s17
    %p19 = scmp.eq.s32.totalorder %s18, 0
    %s21 = sadd.s32 %s20, 1
    %s22 = scalar_select %p19, %s20, %s21
    %p25 = pneg %p19
    %p26 = scmp.eq.s32.totalorder %s10, 1
    %p27 = por %p25, %p26
    %p28 = scmp.ne.s32.totalorder %s20, %s23
    %p29 = scmp.eq.s32.totalorder %s10, 0
    %p30 = por %p28, %p29
    %p31 = scmp.ne.s32.totalorder %s20, %s23
    %p32 = scmp.eq.s32.totalorder %s15, 1
    %p33 = por %p31, %p32
    %p34 = scmp.ne.s32.totalorder %s23, %s24
    %p35 = scmp.eq.s32.totalorder %s15, 0
    %p36 = por %p34, %p35
    %p37 = scmp.ne.s32.totalorder %s23, %s24
    %p38 = scmp.eq.s32.totalorder %s16, 1
    %p39 = por %p37, %p38
    %p41 = scmp.ne.s32.totalorder %s24, %s40
    %p42 = scmp.eq.s32.totalorder %s16, 0
    %p43 = por %p41, %p42
    %s44 = sadd.s32 %s10, 1
    %s45 = smul.u32 %s44, 9
    %s46 = sadd.s32 %s17, 1
    %s47 = smul.u32 %s46, 9
    %s48 = ssub.s32 %s45, %s47
    %p49 = scmp.eq.s32.totalorder %s48, 0
    %s51 = sadd.s32 %s50, 1
    %s52 = scalar_select %p49, %s50, %s51
    %p55 = pneg %p49
    %p56 = scmp.eq.s32.totalorder %s10, 1
    %p57 = por %p55, %p56
    %p58 = scmp.ne.s32.totalorder %s50, %s53
    %p59 = scmp.eq.s32.totalorder %s10, 0
    %p60 = por %p58, %p59
    %p61 = scmp.ne.s32.totalorder %s50, %s53
    %p62 = scmp.eq.s32.totalorder %s15, 1
    %p63 = por %p61, %p62
    %p64 = scmp.ne.s32.totalorder %s53, %s54
    %p65 = scmp.eq.s32.totalorder %s15, 0
    %p66 = por %p64, %p65
    %p67 = scmp.ne.s32.totalorder %s53, %s54
    %p68 = scmp.eq.s32.totalorder %s16, 1
    %p69 = por %p67, %p68
    %p71 = scmp.ne.s32.totalorder %s54, %s70
    %p72 = scmp.eq.s32.totalorder %s16, 0
    %p73 = por %p71, %p72
    %s75 = sadd.s32 %s74, 1
    %p78 = scmp.eq.s32.totalorder %s10, 1
    %p79 = scmp.ne.s32.totalorder %s74, %s76
    %p80 = scmp.eq.s32.totalorder %s10, 0
    %p81 = por %p79, %p80
    %p82 = scmp.ne.s32.totalorder %s74, %s76
    %p83 = scmp.eq.s32.totalorder %s15, 1
    %p84 = por %p82, %p83
    %p85 = scmp.ne.s32.totalorder %s76, %s77
    %p86 = scmp.eq.s32.totalorder %s15, 0
    %p87 = por %p85, %p86
    %p88 = scmp.ne.s32.totalorder %s76, %s77
    %p89 = scmp.eq.s32.totalorder %s16, 1
    %p90 = por %p88, %p89
    %p92 = scmp.ne.s32.totalorder %s77, %s91
    %p93 = scmp.eq.s32.totalorder %s16, 0
    %p94 = por %p92, %p93
    %s95 = ssub.s32 %s10, %s17
    %p96 = scmp.eq.s32.totalorder %s95, 0
    %s98 = sadd.s32 %s97, 1
    %s99 = scalar_select %p96, %s97, %s98
    %p102 = pneg %p96
    %p103 = scmp.eq.s32.totalorder %s10, 1
    %p104 = por %p102, %p103
    %p105 = scmp.ne.s32.totalorder %s97, %s100
    %p106 = scmp.eq.s32.totalorder %s10, 0
    %p107 = por %p105, %p106
    %p108 = scmp.ne.s32.totalorder %s97, %s100
    %p109 = scmp.eq.s32.totalorder %s15, 1
    %p110 = por %p108, %p109
    %p111 = scmp.ne.s32.totalorder %s100, %s101
    %p112 = scmp.eq.s32.totalorder %s15, 0
    %p113 = por %p111, %p112
    %p114 = scmp.ne.s32.totalorder %s100, %s101
    %p115 = scmp.eq.s32.totalorder %s16, 1
    %p116 = por %p114, %p115
    %p118 = scmp.ne.s32.totalorder %s101, %s117
    %p119 = scmp.eq.s32.totalorder %s16, 0
    %p120 = por %p118, %p119
    %s121 = ssub.s32 %s10, %s17
    %p122 = scmp.eq.s32.totalorder %s121, 0
    %s124 = sadd.s32 %s123, 1
    %s125 = scalar_select %p122, %s123, %s124
    %p128 = pneg %p122
    %p129 = scmp.eq.s32.totalorder %s10, 1
    %p130 = por %p128, %p129
    %p131 = scmp.ne.s32.totalorder %s123, %s126
    %p132 = scmp.eq.s32.totalorder %s10, 0
    %p133 = por %p131, %p132
    %p134 = scmp.ne.s32.totalorder %s123, %s126
    %p135 = scmp.eq.s32.totalorder %s15, 1
    %p136 = por %p134, %p135
    %p137 = scmp.ne.s32.totalorder %s126, %s127
    %p138 = scmp.eq.s32.totalorder %s15, 0
    %p139 = por %p137, %p138
    %p140 = scmp.ne.s32.totalorder %s126, %s127
    %p141 = scmp.eq.s32.totalorder %s16, 1
    %p142 = por %p140, %p141
    %p144 = scmp.ne.s32.totalorder %s127, %s143
    %p145 = scmp.eq.s32.totalorder %s16, 0
    %p146 = por %p144, %p145
    %p147 = scmp.le.s32.totalorder 1, %s10
    %p148 = scmp.lt.s32.totalorder %s10, 3
    %p149 = pnand %p147, %p148
    %p150 = pneg %p149
    // Predicated region
    $region9: #{_conv_block_forward.2} parent=5 // pred_check
      _
    $region10: #{_conv_block_forward.2} parent=5 // pred_check_branch
      %152 = sbr.rel (%p149) target = $region12
    $region11: #{_conv_block_forward.2} parent=5 // pred_region
      %s153 = ssub.s32 %s10, 1
      // Predicated region
      $region13: #{_conv_block_forward.2} parent=11 // pred_check
        %p154 = pneg %p87
      $region14: #{_conv_block_forward.2} parent=11 // pred_check_branch
        %156 = sbr.rel (%p154) target = $region16
      $region15: #{_conv_block_forward.2} parent=11 // pred_region
        _
      $region16: #{_conv_block_forward.2} parent=11 // pred_fallthru
        _
    $region12: #{_conv_block_forward.2} parent=5 // pred_fallthru
      _
    %p157 = scmp.lt.s32.totalorder %s10, 2
    // Predicated region
    $region17: #{_conv_block_forward.2} parent=5 // pred_check
      %p158 = pneg %p157
    $region18: #{_conv_block_forward.2} parent=5 // pred_check_branch
      %160 = sbr.rel (%p158) target = $region20
    $region19: #{_conv_block_forward.2} parent=5 // pred_region
      // Predicated region
      $region21: #{_conv_block_forward.2} parent=19 // pred_check
        %p161 = pneg %p30
      $region22: #{_conv_block_forward.2} parent=19 // pred_check_branch
        %163 = sbr.rel (%p161) target = $region24
      $region23: #{_conv_block_forward.2} parent=19 // pred_region
        %s164 = smul.u32 45, %s10
        %s165 = ssub.s32 95, %s164
        %p166 = scmp.lt.s32.totalorder %s165, 45
        %s167 = scalar_select %p166, %s165, 45
        %s168 = smul.u32 64, %s167
        %p169 = scmp.lt.s32.totalorder %s164, 94
        %s170 = scalar_select %p169, %s164, 94
        %s171 = smul.addr %s170, 4
        %s172 = scalar_lea.vmem %s0, %s171
        %s173 = smul.u32 45, %s10
        %s174 = ssub.s32 95, %s173
        %p175 = scmp.lt.s32.totalorder %s174, 45
        %s176 = scalar_select %p175, %s174, 45
        %s177 = smul.u32 64, %s176
      $region24: #{_conv_block_forward.2} parent=19 // pred_fallthru
        _
      // Predicated region
      $region25: #{_conv_block_forward.2} parent=19 // pred_check
        %p178 = pneg %p60
      $region26: #{_conv_block_forward.2} parent=19 // pred_check_branch
        %180 = sbr.rel (%p178) target = $region28
      $region27: #{_conv_block_forward.2} parent=19 // pred_region
        %s181 = sadd.s32 %s10, 1
        %s182 = smul.u32 %s181, 9
        %s183 = smul.u32 5, %s182
        %p184 = scmp.lt.s32.totalorder %s183, 94
        %s185 = scalar_select %p184, %s183, 94
        %s186 = smul.addr %s185, 4
        %s187 = scalar_lea.vmem %s1, %s186
        %s188 = sadd.s32 %s10, 1
        %s189 = smul.u32 %s188, 9
        %s190 = smul.u32 5, %s189
      $region28: #{_conv_block_forward.2} parent=19 // pred_fallthru
        _
      // Predicated region
      $region29: #{_conv_block_forward.2} parent=19 // pred_check
        %p191 = pneg %p107
      $region30: #{_conv_block_forward.2} parent=19 // pred_check_branch
        %193 = sbr.rel (%p191) target = $region32
      $region31: #{_conv_block_forward.2} parent=19 // pred_region
        %p194 = scmp.lt.s32.totalorder %s10, 1
        %s195 = scalar_select %p194, %s10, 1
        %s196 = smul.addr %s195, 3
        %s197 = scalar_lea.vmem %s3, %s196
      $region32: #{_conv_block_forward.2} parent=19 // pred_fallthru
        _
    $region20: #{_conv_block_forward.2} parent=5 // pred_fallthru
      _
    %p198 = scmp.le.s32.totalorder 1, %s10
    %p199 = scmp.lt.s32.totalorder %s10, 3
    %p200 = pnand %p198, %p199
    %p201 = pneg %p200
    // Predicated region
    $region33: #{_conv_block_forward.2} parent=5 // pred_check
      _
    $region34: #{_conv_block_forward.2} parent=5 // pred_check_branch
      %203 = sbr.rel (%p200) target = $region36
    $region35: #{_conv_block_forward.2} parent=5 // pred_region
      %s204 = ssub.s32 %s10, 1
      %s205 = smul.u32 45, %s15
      %s206 = ssub.s32 95, %s205
      %p207 = scmp.lt.s32.totalorder %s206, 45
      %s208 = scalar_select %p207, %s206, 45
      %s209 = smul.u32 64, %s208
      %p210 = scmp.lt.s32.totalorder %s205, 94
      %s211 = scalar_select %p210, %s205, 94
      %s212 = smul.addr %s211, 4
      %s213 = scalar_lea.vmem %s0, %s212
      %p214 = pneg %p36
      %p215 = pneg %p33
      %s216 = sadd.s32 %s15, 1
      %s217 = smul.u32 %s216, 9
      %s218 = smul.u32 5, %s217
      %p219 = scmp.lt.s32.totalorder %s218, 94
      %s220 = scalar_select %p219, %s218, 94
      %s221 = smul.addr %s220, 4
      %s222 = scalar_lea.vmem %s1, %s221
      %p223 = pneg %p66
      %p224 = pneg %p63
      %p225 = pneg %p87
      %p226 = pneg %p84
      %p227 = scmp.lt.s32.totalorder %s15, 1
      %s228 = scalar_select %p227, %s15, 1
      %s229 = smul.addr %s228, 3
      %s230 = scalar_lea.vmem %s3, %s229
      %p231 = pneg %p113
      %p232 = pneg %p110
      %p233 = pneg %p139
      %p234 = pneg %p136
      %p235 = scmp.lt.s32.totalorder %s15, 1
      %s236 = scalar_select %p235, %s15, 1
      %s237 = smul.addr %s236, 8
      %s238 = scalar_lea.vmem %s4, %s237
      %s239 = smul.u32 45, %s15
      %s240 = ssub.s32 95, %s239
      %p241 = scmp.lt.s32.totalorder %s240, 45
      %s242 = scalar_select %p241, %s240, 45
      %s243 = smul.u32 64, %s242
      %p244 = scmp.lt.s32.totalorder %s239, 94
      %s245 = scalar_select %p244, %s239, 94
      %s246 = smul.addr %s245, 4
      %s247 = scalar_lea.vmem %s0, %s246
      %s248 = smul.u32 45, %s15
      %s249 = ssub.s32 95, %s248
      %p250 = scmp.lt.s32.totalorder %s249, 45
      %s251 = scalar_select %p250, %s249, 45
      %s252 = smul.u32 64, %s251
      %s253 = sadd.s32 %s15, 1
      %s254 = smul.u32 %s253, 9
      %s255 = smul.u32 5, %s254
      %p256 = scmp.lt.s32.totalorder %s255, 94
      %s257 = scalar_select %p256, %s255, 94
      %s258 = smul.addr %s257, 4
      %s259 = scalar_lea.vmem %s1, %s258
      %s260 = sadd.s32 %s15, 1
      %s261 = smul.u32 %s260, 9
      %s262 = smul.u32 5, %s261
      %p263 = scmp.lt.s32.totalorder %s15, 1
      %s264 = scalar_select %p263, %s15, 1
      %s265 = smul.addr %s264, 3
      %s266 = scalar_lea.vmem %s3, %s265
      %p267 = scmp.lt.s32.totalorder %s15, 1
      %s268 = scalar_select %p267, %s15, 1
      %s269 = smul.addr %s268, 8
      %s270 = scalar_lea.vmem %s4, %s269
      %v272 = vld [vmem:[%s247] sm:$0xf]
      %v273 = vld [vmem:[%s247 + $0x4] sm:$0xf]
      %v274 = vld [vmem:[%s247 + $0x8] sm:$0xf]
      %v275 = vld [vmem:[%s247 + $0xc] sm:$0xf]
      %v276 = vld [vmem:[%s247 + $0x10] sm:$0xf]
      %v277 = vld [vmem:[%s247 + $0x14] sm:$0xf]
      %v278 = vld [vmem:[%s247 + $0x18] sm:$0xf]
      %v279 = vld [vmem:[%s247 + $0x1c] sm:$0xf]
      %v280 = vld [vmem:[%s247 + $0x20] sm:$0xf]
      %v281 = vld [vmem:[%s247 + $0x24] sm:$0xf]
      %v282 = vld [vmem:[%s247 + $0x28] sm:$0xf]
      %v283 = vld [vmem:[%s247 + $0x2c] sm:$0xf]
      %v284 = vld [vmem:[%s247 + $0x30] sm:$0xf]
      %v285 = vld [vmem:[%s247 + $0x34] sm:$0xf]
      %v286 = vld [vmem:[%s247 + $0x38] sm:$0xf]
      %v287 = vld [vmem:[%s247 + $0x3c] sm:$0xf]
      %v288 = vld [vmem:[%s247 + $0x40] sm:$0xf]
      %v289 = vld [vmem:[%s247 + $0x44] sm:$0xf]
      %v290 = vld [vmem:[%s247 + $0x48] sm:$0xf]
      %v291 = vld [vmem:[%s247 + $0x4c] sm:$0xf]
      %v292 = vld [vmem:[%s247 + $0x50] sm:$0xf]
      %v293 = vld [vmem:[%s247 + $0x54] sm:$0xf]
      %v294 = vld [vmem:[%s247 + $0x58] sm:$0xf]
      %v295 = vld [vmem:[%s247 + $0x5c] sm:$0xf]
      %v296 = vld [vmem:[%s247 + $0x60] sm:$0xf]
      %v297 = vld [vmem:[%s247 + $0x64] sm:$0xf]
      %v298 = vld [vmem:[%s247 + $0x68] sm:$0xf]
      %v299 = vld [vmem:[%s247 + $0x6c] sm:$0xf]
      %v300 = vld [vmem:[%s247 + $0x70] sm:$0xf]
      %v301 = vld [vmem:[%s247 + $0x74] sm:$0xf]
      %v302 = vld [vmem:[%s247 + $0x78] sm:$0xf]
      %v303 = vld [vmem:[%s247 + $0x7c] sm:$0xf]
      %v304 = vld [vmem:[%s247 + $0x80] sm:$0xf]
      %v305 = vld [vmem:[%s247 + $0x84] sm:$0xf]
      %v306 = vld [vmem:[%s247 + $0x88] sm:$0xf]
      %v307 = vld [vmem:[%s247 + $0x8c] sm:$0xf]
      %v308 = vld [vmem:[%s247 + $0x90] sm:$0xf]
      %v309 = vld [vmem:[%s247 + $0x94] sm:$0xf]
      %v310 = vld [vmem:[%s247 + $0x98] sm:$0xf]
      %v311 = vld [vmem:[%s247 + $0x9c] sm:$0xf]
      %v312 = vld [vmem:[%s247 + $0xa0] sm:$0xf]
      %v313 = vld [vmem:[%s247 + $0xa4] sm:$0xf]
      %v314 = vld [vmem:[%s247 + $0xa8] sm:$0xf]
      %v315 = vld [vmem:[%s247 + $0xac] sm:$0xf]
      %v316 = vld [vmem:[%s247 + $0xb0] sm:$0xf]
      %vm317 = vcmask 27648
      %318 = vst.msk [vmem:[#allocation2] sm:$0xf] %vm317, %v272
      %319 = vst.msk [vmem:[#allocation2 + $0x4] sm:$0xf] %vm317, %v273
      %320 = vst.msk [vmem:[#allocation2 + $0x8] sm:$0xf] %vm317, %v274
      %321 = vst.msk [vmem:[#allocation2 + $0xc] sm:$0xf] %vm317, %v275
      %322 = vst.msk [vmem:[#allocation2 + $0x10] sm:$0xf] %vm317, %v276
      %323 = vst.msk [vmem:[#allocation2 + $0x14] sm:$0xf] %vm317, %v277
      %324 = vst.msk [vmem:[#allocation2 + $0x18] sm:$0xf] %vm317, %v278
      %325 = vst.msk [vmem:[#allocation2 + $0x1c] sm:$0xf] %vm317, %v279
      %326 = vst.msk [vmem:[#allocation2 + $0x20] sm:$0xf] %vm317, %v280
      %327 = vst.msk [vmem:[#allocation2 + $0x24] sm:$0xf] %vm317, %v281
      %328 = vst.msk [vmem:[#allocation2 + $0x28] sm:$0xf] %vm317, %v282
      %329 = vst.msk [vmem:[#allocation2 + $0x2c] sm:$0xf] %vm317, %v283
      %330 = vst.msk [vmem:[#allocation2 + $0x30] sm:$0xf] %vm317, %v284
      %331 = vst.msk [vmem:[#allocation2 + $0x34] sm:$0xf] %vm317, %v285
      %332 = vst.msk [vmem:[#allocation2 + $0x38] sm:$0xf] %vm317, %v286
      %333 = vst.msk [vmem:[#allocation2 + $0x3c] sm:$0xf] %vm317, %v287
      %334 = vst.msk [vmem:[#allocation2 + $0x40] sm:$0xf] %vm317, %v288
      %335 = vst.msk [vmem:[#allocation2 + $0x44] sm:$0xf] %vm317, %v289
      %336 = vst.msk [vmem:[#allocation2 + $0x48] sm:$0xf] %vm317, %v290
      %337 = vst.msk [vmem:[#allocation2 + $0x4c] sm:$0xf] %vm317, %v291
      %338 = vst.msk [vmem:[#allocation2 + $0x50] sm:$0xf] %vm317, %v292
      %339 = vst.msk [vmem:[#allocation2 + $0x54] sm:$0xf] %vm317, %v293
      %340 = vst.msk [vmem:[#allocation2 + $0x58] sm:$0xf] %vm317, %v294
      %341 = vst.msk [vmem:[#allocation2 + $0x5c] sm:$0xf] %vm317, %v295
      %342 = vst.msk [vmem:[#allocation2 + $0x60] sm:$0xf] %vm317, %v296
      %343 = vst.msk [vmem:[#allocation2 + $0x64] sm:$0xf] %vm317, %v297
      %344 = vst.msk [vmem:[#allocation2 + $0x68] sm:$0xf] %vm317, %v298
      %345 = vst.msk [vmem:[#allocation2 + $0x6c] sm:$0xf] %vm317, %v299
      %346 = vst.msk [vmem:[#allocation2 + $0x70] sm:$0xf] %vm317, %v300
      %347 = vst.msk [vmem:[#allocation2 + $0x74] sm:$0xf] %vm317, %v301
      %348 = vst.msk [vmem:[#allocation2 + $0x78] sm:$0xf] %vm317, %v302
      %349 = vst.msk [vmem:[#allocation2 + $0x7c] sm:$0xf] %vm317, %v303
      %350 = vst.msk [vmem:[#allocation2 + $0x80] sm:$0xf] %vm317, %v304
      %351 = vst.msk [vmem:[#allocation2 + $0x84] sm:$0xf] %vm317, %v305
      %352 = vst.msk [vmem:[#allocation2 + $0x88] sm:$0xf] %vm317, %v306
      %353 = vst.msk [vmem:[#allocation2 + $0x8c] sm:$0xf] %vm317, %v307
      %354 = vst.msk [vmem:[#allocation2 + $0x90] sm:$0xf] %vm317, %v308
      %355 = vst.msk [vmem:[#allocation2 + $0x94] sm:$0xf] %vm317, %v309
      %356 = vst.msk [vmem:[#allocation2 + $0x98] sm:$0xf] %vm317, %v310
      %357 = vst.msk [vmem:[#allocation2 + $0x9c] sm:$0xf] %vm317, %v311
      %358 = vst.msk [vmem:[#allocation2 + $0xa0] sm:$0xf] %vm317, %v312
      %359 = vst.msk [vmem:[#allocation2 + $0xa4] sm:$0xf] %vm317, %v313
      %360 = vst.msk [vmem:[#allocation2 + $0xa8] sm:$0xf] %vm317, %v314
      %361 = vst.msk [vmem:[#allocation2 + $0xac] sm:$0xf] %vm317, %v315
      %362 = vst.msk [vmem:[#allocation2 + $0xb0] sm:$0xf] %vm317, %v316
      %v363 = vld [vmem:[%s259] sm:$0xf]
      %v364 = vld [vmem:[%s259 + $0x4] sm:$0xf]
      %v365 = vld [vmem:[%s259 + $0x8] sm:$0xf]
      %v366 = vld [vmem:[%s259 + $0xc] sm:$0xf]
      %v367 = vld [vmem:[%s259 + $0x10] sm:$0xf]
      %368 = vst.msk [vmem:[#allocation2 + $0xb4] sm:$0xf] %vm317, %v363
      %369 = vst.msk [vmem:[#allocation2 + $0xb8] sm:$0xf] %vm317, %v364
      %370 = vst.msk [vmem:[#allocation2 + $0xbc] sm:$0xf] %vm317, %v365
      %371 = vst.msk [vmem:[#allocation2 + $0xc0] sm:$0xf] %vm317, %v366
      %372 = vst.msk [vmem:[#allocation2 + $0xc4] sm:$0xf] %vm317, %v367
      %v373 = vld [vmem:[#allocation2] sm:$0xf]
      %v374 = vld [vmem:[#allocation2 + $0x4] sm:$0xf]
      %v375 = vld [vmem:[#allocation2 + $0x8] sm:$0xf]
      %v376 = vld [vmem:[#allocation2 + $0xc] sm:$0xf]
      %v377 = vld [vmem:[#allocation2 + $0x10] sm:$0xf]
      %v378 = vld [vmem:[#allocation2 + $0x14] sm:$0xf]
      %v379 = vld [vmem:[#allocation2 + $0x18] sm:$0xf]
      %v380 = vld [vmem:[#allocation2 + $0x1c] sm:$0xf]
      %v381 = vld [vmem:[#allocation2 + $0x20] sm:$0xf]
      %v382 = vld [vmem:[#allocation2 + $0x24] sm:$0xf]
      %v383 = vld [vmem:[#allocation2 + $0x28] sm:$0xf]
      %v384 = vld [vmem:[#allocation2 + $0x2c] sm:$0xf]
      %v385 = vld [vmem:[#allocation2 + $0x30] sm:$0xf]
      %v386 = vld [vmem:[#allocation2 + $0x34] sm:$0xf]
      %v387 = vld [vmem:[#allocation2 + $0x38] sm:$0xf]
      %v388 = vld [vmem:[#allocation2 + $0x3c] sm:$0xf]
      %v389 = vld [vmem:[#allocation2 + $0x40] sm:$0xf]
      %v390 = vld [vmem:[#allocation2 + $0x44] sm:$0xf]
      %v391 = vld [vmem:[#allocation2 + $0x48] sm:$0xf]
      %v392 = vld [vmem:[#allocation2 + $0x4c] sm:$0xf]
      %v393 = vld [vmem:[#allocation2 + $0x50] sm:$0xf]
      %v394 = vld [vmem:[#allocation2 + $0x54] sm:$0xf]
      %v395 = vld [vmem:[#allocation2 + $0x58] sm:$0xf]
      %v396 = vld [vmem:[#allocation2 + $0x5c] sm:$0xf]
      %v397 = vld [vmem:[#allocation2 + $0x60] sm:$0xf]
      %v398 = vld [vmem:[#allocation2 + $0x64] sm:$0xf]
      %v399 = vld [vmem:[#allocation2 + $0x68] sm:$0xf]
      %v400 = vld [vmem:[#allocation2 + $0x6c] sm:$0xf]
      %v401 = vld [vmem:[#allocation2 + $0x70] sm:$0xf]
      %v402 = vld [vmem:[#allocation2 + $0x74] sm:$0xf]
      %v403 = vld [vmem:[#allocation2 + $0x78] sm:$0xf]
      %v404 = vld [vmem:[#allocation2 + $0x7c] sm:$0xf]
      %v405 = vld [vmem:[#allocation2 + $0x80] sm:$0xf]
      %v406 = vld [vmem:[#allocation2 + $0x84] sm:$0xf]
      %v407 = vld [vmem:[#allocation2 + $0x88] sm:$0xf]
      %v408 = vld [vmem:[#allocation2 + $0x8c] sm:$0xf]
      %v409 = vld [vmem:[#allocation2 + $0x90] sm:$0xf]
      %v410 = vld [vmem:[#allocation2 + $0x94] sm:$0xf]
      %v411 = vld [vmem:[#allocation2 + $0x98] sm:$0xf]
      %v412 = vld [vmem:[#allocation2 + $0x9c] sm:$0xf]
      %v413 = vld [vmem:[#allocation2 + $0xa0] sm:$0xf]
      %v414 = vld [vmem:[#allocation2 + $0xa4] sm:$0xf]
      %v415 = vld [vmem:[#allocation2 + $0xa8] sm:$0xf]
      %v416 = vld [vmem:[#allocation2 + $0xac] sm:$0xf]
      %v417 = vld [vmem:[#allocation2 + $0xb0] sm:$0xf]
      %418 = vst.msk [vmem:[#allocation3] sm:$0xf] %vm317, %v373
      %419 = vst.msk [vmem:[#allocation3 + $0x4] sm:$0xf] %vm317, %v374
      %420 = vst.msk [vmem:[#allocation3 + $0x8] sm:$0xf] %vm317, %v375
      %421 = vst.msk [vmem:[#allocation3 + $0xc] sm:$0xf] %vm317, %v376
      %422 = vst.msk [vmem:[#allocation3 + $0x10] sm:$0xf] %vm317, %v377
      %423 = vst.msk [vmem:[#allocation3 + $0x14] sm:$0xf] %vm317, %v378
      %424 = vst.msk [vmem:[#allocation3 + $0x18] sm:$0xf] %vm317, %v379
      %425 = vst.msk [vmem:[#allocation3 + $0x1c] sm:$0xf] %vm317, %v380
      %426 = vst.msk [vmem:[#allocation3 + $0x20] sm:$0xf] %vm317, %v381
      %427 = vst.msk [vmem:[#allocation3 + $0x24] sm:$0xf] %vm317, %v382
      %428 = vst.msk [vmem:[#allocation3 + $0x28] sm:$0xf] %vm317, %v383
      %429 = vst.msk [vmem:[#allocation3 + $0x2c] sm:$0xf] %vm317, %v384
      %430 = vst.msk [vmem:[#allocation3 + $0x30] sm:$0xf] %vm317, %v385
      %431 = vst.msk [vmem:[#allocation3 + $0x34] sm:$0xf] %vm317, %v386
      %432 = vst.msk [vmem:[#allocation3 + $0x38] sm:$0xf] %vm317, %v387
      %433 = vst.msk [vmem:[#allocation3 + $0x3c] sm:$0xf] %vm317, %v388
      %434 = vst.msk [vmem:[#allocation3 + $0x40] sm:$0xf] %vm317, %v389
      %435 = vst.msk [vmem:[#allocation3 + $0x44] sm:$0xf] %vm317, %v390
      %436 = vst.msk [vmem:[#allocation3 + $0x48] sm:$0xf] %vm317, %v391
      %437 = vst.msk [vmem:[#allocation3 + $0x4c] sm:$0xf] %vm317, %v392
      %438 = vst.msk [vmem:[#allocation3 + $0x50] sm:$0xf] %vm317, %v393
      %439 = vst.msk [vmem:[#allocation3 + $0x54] sm:$0xf] %vm317, %v394
      %440 = vst.msk [vmem:[#allocation3 + $0x58] sm:$0xf] %vm317, %v395
      %441 = vst.msk [vmem:[#allocation3 + $0x5c] sm:$0xf] %vm317, %v396
      %442 = vst.msk [vmem:[#allocation3 + $0x60] sm:$0xf] %vm317, %v397
      %443 = vst.msk [vmem:[#allocation3 + $0x64] sm:$0xf] %vm317, %v398
      %444 = vst.msk [vmem:[#allocation3 + $0x68] sm:$0xf] %vm317, %v399
      %445 = vst.msk [vmem:[#allocation3 + $0x6c] sm:$0xf] %vm317, %v400
      %446 = vst.msk [vmem:[#allocation3 + $0x70] sm:$0xf] %vm317, %v401
      %447 = vst.msk [vmem:[#allocation3 + $0x74] sm:$0xf] %vm317, %v402
      %448 = vst.msk [vmem:[#allocation3 + $0x78] sm:$0xf] %vm317, %v403
      %449 = vst.msk [vmem:[#allocation3 + $0x7c] sm:$0xf] %vm317, %v404
      %450 = vst.msk [vmem:[#allocation3 + $0x80] sm:$0xf] %vm317, %v405
      %451 = vst.msk [vmem:[#allocation3 + $0x84] sm:$0xf] %vm317, %v406
      %452 = vst.msk [vmem:[#allocation3 + $0x88] sm:$0xf] %vm317, %v407
      %453 = vst.msk [vmem:[#allocation3 + $0x8c] sm:$0xf] %vm317, %v408
      %454 = vst.msk [vmem:[#allocation3 + $0x90] sm:$0xf] %vm317, %v409
      %455 = vst.msk [vmem:[#allocation3 + $0x94] sm:$0xf] %vm317, %v410
      %456 = vst.msk [vmem:[#allocation3 + $0x98] sm:$0xf] %vm317, %v411
      %457 = vst.msk [vmem:[#allocation3 + $0x9c] sm:$0xf] %vm317, %v412
      %458 = vst.msk [vmem:[#allocation3 + $0xa0] sm:$0xf] %vm317, %v413
      %459 = vst.msk [vmem:[#allocation3 + $0xa4] sm:$0xf] %vm317, %v414
      %460 = vst.msk [vmem:[#allocation3 + $0xa8] sm:$0xf] %vm317, %v415
      %461 = vst.msk [vmem:[#allocation3 + $0xac] sm:$0xf] %vm317, %v416
      %462 = vst.msk [vmem:[#allocation3 + $0xb0] sm:$0xf] %vm317, %v417
      %v463 = vld [vmem:[#allocation2] sm:$0xf]
      %v464 = vld [vmem:[#allocation2 + $0x4] sm:$0xf]
      %v465 = vld [vmem:[#allocation2 + $0x8] sm:$0xf]
      %v466 = vld [vmem:[#allocation2 + $0xc] sm:$0xf]
      %v467 = vld [vmem:[#allocation2 + $0x10] sm:$0xf]
      %v468 = vld [vmem:[#allocation2 + $0x14] sm:$0xf]
      %v469 = vld [vmem:[#allocation2 + $0x18] sm:$0xf]
      %v470 = vld [vmem:[#allocation2 + $0x1c] sm:$0xf]
      %v471 = vld [vmem:[#allocation2 + $0x20] sm:$0xf]
      %v472 = vld [vmem:[#allocation2 + $0x24] sm:$0xf]
      %v473 = vld [vmem:[#allocation2 + $0x28] sm:$0xf]
      %v474 = vld [vmem:[#allocation2 + $0x2c] sm:$0xf]
      %v475 = vld [vmem:[#allocation2 + $0x30] sm:$0xf]
      %v476 = vld [vmem:[#allocation2 + $0x34] sm:$0xf]
      %v477 = vld [vmem:[#allocation2 + $0x38] sm:$0xf]
      %v478 = vld [vmem:[#allocation2 + $0x3c] sm:$0xf]
      %v479 = vld [vmem:[#allocation2 + $0x40] sm:$0xf]
      %v480 = vld [vmem:[#allocation2 + $0x44] sm:$0xf]
      %v481 = vld [vmem:[#allocation2 + $0x48] sm:$0xf]
      %v482 = vld [vmem:[#allocation2 + $0x4c] sm:$0xf]
      %v483 = vld [vmem:[#allocation2 + $0x50] sm:$0xf]
      %v484 = vld [vmem:[#allocation2 + $0x54] sm:$0xf]
      %v485 = vld [vmem:[#allocation2 + $0x58] sm:$0xf]
      %v486 = vld [vmem:[#allocation2 + $0x5c] sm:$0xf]
      %v487 = vld [vmem:[#allocation2 + $0x60] sm:$0xf]
      %v488 = vld [vmem:[#allocation2 + $0x64] sm:$0xf]
      %v489 = vld [vmem:[#allocation2 + $0x68] sm:$0xf]
      %v490 = vld [vmem:[#allocation2 + $0x6c] sm:$0xf]
      %v491 = vld [vmem:[#allocation2 + $0x70] sm:$0xf]
      %v492 = vld [vmem:[#allocation2 + $0x74] sm:$0xf]
      %v493 = vld [vmem:[#allocation2 + $0x78] sm:$0xf]
      %v494 = vld [vmem:[#allocation2 + $0x7c] sm:$0xf]
      %v495 = vld [vmem:[#allocation2 + $0x80] sm:$0xf]
      %v496 = vld [vmem:[#allocation2 + $0x84] sm:$0xf]
      %v497 = vld [vmem:[#allocation2 + $0x88] sm:$0xf]
      %v498 = vld [vmem:[#allocation2 + $0x8c] sm:$0xf]
      %v499 = vld [vmem:[#allocation2 + $0x90] sm:$0xf]
      %v500 = vld [vmem:[#allocation2 + $0x94] sm:$0xf]
      %v501 = vld [vmem:[#allocation2 + $0x98] sm:$0xf]
      %v502 = vld [vmem:[#allocation2 + $0x9c] sm:$0xf]
      %v503 = vld [vmem:[#allocation2 + $0xa0] sm:$0xf]
      %v504 = vld [vmem:[#allocation2 + $0xa4] sm:$0xf]
      %v505 = vld [vmem:[#allocation2 + $0xa8] sm:$0xf]
      %v506 = vld [vmem:[#allocation2 + $0xac] sm:$0xf]
      %v507 = vld [vmem:[#allocation2 + $0xb0] sm:$0xf]
      %v508 = vld [vmem:[#allocation2 + $0xb4] sm:$0x1]
      %vm509 = vsmask.f32 3328
      %vm510 = vsmask.f32 7440
      %vm511 = vmor %vm509, %vm510
      %v513 = vshrl.u32 %v463, 16
      %v515 = vrot.slane %v513, 4
      %v516 = vshll.u32 %v463, 16
      %v518 = vrot.slane %v516, 5
      %v519 = vor.u32 %v515, %v518
      %v520 = vrot.slane %v519, 4
      %v522 = vshll.u32 %v464, 16
      %v524 = vrot.slane %v522, 5
      %v525 = vsel %vm511, %v520, %v524
      %v526 = vshrl.u32 %v464, 16
      %v528 = vrot.slane %v526, 4
      %v529 = vor.u32 %v528, %v524
      %v530 = vrot.slane %v529, 4
      %v532 = vshll.u32 %v465, 16
      %v534 = vrot.slane %v532, 5
      %v535 = vsel %vm511, %v530, %v534
      %v536 = vshrl.u32 %v465, 16
      %v538 = vrot.slane %v536, 4
      %v539 = vor.u32 %v538, %v534
      %v540 = vrot.slane %v539, 4
      %v542 = vshll.u32 %v466, 16
      %v544 = vrot.slane %v542, 5
      %v545 = vsel %vm511, %v540, %v544
      %v546 = vshrl.u32 %v466, 16
      %v548 = vrot.slane %v546, 4
      %v549 = vor.u32 %v548, %v544
      %v550 = vrot.slane %v549, 4
      %v552 = vshll.u32 %v467, 16
      %v554 = vrot.slane %v552, 5
      %v555 = vsel %vm511, %v550, %v554
      %v556 = vshrl.u32 %v467, 16
      %v558 = vrot.slane %v556, 4
      %v559 = vor.u32 %v558, %v554
      %v560 = vrot.slane %v559, 4
      %v562 = vshll.u32 %v468, 16
      %v564 = vrot.slane %v562, 5
      %v565 = vsel %vm511, %v560, %v564
      %v566 = vshrl.u32 %v468, 16
      %v568 = vrot.slane %v566, 4
      %v569 = vor.u32 %v568, %v564
      %v570 = vrot.slane %v569, 4
      %v572 = vshll.u32 %v469, 16
      %v574 = vrot.slane %v572, 5
      %v575 = vsel %vm511, %v570, %v574
      %v576 = vshrl.u32 %v469, 16
      %v578 = vrot.slane %v576, 4
      %v579 = vor.u32 %v578, %v574
      %v580 = vrot.slane %v579, 4
      %v582 = vshll.u32 %v470, 16
      %v584 = vrot.slane %v582, 5
      %v585 = vsel %vm511, %v580, %v584
      %v586 = vshrl.u32 %v470, 16
      %v588 = vrot.slane %v586, 4
      %v589 = vor.u32 %v588, %v584
      %v590 = vrot.slane %v589, 4
      %v592 = vshll.u32 %v471, 16
      %v594 = vrot.slane %v592, 5
      %v595 = vsel %vm511, %v590, %v594
      %v596 = vshrl.u32 %v471, 16
      %v598 = vrot.slane %v596, 4
      %v599 = vor.u32 %v598, %v594
      %v600 = vrot.slane %v599, 4
      %v602 = vshll.u32 %v472, 16
      %v604 = vrot.slane %v602, 5
      %v605 = vsel %vm511, %v600, %v604
      %v606 = vshrl.u32 %v472, 16
      %v608 = vrot.slane %v606, 4
      %v609 = vor.u32 %v608, %v604
      %v610 = vrot.slane %v609, 4
      %v612 = vshll.u32 %v473, 16
      %v614 = vrot.slane %v612, 5
      %v615 = vsel %vm511, %v610, %v614
      %v616 = vshrl.u32 %v473, 16
      %v618 = vrot.slane %v616, 4
      %v619 = vor.u32 %v618, %v614
      %v620 = vrot.slane %v619, 4
      %v622 = vshll.u32 %v474, 16
      %v624 = vrot.slane %v622, 5
      %v625 = vsel %vm511, %v620, %v624
      %v626 = vshrl.u32 %v474, 16
      %v628 = vrot.slane %v626, 4
      %v629 = vor.u32 %v628, %v624
      %v630 = vrot.slane %v629, 4
      %v632 = vshll.u32 %v475, 16
      %v634 = vrot.slane %v632, 5
      %v635 = vsel %vm511, %v630, %v634
      %v636 = vshrl.u32 %v475, 16
      %v638 = vrot.slane %v636, 4
      %v639 = vor.u32 %v638, %v634
      %v640 = vrot.slane %v639, 4
      %v642 = vshll.u32 %v476, 16
      %v644 = vrot.slane %v642, 5
      %v645 = vsel %vm511, %v640, %v644
      %v646 = vshrl.u32 %v476, 16
      %v648 = vrot.slane %v646, 4
      %v649 = vor.u32 %v648, %v644
      %v650 = vrot.slane %v649, 4
      %v652 = vshll.u32 %v477, 16
      %v654 = vrot.slane %v652, 5
      %v655 = vsel %vm511, %v650, %v654
      %v656 = vshrl.u32 %v477, 16
      %v658 = vrot.slane %v656, 4
      %v659 = vor.u32 %v658, %v654
      %v660 = vrot.slane %v659, 4
      %v662 = vshll.u32 %v478, 16
      %v664 = vrot.slane %v662, 5
      %v665 = vsel %vm511, %v660, %v664
      %v666 = vshrl.u32 %v478, 16
      %v668 = vrot.slane %v666, 4
      %v669 = vor.u32 %v668, %v664
      %v670 = vrot.slane %v669, 4
      %v672 = vshll.u32 %v479, 16
      %v674 = vrot.slane %v672, 5
      %v675 = vsel %vm511, %v670, %v674
      %v676 = vshrl.u32 %v479, 16
      %v678 = vrot.slane %v676, 4
      %v679 = vor.u32 %v678, %v674
      %v680 = vrot.slane %v679, 4
      %v682 = vshll.u32 %v480, 16
      %v684 = vrot.slane %v682, 5
      %v685 = vsel %vm511, %v680, %v684
      %v686 = vshrl.u32 %v480, 16
      %v688 = vrot.slane %v686, 4
      %v689 = vor.u32 %v688, %v684
      %v690 = vrot.slane %v689, 4
      %v692 = vshll.u32 %v481, 16
      %v694 = vrot.slane %v692, 5
      %v695 = vsel %vm511, %v690, %v694
      %v696 = vshrl.u32 %v481, 16
      %v698 = vrot.slane %v696, 4
      %v699 = vor.u32 %v698, %v694
      %v700 = vrot.slane %v699, 4
      %v702 = vshll.u32 %v482, 16
      %v704 = vrot.slane %v702, 5
      %v705 = vsel %vm511, %v700, %v704
      %v706 = vshrl.u32 %v482, 16
      %v708 = vrot.slane %v706, 4
      %v709 = vor.u32 %v708, %v704
      %v710 = vrot.slane %v709, 4
      %v712 = vshll.u32 %v483, 16
      %v714 = vrot.slane %v712, 5
      %v715 = vsel %vm511, %v710, %v714
      %v716 = vshrl.u32 %v483, 16
      %v718 = vrot.slane %v716, 4
      %v719 = vor.u32 %v718, %v714
      %v720 = vrot.slane %v719, 4
      %v722 = vshll.u32 %v484, 16
      %v724 = vrot.slane %v722, 5
      %v725 = vsel %vm511, %v720, %v724
      %v726 = vshrl.u32 %v484, 16
      %v728 = vrot.slane %v726, 4
      %v729 = vor.u32 %v728, %v724
      %v730 = vrot.slane %v729, 4
      %v732 = vshll.u32 %v485, 16
      %v734 = vrot.slane %v732, 5
      %v735 = vsel %vm511, %v730, %v734
      %v736 = vshrl.u32 %v485, 16
      %v738 = vrot.slane %v736, 4
      %v739 = vor.u32 %v738, %v734
      %v740 = vrot.slane %v739, 4
      %v742 = vshll.u32 %v486, 16
      %v744 = vrot.slane %v742, 5
      %v745 = vsel %vm511, %v740, %v744
      %v746 = vshrl.u32 %v486, 16
      %v748 = vrot.slane %v746, 4
      %v749 = vor.u32 %v748, %v744
      %v750 = vrot.slane %v749, 4
      %v752 = vshll.u32 %v487, 16
      %v754 = vrot.slane %v752, 5
      %v755 = vsel %vm511, %v750, %v754
      %v756 = vshrl.u32 %v487, 16
      %v758 = vrot.slane %v756, 4
      %v759 = vor.u32 %v758, %v754
      %v760 = vrot.slane %v759, 4
      %v762 = vshll.u32 %v488, 16
      %v764 = vrot.slane %v762, 5
      %v765 = vsel %vm511, %v760, %v764
      %v766 = vshrl.u32 %v488, 16
      %v768 = vrot.slane %v766, 4
      %v769 = vor.u32 %v768, %v764
      %v770 = vrot.slane %v769, 4
      %v772 = vshll.u32 %v489, 16
      %v774 = vrot.slane %v772, 5
      %v775 = vsel %vm511, %v770, %v774
      %v776 = vshrl.u32 %v489, 16
      %v778 = vrot.slane %v776, 4
      %v779 = vor.u32 %v778, %v774
      %v780 = vrot.slane %v779, 4
      %v782 = vshll.u32 %v490, 16
      %v784 = vrot.slane %v782, 5
      %v785 = vsel %vm511, %v780, %v784
      %v786 = vshrl.u32 %v490, 16
      %v788 = vrot.slane %v786, 4
      %v789 = vor.u32 %v788, %v784
      %v790 = vrot.slane %v789, 4
      %v792 = vshll.u32 %v491, 16
      %v794 = vrot.slane %v792, 5
      %v795 = vsel %vm511, %v790, %v794
      %v796 = vshrl.u32 %v491, 16
      %v798 = vrot.slane %v796, 4
      %v799 = vor.u32 %v798, %v794
      %v800 = vrot.slane %v799, 4
      %v802 = vshll.u32 %v492, 16
      %v804 = vrot.slane %v802, 5
      %v805 = vsel %vm511, %v800, %v804
      %v806 = vshrl.u32 %v492, 16
      %v808 = vrot.slane %v806, 4
      %v809 = vor.u32 %v808, %v804
      %v810 = vrot.slane %v809, 4
      %v812 = vshll.u32 %v493, 16
      %v814 = vrot.slane %v812, 5
      %v815 = vsel %vm511, %v810, %v814
      %v816 = vshrl.u32 %v493, 16
      %v818 = vrot.slane %v816, 4
      %v819 = vor.u32 %v818, %v814
      %v820 = vrot.slane %v819, 4
      %v822 = vshll.u32 %v494, 16
      %v824 = vrot.slane %v822, 5
      %v825 = vsel %vm511, %v820, %v824
      %v826 = vshrl.u32 %v494, 16
      %v828 = vrot.slane %v826, 4
      %v829 = vor.u32 %v828, %v824
      %v830 = vrot.slane %v829, 4
      %v832 = vshll.u32 %v495, 16
      %v834 = vrot.slane %v832, 5
      %v835 = vsel %vm511, %v830, %v834
      %v836 = vshrl.u32 %v495, 16
      %v838 = vrot.slane %v836, 4
      %v839 = vor.u32 %v838, %v834
      %v840 = vrot.slane %v839, 4
      %v842 = vshll.u32 %v496, 16
      %v844 = vrot.slane %v842, 5
      %v845 = vsel %vm511, %v840, %v844
      %v846 = vshrl.u32 %v496, 16
      %v848 = vrot.slane %v846, 4
      %v849 = vor.u32 %v848, %v844
      %v850 = vrot.slane %v849, 4
      %v852 = vshll.u32 %v497, 16
      %v854 = vrot.slane %v852, 5
      %v855 = vsel %vm511, %v850, %v854
      %v856 = vshrl.u32 %v497, 16
      %v858 = vrot.slane %v856, 4
      %v859 = vor.u32 %v858, %v854
      %v860 = vrot.slane %v859, 4
      %v862 = vshll.u32 %v498, 16
      %v864 = vrot.slane %v862, 5
      %v865 = vsel %vm511, %v860, %v864
      %v866 = vshrl.u32 %v498, 16
      %v868 = vrot.slane %v866, 4
      %v869 = vor.u32 %v868, %v864
      %v870 = vrot.slane %v869, 4
      %v872 = vshll.u32 %v499, 16
      %v874 = vrot.slane %v872, 5
      %v875 = vsel %vm511, %v870, %v874
      %v876 = vshrl.u32 %v499, 16
      %v878 = vrot.slane %v876, 4
      %v879 = vor.u32 %v878, %v874
      %v880 = vrot.slane %v879, 4
      %v882 = vshll.u32 %v500, 16
      %v884 = vrot.slane %v882, 5
      %v885 = vsel %vm511, %v880, %v884
      %v886 = vshrl.u32 %v500, 16
      %v888 = vrot.slane %v886, 4
      %v889 = vor.u32 %v888, %v884
      %v890 = vrot.slane %v889, 4
      %v892 = vshll.u32 %v501, 16
      %v894 = vrot.slane %v892, 5
      %v895 = vsel %vm511, %v890, %v894
      %v896 = vshrl.u32 %v501, 16
      %v898 = vrot.slane %v896, 4
      %v899 = vor.u32 %v898, %v894
      %v900 = vrot.slane %v899, 4
      %v902 = vshll.u32 %v502, 16
      %v904 = vrot.slane %v902, 5
      %v905 = vsel %vm511, %v900, %v904
      %v906 = vshrl.u32 %v502, 16
      %v908 = vrot.slane %v906, 4
      %v909 = vor.u32 %v908, %v904
      %v910 = vrot.slane %v909, 4
      %v912 = vshll.u32 %v503, 16
      %v914 = vrot.slane %v912, 5
      %v915 = vsel %vm511, %v910, %v914
      %v916 = vshrl.u32 %v503, 16
      %v918 = vrot.slane %v916, 4
      %v919 = vor.u32 %v918, %v914
      %v920 = vrot.slane %v919, 4
      %v922 = vshll.u32 %v504, 16
      %v924 = vrot.slane %v922, 5
      %v925 = vsel %vm511, %v920, %v924
      %v926 = vshrl.u32 %v504, 16
      %v928 = vrot.slane %v926, 4
      %v929 = vor.u32 %v928, %v924
      %v930 = vrot.slane %v929, 4
      %v932 = vshll.u32 %v505, 16
      %v934 = vrot.slane %v932, 5
      %v935 = vsel %vm511, %v930, %v934
      %v936 = vshrl.u32 %v505, 16
      %v938 = vrot.slane %v936, 4
      %v939 = vor.u32 %v938, %v934
      %v940 = vrot.slane %v939, 4
      %v942 = vshll.u32 %v506, 16
      %v944 = vrot.slane %v942, 5
      %v945 = vsel %vm511, %v940, %v944
      %v946 = vshrl.u32 %v506, 16
      %v948 = vrot.slane %v946, 4
      %v949 = vor.u32 %v948, %v944
      %v950 = vrot.slane %v949, 4
      %v952 = vshll.u32 %v507, 16
      %v954 = vrot.slane %v952, 5
      %v955 = vsel %vm511, %v950, %v954
      %v956 = vshrl.u32 %v507, 16
      %v958 = vrot.slane %v956, 4
      %v959 = vor.u32 %v958, %v954
      %v960 = vrot.slane %v959, 4
      %v962 = vshll.u32 %v508, 16
      %v964 = vrot.slane %v962, 5
      %v965 = vsel %vm511, %v960, %v964
      %966 = vrot.lane.b32.xlu0 %v525, 4
      %v967 = vpop.permute.xlu0 %966
      %968 = vrot.lane.b32.xlu0 %v535, 4
      %v969 = vpop.permute.xlu0 %968
      %970 = vrot.lane.b32.xlu0 %v545, 4
      %v971 = vpop.permute.xlu0 %970
      %972 = vrot.lane.b32.xlu0 %v555, 4
      %v973 = vpop.permute.xlu0 %972
      %974 = vrot.lane.b32.xlu0 %v565, 4
      %v975 = vpop.permute.xlu0 %974
      %976 = vrot.lane.b32.xlu0 %v575, 4
      %v977 = vpop.permute.xlu0 %976
      %978 = vrot.lane.b32.xlu0 %v585, 4
      %v979 = vpop.permute.xlu0 %978
      %980 = vrot.lane.b32.xlu0 %v595, 4
      %v981 = vpop.permute.xlu0 %980
      %982 = vrot.lane.b32.xlu0 %v605, 4
      %v983 = vpop.permute.xlu0 %982
      %984 = vrot.lane.b32.xlu0 %v615, 4
      %v985 = vpop.permute.xlu0 %984
      %986 = vrot.lane.b32.xlu0 %v625, 4
      %v987 = vpop.permute.xlu0 %986
      %988 = vrot.lane.b32.xlu0 %v635, 4
      %v989 = vpop.permute.xlu0 %988
      %990 = vrot.lane.b32.xlu0 %v645, 4
      %v991 = vpop.permute.xlu0 %990
      %992 = vrot.lane.b32.xlu0 %v655, 4
      %v993 = vpop.permute.xlu0 %992
      %994 = vrot.lane.b32.xlu0 %v665, 4
      %v995 = vpop.permute.xlu0 %994
      %996 = vrot.lane.b32.xlu0 %v675, 4
      %v997 = vpop.permute.xlu0 %996
      %998 = vrot.lane.b32.xlu0 %v685, 4
      %v999 = vpop.permute.xlu0 %998
      %1000 = vrot.lane.b32.xlu0 %v695, 4
      %v1001 = vpop.permute.xlu0 %1000
      %1002 = vrot.lane.b32.xlu0 %v705, 4
      %v1003 = vpop.permute.xlu0 %1002
      %1004 = vrot.lane.b32.xlu0 %v715, 4
      %v1005 = vpop.permute.xlu0 %1004
      %1006 = vrot.lane.b32.xlu0 %v725, 4
      %v1007 = vpop.permute.xlu0 %1006
      %1008 = vrot.lane.b32.xlu0 %v735, 4
      %v1009 = vpop.permute.xlu0 %1008
      %1010 = vrot.lane.b32.xlu0 %v745, 4
      %v1011 = vpop.permute.xlu0 %1010
      %1012 = vrot.lane.b32.xlu0 %v755, 4
      %v1013 = vpop.permute.xlu0 %1012
      %1014 = vrot.lane.b32.xlu0 %v765, 4
      %v1015 = vpop.permute.xlu0 %1014
      %1016 = vrot.lane.b32.xlu0 %v775, 4
      %v1017 = vpop.permute.xlu0 %1016
      %1018 = vrot.lane.b32.xlu0 %v785, 4
      %v1019 = vpop.permute.xlu0 %1018
      %1020 = vrot.lane.b32.xlu0 %v795, 4
      %v1021 = vpop.permute.xlu0 %1020
      %1022 = vrot.lane.b32.xlu0 %v805, 4
      %v1023 = vpop.permute.xlu0 %1022
      %1024 = vrot.lane.b32.xlu0 %v815, 4
      %v1025 = vpop.permute.xlu0 %1024
      %1026 = vrot.lane.b32.xlu0 %v825, 4
      %v1027 = vpop.permute.xlu0 %1026
      %1028 = vrot.lane.b32.xlu0 %v835, 4
      %v1029 = vpop.permute.xlu0 %1028
      %1030 = vrot.lane.b32.xlu0 %v845, 4
      %v1031 = vpop.permute.xlu0 %1030
      %1032 = vrot.lane.b32.xlu0 %v855, 4
      %v1033 = vpop.permute.xlu0 %1032
      %1034 = vrot.lane.b32.xlu0 %v865, 4
      %v1035 = vpop.permute.xlu0 %1034
      %1036 = vrot.lane.b32.xlu0 %v875, 4
      %v1037 = vpop.permute.xlu0 %1036
      %1038 = vrot.lane.b32.xlu0 %v885, 4
      %v1039 = vpop.permute.xlu0 %1038
      %1040 = vrot.lane.b32.xlu0 %v895, 4
      %v1041 = vpop.permute.xlu0 %1040
      %1042 = vrot.lane.b32.xlu0 %v905, 4
      %v1043 = vpop.permute.xlu0 %1042
      %1044 = vrot.lane.b32.xlu0 %v915, 4
      %v1045 = vpop.permute.xlu0 %1044
      %1046 = vrot.lane.b32.xlu0 %v925, 4
      %v1047 = vpop.permute.xlu0 %1046
      %1048 = vrot.lane.b32.xlu0 %v935, 4
      %v1049 = vpop.permute.xlu0 %1048
      %1050 = vrot.lane.b32.xlu0 %v945, 4
      %v1051 = vpop.permute.xlu0 %1050
      %1052 = vrot.lane.b32.xlu0 %v955, 4
      %v1053 = vpop.permute.xlu0 %1052
      %1054 = vrot.lane.b32.xlu0 %v965, 4
      %v1055 = vpop.permute.xlu0 %1054
      %vm1101 = vcmask 60448
      %1102 = vst.msk [vmem:[#allocation3] sm:$0xf] %vm1101, %v967
      %1103 = vst.msk [vmem:[#allocation3 + $0x4] sm:$0xf] %vm1101, %v969
      %1104 = vst.msk [vmem:[#allocation3 + $0x8] sm:$0xf] %vm1101, %v971
      %1105 = vst.msk [vmem:[#allocation3 + $0xc] sm:$0xf] %vm1101, %v973
      %1106 = vst.msk [vmem:[#allocation3 + $0x10] sm:$0xf] %vm1101, %v975
      %1107 = vst.msk [vmem:[#allocation3 + $0x14] sm:$0xf] %vm1101, %v977
      %1108 = vst.msk [vmem:[#allocation3 + $0x18] sm:$0xf] %vm1101, %v979
      %1109 = vst.msk [vmem:[#allocation3 + $0x1c] sm:$0xf] %vm1101, %v981
      %1110 = vst.msk [vmem:[#allocation3 + $0x20] sm:$0xf] %vm1101, %v983
      %1111 = vst.msk [vmem:[#allocation3 + $0x24] sm:$0xf] %vm1101, %v985
      %1112 = vst.msk [vmem:[#allocation3 + $0x28] sm:$0xf] %vm1101, %v987
      %1113 = vst.msk [vmem:[#allocation3 + $0x2c] sm:$0xf] %vm1101, %v989
      %1114 = vst.msk [vmem:[#allocation3 + $0x30] sm:$0xf] %vm1101, %v991
      %1115 = vst.msk [vmem:[#allocation3 + $0x34] sm:$0xf] %vm1101, %v993
      %1116 = vst.msk [vmem:[#allocation3 + $0x38] sm:$0xf] %vm1101, %v995
      %1117 = vst.msk [vmem:[#allocation3 + $0x3c] sm:$0xf] %vm1101, %v997
      %1118 = vst.msk [vmem:[#allocation3 + $0x40] sm:$0xf] %vm1101, %v999
      %1119 = vst.msk [vmem:[#allocation3 + $0x44] sm:$0xf] %vm1101, %v1001
      %1120 = vst.msk [vmem:[#allocation3 + $0x48] sm:$0xf] %vm1101, %v1003
      %1121 = vst.msk [vmem:[#allocation3 + $0x4c] sm:$0xf] %vm1101, %v1005
      %1122 = vst.msk [vmem:[#allocation3 + $0x50] sm:$0xf] %vm1101, %v1007
      %1123 = vst.msk [vmem:[#allocation3 + $0x54] sm:$0xf] %vm1101, %v1009
      %1124 = vst.msk [vmem:[#allocation3 + $0x58] sm:$0xf] %vm1101, %v1011
      %1125 = vst.msk [vmem:[#allocation3 + $0x5c] sm:$0xf] %vm1101, %v1013
      %1126 = vst.msk [vmem:[#allocation3 + $0x60] sm:$0xf] %vm1101, %v1015
      %1127 = vst.msk [vmem:[#allocation3 + $0x64] sm:$0xf] %vm1101, %v1017
      %1128 = vst.msk [vmem:[#allocation3 + $0x68] sm:$0xf] %vm1101, %v1019
      %1129 = vst.msk [vmem:[#allocation3 + $0x6c] sm:$0xf] %vm1101, %v1021
      %1130 = vst.msk [vmem:[#allocation3 + $0x70] sm:$0xf] %vm1101, %v1023
      %1131 = vst.msk [vmem:[#allocation3 + $0x74] sm:$0xf] %vm1101, %v1025
      %1132 = vst.msk [vmem:[#allocation3 + $0x78] sm:$0xf] %vm1101, %v1027
      %1133 = vst.msk [vmem:[#allocation3 + $0x7c] sm:$0xf] %vm1101, %v1029
      %1134 = vst.msk [vmem:[#allocation3 + $0x80] sm:$0xf] %vm1101, %v1031
      %1135 = vst.msk [vmem:[#allocation3 + $0x84] sm:$0xf] %vm1101, %v1033
      %1136 = vst.msk [vmem:[#allocation3 + $0x88] sm:$0xf] %vm1101, %v1035
      %1137 = vst.msk [vmem:[#allocation3 + $0x8c] sm:$0xf] %vm1101, %v1037
      %1138 = vst.msk [vmem:[#allocation3 + $0x90] sm:$0xf] %vm1101, %v1039
      %1139 = vst.msk [vmem:[#allocation3 + $0x94] sm:$0xf] %vm1101, %v1041
      %1140 = vst.msk [vmem:[#allocation3 + $0x98] sm:$0xf] %vm1101, %v1043
      %1141 = vst.msk [vmem:[#allocation3 + $0x9c] sm:$0xf] %vm1101, %v1045
      %1142 = vst.msk [vmem:[#allocation3 + $0xa0] sm:$0xf] %vm1101, %v1047
      %1143 = vst.msk [vmem:[#allocation3 + $0xa4] sm:$0xf] %vm1101, %v1049
      %1144 = vst.msk [vmem:[#allocation3 + $0xa8] sm:$0xf] %vm1101, %v1051
      %1145 = vst.msk [vmem:[#allocation3 + $0xac] sm:$0xf] %vm1101, %v1053
      %1146 = vst.msk [vmem:[#allocation3 + $0xb0] sm:$0xf] %vm1101, %v1055
      %v1147 = vld [vmem:[#allocation2] sm:$0xe]
      %v1148 = vld [vmem:[#allocation2 + $0x4] sm:$0xf]
      %v1149 = vld [vmem:[#allocation2 + $0x8] sm:$0xf]
      %v1150 = vld [vmem:[#allocation2 + $0xc] sm:$0xf]
      %v1151 = vld [vmem:[#allocation2 + $0x10] sm:$0xf]
      %v1152 = vld [vmem:[#allocation2 + $0x14] sm:$0xf]
      %v1153 = vld [vmem:[#allocation2 + $0x18] sm:$0xf]
      %v1154 = vld [vmem:[#allocation2 + $0x1c] sm:$0xf]
      %v1155 = vld [vmem:[#allocation2 + $0x20] sm:$0xf]
      %v1156 = vld [vmem:[#allocation2 + $0x24] sm:$0xf]
      %v1157 = vld [vmem:[#allocation2 + $0x28] sm:$0xf]
      %v1158 = vld [vmem:[#allocation2 + $0x2c] sm:$0xf]
      %v1159 = vld [vmem:[#allocation2 + $0x30] sm:$0xf]
      %v1160 = vld [vmem:[#allocation2 + $0x34] sm:$0xf]
      %v1161 = vld [vmem:[#allocation2 + $0x38] sm:$0xf]
      %v1162 = vld [vmem:[#allocation2 + $0x3c] sm:$0xf]
      %v1163 = vld [vmem:[#allocation2 + $0x40] sm:$0xf]
      %v1164 = vld [vmem:[#allocation2 + $0x44] sm:$0xf]
      %v1165 = vld [vmem:[#allocation2 + $0x48] sm:$0xf]
      %v1166 = vld [vmem:[#allocation2 + $0x4c] sm:$0xf]
      %v1167 = vld [vmem:[#allocation2 + $0x50] sm:$0xf]
      %v1168 = vld [vmem:[#allocation2 + $0x54] sm:$0xf]
      %v1169 = vld [vmem:[#allocation2 + $0x58] sm:$0xf]
      %v1170 = vld [vmem:[#allocation2 + $0x5c] sm:$0xf]
      %v1171 = vld [vmem:[#allocation2 + $0x60] sm:$0xf]
      %v1172 = vld [vmem:[#allocation2 + $0x64] sm:$0xf]
      %v1173 = vld [vmem:[#allocation2 + $0x68] sm:$0xf]
      %v1174 = vld [vmem:[#allocation2 + $0x6c] sm:$0xf]
      %v1175 = vld [vmem:[#allocation2 + $0x70] sm:$0xf]
      %v1176 = vld [vmem:[#allocation2 + $0x74] sm:$0xf]
      %v1177 = vld [vmem:[#allocation2 + $0x78] sm:$0xf]
      %v1178 = vld [vmem:[#allocation2 + $0x7c] sm:$0xf]
      %v1179 = vld [vmem:[#allocation2 + $0x80] sm:$0xf]
      %v1180 = vld [vmem:[#allocation2 + $0x84] sm:$0xf]
      %v1181 = vld [vmem:[#allocation2 + $0x88] sm:$0xf]
      %v1182 = vld [vmem:[#allocation2 + $0x8c] sm:$0xf]
      %v1183 = vld [vmem:[#allocation2 + $0x90] sm:$0xf]
      %v1184 = vld [vmem:[#allocation2 + $0x94] sm:$0xf]
      %v1185 = vld [vmem:[#allocation2 + $0x98] sm:$0xf]
      %v1186 = vld [vmem:[#allocation2 + $0x9c] sm:$0xf]
      %v1187 = vld [vmem:[#allocation2 + $0xa0] sm:$0xf]
      %v1188 = vld [vmem:[#allocation2 + $0xa4] sm:$0xf]
      %v1189 = vld [vmem:[#allocation2 + $0xa8] sm:$0xf]
      %v1190 = vld [vmem:[#allocation2 + $0xac] sm:$0xf]
      %v1191 = vld [vmem:[#allocation2 + $0xb0] sm:$0xf]
      %v1192 = vld [vmem:[#allocation2 + $0xb4] sm:$0x1]
      %vm1239 = vcmask 1042432
      %vm1240 = vcmask 1046532
      %vm1241 = vmor %vm1239, %vm1240
      %v1242 = vrot.slane %v1147, 5
      %v1243 = vrot.slane %v1242, 4
      %v1244 = vrot.slane %v1148, 5
      %v1245 = vsel %vm1241, %v1243, %v1244
      %v1246 = vrot.slane %v1244, 4
      %v1247 = vrot.slane %v1149, 5
      %v1248 = vsel %vm1241, %v1246, %v1247
      %v1249 = vrot.slane %v1247, 4
      %v1250 = vrot.slane %v1150, 5
      %v1251 = vsel %vm1241, %v1249, %v1250
      %v1252 = vrot.slane %v1250, 4
      %v1253 = vrot.slane %v1151, 5
      %v1254 = vsel %vm1241, %v1252, %v1253
      %v1255 = vrot.slane %v1253, 4
      %v1256 = vrot.slane %v1152, 5
      %v1257 = vsel %vm1241, %v1255, %v1256
      %v1258 = vrot.slane %v1256, 4
      %v1259 = vrot.slane %v1153, 5
      %v1260 = vsel %vm1241, %v1258, %v1259
      %v1261 = vrot.slane %v1259, 4
      %v1262 = vrot.slane %v1154, 5
      %v1263 = vsel %vm1241, %v1261, %v1262
      %v1264 = vrot.slane %v1262, 4
      %v1265 = vrot.slane %v1155, 5
      %v1266 = vsel %vm1241, %v1264, %v1265
      %v1267 = vrot.slane %v1265, 4
      %v1268 = vrot.slane %v1156, 5
      %v1269 = vsel %vm1241, %v1267, %v1268
      %v1270 = vrot.slane %v1268, 4
      %v1271 = vrot.slane %v1157, 5
      %v1272 = vsel %vm1241, %v1270, %v1271
      %v1273 = vrot.slane %v1271, 4
      %v1274 = vrot.slane %v1158, 5
      %v1275 = vsel %vm1241, %v1273, %v1274
      %v1276 = vrot.slane %v1274, 4
      %v1277 = vrot.slane %v1159, 5
      %v1278 = vsel %vm1241, %v1276, %v1277
      %v1279 = vrot.slane %v1277, 4
      %v1280 = vrot.slane %v1160, 5
      %v1281 = vsel %vm1241, %v1279, %v1280
      %v1282 = vrot.slane %v1280, 4
      %v1283 = vrot.slane %v1161, 5
      %v1284 = vsel %vm1241, %v1282, %v1283
      %v1285 = vrot.slane %v1283, 4
      %v1286 = vrot.slane %v1162, 5
      %v1287 = vsel %vm1241, %v1285, %v1286
      %v1288 = vrot.slane %v1286, 4
      %v1289 = vrot.slane %v1163, 5
      %v1290 = vsel %vm1241, %v1288, %v1289
      %v1291 = vrot.slane %v1289, 4
      %v1292 = vrot.slane %v1164, 5
      %v1293 = vsel %vm1241, %v1291, %v1292
      %v1294 = vrot.slane %v1292, 4
      %v1295 = vrot.slane %v1165, 5
      %v1296 = vsel %vm1241, %v1294, %v1295
      %v1297 = vrot.slane %v1295, 4
      %v1298 = vrot.slane %v1166, 5
      %v1299 = vsel %vm1241, %v1297, %v1298
      %v1300 = vrot.slane %v1298, 4
      %v1301 = vrot.slane %v1167, 5
      %v1302 = vsel %vm1241, %v1300, %v1301
      %v1303 = vrot.slane %v1301, 4
      %v1304 = vrot.slane %v1168, 5
      %v1305 = vsel %vm1241, %v1303, %v1304
      %v1306 = vrot.slane %v1304, 4
      %v1307 = vrot.slane %v1169, 5
      %v1308 = vsel %vm1241, %v1306, %v1307
      %v1309 = vrot.slane %v1307, 4
      %v1310 = vrot.slane %v1170, 5
      %v1311 = vsel %vm1241, %v1309, %v1310
      %v1312 = vrot.slane %v1310, 4
      %v1313 = vrot.slane %v1171, 5
      %v1314 = vsel %vm1241, %v1312, %v1313
      %v1315 = vrot.slane %v1313, 4
      %v1316 = vrot.slane %v1172, 5
      %v1317 = vsel %vm1241, %v1315, %v1316
      %v1318 = vrot.slane %v1316, 4
      %v1319 = vrot.slane %v1173, 5
      %v1320 = vsel %vm1241, %v1318, %v1319
      %v1321 = vrot.slane %v1319, 4
      %v1322 = vrot.slane %v1174, 5
      %v1323 = vsel %vm1241, %v1321, %v1322
      %v1324 = vrot.slane %v1322, 4
      %v1325 = vrot.slane %v1175, 5
      %v1326 = vsel %vm1241, %v1324, %v1325
      %v1327 = vrot.slane %v1325, 4
      %v1328 = vrot.slane %v1176, 5
      %v1329 = vsel %vm1241, %v1327, %v1328
      %v1330 = vrot.slane %v1328, 4
      %v1331 = vrot.slane %v1177, 5
      %v1332 = vsel %vm1241, %v1330, %v1331
      %v1333 = vrot.slane %v1331, 4
      %v1334 = vrot.slane %v1178, 5
      %v1335 = vsel %vm1241, %v1333, %v1334
      %v1336 = vrot.slane %v1334, 4
      %v1337 = vrot.slane %v1179, 5
      %v1338 = vsel %vm1241, %v1336, %v1337
      %v1339 = vrot.slane %v1337, 4
      %v1340 = vrot.slane %v1180, 5
      %v1341 = vsel %vm1241, %v1339, %v1340
      %v1342 = vrot.slane %v1340, 4
      %v1343 = vrot.slane %v1181, 5
      %v1344 = vsel %vm1241, %v1342, %v1343
      %v1345 = vrot.slane %v1343, 4
      %v1346 = vrot.slane %v1182, 5
      %v1347 = vsel %vm1241, %v1345, %v1346
      %v1348 = vrot.slane %v1346, 4
      %v1349 = vrot.slane %v1183, 5
      %v1350 = vsel %vm1241, %v1348, %v1349
      %v1351 = vrot.slane %v1349, 4
      %v1352 = vrot.slane %v1184, 5
      %v1353 = vsel %vm1241, %v1351, %v1352
      %v1354 = vrot.slane %v1352, 4
      %v1355 = vrot.slane %v1185, 5
      %v1356 = vsel %vm1241, %v1354, %v1355
      %v1357 = vrot.slane %v1355, 4
      %v1358 = vrot.slane %v1186, 5
      %v1359 = vsel %vm1241, %v1357, %v1358
      %v1360 = vrot.slane %v1358, 4
      %v1361 = vrot.slane %v1187, 5
      %v1362 = vsel %vm1241, %v1360, %v1361
      %v1363 = vrot.slane %v1361, 4
      %v1364 = vrot.slane %v1188, 5
      %v1365 = vsel %vm1241, %v1363, %v1364
      %v1366 = vrot.slane %v1364, 4
      %v1367 = vrot.slane %v1189, 5
      %v1368 = vsel %vm1241, %v1366, %v1367
      %v1369 = vrot.slane %v1367, 4
      %v1370 = vrot.slane %v1190, 5
      %v1371 = vsel %vm1241, %v1369, %v1370
      %v1372 = vrot.slane %v1370, 4
      %v1373 = vrot.slane %v1191, 5
      %v1374 = vsel %vm1241, %v1372, %v1373
      %v1375 = vrot.slane %v1373, 4
      %v1376 = vrot.slane %v1192, 5
      %v1377 = vsel %vm1241, %v1375, %v1376
      %1378 = vrot.lane.b32.xlu0 %v1245, 8
      %v1379 = vpop.permute.xlu0 %1378
      %1380 = vrot.lane.b32.xlu0 %v1248, 8
      %v1381 = vpop.permute.xlu0 %1380
      %1382 = vrot.lane.b32.xlu0 %v1251, 8
      %v1383 = vpop.permute.xlu0 %1382
      %1384 = vrot.lane.b32.xlu0 %v1254, 8
      %v1385 = vpop.permute.xlu0 %1384
      %1386 = vrot.lane.b32.xlu0 %v1257, 8
      %v1387 = vpop.permute.xlu0 %1386
      %1388 = vrot.lane.b32.xlu0 %v1260, 8
      %v1389 = vpop.permute.xlu0 %1388
      %1390 = vrot.lane.b32.xlu0 %v1263, 8
      %v1391 = vpop.permute.xlu0 %1390
      %1392 = vrot.lane.b32.xlu0 %v1266, 8
      %v1393 = vpop.permute.xlu0 %1392
      %1394 = vrot.lane.b32.xlu0 %v1269, 8
      %v1395 = vpop.permute.xlu0 %1394
      %1396 = vrot.lane.b32.xlu0 %v1272, 8
      %v1397 = vpop.permute.xlu0 %1396
      %1398 = vrot.lane.b32.xlu0 %v1275, 8
      %v1399 = vpop.permute.xlu0 %1398
      %1400 = vrot.lane.b32.xlu0 %v1278, 8
      %v1401 = vpop.permute.xlu0 %1400
      %1402 = vrot.lane.b32.xlu0 %v1281, 8
      %v1403 = vpop.permute.xlu0 %1402
      %1404 = vrot.lane.b32.xlu0 %v1284, 8
      %v1405 = vpop.permute.xlu0 %1404
      %1406 = vrot.lane.b32.xlu0 %v1287, 8
      %v1407 = vpop.permute.xlu0 %1406
      %1408 = vrot.lane.b32.xlu0 %v1290, 8
      %v1409 = vpop.permute.xlu0 %1408
      %1410 = vrot.lane.b32.xlu0 %v1293, 8
      %v1411 = vpop.permute.xlu0 %1410
      %1412 = vrot.lane.b32.xlu0 %v1296, 8
      %v1413 = vpop.permute.xlu0 %1412
      %1414 = vrot.lane.b32.xlu0 %v1299, 8
      %v1415 = vpop.permute.xlu0 %1414
      %1416 = vrot.lane.b32.xlu0 %v1302, 8
      %v1417 = vpop.permute.xlu0 %1416
      %1418 = vrot.lane.b32.xlu0 %v1305, 8
      %v1419 = vpop.permute.xlu0 %1418
      %1420 = vrot.lane.b32.xlu0 %v1308, 8
      %v1421 = vpop.permute.xlu0 %1420
      %1422 = vrot.lane.b32.xlu0 %v1311, 8
      %v1423 = vpop.permute.xlu0 %1422
      %1424 = vrot.lane.b32.xlu0 %v1314, 8
      %v1425 = vpop.permute.xlu0 %1424
      %1426 = vrot.lane.b32.xlu0 %v1317, 8
      %v1427 = vpop.permute.xlu0 %1426
      %1428 = vrot.lane.b32.xlu0 %v1320, 8
      %v1429 = vpop.permute.xlu0 %1428
      %1430 = vrot.lane.b32.xlu0 %v1323, 8
      %v1431 = vpop.permute.xlu0 %1430
      %1432 = vrot.lane.b32.xlu0 %v1326, 8
      %v1433 = vpop.permute.xlu0 %1432
      %1434 = vrot.lane.b32.xlu0 %v1329, 8
      %v1435 = vpop.permute.xlu0 %1434
      %1436 = vrot.lane.b32.xlu0 %v1332, 8
      %v1437 = vpop.permute.xlu0 %1436
      %1438 = vrot.lane.b32.xlu0 %v1335, 8
      %v1439 = vpop.permute.xlu0 %1438
      %1440 = vrot.lane.b32.xlu0 %v1338, 8
      %v1441 = vpop.permute.xlu0 %1440
      %1442 = vrot.lane.b32.xlu0 %v1341, 8
      %v1443 = vpop.permute.xlu0 %1442
      %1444 = vrot.lane.b32.xlu0 %v1344, 8
      %v1445 = vpop.permute.xlu0 %1444
      %1446 = vrot.lane.b32.xlu0 %v1347, 8
      %v1447 = vpop.permute.xlu0 %1446
      %1448 = vrot.lane.b32.xlu0 %v1350, 8
      %v1449 = vpop.permute.xlu0 %1448
      %1450 = vrot.lane.b32.xlu0 %v1353, 8
      %v1451 = vpop.permute.xlu0 %1450
      %1452 = vrot.lane.b32.xlu0 %v1356, 8
      %v1453 = vpop.permute.xlu0 %1452
      %1454 = vrot.lane.b32.xlu0 %v1359, 8
      %v1455 = vpop.permute.xlu0 %1454
      %1456 = vrot.lane.b32.xlu0 %v1362, 8
      %v1457 = vpop.permute.xlu0 %1456
      %1458 = vrot.lane.b32.xlu0 %v1365, 8
      %v1459 = vpop.permute.xlu0 %1458
      %1460 = vrot.lane.b32.xlu0 %v1368, 8
      %v1461 = vpop.permute.xlu0 %1460
      %1462 = vrot.lane.b32.xlu0 %v1371, 8
      %v1463 = vpop.permute.xlu0 %1462
      %1464 = vrot.lane.b32.xlu0 %v1374, 8
      %v1465 = vpop.permute.xlu0 %1464
      %1466 = vrot.lane.b32.xlu0 %v1377, 8
      %v1467 = vpop.permute.xlu0 %1466
      %vm1513 = vcmask 93248
      %1514 = vst.msk [vmem:[#allocation3] sm:$0xf] %vm1513, %v1379
      %1515 = vst.msk [vmem:[#allocation3 + $0x4] sm:$0xf] %vm1513, %v1381
      %1516 = vst.msk [vmem:[#allocation3 + $0x8] sm:$0xf] %vm1513, %v1383
      %1517 = vst.msk [vmem:[#allocation3 + $0xc] sm:$0xf] %vm1513, %v1385
      %1518 = vst.msk [vmem:[#allocation3 + $0x10] sm:$0xf] %vm1513, %v1387
      %1519 = vst.msk [vmem:[#allocation3 + $0x14] sm:$0xf] %vm1513, %v1389
      %1520 = vst.msk [vmem:[#allocation3 + $0x18] sm:$0xf] %vm1513, %v1391
      %1521 = vst.msk [vmem:[#allocation3 + $0x1c] sm:$0xf] %vm1513, %v1393
      %1522 = vst.msk [vmem:[#allocation3 + $0x20] sm:$0xf] %vm1513, %v1395
      %1523 = vst.msk [vmem:[#allocation3 + $0x24] sm:$0xf] %vm1513, %v1397
      %1524 = vst.msk [vmem:[#allocation3 + $0x28] sm:$0xf] %vm1513, %v1399
      %1525 = vst.msk [vmem:[#allocation3 + $0x2c] sm:$0xf] %vm1513, %v1401
      %1526 = vst.msk [vmem:[#allocation3 + $0x30] sm:$0xf] %vm1513, %v1403
      %1527 = vst.msk [vmem:[#allocation3 + $0x34] sm:$0xf] %vm1513, %v1405
      %1528 = vst.msk [vmem:[#allocation3 + $0x38] sm:$0xf] %vm1513, %v1407
      %1529 = vst.msk [vmem:[#allocation3 + $0x3c] sm:$0xf] %vm1513, %v1409
      %1530 = vst.msk [vmem:[#allocation3 + $0x40] sm:$0xf] %vm1513, %v1411
      %1531 = vst.msk [vmem:[#allocation3 + $0x44] sm:$0xf] %vm1513, %v1413
      %1532 = vst.msk [vmem:[#allocation3 + $0x48] sm:$0xf] %vm1513, %v1415
      %1533 = vst.msk [vmem:[#allocation3 + $0x4c] sm:$0xf] %vm1513, %v1417
      %1534 = vst.msk [vmem:[#allocation3 + $0x50] sm:$0xf] %vm1513, %v1419
      %1535 = vst.msk [vmem:[#allocation3 + $0x54] sm:$0xf] %vm1513, %v1421
      %1536 = vst.msk [vmem:[#allocation3 + $0x58] sm:$0xf] %vm1513, %v1423
      %1537 = vst.msk [vmem:[#allocation3 + $0x5c] sm:$0xf] %vm1513, %v1425
      %1538 = vst.msk [vmem:[#allocation3 + $0x60] sm:$0xf] %vm1513, %v1427
      %1539 = vst.msk [vmem:[#allocation3 + $0x64] sm:$0xf] %vm1513, %v1429
      %1540 = vst.msk [vmem:[#allocation3 + $0x68] sm:$0xf] %vm1513, %v1431
      %1541 = vst.msk [vmem:[#allocation3 + $0x6c] sm:$0xf] %vm1513, %v1433
      %1542 = vst.msk [vmem:[#allocation3 + $0x70] sm:$0xf] %vm1513, %v1435
      %1543 = vst.msk [vmem:[#allocation3 + $0x74] sm:$0xf] %vm1513, %v1437
      %1544 = vst.msk [vmem:[#allocation3 + $0x78] sm:$0xf] %vm1513, %v1439
      %1545 = vst.msk [vmem:[#allocation3 + $0x7c] sm:$0xf] %vm1513, %v1441
      %1546 = vst.msk [vmem:[#allocation3 + $0x80] sm:$0xf] %vm1513, %v1443
      %1547 = vst.msk [vmem:[#allocation3 + $0x84] sm:$0xf] %vm1513, %v1445
      %1548 = vst.msk [vmem:[#allocation3 + $0x88] sm:$0xf] %vm1513, %v1447
      %1549 = vst.msk [vmem:[#allocation3 + $0x8c] sm:$0xf] %vm1513, %v1449
      %1550 = vst.msk [vmem:[#allocation3 + $0x90] sm:$0xf] %vm1513, %v1451
      %1551 = vst.msk [vmem:[#allocation3 + $0x94] sm:$0xf] %vm1513, %v1453
      %1552 = vst.msk [vmem:[#allocation3 + $0x98] sm:$0xf] %vm1513, %v1455
      %1553 = vst.msk [vmem:[#allocation3 + $0x9c] sm:$0xf] %vm1513, %v1457
      %1554 = vst.msk [vmem:[#allocation3 + $0xa0] sm:$0xf] %vm1513, %v1459
      %1555 = vst.msk [vmem:[#allocation3 + $0xa4] sm:$0xf] %vm1513, %v1461
      %1556 = vst.msk [vmem:[#allocation3 + $0xa8] sm:$0xf] %vm1513, %v1463
      %1557 = vst.msk [vmem:[#allocation3 + $0xac] sm:$0xf] %vm1513, %v1465
      %1558 = vst.msk [vmem:[#allocation3 + $0xb0] sm:$0xf] %vm1513, %v1467
      %v1559 = vld [vmem:[#allocation2 + $0x8] sm:$0xe]
      %v1560 = vld [vmem:[#allocation2 + $0xc] sm:$0xf]
      %v1561 = vld [vmem:[#allocation2 + $0x10] sm:$0xf]
      %v1562 = vld [vmem:[#allocation2 + $0x14] sm:$0xf]
      %v1563 = vld [vmem:[#allocation2 + $0x18] sm:$0xf]
      %v1564 = vld [vmem:[#allocation2 + $0x1c] sm:$0xf]
      %v1565 = vld [vmem:[#allocation2 + $0x20] sm:$0xf]
      %v1566 = vld [vmem:[#allocation2 + $0x24] sm:$0xf]
      %v1567 = vld [vmem:[#allocation2 + $0x28] sm:$0xf]
      %v1568 = vld [vmem:[#allocation2 + $0x2c] sm:$0xf]
      %v1569 = vld [vmem:[#allocation2 + $0x30] sm:$0xf]
      %v1570 = vld [vmem:[#allocation2 + $0x34] sm:$0xf]
      %v1571 = vld [vmem:[#allocation2 + $0x38] sm:$0xf]
      %v1572 = vld [vmem:[#allocation2 + $0x3c] sm:$0xf]
      %v1573 = vld [vmem:[#allocation2 + $0x40] sm:$0xf]
      %v1574 = vld [vmem:[#allocation2 + $0x44] sm:$0xf]
      %v1575 = vld [vmem:[#allocation2 + $0x48] sm:$0xf]
      %v1576 = vld [vmem:[#allocation2 + $0x4c] sm:$0xf]
      %v1577 = vld [vmem:[#allocation2 + $0x50] sm:$0xf]
      %v1578 = vld [vmem:[#allocation2 + $0x54] sm:$0xf]
      %v1579 = vld [vmem:[#allocation2 + $0x58] sm:$0xf]
      %v1580 = vld [vmem:[#allocation2 + $0x5c] sm:$0xf]
      %v1581 = vld [vmem:[#allocation2 + $0x60] sm:$0xf]
      %v1582 = vld [vmem:[#allocation2 + $0x64] sm:$0xf]
      %v1583 = vld [vmem:[#allocation2 + $0x68] sm:$0xf]
      %v1584 = vld [vmem:[#allocation2 + $0x6c] sm:$0xf]
      %v1585 = vld [vmem:[#allocation2 + $0x70] sm:$0xf]
      %v1586 = vld [vmem:[#allocation2 + $0x74] sm:$0xf]
      %v1587 = vld [vmem:[#allocation2 + $0x78] sm:$0xf]
      %v1588 = vld [vmem:[#allocation2 + $0x7c] sm:$0xf]
      %v1589 = vld [vmem:[#allocation2 + $0x80] sm:$0xf]
      %v1590 = vld [vmem:[#allocation2 + $0x84] sm:$0xf]
      %v1591 = vld [vmem:[#allocation2 + $0x88] sm:$0xf]
      %v1592 = vld [vmem:[#allocation2 + $0x8c] sm:$0xf]
      %v1593 = vld [vmem:[#allocation2 + $0x90] sm:$0xf]
      %v1594 = vld [vmem:[#allocation2 + $0x94] sm:$0xf]
      %v1595 = vld [vmem:[#allocation2 + $0x98] sm:$0xf]
      %v1596 = vld [vmem:[#allocation2 + $0x9c] sm:$0xf]
      %v1597 = vld [vmem:[#allocation2 + $0xa0] sm:$0xf]
      %v1598 = vld [vmem:[#allocation2 + $0xa4] sm:$0xf]
      %v1599 = vld [vmem:[#allocation2 + $0xa8] sm:$0xf]
      %v1600 = vld [vmem:[#allocation2 + $0xac] sm:$0xf]
      %v1601 = vld [vmem:[#allocation2 + $0xb0] sm:$0xf]
      %v1602 = vld [vmem:[#allocation2 + $0xb4] sm:$0xf]
      %v1603 = vld [vmem:[#allocation2 + $0xb8] sm:$0xf]
      %v1604 = vld [vmem:[#allocation2 + $0xbc] sm:$0x1]
      %v1651 = vrot.slane %v1559, 5
      %v1652 = vrot.slane %v1651, 4
      %v1653 = vrot.slane %v1560, 5
      %v1654 = vsel %vm1241, %v1652, %v1653
      %v1655 = vrot.slane %v1653, 4
      %v1656 = vrot.slane %v1561, 5
      %v1657 = vsel %vm1241, %v1655, %v1656
      %v1658 = vrot.slane %v1656, 4
      %v1659 = vrot.slane %v1562, 5
      %v1660 = vsel %vm1241, %v1658, %v1659
      %v1661 = vrot.slane %v1659, 4
      %v1662 = vrot.slane %v1563, 5
      %v1663 = vsel %vm1241, %v1661, %v1662
      %v1664 = vrot.slane %v1662, 4
      %v1665 = vrot.slane %v1564, 5
      %v1666 = vsel %vm1241, %v1664, %v1665
      %v1667 = vrot.slane %v1665, 4
      %v1668 = vrot.slane %v1565, 5
      %v1669 = vsel %vm1241, %v1667, %v1668
      %v1670 = vrot.slane %v1668, 4
      %v1671 = vrot.slane %v1566, 5
      %v1672 = vsel %vm1241, %v1670, %v1671
      %v1673 = vrot.slane %v1671, 4
      %v1674 = vrot.slane %v1567, 5
      %v1675 = vsel %vm1241, %v1673, %v1674
      %v1676 = vrot.slane %v1674, 4
      %v1677 = vrot.slane %v1568, 5
      %v1678 = vsel %vm1241, %v1676, %v1677
      %v1679 = vrot.slane %v1677, 4
      %v1680 = vrot.slane %v1569, 5
      %v1681 = vsel %vm1241, %v1679, %v1680
      %v1682 = vrot.slane %v1680, 4
      %v1683 = vrot.slane %v1570, 5
      %v1684 = vsel %vm1241, %v1682, %v1683
      %v1685 = vrot.slane %v1683, 4
      %v1686 = vrot.slane %v1571, 5
      %v1687 = vsel %vm1241, %v1685, %v1686
      %v1688 = vrot.slane %v1686, 4
      %v1689 = vrot.slane %v1572, 5
      %v1690 = vsel %vm1241, %v1688, %v1689
      %v1691 = vrot.slane %v1689, 4
      %v1692 = vrot.slane %v1573, 5
      %v1693 = vsel %vm1241, %v1691, %v1692
      %v1694 = vrot.slane %v1692, 4
      %v1695 = vrot.slane %v1574, 5
      %v1696 = vsel %vm1241, %v1694, %v1695
      %v1697 = vrot.slane %v1695, 4
      %v1698 = vrot.slane %v1575, 5
      %v1699 = vsel %vm1241, %v1697, %v1698
      %v1700 = vrot.slane %v1698, 4
      %v1701 = vrot.slane %v1576, 5
      %v1702 = vsel %vm1241, %v1700, %v1701
      %v1703 = vrot.slane %v1701, 4
      %v1704 = vrot.slane %v1577, 5
      %v1705 = vsel %vm1241, %v1703, %v1704
      %v1706 = vrot.slane %v1704, 4
      %v1707 = vrot.slane %v1578, 5
      %v1708 = vsel %vm1241, %v1706, %v1707
      %v1709 = vrot.slane %v1707, 4
      %v1710 = vrot.slane %v1579, 5
      %v1711 = vsel %vm1241, %v1709, %v1710
      %v1712 = vrot.slane %v1710, 4
      %v1713 = vrot.slane %v1580, 5
      %v1714 = vsel %vm1241, %v1712, %v1713
      %v1715 = vrot.slane %v1713, 4
      %v1716 = vrot.slane %v1581, 5
      %v1717 = vsel %vm1241, %v1715, %v1716
      %v1718 = vrot.slane %v1716, 4
      %v1719 = vrot.slane %v1582, 5
      %v1720 = vsel %vm1241, %v1718, %v1719
      %v1721 = vrot.slane %v1719, 4
      %v1722 = vrot.slane %v1583, 5
      %v1723 = vsel %vm1241, %v1721, %v1722
      %v1724 = vrot.slane %v1722, 4
      %v1725 = vrot.slane %v1584, 5
      %v1726 = vsel %vm1241, %v1724, %v1725
      %v1727 = vrot.slane %v1725, 4
      %v1728 = vrot.slane %v1585, 5
      %v1729 = vsel %vm1241, %v1727, %v1728
      %v1730 = vrot.slane %v1728, 4
      %v1731 = vrot.slane %v1586, 5
      %v1732 = vsel %vm1241, %v1730, %v1731
      %v1733 = vrot.slane %v1731, 4
      %v1734 = vrot.slane %v1587, 5
      %v1735 = vsel %vm1241, %v1733, %v1734
      %v1736 = vrot.slane %v1734, 4
      %v1737 = vrot.slane %v1588, 5
      %v1738 = vsel %vm1241, %v1736, %v1737
      %v1739 = vrot.slane %v1737, 4
      %v1740 = vrot.slane %v1589, 5
      %v1741 = vsel %vm1241, %v1739, %v1740
      %v1742 = vrot.slane %v1740, 4
      %v1743 = vrot.slane %v1590, 5
      %v1744 = vsel %vm1241, %v1742, %v1743
      %v1745 = vrot.slane %v1743, 4
      %v1746 = vrot.slane %v1591, 5
      %v1747 = vsel %vm1241, %v1745, %v1746
      %v1748 = vrot.slane %v1746, 4
      %v1749 = vrot.slane %v1592, 5
      %v1750 = vsel %vm1241, %v1748, %v1749
      %v1751 = vrot.slane %v1749, 4
      %v1752 = vrot.slane %v1593, 5
      %v1753 = vsel %vm1241, %v1751, %v1752
      %v1754 = vrot.slane %v1752, 4
      %v1755 = vrot.slane %v1594, 5
      %v1756 = vsel %vm1241, %v1754, %v1755
      %v1757 = vrot.slane %v1755, 4
      %v1758 = vrot.slane %v1595, 5
      %v1759 = vsel %vm1241, %v1757, %v1758
      %v1760 = vrot.slane %v1758, 4
      %v1761 = vrot.slane %v1596, 5
      %v1762 = vsel %vm1241, %v1760, %v1761
      %v1763 = vrot.slane %v1761, 4
      %v1764 = vrot.slane %v1597, 5
      %v1765 = vsel %vm1241, %v1763, %v1764
      %v1766 = vrot.slane %v1764, 4
      %v1767 = vrot.slane %v1598, 5
      %v1768 = vsel %vm1241, %v1766, %v1767
      %v1769 = vrot.slane %v1767, 4
      %v1770 = vrot.slane %v1599, 5
      %v1771 = vsel %vm1241, %v1769, %v1770
      %v1772 = vrot.slane %v1770, 4
      %v1773 = vrot.slane %v1600, 5
      %v1774 = vsel %vm1241, %v1772, %v1773
      %v1775 = vrot.slane %v1773, 4
      %v1776 = vrot.slane %v1601, 5
      %v1777 = vsel %vm1241, %v1775, %v1776
      %v1778 = vrot.slane %v1776, 4
      %v1779 = vrot.slane %v1602, 5
      %v1780 = vsel %vm1241, %v1778, %v1779
      %v1781 = vrot.slane %v1779, 4
      %v1782 = vrot.slane %v1603, 5
      %v1783 = vsel %vm1241, %v1781, %v1782
      %v1784 = vrot.slane %v1782, 4
      %v1785 = vrot.slane %v1604, 5
      %v1786 = vsel %vm1241, %v1784, %v1785
      %1787 = vrot.lane.b32.xlu0 %v1654, 12
      %v1788 = vpop.permute.xlu0 %1787
      %1789 = vrot.lane.b32.xlu0 %v1657, 12
      %v1790 = vpop.permute.xlu0 %1789
      %1791 = vrot.lane.b32.xlu0 %v1660, 12
      %v1792 = vpop.permute.xlu0 %1791
      %1793 = vrot.lane.b32.xlu0 %v1663, 12
      %v1794 = vpop.permute.xlu0 %1793
      %1795 = vrot.lane.b32.xlu0 %v1666, 12
      %v1796 = vpop.permute.xlu0 %1795
      %1797 = vrot.lane.b32.xlu0 %v1669, 12
      %v1798 = vpop.permute.xlu0 %1797
      %1799 = vrot.lane.b32.xlu0 %v1672, 12
      %v1800 = vpop.permute.xlu0 %1799
      %1801 = vrot.lane.b32.xlu0 %v1675, 12
      %v1802 = vpop.permute.xlu0 %1801
      %1803 = vrot.lane.b32.xlu0 %v1678, 12
      %v1804 = vpop.permute.xlu0 %1803
      %1805 = vrot.lane.b32.xlu0 %v1681, 12
      %v1806 = vpop.permute.xlu0 %1805
      %1807 = vrot.lane.b32.xlu0 %v1684, 12
      %v1808 = vpop.permute.xlu0 %1807
      %1809 = vrot.lane.b32.xlu0 %v1687, 12
      %v1810 = vpop.permute.xlu0 %1809
      %1811 = vrot.lane.b32.xlu0 %v1690, 12
      %v1812 = vpop.permute.xlu0 %1811
      %1813 = vrot.lane.b32.xlu0 %v1693, 12
      %v1814 = vpop.permute.xlu0 %1813
      %1815 = vrot.lane.b32.xlu0 %v1696, 12
      %v1816 = vpop.permute.xlu0 %1815
      %1817 = vrot.lane.b32.xlu0 %v1699, 12
      %v1818 = vpop.permute.xlu0 %1817
      %1819 = vrot.lane.b32.xlu0 %v1702, 12
      %v1820 = vpop.permute.xlu0 %1819
      %1821 = vrot.lane.b32.xlu0 %v1705, 12
      %v1822 = vpop.permute.xlu0 %1821
      %1823 = vrot.lane.b32.xlu0 %v1708, 12
      %v1824 = vpop.permute.xlu0 %1823
      %1825 = vrot.lane.b32.xlu0 %v1711, 12
      %v1826 = vpop.permute.xlu0 %1825
      %1827 = vrot.lane.b32.xlu0 %v1714, 12
      %v1828 = vpop.permute.xlu0 %1827
      %1829 = vrot.lane.b32.xlu0 %v1717, 12
      %v1830 = vpop.permute.xlu0 %1829
      %1831 = vrot.lane.b32.xlu0 %v1720, 12
      %v1832 = vpop.permute.xlu0 %1831
      %1833 = vrot.lane.b32.xlu0 %v1723, 12
      %v1834 = vpop.permute.xlu0 %1833
      %1835 = vrot.lane.b32.xlu0 %v1726, 12
      %v1836 = vpop.permute.xlu0 %1835
      %1837 = vrot.lane.b32.xlu0 %v1729, 12
      %v1838 = vpop.permute.xlu0 %1837
      %1839 = vrot.lane.b32.xlu0 %v1732, 12
      %v1840 = vpop.permute.xlu0 %1839
      %1841 = vrot.lane.b32.xlu0 %v1735, 12
      %v1842 = vpop.permute.xlu0 %1841
      %1843 = vrot.lane.b32.xlu0 %v1738, 12
      %v1844 = vpop.permute.xlu0 %1843
      %1845 = vrot.lane.b32.xlu0 %v1741, 12
      %v1846 = vpop.permute.xlu0 %1845
      %1847 = vrot.lane.b32.xlu0 %v1744, 12
      %v1848 = vpop.permute.xlu0 %1847
      %1849 = vrot.lane.b32.xlu0 %v1747, 12
      %v1850 = vpop.permute.xlu0 %1849
      %1851 = vrot.lane.b32.xlu0 %v1750, 12
      %v1852 = vpop.permute.xlu0 %1851
      %1853 = vrot.lane.b32.xlu0 %v1753, 12
      %v1854 = vpop.permute.xlu0 %1853
      %1855 = vrot.lane.b32.xlu0 %v1756, 12
      %v1856 = vpop.permute.xlu0 %1855
      %1857 = vrot.lane.b32.xlu0 %v1759, 12
      %v1858 = vpop.permute.xlu0 %1857
      %1859 = vrot.lane.b32.xlu0 %v1762, 12
      %v1860 = vpop.permute.xlu0 %1859
      %1861 = vrot.lane.b32.xlu0 %v1765, 12
      %v1862 = vpop.permute.xlu0 %1861
      %1863 = vrot.lane.b32.xlu0 %v1768, 12
      %v1864 = vpop.permute.xlu0 %1863
      %1865 = vrot.lane.b32.xlu0 %v1771, 12
      %v1866 = vpop.permute.xlu0 %1865
      %1867 = vrot.lane.b32.xlu0 %v1774, 12
      %v1868 = vpop.permute.xlu0 %1867
      %1869 = vrot.lane.b32.xlu0 %v1777, 12
      %v1870 = vpop.permute.xlu0 %1869
      %1871 = vrot.lane.b32.xlu0 %v1780, 12
      %v1872 = vpop.permute.xlu0 %1871
      %1873 = vrot.lane.b32.xlu0 %v1783, 12
      %v1874 = vpop.permute.xlu0 %1873
      %1875 = vrot.lane.b32.xlu0 %v1786, 12
      %v1876 = vpop.permute.xlu0 %1875
      %vm1922 = vcmask 126048
      %1923 = vst.msk [vmem:[#allocation3] sm:$0xf] %vm1922, %v1788
      %1924 = vst.msk [vmem:[#allocation3 + $0x4] sm:$0xf] %vm1922, %v1790
      %1925 = vst.msk [vmem:[#allocation3 + $0x8] sm:$0xf] %vm1922, %v1792
      %1926 = vst.msk [vmem:[#allocation3 + $0xc] sm:$0xf] %vm1922, %v1794
      %1927 = vst.msk [vmem:[#allocation3 + $0x10] sm:$0xf] %vm1922, %v1796
      %1928 = vst.msk [vmem:[#allocation3 + $0x14] sm:$0xf] %vm1922, %v1798
      %1929 = vst.msk [vmem:[#allocation3 + $0x18] sm:$0xf] %vm1922, %v1800
      %1930 = vst.msk [vmem:[#allocation3 + $0x1c] sm:$0xf] %vm1922, %v1802
      %1931 = vst.msk [vmem:[#allocation3 + $0x20] sm:$0xf] %vm1922, %v1804
      %1932 = vst.msk [vmem:[#allocation3 + $0x24] sm:$0xf] %vm1922, %v1806
      %1933 = vst.msk [vmem:[#allocation3 + $0x28] sm:$0xf] %vm1922, %v1808
      %1934 = vst.msk [vmem:[#allocation3 + $0x2c] sm:$0xf] %vm1922, %v1810
      %1935 = vst.msk [vmem:[#allocation3 + $0x30] sm:$0xf] %vm1922, %v1812
      %1936 = vst.msk [vmem:[#allocation3 + $0x34] sm:$0xf] %vm1922, %v1814
      %1937 = vst.msk [vmem:[#allocation3 + $0x38] sm:$0xf] %vm1922, %v1816
      %1938 = vst.msk [vmem:[#allocation3 + $0x3c] sm:$0xf] %vm1922, %v1818
      %1939 = vst.msk [vmem:[#allocation3 + $0x40] sm:$0xf] %vm1922, %v1820
      %1940 = vst.msk [vmem:[#allocation3 + $0x44] sm:$0xf] %vm1922, %v1822
      %1941 = vst.msk [vmem:[#allocation3 + $0x48] sm:$0xf] %vm1922, %v1824
      %1942 = vst.msk [vmem:[#allocation3 + $0x4c] sm:$0xf] %vm1922, %v1826
      %1943 = vst.msk [vmem:[#allocation3 + $0x50] sm:$0xf] %vm1922, %v1828
      %1944 = vst.msk [vmem:[#allocation3 + $0x54] sm:$0xf] %vm1922, %v1830
      %1945 = vst.msk [vmem:[#allocation3 + $0x58] sm:$0xf] %vm1922, %v1832
      %1946 = vst.msk [vmem:[#allocation3 + $0x5c] sm:$0xf] %vm1922, %v1834
      %1947 = vst.msk [vmem:[#allocation3 + $0x60] sm:$0xf] %vm1922, %v1836
      %1948 = vst.msk [vmem:[#allocation3 + $0x64] sm:$0xf] %vm1922, %v1838
      %1949 = vst.msk [vmem:[#allocation3 + $0x68] sm:$0xf] %vm1922, %v1840
      %1950 = vst.msk [vmem:[#allocation3 + $0x6c] sm:$0xf] %vm1922, %v1842
      %1951 = vst.msk [vmem:[#allocation3 + $0x70] sm:$0xf] %vm1922, %v1844
      %1952 = vst.msk [vmem:[#allocation3 + $0x74] sm:$0xf] %vm1922, %v1846
      %1953 = vst.msk [vmem:[#allocation3 + $0x78] sm:$0xf] %vm1922, %v1848
      %1954 = vst.msk [vmem:[#allocation3 + $0x7c] sm:$0xf] %vm1922, %v1850
      %1955 = vst.msk [vmem:[#allocation3 + $0x80] sm:$0xf] %vm1922, %v1852
      %1956 = vst.msk [vmem:[#allocation3 + $0x84] sm:$0xf] %vm1922, %v1854
      %1957 = vst.msk [vmem:[#allocation3 + $0x88] sm:$0xf] %vm1922, %v1856
      %1958 = vst.msk [vmem:[#allocation3 + $0x8c] sm:$0xf] %vm1922, %v1858
      %1959 = vst.msk [vmem:[#allocation3 + $0x90] sm:$0xf] %vm1922, %v1860
      %1960 = vst.msk [vmem:[#allocation3 + $0x94] sm:$0xf] %vm1922, %v1862
      %1961 = vst.msk [vmem:[#allocation3 + $0x98] sm:$0xf] %vm1922, %v1864
      %1962 = vst.msk [vmem:[#allocation3 + $0x9c] sm:$0xf] %vm1922, %v1866
      %1963 = vst.msk [vmem:[#allocation3 + $0xa0] sm:$0xf] %vm1922, %v1868
      %1964 = vst.msk [vmem:[#allocation3 + $0xa4] sm:$0xf] %vm1922, %v1870
      %1965 = vst.msk [vmem:[#allocation3 + $0xa8] sm:$0xf] %vm1922, %v1872
      %1966 = vst.msk [vmem:[#allocation3 + $0xac] sm:$0xf] %vm1922, %v1874
      %1967 = vst.msk [vmem:[#allocation3 + $0xb0] sm:$0xf] %vm1922, %v1876
      %v1968 = vld [vmem:[#allocation2 + $0x8] sm:$0xe]
      %v1969 = vld [vmem:[#allocation2 + $0xc] sm:$0xf]
      %v1970 = vld [vmem:[#allocation2 + $0x10] sm:$0xf]
      %v1971 = vld [vmem:[#allocation2 + $0x14] sm:$0xf]
      %v1972 = vld [vmem:[#allocation2 + $0x18] sm:$0xf]
      %v1973 = vld [vmem:[#allocation2 + $0x1c] sm:$0xf]
      %v1974 = vld [vmem:[#allocation2 + $0x20] sm:$0xf]
      %v1975 = vld [vmem:[#allocation2 + $0x24] sm:$0xf]
      %v1976 = vld [vmem:[#allocation2 + $0x28] sm:$0xf]
      %v1977 = vld [vmem:[#allocation2 + $0x2c] sm:$0xf]
      %v1978 = vld [vmem:[#allocation2 + $0x30] sm:$0xf]
      %v1979 = vld [vmem:[#allocation2 + $0x34] sm:$0xf]
      %v1980 = vld [vmem:[#allocation2 + $0x38] sm:$0xf]
      %v1981 = vld [vmem:[#allocation2 + $0x3c] sm:$0xf]
      %v1982 = vld [vmem:[#allocation2 + $0x40] sm:$0xf]
      %v1983 = vld [vmem:[#allocation2 + $0x44] sm:$0xf]
      %v1984 = vld [vmem:[#allocation2 + $0x48] sm:$0xf]
      %v1985 = vld [vmem:[#allocation2 + $0x4c] sm:$0xf]
      %v1986 = vld [vmem:[#allocation2 + $0x50] sm:$0xf]
      %v1987 = vld [vmem:[#allocation2 + $0x54] sm:$0xf]
      %v1988 = vld [vmem:[#allocation2 + $0x58] sm:$0xf]
      %v1989 = vld [vmem:[#allocation2 + $0x5c] sm:$0xf]
      %v1990 = vld [vmem:[#allocation2 + $0x60] sm:$0xf]
      %v1991 = vld [vmem:[#allocation2 + $0x64] sm:$0xf]
      %v1992 = vld [vmem:[#allocation2 + $0x68] sm:$0xf]
      %v1993 = vld [vmem:[#allocation2 + $0x6c] sm:$0xf]
      %v1994 = vld [vmem:[#allocation2 + $0x70] sm:$0xf]
      %v1995 = vld [vmem:[#allocation2 + $0x74] sm:$0xf]
      %v1996 = vld [vmem:[#allocation2 + $0x78] sm:$0xf]
      %v1997 = vld [vmem:[#allocation2 + $0x7c] sm:$0xf]
      %v1998 = vld [vmem:[#allocation2 + $0x80] sm:$0xf]
      %v1999 = vld [vmem:[#allocation2 + $0x84] sm:$0xf]
      %v2000 = vld [vmem:[#allocation2 + $0x88] sm:$0xf]
      %v2001 = vld [vmem:[#allocation2 + $0x8c] sm:$0xf]
      %v2002 = vld [vmem:[#allocation2 + $0x90] sm:$0xf]
      %v2003 = vld [vmem:[#allocation2 + $0x94] sm:$0xf]
      %v2004 = vld [vmem:[#allocation2 + $0x98] sm:$0xf]
      %v2005 = vld [vmem:[#allocation2 + $0x9c] sm:$0xf]
      %v2006 = vld [vmem:[#allocation2 + $0xa0] sm:$0xf]
      %v2007 = vld [vmem:[#allocation2 + $0xa4] sm:$0xf]
      %v2008 = vld [vmem:[#allocation2 + $0xa8] sm:$0xf]
      %v2009 = vld [vmem:[#allocation2 + $0xac] sm:$0xf]
      %v2010 = vld [vmem:[#allocation2 + $0xb0] sm:$0xf]
      %v2011 = vld [vmem:[#allocation2 + $0xb4] sm:$0xf]
      %v2012 = vld [vmem:[#allocation2 + $0xb8] sm:$0xf]
      %v2013 = vld [vmem:[#allocation2 + $0xbc] sm:$0x3]
      %vm2014 = vsmask.f32 2304
      %vm2015 = vsmask.f32 6416
      %vm2016 = vmor %vm2014, %vm2015
      %v2018 = vshrl.u32 %v1968, 16
      %v2020 = vrot.slane %v2018, 5
      %v2021 = vshll.u32 %v1968, 16
      %v2023 = vrot.slane %v2021, 6
      %v2024 = vor.u32 %v2020, %v2023
      %v2025 = vrot.slane %v2024, 4
      %v2027 = vshrl.u32 %v1969, 16
      %v2029 = vrot.slane %v2027, 5
      %v2030 = vshll.u32 %v1969, 16
      %v2032 = vrot.slane %v2030, 6
      %v2033 = vor.u32 %v2029, %v2032
      %v2034 = vsel %vm2016, %v2025, %v2033
      %v2035 = vrot.slane %v2033, 4
      %v2037 = vshrl.u32 %v1970, 16
      %v2039 = vrot.slane %v2037, 5
      %v2040 = vshll.u32 %v1970, 16
      %v2042 = vrot.slane %v2040, 6
      %v2043 = vor.u32 %v2039, %v2042
      %v2044 = vsel %vm2016, %v2035, %v2043
      %v2045 = vrot.slane %v2043, 4
      %v2047 = vshrl.u32 %v1971, 16
      %v2049 = vrot.slane %v2047, 5
      %v2050 = vshll.u32 %v1971, 16
      %v2052 = vrot.slane %v2050, 6
      %v2053 = vor.u32 %v2049, %v2052
      %v2054 = vsel %vm2016, %v2045, %v2053
      %v2055 = vrot.slane %v2053, 4
      %v2057 = vshrl.u32 %v1972, 16
      %v2059 = vrot.slane %v2057, 5
      %v2060 = vshll.u32 %v1972, 16
      %v2062 = vrot.slane %v2060, 6
      %v2063 = vor.u32 %v2059, %v2062
      %v2064 = vsel %vm2016, %v2055, %v2063
      %v2065 = vrot.slane %v2063, 4
      %v2067 = vshrl.u32 %v1973, 16
      %v2069 = vrot.slane %v2067, 5
      %v2070 = vshll.u32 %v1973, 16
      %v2072 = vrot.slane %v2070, 6
      %v2073 = vor.u32 %v2069, %v2072
      %v2074 = vsel %vm2016, %v2065, %v2073
      %v2075 = vrot.slane %v2073, 4
      %v2077 = vshrl.u32 %v1974, 16
      %v2079 = vrot.slane %v2077, 5
      %v2080 = vshll.u32 %v1974, 16
      %v2082 = vrot.slane %v2080, 6
      %v2083 = vor.u32 %v2079, %v2082
      %v2084 = vsel %vm2016, %v2075, %v2083
      %v2085 = vrot.slane %v2083, 4
      %v2087 = vshrl.u32 %v1975, 16
      %v2089 = vrot.slane %v2087, 5
      %v2090 = vshll.u32 %v1975, 16
      %v2092 = vrot.slane %v2090, 6
      %v2093 = vor.u32 %v2089, %v2092
      %v2094 = vsel %vm2016, %v2085, %v2093
      %v2095 = vrot.slane %v2093, 4
      %v2097 = vshrl.u32 %v1976, 16
      %v2099 = vrot.slane %v2097, 5
      %v2100 = vshll.u32 %v1976, 16
      %v2102 = vrot.slane %v2100, 6
      %v2103 = vor.u32 %v2099, %v2102
      %v2104 = vsel %vm2016, %v2095, %v2103
      %v2105 = vrot.slane %v2103, 4
      %v2107 = vshrl.u32 %v1977, 16
      %v2109 = vrot.slane %v2107, 5
      %v2110 = vshll.u32 %v1977, 16
      %v2112 = vrot.slane %v2110, 6
      %v2113 = vor.u32 %v2109, %v2112
      %v2114 = vsel %vm2016, %v2105, %v2113
      %v2115 = vrot.slane %v2113, 4
      %v2117 = vshrl.u32 %v1978, 16
      %v2119 = vrot.slane %v2117, 5
      %v2120 = vshll.u32 %v1978, 16
      %v2122 = vrot.slane %v2120, 6
      %v2123 = vor.u32 %v2119, %v2122
      %v2124 = vsel %vm2016, %v2115, %v2123
      %v2125 = vrot.slane %v2123, 4
      %v2127 = vshrl.u32 %v1979, 16
      %v2129 = vrot.slane %v2127, 5
      %v2130 = vshll.u32 %v1979, 16
      %v2132 = vrot.slane %v2130, 6
      %v2133 = vor.u32 %v2129, %v2132
      %v2134 = vsel %vm2016, %v2125, %v2133
      %v2135 = vrot.slane %v2133, 4
      %v2137 = vshrl.u32 %v1980, 16
      %v2139 = vrot.slane %v2137, 5
      %v2140 = vshll.u32 %v1980, 16
      %v2142 = vrot.slane %v2140, 6
      %v2143 = vor.u32 %v2139, %v2142
      %v2144 = vsel %vm2016, %v2135, %v2143
      %v2145 = vrot.slane %v2143, 4
      %v2147 = vshrl.u32 %v1981, 16
      %v2149 = vrot.slane %v2147, 5
      %v2150 = vshll.u32 %v1981, 16
      %v2152 = vrot.slane %v2150, 6
      %v2153 = vor.u32 %v2149, %v2152
      %v2154 = vsel %vm2016, %v2145, %v2153
      %v2155 = vrot.slane %v2153, 4
      %v2157 = vshrl.u32 %v1982, 16
      %v2159 = vrot.slane %v2157, 5
      %v2160 = vshll.u32 %v1982, 16
      %v2162 = vrot.slane %v2160, 6
      %v2163 = vor.u32 %v2159, %v2162
      %v2164 = vsel %vm2016, %v2155, %v2163
      %v2165 = vrot.slane %v2163, 4
      %v2167 = vshrl.u32 %v1983, 16
      %v2169 = vrot.slane %v2167, 5
      %v2170 = vshll.u32 %v1983, 16
      %v2172 = vrot.slane %v2170, 6
      %v2173 = vor.u32 %v2169, %v2172
      %v2174 = vsel %vm2016, %v2165, %v2173
      %v2175 = vrot.slane %v2173, 4
      %v2177 = vshrl.u32 %v1984, 16
      %v2179 = vrot.slane %v2177, 5
      %v2180 = vshll.u32 %v1984, 16
      %v2182 = vrot.slane %v2180, 6
      %v2183 = vor.u32 %v2179, %v2182
      %v2184 = vsel %vm2016, %v2175, %v2183
      %v2185 = vrot.slane %v2183, 4
      %v2187 = vshrl.u32 %v1985, 16
      %v2189 = vrot.slane %v2187, 5
      %v2190 = vshll.u32 %v1985, 16
      %v2192 = vrot.slane %v2190, 6
      %v2193 = vor.u32 %v2189, %v2192
      %v2194 = vsel %vm2016, %v2185, %v2193
      %v2195 = vrot.slane %v2193, 4
      %v2197 = vshrl.u32 %v1986, 16
      %v2199 = vrot.slane %v2197, 5
      %v2200 = vshll.u32 %v1986, 16
      %v2202 = vrot.slane %v2200, 6
      %v2203 = vor.u32 %v2199, %v2202
      %v2204 = vsel %vm2016, %v2195, %v2203
      %v2205 = vrot.slane %v2203, 4
      %v2207 = vshrl.u32 %v1987, 16
      %v2209 = vrot.slane %v2207, 5
      %v2210 = vshll.u32 %v1987, 16
      %v2212 = vrot.slane %v2210, 6
      %v2213 = vor.u32 %v2209, %v2212
      %v2214 = vsel %vm2016, %v2205, %v2213
      %v2215 = vrot.slane %v2213, 4
      %v2217 = vshrl.u32 %v1988, 16
      %v2219 = vrot.slane %v2217, 5
      %v2220 = vshll.u32 %v1988, 16
      %v2222 = vrot.slane %v2220, 6
      %v2223 = vor.u32 %v2219, %v2222
      %v2224 = vsel %vm2016, %v2215, %v2223
      %v2225 = vrot.slane %v2223, 4
      %v2227 = vshrl.u32 %v1989, 16
      %v2229 = vrot.slane %v2227, 5
      %v2230 = vshll.u32 %v1989, 16
      %v2232 = vrot.slane %v2230, 6
      %v2233 = vor.u32 %v2229, %v2232
      %v2234 = vsel %vm2016, %v2225, %v2233
      %v2235 = vrot.slane %v2233, 4
      %v2237 = vshrl.u32 %v1990, 16
      %v2239 = vrot.slane %v2237, 5
      %v2240 = vshll.u32 %v1990, 16
      %v2242 = vrot.slane %v2240, 6
      %v2243 = vor.u32 %v2239, %v2242
      %v2244 = vsel %vm2016, %v2235, %v2243
      %v2245 = vrot.slane %v2243, 4
      %v2247 = vshrl.u32 %v1991, 16
      %v2249 = vrot.slane %v2247, 5
      %v2250 = vshll.u32 %v1991, 16
      %v2252 = vrot.slane %v2250, 6
      %v2253 = vor.u32 %v2249, %v2252
      %v2254 = vsel %vm2016, %v2245, %v2253
      %v2255 = vrot.slane %v2253, 4
      %v2257 = vshrl.u32 %v1992, 16
      %v2259 = vrot.slane %v2257, 5
      %v2260 = vshll.u32 %v1992, 16
      %v2262 = vrot.slane %v2260, 6
      %v2263 = vor.u32 %v2259, %v2262
      %v2264 = vsel %vm2016, %v2255, %v2263
      %v2265 = vrot.slane %v2263, 4
      %v2267 = vshrl.u32 %v1993, 16
      %v2269 = vrot.slane %v2267, 5
      %v2270 = vshll.u32 %v1993, 16
      %v2272 = vrot.slane %v2270, 6
      %v2273 = vor.u32 %v2269, %v2272
      %v2274 = vsel %vm2016, %v2265, %v2273
      %v2275 = vrot.slane %v2273, 4
      %v2277 = vshrl.u32 %v1994, 16
      %v2279 = vrot.slane %v2277, 5
      %v2280 = vshll.u32 %v1994, 16
      %v2282 = vrot.slane %v2280, 6
      %v2283 = vor.u32 %v2279, %v2282
      %v2284 = vsel %vm2016, %v2275, %v2283
      %v2285 = vrot.slane %v2283, 4
      %v2287 = vshrl.u32 %v1995, 16
      %v2289 = vrot.slane %v2287, 5
      %v2290 = vshll.u32 %v1995, 16
      %v2292 = vrot.slane %v2290, 6
      %v2293 = vor.u32 %v2289, %v2292
      %v2294 = vsel %vm2016, %v2285, %v2293
      %v2295 = vrot.slane %v2293, 4
      %v2297 = vshrl.u32 %v1996, 16
      %v2299 = vrot.slane %v2297, 5
      %v2300 = vshll.u32 %v1996, 16
      %v2302 = vrot.slane %v2300, 6
      %v2303 = vor.u32 %v2299, %v2302
      %v2304 = vsel %vm2016, %v2295, %v2303
      %v2305 = vrot.slane %v2303, 4
      %v2307 = vshrl.u32 %v1997, 16
      %v2309 = vrot.slane %v2307, 5
      %v2310 = vshll.u32 %v1997, 16
      %v2312 = vrot.slane %v2310, 6
      %v2313 = vor.u32 %v2309, %v2312
      %v2314 = vsel %vm2016, %v2305, %v2313
      %v2315 = vrot.slane %v2313, 4
      %v2317 = vshrl.u32 %v1998, 16
      %v2319 = vrot.slane %v2317, 5
      %v2320 = vshll.u32 %v1998, 16
      %v2322 = vrot.slane %v2320, 6
      %v2323 = vor.u32 %v2319, %v2322
      %v2324 = vsel %vm2016, %v2315, %v2323
      %v2325 = vrot.slane %v2323, 4
      %v2327 = vshrl.u32 %v1999, 16
      %v2329 = vrot.slane %v2327, 5
      %v2330 = vshll.u32 %v1999, 16
      %v2332 = vrot.slane %v2330, 6
      %v2333 = vor.u32 %v2329, %v2332
      %v2334 = vsel %vm2016, %v2325, %v2333
      %v2335 = vrot.slane %v2333, 4
      %v2337 = vshrl.u32 %v2000, 16
      %v2339 = vrot.slane %v2337, 5
      %v2340 = vshll.u32 %v2000, 16
      %v2342 = vrot.slane %v2340, 6
      %v2343 = vor.u32 %v2339, %v2342
      %v2344 = vsel %vm2016, %v2335, %v2343
      %v2345 = vrot.slane %v2343, 4
      %v2347 = vshrl.u32 %v2001, 16
      %v2349 = vrot.slane %v2347, 5
      %v2350 = vshll.u32 %v2001, 16
      %v2352 = vrot.slane %v2350, 6
      %v2353 = vor.u32 %v2349, %v2352
      %v2354 = vsel %vm2016, %v2345, %v2353
      %v2355 = vrot.slane %v2353, 4
      %v2357 = vshrl.u32 %v2002, 16
      %v2359 = vrot.slane %v2357, 5
      %v2360 = vshll.u32 %v2002, 16
      %v2362 = vrot.slane %v2360, 6
      %v2363 = vor.u32 %v2359, %v2362
      %v2364 = vsel %vm2016, %v2355, %v2363
      %v2365 = vrot.slane %v2363, 4
      %v2367 = vshrl.u32 %v2003, 16
      %v2369 = vrot.slane %v2367, 5
      %v2370 = vshll.u32 %v2003, 16
      %v2372 = vrot.slane %v2370, 6
      %v2373 = vor.u32 %v2369, %v2372
      %v2374 = vsel %vm2016, %v2365, %v2373
      %v2375 = vrot.slane %v2373, 4
      %v2377 = vshrl.u32 %v2004, 16
      %v2379 = vrot.slane %v2377, 5
      %v2380 = vshll.u32 %v2004, 16
      %v2382 = vrot.slane %v2380, 6
      %v2383 = vor.u32 %v2379, %v2382
      %v2384 = vsel %vm2016, %v2375, %v2383
      %v2385 = vrot.slane %v2383, 4
      %v2387 = vshrl.u32 %v2005, 16
      %v2389 = vrot.slane %v2387, 5
      %v2390 = vshll.u32 %v2005, 16
      %v2392 = vrot.slane %v2390, 6
      %v2393 = vor.u32 %v2389, %v2392
      %v2394 = vsel %vm2016, %v2385, %v2393
      %v2395 = vrot.slane %v2393, 4
      %v2397 = vshrl.u32 %v2006, 16
      %v2399 = vrot.slane %v2397, 5
      %v2400 = vshll.u32 %v2006, 16
      %v2402 = vrot.slane %v2400, 6
      %v2403 = vor.u32 %v2399, %v2402
      %v2404 = vsel %vm2016, %v2395, %v2403
      %v2405 = vrot.slane %v2403, 4
      %v2407 = vshrl.u32 %v2007, 16
      %v2409 = vrot.slane %v2407, 5
      %v2410 = vshll.u32 %v2007, 16
      %v2412 = vrot.slane %v2410, 6
      %v2413 = vor.u32 %v2409, %v2412
      %v2414 = vsel %vm2016, %v2405, %v2413
      %v2415 = vrot.slane %v2413, 4
      %v2417 = vshrl.u32 %v2008, 16
      %v2419 = vrot.slane %v2417, 5
      %v2420 = vshll.u32 %v2008, 16
      %v2422 = vrot.slane %v2420, 6
      %v2423 = vor.u32 %v2419, %v2422
      %v2424 = vsel %vm2016, %v2415, %v2423
      %v2425 = vrot.slane %v2423, 4
      %v2427 = vshrl.u32 %v2009, 16
      %v2429 = vrot.slane %v2427, 5
      %v2430 = vshll.u32 %v2009, 16
      %v2432 = vrot.slane %v2430, 6
      %v2433 = vor.u32 %v2429, %v2432
      %v2434 = vsel %vm2016, %v2425, %v2433
      %v2435 = vrot.slane %v2433, 4
      %v2437 = vshrl.u32 %v2010, 16
      %v2439 = vrot.slane %v2437, 5
      %v2440 = vshll.u32 %v2010, 16
      %v2442 = vrot.slane %v2440, 6
      %v2443 = vor.u32 %v2439, %v2442
      %v2444 = vsel %vm2016, %v2435, %v2443
      %v2445 = vrot.slane %v2443, 4
      %v2447 = vshrl.u32 %v2011, 16
      %v2449 = vrot.slane %v2447, 5
      %v2450 = vshll.u32 %v2011, 16
      %v2452 = vrot.slane %v2450, 6
      %v2453 = vor.u32 %v2449, %v2452
      %v2454 = vsel %vm2016, %v2445, %v2453
      %v2455 = vrot.slane %v2453, 4
      %v2457 = vshrl.u32 %v2012, 16
      %v2459 = vrot.slane %v2457, 5
      %v2460 = vshll.u32 %v2012, 16
      %v2462 = vrot.slane %v2460, 6
      %v2463 = vor.u32 %v2459, %v2462
      %v2464 = vsel %vm2016, %v2455, %v2463
      %v2465 = vrot.slane %v2463, 4
      %v2467 = vshrl.u32 %v2013, 16
      %v2469 = vrot.slane %v2467, 5
      %v2470 = vshll.u32 %v2013, 16
      %v2472 = vrot.slane %v2470, 6
      %v2473 = vor.u32 %v2469, %v2472
      %v2474 = vsel %vm2016, %v2465, %v2473
      %2475 = vrot.lane.b32.xlu0 %v2034, 16
      %v2476 = vpop.permute.xlu0 %2475
      %2477 = vrot.lane.b32.xlu0 %v2044, 16
      %v2478 = vpop.permute.xlu0 %2477
      %2479 = vrot.lane.b32.xlu0 %v2054, 16
      %v2480 = vpop.permute.xlu0 %2479
      %2481 = vrot.lane.b32.xlu0 %v2064, 16
      %v2482 = vpop.permute.xlu0 %2481
      %2483 = vrot.lane.b32.xlu0 %v2074, 16
      %v2484 = vpop.permute.xlu0 %2483
      %2485 = vrot.lane.b32.xlu0 %v2084, 16
      %v2486 = vpop.permute.xlu0 %2485
      %2487 = vrot.lane.b32.xlu0 %v2094, 16
      %v2488 = vpop.permute.xlu0 %2487
      %2489 = vrot.lane.b32.xlu0 %v2104, 16
      %v2490 = vpop.permute.xlu0 %2489
      %2491 = vrot.lane.b32.xlu0 %v2114, 16
      %v2492 = vpop.permute.xlu0 %2491
      %2493 = vrot.lane.b32.xlu0 %v2124, 16
      %v2494 = vpop.permute.xlu0 %2493
      %2495 = vrot.lane.b32.xlu0 %v2134, 16
      %v2496 = vpop.permute.xlu0 %2495
      %2497 = vrot.lane.b32.xlu0 %v2144, 16
      %v2498 = vpop.permute.xlu0 %2497
      %2499 = vrot.lane.b32.xlu0 %v2154, 16
      %v2500 = vpop.permute.xlu0 %2499
      %2501 = vrot.lane.b32.xlu0 %v2164, 16
      %v2502 = vpop.permute.xlu0 %2501
      %2503 = vrot.lane.b32.xlu0 %v2174, 16
      %v2504 = vpop.permute.xlu0 %2503
      %2505 = vrot.lane.b32.xlu0 %v2184, 16
      %v2506 = vpop.permute.xlu0 %2505
      %2507 = vrot.lane.b32.xlu0 %v2194, 16
      %v2508 = vpop.permute.xlu0 %2507
      %2509 = vrot.lane.b32.xlu0 %v2204, 16
      %v2510 = vpop.permute.xlu0 %2509
      %2511 = vrot.lane.b32.xlu0 %v2214, 16
      %v2512 = vpop.permute.xlu0 %2511
      %2513 = vrot.lane.b32.xlu0 %v2224, 16
      %v2514 = vpop.permute.xlu0 %2513
      %2515 = vrot.lane.b32.xlu0 %v2234, 16
      %v2516 = vpop.permute.xlu0 %2515
      %2517 = vrot.lane.b32.xlu0 %v2244, 16
      %v2518 = vpop.permute.xlu0 %2517
      %2519 = vrot.lane.b32.xlu0 %v2254, 16
      %v2520 = vpop.permute.xlu0 %2519
      %2521 = vrot.lane.b32.xlu0 %v2264, 16
      %v2522 = vpop.permute.xlu0 %2521
      %2523 = vrot.lane.b32.xlu0 %v2274, 16
      %v2524 = vpop.permute.xlu0 %2523
      %2525 = vrot.lane.b32.xlu0 %v2284, 16
      %v2526 = vpop.permute.xlu0 %2525
      %2527 = vrot.lane.b32.xlu0 %v2294, 16
      %v2528 = vpop.permute.xlu0 %2527
      %2529 = vrot.lane.b32.xlu0 %v2304, 16
      %v2530 = vpop.permute.xlu0 %2529
      %2531 = vrot.lane.b32.xlu0 %v2314, 16
      %v2532 = vpop.permute.xlu0 %2531
      %2533 = vrot.lane.b32.xlu0 %v2324, 16
      %v2534 = vpop.permute.xlu0 %2533
      %2535 = vrot.lane.b32.xlu0 %v2334, 16
      %v2536 = vpop.permute.xlu0 %2535
      %2537 = vrot.lane.b32.xlu0 %v2344, 16
      %v2538 = vpop.permute.xlu0 %2537
      %2539 = vrot.lane.b32.xlu0 %v2354, 16
      %v2540 = vpop.permute.xlu0 %2539
      %2541 = vrot.lane.b32.xlu0 %v2364, 16
      %v2542 = vpop.permute.xlu0 %2541
      %2543 = vrot.lane.b32.xlu0 %v2374, 16
      %v2544 = vpop.permute.xlu0 %2543
      %2545 = vrot.lane.b32.xlu0 %v2384, 16
      %v2546 = vpop.permute.xlu0 %2545
      %2547 = vrot.lane.b32.xlu0 %v2394, 16
      %v2548 = vpop.permute.xlu0 %2547
      %2549 = vrot.lane.b32.xlu0 %v2404, 16
      %v2550 = vpop.permute.xlu0 %2549
      %2551 = vrot.lane.b32.xlu0 %v2414, 16
      %v2552 = vpop.permute.xlu0 %2551
      %2553 = vrot.lane.b32.xlu0 %v2424, 16
      %v2554 = vpop.permute.xlu0 %2553
      %2555 = vrot.lane.b32.xlu0 %v2434, 16
      %v2556 = vpop.permute.xlu0 %2555
      %2557 = vrot.lane.b32.xlu0 %v2444, 16
      %v2558 = vpop.permute.xlu0 %2557
      %2559 = vrot.lane.b32.xlu0 %v2454, 16
      %v2560 = vpop.permute.xlu0 %2559
      %2561 = vrot.lane.b32.xlu0 %v2464, 16
      %v2562 = vpop.permute.xlu0 %2561
      %2563 = vrot.lane.b32.xlu0 %v2474, 16
      %v2564 = vpop.permute.xlu0 %2563
      %vm2610 = vcmask 158848
      %2611 = vst.msk [vmem:[#allocation3] sm:$0xf] %vm2610, %v2476
      %2612 = vst.msk [vmem:[#allocation3 + $0x4] sm:$0xf] %vm2610, %v2478
      %2613 = vst.msk [vmem:[#allocation3 + $0x8] sm:$0xf] %vm2610, %v2480
      %2614 = vst.msk [vmem:[#allocation3 + $0xc] sm:$0xf] %vm2610, %v2482
      %2615 = vst.msk [vmem:[#allocation3 + $0x10] sm:$0xf] %vm2610, %v2484
      %2616 = vst.msk [vmem:[#allocation3 + $0x14] sm:$0xf] %vm2610, %v2486
      %2617 = vst.msk [vmem:[#allocation3 + $0x18] sm:$0xf] %vm2610, %v2488
      %2618 = vst.msk [vmem:[#allocation3 + $0x1c] sm:$0xf] %vm2610, %v2490
      %2619 = vst.msk [vmem:[#allocation3 + $0x20] sm:$0xf] %vm2610, %v2492
      %2620 = vst.msk [vmem:[#allocation3 + $0x24] sm:$0xf] %vm2610, %v2494
      %2621 = vst.msk [vmem:[#allocation3 + $0x28] sm:$0xf] %vm2610, %v2496
      %2622 = vst.msk [vmem:[#allocation3 + $0x2c] sm:$0xf] %vm2610, %v2498
      %2623 = vst.msk [vmem:[#allocation3 + $0x30] sm:$0xf] %vm2610, %v2500
      %2624 = vst.msk [vmem:[#allocation3 + $0x34] sm:$0xf] %vm2610, %v2502
      %2625 = vst.msk [vmem:[#allocation3 + $0x38] sm:$0xf] %vm2610, %v2504
      %2626 = vst.msk [vmem:[#allocation3 + $0x3c] sm:$0xf] %vm2610, %v2506
      %2627 = vst.msk [vmem:[#allocation3 + $0x40] sm:$0xf] %vm2610, %v2508
      %2628 = vst.msk [vmem:[#allocation3 + $0x44] sm:$0xf] %vm2610, %v2510
      %2629 = vst.msk [vmem:[#allocation3 + $0x48] sm:$0xf] %vm2610, %v2512
      %2630 = vst.msk [vmem:[#allocation3 + $0x4c] sm:$0xf] %vm2610, %v2514
      %2631 = vst.msk [vmem:[#allocation3 + $0x50] sm:$0xf] %vm2610, %v2516
      %2632 = vst.msk [vmem:[#allocation3 + $0x54] sm:$0xf] %vm2610, %v2518
      %2633 = vst.msk [vmem:[#allocation3 + $0x58] sm:$0xf] %vm2610, %v2520
      %2634 = vst.msk [vmem:[#allocation3 + $0x5c] sm:$0xf] %vm2610, %v2522
      %2635 = vst.msk [vmem:[#allocation3 + $0x60] sm:$0xf] %vm2610, %v2524
      %2636 = vst.msk [vmem:[#allocation3 + $0x64] sm:$0xf] %vm2610, %v2526
      %2637 = vst.msk [vmem:[#allocation3 + $0x68] sm:$0xf] %vm2610, %v2528
      %2638 = vst.msk [vmem:[#allocation3 + $0x6c] sm:$0xf] %vm2610, %v2530
      %2639 = vst.msk [vmem:[#allocation3 + $0x70] sm:$0xf] %vm2610, %v2532
      %2640 = vst.msk [vmem:[#allocation3 + $0x74] sm:$0xf] %vm2610, %v2534
      %2641 = vst.msk [vmem:[#allocation3 + $0x78] sm:$0xf] %vm2610, %v2536
      %2642 = vst.msk [vmem:[#allocation3 + $0x7c] sm:$0xf] %vm2610, %v2538
      %2643 = vst.msk [vmem:[#allocation3 + $0x80] sm:$0xf] %vm2610, %v2540
      %2644 = vst.msk [vmem:[#allocation3 + $0x84] sm:$0xf] %vm2610, %v2542
      %2645 = vst.msk [vmem:[#allocation3 + $0x88] sm:$0xf] %vm2610, %v2544
      %2646 = vst.msk [vmem:[#allocation3 + $0x8c] sm:$0xf] %vm2610, %v2546
      %2647 = vst.msk [vmem:[#allocation3 + $0x90] sm:$0xf] %vm2610, %v2548
      %2648 = vst.msk [vmem:[#allocation3 + $0x94] sm:$0xf] %vm2610, %v2550
      %2649 = vst.msk [vmem:[#allocation3 + $0x98] sm:$0xf] %vm2610, %v2552
      %2650 = vst.msk [vmem:[#allocation3 + $0x9c] sm:$0xf] %vm2610, %v2554
      %2651 = vst.msk [vmem:[#allocation3 + $0xa0] sm:$0xf] %vm2610, %v2556
      %2652 = vst.msk [vmem:[#allocation3 + $0xa4] sm:$0xf] %vm2610, %v2558
      %2653 = vst.msk [vmem:[#allocation3 + $0xa8] sm:$0xf] %vm2610, %v2560
      %2654 = vst.msk [vmem:[#allocation3 + $0xac] sm:$0xf] %vm2610, %v2562
      %2655 = vst.msk [vmem:[#allocation3 + $0xb0] sm:$0xf] %vm2610, %v2564
      %v2656 = vld [vmem:[#allocation2 + $0x8] sm:$0xc]
      %v2657 = vld [vmem:[#allocation2 + $0xc] sm:$0xf]
      %v2658 = vld [vmem:[#allocation2 + $0x10] sm:$0xf]
      %v2659 = vld [vmem:[#allocation2 + $0x14] sm:$0xf]
      %v2660 = vld [vmem:[#allocation2 + $0x18] sm:$0xf]
      %v2661 = vld [vmem:[#allocation2 + $0x1c] sm:$0xf]
      %v2662 = vld [vmem:[#allocation2 + $0x20] sm:$0xf]
      %v2663 = vld [vmem:[#allocation2 + $0x24] sm:$0xf]
      %v2664 = vld [vmem:[#allocation2 + $0x28] sm:$0xf]
      %v2665 = vld [vmem:[#allocation2 + $0x2c] sm:$0xf]
      %v2666 = vld [vmem:[#allocation2 + $0x30] sm:$0xf]
      %v2667 = vld [vmem:[#allocation2 + $0x34] sm:$0xf]
      %v2668 = vld [vmem:[#allocation2 + $0x38] sm:$0xf]
      %v2669 = vld [vmem:[#allocation2 + $0x3c] sm:$0xf]
      %v2670 = vld [vmem:[#allocation2 + $0x40] sm:$0xf]
      %v2671 = vld [vmem:[#allocation2 + $0x44] sm:$0xf]
      %v2672 = vld [vmem:[#allocation2 + $0x48] sm:$0xf]
      %v2673 = vld [vmem:[#allocation2 + $0x4c] sm:$0xf]
      %v2674 = vld [vmem:[#allocation2 + $0x50] sm:$0xf]
      %v2675 = vld [vmem:[#allocation2 + $0x54] sm:$0xf]
      %v2676 = vld [vmem:[#allocation2 + $0x58] sm:$0xf]
      %v2677 = vld [vmem:[#allocation2 + $0x5c] sm:$0xf]
      %v2678 = vld [vmem:[#allocation2 + $0x60] sm:$0xf]
      %v2679 = vld [vmem:[#allocation2 + $0x64] sm:$0xf]
      %v2680 = vld [vmem:[#allocation2 + $0x68] sm:$0xf]
      %v2681 = vld [vmem:[#allocation2 + $0x6c] sm:$0xf]
      %v2682 = vld [vmem:[#allocation2 + $0x70] sm:$0xf]
      %v2683 = vld [vmem:[#allocation2 + $0x74] sm:$0xf]
      %v2684 = vld [vmem:[#allocation2 + $0x78] sm:$0xf]
      %v2685 = vld [vmem:[#allocation2 + $0x7c] sm:$0xf]
      %v2686 = vld [vmem:[#allocation2 + $0x80] sm:$0xf]
      %v2687 = vld [vmem:[#allocation2 + $0x84] sm:$0xf]
      %v2688 = vld [vmem:[#allocation2 + $0x88] sm:$0xf]
      %v2689 = vld [vmem:[#allocation2 + $0x8c] sm:$0xf]
      %v2690 = vld [vmem:[#allocation2 + $0x90] sm:$0xf]
      %v2691 = vld [vmem:[#allocation2 + $0x94] sm:$0xf]
      %v2692 = vld [vmem:[#allocation2 + $0x98] sm:$0xf]
      %v2693 = vld [vmem:[#allocation2 + $0x9c] sm:$0xf]
      %v2694 = vld [vmem:[#allocation2 + $0xa0] sm:$0xf]
      %v2695 = vld [vmem:[#allocation2 + $0xa4] sm:$0xf]
      %v2696 = vld [vmem:[#allocation2 + $0xa8] sm:$0xf]
      %v2697 = vld [vmem:[#allocation2 + $0xac] sm:$0xf]
      %v2698 = vld [vmem:[#allocation2 + $0xb0] sm:$0xf]
      %v2699 = vld [vmem:[#allocation2 + $0xb4] sm:$0xf]
      %v2700 = vld [vmem:[#allocation2 + $0xb8] sm:$0xf]
      %v2701 = vld [vmem:[#allocation2 + $0xbc] sm:$0x3]
      %vm2748 = vcmask 1041408
      %vm2749 = vcmask 1045508
      %vm2750 = vmor %vm2748, %vm2749
      %v2751 = vrot.slane %v2656, 6
      %v2752 = vrot.slane %v2751, 4
      %v2753 = vrot.slane %v2657, 6
      %v2754 = vsel %vm2750, %v2752, %v2753
      %v2755 = vrot.slane %v2753, 4
      %v2756 = vrot.slane %v2658, 6
      %v2757 = vsel %vm2750, %v2755, %v2756
      %v2758 = vrot.slane %v2756, 4
      %v2759 = vrot.slane %v2659, 6
      %v2760 = vsel %vm2750, %v2758, %v2759
      %v2761 = vrot.slane %v2759, 4
      %v2762 = vrot.slane %v2660, 6
      %v2763 = vsel %vm2750, %v2761, %v2762
      %v2764 = vrot.slane %v2762, 4
      %v2765 = vrot.slane %v2661, 6
      %v2766 = vsel %vm2750, %v2764, %v2765
      %v2767 = vrot.slane %v2765, 4
      %v2768 = vrot.slane %v2662, 6
      %v2769 = vsel %vm2750, %v2767, %v2768
      %v2770 = vrot.slane %v2768, 4
      %v2771 = vrot.slane %v2663, 6
      %v2772 = vsel %vm2750, %v2770, %v2771
      %v2773 = vrot.slane %v2771, 4
      %v2774 = vrot.slane %v2664, 6
      %v2775 = vsel %vm2750, %v2773, %v2774
      %v2776 = vrot.slane %v2774, 4
      %v2777 = vrot.slane %v2665, 6
      %v2778 = vsel %vm2750, %v2776, %v2777
      %v2779 = vrot.slane %v2777, 4
      %v2780 = vrot.slane %v2666, 6
      %v2781 = vsel %vm2750, %v2779, %v2780
      %v2782 = vrot.slane %v2780, 4
      %v2783 = vrot.slane %v2667, 6
      %v2784 = vsel %vm2750, %v2782, %v2783
      %v2785 = vrot.slane %v2783, 4
      %v2786 = vrot.slane %v2668, 6
      %v2787 = vsel %vm2750, %v2785, %v2786
      %v2788 = vrot.slane %v2786, 4
      %v2789 = vrot.slane %v2669, 6
      %v2790 = vsel %vm2750, %v2788, %v2789
      %v2791 = vrot.slane %v2789, 4
      %v2792 = vrot.slane %v2670, 6
      %v2793 = vsel %vm2750, %v2791, %v2792
      %v2794 = vrot.slane %v2792, 4
      %v2795 = vrot.slane %v2671, 6
      %v2796 = vsel %vm2750, %v2794, %v2795
      %v2797 = vrot.slane %v2795, 4
      %v2798 = vrot.slane %v2672, 6
      %v2799 = vsel %vm2750, %v2797, %v2798
      %v2800 = vrot.slane %v2798, 4
      %v2801 = vrot.slane %v2673, 6
      %v2802 = vsel %vm2750, %v2800, %v2801
      %v2803 = vrot.slane %v2801, 4
      %v2804 = vrot.slane %v2674, 6
      %v2805 = vsel %vm2750, %v2803, %v2804
      %v2806 = vrot.slane %v2804, 4
      %v2807 = vrot.slane %v2675, 6
      %v2808 = vsel %vm2750, %v2806, %v2807
      %v2809 = vrot.slane %v2807, 4
      %v2810 = vrot.slane %v2676, 6
      %v2811 = vsel %vm2750, %v2809, %v2810
      %v2812 = vrot.slane %v2810, 4
      %v2813 = vrot.slane %v2677, 6
      %v2814 = vsel %vm2750, %v2812, %v2813
      %v2815 = vrot.slane %v2813, 4
      %v2816 = vrot.slane %v2678, 6
      %v2817 = vsel %vm2750, %v2815, %v2816
      %v2818 = vrot.slane %v2816, 4
      %v2819 = vrot.slane %v2679, 6
      %v2820 = vsel %vm2750, %v2818, %v2819
      %v2821 = vrot.slane %v2819, 4
      %v2822 = vrot.slane %v2680, 6
      %v2823 = vsel %vm2750, %v2821, %v2822
      %v2824 = vrot.slane %v2822, 4
      %v2825 = vrot.slane %v2681, 6
      %v2826 = vsel %vm2750, %v2824, %v2825
      %v2827 = vrot.slane %v2825, 4
      %v2828 = vrot.slane %v2682, 6
      %v2829 = vsel %vm2750, %v2827, %v2828
      %v2830 = vrot.slane %v2828, 4
      %v2831 = vrot.slane %v2683, 6
      %v2832 = vsel %vm2750, %v2830, %v2831
      %v2833 = vrot.slane %v2831, 4
      %v2834 = vrot.slane %v2684, 6
      %v2835 = vsel %vm2750, %v2833, %v2834
      %v2836 = vrot.slane %v2834, 4
      %v2837 = vrot.slane %v2685, 6
      %v2838 = vsel %vm2750, %v2836, %v2837
      %v2839 = vrot.slane %v2837, 4
      %v2840 = vrot.slane %v2686, 6
      %v2841 = vsel %vm2750, %v2839, %v2840
      %v2842 = vrot.slane %v2840, 4
      %v2843 = vrot.slane %v2687, 6
      %v2844 = vsel %vm2750, %v2842, %v2843
      %v2845 = vrot.slane %v2843, 4
      %v2846 = vrot.slane %v2688, 6
      %v2847 = vsel %vm2750, %v2845, %v2846
      %v2848 = vrot.slane %v2846, 4
      %v2849 = vrot.slane %v2689, 6
      %v2850 = vsel %vm2750, %v2848, %v2849
      %v2851 = vrot.slane %v2849, 4
      %v2852 = vrot.slane %v2690, 6
      %v2853 = vsel %vm2750, %v2851, %v2852
      %v2854 = vrot.slane %v2852, 4
      %v2855 = vrot.slane %v2691, 6
      %v2856 = vsel %vm2750, %v2854, %v2855
      %v2857 = vrot.slane %v2855, 4
      %v2858 = vrot.slane %v2692, 6
      %v2859 = vsel %vm2750, %v2857, %v2858
      %v2860 = vrot.slane %v2858, 4
      %v2861 = vrot.slane %v2693, 6
      %v2862 = vsel %vm2750, %v2860, %v2861
      %v2863 = vrot.slane %v2861, 4
      %v2864 = vrot.slane %v2694, 6
      %v2865 = vsel %vm2750, %v2863, %v2864
      %v2866 = vrot.slane %v2864, 4
      %v2867 = vrot.slane %v2695, 6
      %v2868 = vsel %vm2750, %v2866, %v2867
      %v2869 = vrot.slane %v2867, 4
      %v2870 = vrot.slane %v2696, 6
      %v2871 = vsel %vm2750, %v2869, %v2870
      %v2872 = vrot.slane %v2870, 4
      %v2873 = vrot.slane %v2697, 6
      %v2874 = vsel %vm2750, %v2872, %v2873
      %v2875 = vrot.slane %v2873, 4
      %v2876 = vrot.slane %v2698, 6
      %v2877 = vsel %vm2750, %v2875, %v2876
      %v2878 = vrot.slane %v2876, 4
      %v2879 = vrot.slane %v2699, 6
      %v2880 = vsel %vm2750, %v2878, %v2879
      %v2881 = vrot.slane %v2879, 4
      %v2882 = vrot.slane %v2700, 6
      %v2883 = vsel %vm2750, %v2881, %v2882
      %v2884 = vrot.slane %v2882, 4
      %v2885 = vrot.slane %v2701, 6
      %v2886 = vsel %vm2750, %v2884, %v2885
      %2887 = vrot.lane.b32.xlu0 %v2754, 20
      %v2888 = vpop.permute.xlu0 %2887
      %2889 = vrot.lane.b32.xlu0 %v2757, 20
      %v2890 = vpop.permute.xlu0 %2889
      %2891 = vrot.lane.b32.xlu0 %v2760, 20
      %v2892 = vpop.permute.xlu0 %2891
      %2893 = vrot.lane.b32.xlu0 %v2763, 20
      %v2894 = vpop.permute.xlu0 %2893
      %2895 = vrot.lane.b32.xlu0 %v2766, 20
      %v2896 = vpop.permute.xlu0 %2895
      %2897 = vrot.lane.b32.xlu0 %v2769, 20
      %v2898 = vpop.permute.xlu0 %2897
      %2899 = vrot.lane.b32.xlu0 %v2772, 20
      %v2900 = vpop.permute.xlu0 %2899
      %2901 = vrot.lane.b32.xlu0 %v2775, 20
      %v2902 = vpop.permute.xlu0 %2901
      %2903 = vrot.lane.b32.xlu0 %v2778, 20
      %v2904 = vpop.permute.xlu0 %2903
      %2905 = vrot.lane.b32.xlu0 %v2781, 20
      %v2906 = vpop.permute.xlu0 %2905
      %2907 = vrot.lane.b32.xlu0 %v2784, 20
      %v2908 = vpop.permute.xlu0 %2907
      %2909 = vrot.lane.b32.xlu0 %v2787, 20
      %v2910 = vpop.permute.xlu0 %2909
      %2911 = vrot.lane.b32.xlu0 %v2790, 20
      %v2912 = vpop.permute.xlu0 %2911
      %2913 = vrot.lane.b32.xlu0 %v2793, 20
      %v2914 = vpop.permute.xlu0 %2913
      %2915 = vrot.lane.b32.xlu0 %v2796, 20
      %v2916 = vpop.permute.xlu0 %2915
      %2917 = vrot.lane.b32.xlu0 %v2799, 20
      %v2918 = vpop.permute.xlu0 %2917
      %2919 = vrot.lane.b32.xlu0 %v2802, 20
      %v2920 = vpop.permute.xlu0 %2919
      %2921 = vrot.lane.b32.xlu0 %v2805, 20
      %v2922 = vpop.permute.xlu0 %2921
      %2923 = vrot.lane.b32.xlu0 %v2808, 20
      %v2924 = vpop.permute.xlu0 %2923
      %2925 = vrot.lane.b32.xlu0 %v2811, 20
      %v2926 = vpop.permute.xlu0 %2925
      %2927 = vrot.lane.b32.xlu0 %v2814, 20
      %v2928 = vpop.permute.xlu0 %2927
      %2929 = vrot.lane.b32.xlu0 %v2817, 20
      %v2930 = vpop.permute.xlu0 %2929
      %2931 = vrot.lane.b32.xlu0 %v2820, 20
      %v2932 = vpop.permute.xlu0 %2931
      %2933 = vrot.lane.b32.xlu0 %v2823, 20
      %v2934 = vpop.permute.xlu0 %2933
      %2935 = vrot.lane.b32.xlu0 %v2826, 20
      %v2936 = vpop.permute.xlu0 %2935
      %2937 = vrot.lane.b32.xlu0 %v2829, 20
      %v2938 = vpop.permute.xlu0 %2937
      %2939 = vrot.lane.b32.xlu0 %v2832, 20
      %v2940 = vpop.permute.xlu0 %2939
      %2941 = vrot.lane.b32.xlu0 %v2835, 20
      %v2942 = vpop.permute.xlu0 %2941
      %2943 = vrot.lane.b32.xlu0 %v2838, 20
      %v2944 = vpop.permute.xlu0 %2943
      %2945 = vrot.lane.b32.xlu0 %v2841, 20
      %v2946 = vpop.permute.xlu0 %2945
      %2947 = vrot.lane.b32.xlu0 %v2844, 20
      %v2948 = vpop.permute.xlu0 %2947
      %2949 = vrot.lane.b32.xlu0 %v2847, 20
      %v2950 = vpop.permute.xlu0 %2949
      %2951 = vrot.lane.b32.xlu0 %v2850, 20
      %v2952 = vpop.permute.xlu0 %2951
      %2953 = vrot.lane.b32.xlu0 %v2853, 20
      %v2954 = vpop.permute.xlu0 %2953
      %2955 = vrot.lane.b32.xlu0 %v2856, 20
      %v2956 = vpop.permute.xlu0 %2955
      %2957 = vrot.lane.b32.xlu0 %v2859, 20
      %v2958 = vpop.permute.xlu0 %2957
      %2959 = vrot.lane.b32.xlu0 %v2862, 20
      %v2960 = vpop.permute.xlu0 %2959
      %2961 = vrot.lane.b32.xlu0 %v2865, 20
      %v2962 = vpop.permute.xlu0 %2961
      %2963 = vrot.lane.b32.xlu0 %v2868, 20
      %v2964 = vpop.permute.xlu0 %2963
      %2965 = vrot.lane.b32.xlu0 %v2871, 20
      %v2966 = vpop.permute.xlu0 %2965
      %2967 = vrot.lane.b32.xlu0 %v2874, 20
      %v2968 = vpop.permute.xlu0 %2967
      %2969 = vrot.lane.b32.xlu0 %v2877, 20
      %v2970 = vpop.permute.xlu0 %2969
      %2971 = vrot.lane.b32.xlu0 %v2880, 20
      %v2972 = vpop.permute.xlu0 %2971
      %2973 = vrot.lane.b32.xlu0 %v2883, 20
      %v2974 = vpop.permute.xlu0 %2973
      %2975 = vrot.lane.b32.xlu0 %v2886, 20
      %v2976 = vpop.permute.xlu0 %2975
      %vm3022 = vcmask 191648
      %3023 = vst.msk [vmem:[#allocation3] sm:$0xf] %vm3022, %v2888
      %3024 = vst.msk [vmem:[#allocation3 + $0x4] sm:$0xf] %vm3022, %v2890
      %3025 = vst.msk [vmem:[#allocation3 + $0x8] sm:$0xf] %vm3022, %v2892
      %3026 = vst.msk [vmem:[#allocation3 + $0xc] sm:$0xf] %vm3022, %v2894
      %3027 = vst.msk [vmem:[#allocation3 + $0x10] sm:$0xf] %vm3022, %v2896
      %3028 = vst.msk [vmem:[#allocation3 + $0x14] sm:$0xf] %vm3022, %v2898
      %3029 = vst.msk [vmem:[#allocation3 + $0x18] sm:$0xf] %vm3022, %v2900
      %3030 = vst.msk [vmem:[#allocation3 + $0x1c] sm:$0xf] %vm3022, %v2902
      %3031 = vst.msk [vmem:[#allocation3 + $0x20] sm:$0xf] %vm3022, %v2904
      %3032 = vst.msk [vmem:[#allocation3 + $0x24] sm:$0xf] %vm3022, %v2906
      %3033 = vst.msk [vmem:[#allocation3 + $0x28] sm:$0xf] %vm3022, %v2908
      %3034 = vst.msk [vmem:[#allocation3 + $0x2c] sm:$0xf] %vm3022, %v2910
      %3035 = vst.msk [vmem:[#allocation3 + $0x30] sm:$0xf] %vm3022, %v2912
      %3036 = vst.msk [vmem:[#allocation3 + $0x34] sm:$0xf] %vm3022, %v2914
      %3037 = vst.msk [vmem:[#allocation3 + $0x38] sm:$0xf] %vm3022, %v2916
      %3038 = vst.msk [vmem:[#allocation3 + $0x3c] sm:$0xf] %vm3022, %v2918
      %3039 = vst.msk [vmem:[#allocation3 + $0x40] sm:$0xf] %vm3022, %v2920
      %3040 = vst.msk [vmem:[#allocation3 + $0x44] sm:$0xf] %vm3022, %v2922
      %3041 = vst.msk [vmem:[#allocation3 + $0x48] sm:$0xf] %vm3022, %v2924
      %3042 = vst.msk [vmem:[#allocation3 + $0x4c] sm:$0xf] %vm3022, %v2926
      %3043 = vst.msk [vmem:[#allocation3 + $0x50] sm:$0xf] %vm3022, %v2928
      %3044 = vst.msk [vmem:[#allocation3 + $0x54] sm:$0xf] %vm3022, %v2930
      %3045 = vst.msk [vmem:[#allocation3 + $0x58] sm:$0xf] %vm3022, %v2932
      %3046 = vst.msk [vmem:[#allocation3 + $0x5c] sm:$0xf] %vm3022, %v2934
      %3047 = vst.msk [vmem:[#allocation3 + $0x60] sm:$0xf] %vm3022, %v2936
      %3048 = vst.msk [vmem:[#allocation3 + $0x64] sm:$0xf] %vm3022, %v2938
      %3049 = vst.msk [vmem:[#allocation3 + $0x68] sm:$0xf] %vm3022, %v2940
      %3050 = vst.msk [vmem:[#allocation3 + $0x6c] sm:$0xf] %vm3022, %v2942
      %3051 = vst.msk [vmem:[#allocation3 + $0x70] sm:$0xf] %vm3022, %v2944
      %3052 = vst.msk [vmem:[#allocation3 + $0x74] sm:$0xf] %vm3022, %v2946
      %3053 = vst.msk [vmem:[#allocation3 + $0x78] sm:$0xf] %vm3022, %v2948
      %3054 = vst.msk [vmem:[#allocation3 + $0x7c] sm:$0xf] %vm3022, %v2950
      %3055 = vst.msk [vmem:[#allocation3 + $0x80] sm:$0xf] %vm3022, %v2952
      %3056 = vst.msk [vmem:[#allocation3 + $0x84] sm:$0xf] %vm3022, %v2954
      %3057 = vst.msk [vmem:[#allocation3 + $0x88] sm:$0xf] %vm3022, %v2956
      %3058 = vst.msk [vmem:[#allocation3 + $0x8c] sm:$0xf] %vm3022, %v2958
      %3059 = vst.msk [vmem:[#allocation3 + $0x90] sm:$0xf] %vm3022, %v2960
      %3060 = vst.msk [vmem:[#allocation3 + $0x94] sm:$0xf] %vm3022, %v2962
      %3061 = vst.msk [vmem:[#allocation3 + $0x98] sm:$0xf] %vm3022, %v2964
      %3062 = vst.msk [vmem:[#allocation3 + $0x9c] sm:$0xf] %vm3022, %v2966
      %3063 = vst.msk [vmem:[#allocation3 + $0xa0] sm:$0xf] %vm3022, %v2968
      %3064 = vst.msk [vmem:[#allocation3 + $0xa4] sm:$0xf] %vm3022, %v2970
      %3065 = vst.msk [vmem:[#allocation3 + $0xa8] sm:$0xf] %vm3022, %v2972
      %3066 = vst.msk [vmem:[#allocation3 + $0xac] sm:$0xf] %vm3022, %v2974
      %3067 = vst.msk [vmem:[#allocation3 + $0xb0] sm:$0xf] %vm3022, %v2976
      %v3068 = vld [vmem:[#allocation2 + $0x10] sm:$0xc]
      %v3069 = vld [vmem:[#allocation2 + $0x14] sm:$0xf]
      %v3070 = vld [vmem:[#allocation2 + $0x18] sm:$0xf]
      %v3071 = vld [vmem:[#allocation2 + $0x1c] sm:$0xf]
      %v3072 = vld [vmem:[#allocation2 + $0x20] sm:$0xf]
      %v3073 = vld [vmem:[#allocation2 + $0x24] sm:$0xf]
      %v3074 = vld [vmem:[#allocation2 + $0x28] sm:$0xf]
      %v3075 = vld [vmem:[#allocation2 + $0x2c] sm:$0xf]
      %v3076 = vld [vmem:[#allocation2 + $0x30] sm:$0xf]
      %v3077 = vld [vmem:[#allocation2 + $0x34] sm:$0xf]
      %v3078 = vld [vmem:[#allocation2 + $0x38] sm:$0xf]
      %v3079 = vld [vmem:[#allocation2 + $0x3c] sm:$0xf]
      %v3080 = vld [vmem:[#allocation2 + $0x40] sm:$0xf]
      %v3081 = vld [vmem:[#allocation2 + $0x44] sm:$0xf]
      %v3082 = vld [vmem:[#allocation2 + $0x48] sm:$0xf]
      %v3083 = vld [vmem:[#allocation2 + $0x4c] sm:$0xf]
      %v3084 = vld [vmem:[#allocation2 + $0x50] sm:$0xf]
      %v3085 = vld [vmem:[#allocation2 + $0x54] sm:$0xf]
      %v3086 = vld [vmem:[#allocation2 + $0x58] sm:$0xf]
      %v3087 = vld [vmem:[#allocation2 + $0x5c] sm:$0xf]
      %v3088 = vld [vmem:[#allocation2 + $0x60] sm:$0xf]
      %v3089 = vld [vmem:[#allocation2 + $0x64] sm:$0xf]
      %v3090 = vld [vmem:[#allocation2 + $0x68] sm:$0xf]
      %v3091 = vld [vmem:[#allocation2 + $0x6c] sm:$0xf]
      %v3092 = vld [vmem:[#allocation2 + $0x70] sm:$0xf]
      %v3093 = vld [vmem:[#allocation2 + $0x74] sm:$0xf]
      %v3094 = vld [vmem:[#allocation2 + $0x78] sm:$0xf]
      %v3095 = vld [vmem:[#allocation2 + $0x7c] sm:$0xf]
      %v3096 = vld [vmem:[#allocation2 + $0x80] sm:$0xf]
      %v3097 = vld [vmem:[#allocation2 + $0x84] sm:$0xf]
      %v3098 = vld [vmem:[#allocation2 + $0x88] sm:$0xf]
      %v3099 = vld [vmem:[#allocation2 + $0x8c] sm:$0xf]
      %v3100 = vld [vmem:[#allocation2 + $0x90] sm:$0xf]
      %v3101 = vld [vmem:[#allocation2 + $0x94] sm:$0xf]
      %v3102 = vld [vmem:[#allocation2 + $0x98] sm:$0xf]
      %v3103 = vld [vmem:[#allocation2 + $0x9c] sm:$0xf]
      %v3104 = vld [vmem:[#allocation2 + $0xa0] sm:$0xf]
      %v3105 = vld [vmem:[#allocation2 + $0xa4] sm:$0xf]
      %v3106 = vld [vmem:[#allocation2 + $0xa8] sm:$0xf]
      %v3107 = vld [vmem:[#allocation2 + $0xac] sm:$0xf]
      %v3108 = vld [vmem:[#allocation2 + $0xb0] sm:$0xf]
      %v3109 = vld [vmem:[#allocation2 + $0xb4] sm:$0xf]
      %v3110 = vld [vmem:[#allocation2 + $0xb8] sm:$0xf]
      %v3111 = vld [vmem:[#allocation2 + $0xbc] sm:$0xf]
      %v3112 = vld [vmem:[#allocation2 + $0xc0] sm:$0xf]
      %v3113 = vld [vmem:[#allocation2 + $0xc4] sm:$0x3]
      %v3160 = vrot.slane %v3068, 6
      %v3161 = vrot.slane %v3160, 4
      %v3162 = vrot.slane %v3069, 6
      %v3163 = vsel %vm2750, %v3161, %v3162
      %v3164 = vrot.slane %v3162, 4
      %v3165 = vrot.slane %v3070, 6
      %v3166 = vsel %vm2750, %v3164, %v3165
      %v3167 = vrot.slane %v3165, 4
      %v3168 = vrot.slane %v3071, 6
      %v3169 = vsel %vm2750, %v3167, %v3168
      %v3170 = vrot.slane %v3168, 4
      %v3171 = vrot.slane %v3072, 6
      %v3172 = vsel %vm2750, %v3170, %v3171
      %v3173 = vrot.slane %v3171, 4
      %v3174 = vrot.slane %v3073, 6
      %v3175 = vsel %vm2750, %v3173, %v3174
      %v3176 = vrot.slane %v3174, 4
      %v3177 = vrot.slane %v3074, 6
      %v3178 = vsel %vm2750, %v3176, %v3177
      %v3179 = vrot.slane %v3177, 4
      %v3180 = vrot.slane %v3075, 6
      %v3181 = vsel %vm2750, %v3179, %v3180
      %v3182 = vrot.slane %v3180, 4
      %v3183 = vrot.slane %v3076, 6
      %v3184 = vsel %vm2750, %v3182, %v3183
      %v3185 = vrot.slane %v3183, 4
      %v3186 = vrot.slane %v3077, 6
      %v3187 = vsel %vm2750, %v3185, %v3186
      %v3188 = vrot.slane %v3186, 4
      %v3189 = vrot.slane %v3078, 6
      %v3190 = vsel %vm2750, %v3188, %v3189
      %v3191 = vrot.slane %v3189, 4
      %v3192 = vrot.slane %v3079, 6
      %v3193 = vsel %vm2750, %v3191, %v3192
      %v3194 = vrot.slane %v3192, 4
      %v3195 = vrot.slane %v3080, 6
      %v3196 = vsel %vm2750, %v3194, %v3195
      %v3197 = vrot.slane %v3195, 4
      %v3198 = vrot.slane %v3081, 6
      %v3199 = vsel %vm2750, %v3197, %v3198
      %v3200 = vrot.slane %v3198, 4
      %v3201 = vrot.slane %v3082, 6
      %v3202 = vsel %vm2750, %v3200, %v3201
      %v3203 = vrot.slane %v3201, 4
      %v3204 = vrot.slane %v3083, 6
      %v3205 = vsel %vm2750, %v3203, %v3204
      %v3206 = vrot.slane %v3204, 4
      %v3207 = vrot.slane %v3084, 6
      %v3208 = vsel %vm2750, %v3206, %v3207
      %v3209 = vrot.slane %v3207, 4
      %v3210 = vrot.slane %v3085, 6
      %v3211 = vsel %vm2750, %v3209, %v3210
      %v3212 = vrot.slane %v3210, 4
      %v3213 = vrot.slane %v3086, 6
      %v3214 = vsel %vm2750, %v3212, %v3213
      %v3215 = vrot.slane %v3213, 4
      %v3216 = vrot.slane %v3087, 6
      %v3217 = vsel %vm2750, %v3215, %v3216
      %v3218 = vrot.slane %v3216, 4
      %v3219 = vrot.slane %v3088, 6
      %v3220 = vsel %vm2750, %v3218, %v3219
      %v3221 = vrot.slane %v3219, 4
      %v3222 = vrot.slane %v3089, 6
      %v3223 = vsel %vm2750, %v3221, %v3222
      %v3224 = vrot.slane %v3222, 4
      %v3225 = vrot.slane %v3090, 6
      %v3226 = vsel %vm2750, %v3224, %v3225
      %v3227 = vrot.slane %v3225, 4
      %v3228 = vrot.slane %v3091, 6
      %v3229 = vsel %vm2750, %v3227, %v3228
      %v3230 = vrot.slane %v3228, 4
      %v3231 = vrot.slane %v3092, 6
      %v3232 = vsel %vm2750, %v3230, %v3231
      %v3233 = vrot.slane %v3231, 4
      %v3234 = vrot.slane %v3093, 6
      %v3235 = vsel %vm2750, %v3233, %v3234
      %v3236 = vrot.slane %v3234, 4
      %v3237 = vrot.slane %v3094, 6
      %v3238 = vsel %vm2750, %v3236, %v3237
      %v3239 = vrot.slane %v3237, 4
      %v3240 = vrot.slane %v3095, 6
      %v3241 = vsel %vm2750, %v3239, %v3240
      %v3242 = vrot.slane %v3240, 4
      %v3243 = vrot.slane %v3096, 6
      %v3244 = vsel %vm2750, %v3242, %v3243
      %v3245 = vrot.slane %v3243, 4
      %v3246 = vrot.slane %v3097, 6
      %v3247 = vsel %vm2750, %v3245, %v3246
      %v3248 = vrot.slane %v3246, 4
      %v3249 = vrot.slane %v3098, 6
      %v3250 = vsel %vm2750, %v3248, %v3249
      %v3251 = vrot.slane %v3249, 4
      %v3252 = vrot.slane %v3099, 6
      %v3253 = vsel %vm2750, %v3251, %v3252
      %v3254 = vrot.slane %v3252, 4
      %v3255 = vrot.slane %v3100, 6
      %v3256 = vsel %vm2750, %v3254, %v3255
      %v3257 = vrot.slane %v3255, 4
      %v3258 = vrot.slane %v3101, 6
      %v3259 = vsel %vm2750, %v3257, %v3258
      %v3260 = vrot.slane %v3258, 4
      %v3261 = vrot.slane %v3102, 6
      %v3262 = vsel %vm2750, %v3260, %v3261
      %v3263 = vrot.slane %v3261, 4
      %v3264 = vrot.slane %v3103, 6
      %v3265 = vsel %vm2750, %v3263, %v3264
      %v3266 = vrot.slane %v3264, 4
      %v3267 = vrot.slane %v3104, 6
      %v3268 = vsel %vm2750, %v3266, %v3267
      %v3269 = vrot.slane %v3267, 4
      %v3270 = vrot.slane %v3105, 6
      %v3271 = vsel %vm2750, %v3269, %v3270
      %v3272 = vrot.slane %v3270, 4
      %v3273 = vrot.slane %v3106, 6
      %v3274 = vsel %vm2750, %v3272, %v3273
      %v3275 = vrot.slane %v3273, 4
      %v3276 = vrot.slane %v3107, 6
      %v3277 = vsel %vm2750, %v3275, %v3276
      %v3278 = vrot.slane %v3276, 4
      %v3279 = vrot.slane %v3108, 6
      %v3280 = vsel %vm2750, %v3278, %v3279
      %v3281 = vrot.slane %v3279, 4
      %v3282 = vrot.slane %v3109, 6
      %v3283 = vsel %vm2750, %v3281, %v3282
      %v3284 = vrot.slane %v3282, 4
      %v3285 = vrot.slane %v3110, 6
      %v3286 = vsel %vm2750, %v3284, %v3285
      %v3287 = vrot.slane %v3285, 4
      %v3288 = vrot.slane %v3111, 6
      %v3289 = vsel %vm2750, %v3287, %v3288
      %v3290 = vrot.slane %v3288, 4
      %v3291 = vrot.slane %v3112, 6
      %v3292 = vsel %vm2750, %v3290, %v3291
      %v3293 = vrot.slane %v3291, 4
      %v3294 = vrot.slane %v3113, 6
      %v3295 = vsel %vm2750, %v3293, %v3294
      %3296 = vrot.lane.b32.xlu0 %v3163, 24
      %v3297 = vpop.permute.xlu0 %3296
      %3298 = vrot.lane.b32.xlu0 %v3166, 24
      %v3299 = vpop.permute.xlu0 %3298
      %3300 = vrot.lane.b32.xlu0 %v3169, 24
      %v3301 = vpop.permute.xlu0 %3300
      %3302 = vrot.lane.b32.xlu0 %v3172, 24
      %v3303 = vpop.permute.xlu0 %3302
      %3304 = vrot.lane.b32.xlu0 %v3175, 24
      %v3305 = vpop.permute.xlu0 %3304
      %3306 = vrot.lane.b32.xlu0 %v3178, 24
      %v3307 = vpop.permute.xlu0 %3306
      %3308 = vrot.lane.b32.xlu0 %v3181, 24
      %v3309 = vpop.permute.xlu0 %3308
      %3310 = vrot.lane.b32.xlu0 %v3184, 24
      %v3311 = vpop.permute.xlu0 %3310
      %3312 = vrot.lane.b32.xlu0 %v3187, 24
      %v3313 = vpop.permute.xlu0 %3312
      %3314 = vrot.lane.b32.xlu0 %v3190, 24
      %v3315 = vpop.permute.xlu0 %3314
      %3316 = vrot.lane.b32.xlu0 %v3193, 24
      %v3317 = vpop.permute.xlu0 %3316
      %3318 = vrot.lane.b32.xlu0 %v3196, 24
      %v3319 = vpop.permute.xlu0 %3318
      %3320 = vrot.lane.b32.xlu0 %v3199, 24
      %v3321 = vpop.permute.xlu0 %3320
      %3322 = vrot.lane.b32.xlu0 %v3202, 24
      %v3323 = vpop.permute.xlu0 %3322
      %3324 = vrot.lane.b32.xlu0 %v3205, 24
      %v3325 = vpop.permute.xlu0 %3324
      %3326 = vrot.lane.b32.xlu0 %v3208, 24
      %v3327 = vpop.permute.xlu0 %3326
      %3328 = vrot.lane.b32.xlu0 %v3211, 24
      %v3329 = vpop.permute.xlu0 %3328
      %3330 = vrot.lane.b32.xlu0 %v3214, 24
      %v3331 = vpop.permute.xlu0 %3330
      %3332 = vrot.lane.b32.xlu0 %v3217, 24
      %v3333 = vpop.permute.xlu0 %3332
      %3334 = vrot.lane.b32.xlu0 %v3220, 24
      %v3335 = vpop.permute.xlu0 %3334
      %3336 = vrot.lane.b32.xlu0 %v3223, 24
      %v3337 = vpop.permute.xlu0 %3336
      %3338 = vrot.lane.b32.xlu0 %v3226, 24
      %v3339 = vpop.permute.xlu0 %3338
      %3340 = vrot.lane.b32.xlu0 %v3229, 24
      %v3341 = vpop.permute.xlu0 %3340
      %3342 = vrot.lane.b32.xlu0 %v3232, 24
      %v3343 = vpop.permute.xlu0 %3342
      %3344 = vrot.lane.b32.xlu0 %v3235, 24
      %v3345 = vpop.permute.xlu0 %3344
      %3346 = vrot.lane.b32.xlu0 %v3238, 24
      %v3347 = vpop.permute.xlu0 %3346
      %3348 = vrot.lane.b32.xlu0 %v3241, 24
      %v3349 = vpop.permute.xlu0 %3348
      %3350 = vrot.lane.b32.xlu0 %v3244, 24
      %v3351 = vpop.permute.xlu0 %3350
      %3352 = vrot.lane.b32.xlu0 %v3247, 24
      %v3353 = vpop.permute.xlu0 %3352
      %3354 = vrot.lane.b32.xlu0 %v3250, 24
      %v3355 = vpop.permute.xlu0 %3354
      %3356 = vrot.lane.b32.xlu0 %v3253, 24
      %v3357 = vpop.permute.xlu0 %3356
      %3358 = vrot.lane.b32.xlu0 %v3256, 24
      %v3359 = vpop.permute.xlu0 %3358
      %3360 = vrot.lane.b32.xlu0 %v3259, 24
      %v3361 = vpop.permute.xlu0 %3360
      %3362 = vrot.lane.b32.xlu0 %v3262, 24
      %v3363 = vpop.permute.xlu0 %3362
      %3364 = vrot.lane.b32.xlu0 %v3265, 24
      %v3365 = vpop.permute.xlu0 %3364
      %3366 = vrot.lane.b32.xlu0 %v3268, 24
      %v3367 = vpop.permute.xlu0 %3366
      %3368 = vrot.lane.b32.xlu0 %v3271, 24
      %v3369 = vpop.permute.xlu0 %3368
      %3370 = vrot.lane.b32.xlu0 %v3274, 24
      %v3371 = vpop.permute.xlu0 %3370
      %3372 = vrot.lane.b32.xlu0 %v3277, 24
      %v3373 = vpop.permute.xlu0 %3372
      %3374 = vrot.lane.b32.xlu0 %v3280, 24
      %v3375 = vpop.permute.xlu0 %3374
      %3376 = vrot.lane.b32.xlu0 %v3283, 24
      %v3377 = vpop.permute.xlu0 %3376
      %3378 = vrot.lane.b32.xlu0 %v3286, 24
      %v3379 = vpop.permute.xlu0 %3378
      %3380 = vrot.lane.b32.xlu0 %v3289, 24
      %v3381 = vpop.permute.xlu0 %3380
      %3382 = vrot.lane.b32.xlu0 %v3292, 24
      %v3383 = vpop.permute.xlu0 %3382
      %3384 = vrot.lane.b32.xlu0 %v3295, 24
      %v3385 = vpop.permute.xlu0 %3384
      %vm3431 = vcmask 224448
      %3432 = vst.msk [vmem:[#allocation3] sm:$0xf] %vm3431, %v3297
      %3433 = vst.msk [vmem:[#allocation3 + $0x4] sm:$0xf] %vm3431, %v3299
      %3434 = vst.msk [vmem:[#allocation3 + $0x8] sm:$0xf] %vm3431, %v3301
      %3435 = vst.msk [vmem:[#allocation3 + $0xc] sm:$0xf] %vm3431, %v3303
      %3436 = vst.msk [vmem:[#allocation3 + $0x10] sm:$0xf] %vm3431, %v3305
      %3437 = vst.msk [vmem:[#allocation3 + $0x14] sm:$0xf] %vm3431, %v3307
      %3438 = vst.msk [vmem:[#allocation3 + $0x18] sm:$0xf] %vm3431, %v3309
      %3439 = vst.msk [vmem:[#allocation3 + $0x1c] sm:$0xf] %vm3431, %v3311
      %3440 = vst.msk [vmem:[#allocation3 + $0x20] sm:$0xf] %vm3431, %v3313
      %3441 = vst.msk [vmem:[#allocation3 + $0x24] sm:$0xf] %vm3431, %v3315
      %3442 = vst.msk [vmem:[#allocation3 + $0x28] sm:$0xf] %vm3431, %v3317
      %3443 = vst.msk [vmem:[#allocation3 + $0x2c] sm:$0xf] %vm3431, %v3319
      %3444 = vst.msk [vmem:[#allocation3 + $0x30] sm:$0xf] %vm3431, %v3321
      %3445 = vst.msk [vmem:[#allocation3 + $0x34] sm:$0xf] %vm3431, %v3323
      %3446 = vst.msk [vmem:[#allocation3 + $0x38] sm:$0xf] %vm3431, %v3325
      %3447 = vst.msk [vmem:[#allocation3 + $0x3c] sm:$0xf] %vm3431, %v3327
      %3448 = vst.msk [vmem:[#allocation3 + $0x40] sm:$0xf] %vm3431, %v3329
      %3449 = vst.msk [vmem:[#allocation3 + $0x44] sm:$0xf] %vm3431, %v3331
      %3450 = vst.msk [vmem:[#allocation3 + $0x48] sm:$0xf] %vm3431, %v3333
      %3451 = vst.msk [vmem:[#allocation3 + $0x4c] sm:$0xf] %vm3431, %v3335
      %3452 = vst.msk [vmem:[#allocation3 + $0x50] sm:$0xf] %vm3431, %v3337
      %3453 = vst.msk [vmem:[#allocation3 + $0x54] sm:$0xf] %vm3431, %v3339
      %3454 = vst.msk [vmem:[#allocation3 + $0x58] sm:$0xf] %vm3431, %v3341
      %3455 = vst.msk [vmem:[#allocation3 + $0x5c] sm:$0xf] %vm3431, %v3343
      %3456 = vst.msk [vmem:[#allocation3 + $0x60] sm:$0xf] %vm3431, %v3345
      %3457 = vst.msk [vmem:[#allocation3 + $0x64] sm:$0xf] %vm3431, %v3347
      %3458 = vst.msk [vmem:[#allocation3 + $0x68] sm:$0xf] %vm3431, %v3349
      %3459 = vst.msk [vmem:[#allocation3 + $0x6c] sm:$0xf] %vm3431, %v3351
      %3460 = vst.msk [vmem:[#allocation3 + $0x70] sm:$0xf] %vm3431, %v3353
      %3461 = vst.msk [vmem:[#allocation3 + $0x74] sm:$0xf] %vm3431, %v3355
      %3462 = vst.msk [vmem:[#allocation3 + $0x78] sm:$0xf] %vm3431, %v3357
      %3463 = vst.msk [vmem:[#allocation3 + $0x7c] sm:$0xf] %vm3431, %v3359
      %3464 = vst.msk [vmem:[#allocation3 + $0x80] sm:$0xf] %vm3431, %v3361
      %3465 = vst.msk [vmem:[#allocation3 + $0x84] sm:$0xf] %vm3431, %v3363
      %3466 = vst.msk [vmem:[#allocation3 + $0x88] sm:$0xf] %vm3431, %v3365
      %3467 = vst.msk [vmem:[#allocation3 + $0x8c] sm:$0xf] %vm3431, %v3367
      %3468 = vst.msk [vmem:[#allocation3 + $0x90] sm:$0xf] %vm3431, %v3369
      %3469 = vst.msk [vmem:[#allocation3 + $0x94] sm:$0xf] %vm3431, %v3371
      %3470 = vst.msk [vmem:[#allocation3 + $0x98] sm:$0xf] %vm3431, %v3373
      %3471 = vst.msk [vmem:[#allocation3 + $0x9c] sm:$0xf] %vm3431, %v3375
      %3472 = vst.msk [vmem:[#allocation3 + $0xa0] sm:$0xf] %vm3431, %v3377
      %3473 = vst.msk [vmem:[#allocation3 + $0xa4] sm:$0xf] %vm3431, %v3379
      %3474 = vst.msk [vmem:[#allocation3 + $0xa8] sm:$0xf] %vm3431, %v3381
      %3475 = vst.msk [vmem:[#allocation3 + $0xac] sm:$0xf] %vm3431, %v3383
      %3476 = vst.msk [vmem:[#allocation3 + $0xb0] sm:$0xf] %vm3431, %v3385
      %v3477 = vld [vmem:[#allocation2 + $0x10] sm:$0xc]
      %v3478 = vld [vmem:[#allocation2 + $0x14] sm:$0xf]
      %v3479 = vld [vmem:[#allocation2 + $0x18] sm:$0xf]
      %v3480 = vld [vmem:[#allocation2 + $0x1c] sm:$0xf]
      %v3481 = vld [vmem:[#allocation2 + $0x20] sm:$0xf]
      %v3482 = vld [vmem:[#allocation2 + $0x24] sm:$0xf]
      %v3483 = vld [vmem:[#allocation2 + $0x28] sm:$0xf]
      %v3484 = vld [vmem:[#allocation2 + $0x2c] sm:$0xf]
      %v3485 = vld [vmem:[#allocation2 + $0x30] sm:$0xf]
      %v3486 = vld [vmem:[#allocation2 + $0x34] sm:$0xf]
      %v3487 = vld [vmem:[#allocation2 + $0x38] sm:$0xf]
      %v3488 = vld [vmem:[#allocation2 + $0x3c] sm:$0xf]
      %v3489 = vld [vmem:[#allocation2 + $0x40] sm:$0xf]
      %v3490 = vld [vmem:[#allocation2 + $0x44] sm:$0xf]
      %v3491 = vld [vmem:[#allocation2 + $0x48] sm:$0xf]
      %v3492 = vld [vmem:[#allocation2 + $0x4c] sm:$0xf]
      %v3493 = vld [vmem:[#allocation2 + $0x50] sm:$0xf]
      %v3494 = vld [vmem:[#allocation2 + $0x54] sm:$0xf]
      %v3495 = vld [vmem:[#allocation2 + $0x58] sm:$0xf]
      %v3496 = vld [vmem:[#allocation2 + $0x5c] sm:$0xf]
      %v3497 = vld [vmem:[#allocation2 + $0x60] sm:$0xf]
      %v3498 = vld [vmem:[#allocation2 + $0x64] sm:$0xf]
      %v3499 = vld [vmem:[#allocation2 + $0x68] sm:$0xf]
      %v3500 = vld [vmem:[#allocation2 + $0x6c] sm:$0xf]
      %v3501 = vld [vmem:[#allocation2 + $0x70] sm:$0xf]
      %v3502 = vld [vmem:[#allocation2 + $0x74] sm:$0xf]
      %v3503 = vld [vmem:[#allocation2 + $0x78] sm:$0xf]
      %v3504 = vld [vmem:[#allocation2 + $0x7c] sm:$0xf]
      %v3505 = vld [vmem:[#allocation2 + $0x80] sm:$0xf]
      %v3506 = vld [vmem:[#allocation2 + $0x84] sm:$0xf]
      %v3507 = vld [vmem:[#allocation2 + $0x88] sm:$0xf]
      %v3508 = vld [vmem:[#allocation2 + $0x8c] sm:$0xf]
      %v3509 = vld [vmem:[#allocation2 + $0x90] sm:$0xf]
      %v3510 = vld [vmem:[#allocation2 + $0x94] sm:$0xf]
      %v3511 = vld [vmem:[#allocation2 + $0x98] sm:$0xf]
      %v3512 = vld [vmem:[#allocation2 + $0x9c] sm:$0xf]
      %v3513 = vld [vmem:[#allocation2 + $0xa0] sm:$0xf]
      %v3514 = vld [vmem:[#allocation2 + $0xa4] sm:$0xf]
      %v3515 = vld [vmem:[#allocation2 + $0xa8] sm:$0xf]
      %v3516 = vld [vmem:[#allocation2 + $0xac] sm:$0xf]
      %v3517 = vld [vmem:[#allocation2 + $0xb0] sm:$0xf]
      %v3518 = vld [vmem:[#allocation2 + $0xb4] sm:$0xf]
      %v3519 = vld [vmem:[#allocation2 + $0xb8] sm:$0xf]
      %v3520 = vld [vmem:[#allocation2 + $0xbc] sm:$0xf]
      %v3521 = vld [vmem:[#allocation2 + $0xc0] sm:$0xf]
      %v3522 = vld [vmem:[#allocation2 + $0xc4] sm:$0x7]
      %vm3523 = vsmask.f32 1280
      %vm3524 = vsmask.f32 5392
      %vm3525 = vmor %vm3523, %vm3524
      %v3527 = vshrl.u32 %v3477, 16
      %v3529 = vrot.slane %v3527, 6
      %v3530 = vshll.u32 %v3477, 16
      %v3532 = vrot.slane %v3530, 7
      %v3533 = vor.u32 %v3529, %v3532
      %v3534 = vrot.slane %v3533, 4
      %v3536 = vshrl.u32 %v3478, 16
      %v3538 = vrot.slane %v3536, 6
      %v3539 = vshll.u32 %v3478, 16
      %v3541 = vrot.slane %v3539, 7
      %v3542 = vor.u32 %v3538, %v3541
      %v3543 = vsel %vm3525, %v3534, %v3542
      %v3544 = vrot.slane %v3542, 4
      %v3546 = vshrl.u32 %v3479, 16
      %v3548 = vrot.slane %v3546, 6
      %v3549 = vshll.u32 %v3479, 16
      %v3551 = vrot.slane %v3549, 7
      %v3552 = vor.u32 %v3548, %v3551
      %v3553 = vsel %vm3525, %v3544, %v3552
      %v3554 = vrot.slane %v3552, 4
      %v3556 = vshrl.u32 %v3480, 16
      %v3558 = vrot.slane %v3556, 6
      %v3559 = vshll.u32 %v3480, 16
      %v3561 = vrot.slane %v3559, 7
      %v3562 = vor.u32 %v3558, %v3561
      %v3563 = vsel %vm3525, %v3554, %v3562
      %v3564 = vrot.slane %v3562, 4
      %v3566 = vshrl.u32 %v3481, 16
      %v3568 = vrot.slane %v3566, 6
      %v3569 = vshll.u32 %v3481, 16
      %v3571 = vrot.slane %v3569, 7
      %v3572 = vor.u32 %v3568, %v3571
      %v3573 = vsel %vm3525, %v3564, %v3572
      %v3574 = vrot.slane %v3572, 4
      %v3576 = vshrl.u32 %v3482, 16
      %v3578 = vrot.slane %v3576, 6
      %v3579 = vshll.u32 %v3482, 16
      %v3581 = vrot.slane %v3579, 7
      %v3582 = vor.u32 %v3578, %v3581
      %v3583 = vsel %vm3525, %v3574, %v3582
      %v3584 = vrot.slane %v3582, 4
      %v3586 = vshrl.u32 %v3483, 16
      %v3588 = vrot.slane %v3586, 6
      %v3589 = vshll.u32 %v3483, 16
      %v3591 = vrot.slane %v3589, 7
      %v3592 = vor.u32 %v3588, %v3591
      %v3593 = vsel %vm3525, %v3584, %v3592
      %v3594 = vrot.slane %v3592, 4
      %v3596 = vshrl.u32 %v3484, 16
      %v3598 = vrot.slane %v3596, 6
      %v3599 = vshll.u32 %v3484, 16
      %v3601 = vrot.slane %v3599, 7
      %v3602 = vor.u32 %v3598, %v3601
      %v3603 = vsel %vm3525, %v3594, %v3602
      %v3604 = vrot.slane %v3602, 4
      %v3606 = vshrl.u32 %v3485, 16
      %v3608 = vrot.slane %v3606, 6
      %v3609 = vshll.u32 %v3485, 16
      %v3611 = vrot.slane %v3609, 7
      %v3612 = vor.u32 %v3608, %v3611
      %v3613 = vsel %vm3525, %v3604, %v3612
      %v3614 = vrot.slane %v3612, 4
      %v3616 = vshrl.u32 %v3486, 16
      %v3618 = vrot.slane %v3616, 6
      %v3619 = vshll.u32 %v3486, 16
      %v3621 = vrot.slane %v3619, 7
      %v3622 = vor.u32 %v3618, %v3621
      %v3623 = vsel %vm3525, %v3614, %v3622
      %v3624 = vrot.slane %v3622, 4
      %v3626 = vshrl.u32 %v3487, 16
      %v3628 = vrot.slane %v3626, 6
      %v3629 = vshll.u32 %v3487, 16
      %v3631 = vrot.slane %v3629, 7
      %v3632 = vor.u32 %v3628, %v3631
      %v3633 = vsel %vm3525, %v3624, %v3632
      %v3634 = vrot.slane %v3632, 4
      %v3636 = vshrl.u32 %v3488, 16
      %v3638 = vrot.slane %v3636, 6
      %v3639 = vshll.u32 %v3488, 16
      %v3641 = vrot.slane %v3639, 7
      %v3642 = vor.u32 %v3638, %v3641
      %v3643 = vsel %vm3525, %v3634, %v3642
      %v3644 = vrot.slane %v3642, 4
      %v3646 = vshrl.u32 %v3489, 16
      %v3648 = vrot.slane %v3646, 6
      %v3649 = vshll.u32 %v3489, 16
      %v3651 = vrot.slane %v3649, 7
      %v3652 = vor.u32 %v3648, %v3651
      %v3653 = vsel %vm3525, %v3644, %v3652
      %v3654 = vrot.slane %v3652, 4
      %v3656 = vshrl.u32 %v3490, 16
      %v3658 = vrot.slane %v3656, 6
      %v3659 = vshll.u32 %v3490, 16
      %v3661 = vrot.slane %v3659, 7
      %v3662 = vor.u32 %v3658, %v3661
      %v3663 = vsel %vm3525, %v3654, %v3662
      %v3664 = vrot.slane %v3662, 4
      %v3666 = vshrl.u32 %v3491, 16
      %v3668 = vrot.slane %v3666, 6
      %v3669 = vshll.u32 %v3491, 16
      %v3671 = vrot.slane %v3669, 7
      %v3672 = vor.u32 %v3668, %v3671
      %v3673 = vsel %vm3525, %v3664, %v3672
      %v3674 = vrot.slane %v3672, 4
      %v3676 = vshrl.u32 %v3492, 16
      %v3678 = vrot.slane %v3676, 6
      %v3679 = vshll.u32 %v3492, 16
      %v3681 = vrot.slane %v3679, 7
      %v3682 = vor.u32 %v3678, %v3681
      %v3683 = vsel %vm3525, %v3674, %v3682
      %v3684 = vrot.slane %v3682, 4
      %v3686 = vshrl.u32 %v3493, 16
      %v3688 = vrot.slane %v3686, 6
      %v3689 = vshll.u32 %v3493, 16
      %v3691 = vrot.slane %v3689, 7
      %v3692 = vor.u32 %v3688, %v3691
      %v3693 = vsel %vm3525, %v3684, %v3692
      %v3694 = vrot.slane %v3692, 4
      %v3696 = vshrl.u32 %v3494, 16
      %v3698 = vrot.slane %v3696, 6
      %v3699 = vshll.u32 %v3494, 16
      %v3701 = vrot.slane %v3699, 7
      %v3702 = vor.u32 %v3698, %v3701
      %v3703 = vsel %vm3525, %v3694, %v3702
      %v3704 = vrot.slane %v3702, 4
      %v3706 = vshrl.u32 %v3495, 16
      %v3708 = vrot.slane %v3706, 6
      %v3709 = vshll.u32 %v3495, 16
      %v3711 = vrot.slane %v3709, 7
      %v3712 = vor.u32 %v3708, %v3711
      %v3713 = vsel %vm3525, %v3704, %v3712
      %v3714 = vrot.slane %v3712, 4
      %v3716 = vshrl.u32 %v3496, 16
      %v3718 = vrot.slane %v3716, 6
      %v3719 = vshll.u32 %v3496, 16
      %v3721 = vrot.slane %v3719, 7
      %v3722 = vor.u32 %v3718, %v3721
      %v3723 = vsel %vm3525, %v3714, %v3722
      %v3724 = vrot.slane %v3722, 4
      %v3726 = vshrl.u32 %v3497, 16
      %v3728 = vrot.slane %v3726, 6
      %v3729 = vshll.u32 %v3497, 16
      %v3731 = vrot.slane %v3729, 7
      %v3732 = vor.u32 %v3728, %v3731
      %v3733 = vsel %vm3525, %v3724, %v3732
      %v3734 = vrot.slane %v3732, 4
      %v3736 = vshrl.u32 %v3498, 16
      %v3738 = vrot.slane %v3736, 6
      %v3739 = vshll.u32 %v3498, 16
      %v3741 = vrot.slane %v3739, 7
      %v3742 = vor.u32 %v3738, %v3741
      %v3743 = vsel %vm3525, %v3734, %v3742
      %v3744 = vrot.slane %v3742, 4
      %v3746 = vshrl.u32 %v3499, 16
      %v3748 = vrot.slane %v3746, 6
      %v3749 = vshll.u32 %v3499, 16
      %v3751 = vrot.slane %v3749, 7
      %v3752 = vor.u32 %v3748, %v3751
      %v3753 = vsel %vm3525, %v3744, %v3752
      %v3754 = vrot.slane %v3752, 4
      %v3756 = vshrl.u32 %v3500, 16
      %v3758 = vrot.slane %v3756, 6
      %v3759 = vshll.u32 %v3500, 16
      %v3761 = vrot.slane %v3759, 7
      %v3762 = vor.u32 %v3758, %v3761
      %v3763 = vsel %vm3525, %v3754, %v3762
      %v3764 = vrot.slane %v3762, 4
      %v3766 = vshrl.u32 %v3501, 16
      %v3768 = vrot.slane %v3766, 6
      %v3769 = vshll.u32 %v3501, 16
      %v3771 = vrot.slane %v3769, 7
      %v3772 = vor.u32 %v3768, %v3771
      %v3773 = vsel %vm3525, %v3764, %v3772
      %v3774 = vrot.slane %v3772, 4
      %v3776 = vshrl.u32 %v3502, 16
      %v3778 = vrot.slane %v3776, 6
      %v3779 = vshll.u32 %v3502, 16
      %v3781 = vrot.slane %v3779, 7
      %v3782 = vor.u32 %v3778, %v3781
      %v3783 = vsel %vm3525, %v3774, %v3782
      %v3784 = vrot.slane %v3782, 4
      %v3786 = vshrl.u32 %v3503, 16
      %v3788 = vrot.slane %v3786, 6
      %v3789 = vshll.u32 %v3503, 16
      %v3791 = vrot.slane %v3789, 7
      %v3792 = vor.u32 %v3788, %v3791
      %v3793 = vsel %vm3525, %v3784, %v3792
      %v3794 = vrot.slane %v3792, 4
      %v3796 = vshrl.u32 %v3504, 16
      %v3798 = vrot.slane %v3796, 6
      %v3799 = vshll.u32 %v3504, 16
      %v3801 = vrot.slane %v3799, 7
      %v3802 = vor.u32 %v3798, %v3801
      %v3803 = vsel %vm3525, %v3794, %v3802
      %v3804 = vrot.slane %v3802, 4
      %v3806 = vshrl.u32 %v3505, 16
      %v3808 = vrot.slane %v3806, 6
      %v3809 = vshll.u32 %v3505, 16
      %v3811 = vrot.slane %v3809, 7
      %v3812 = vor.u32 %v3808, %v3811
      %v3813 = vsel %vm3525, %v3804, %v3812
      %v3814 = vrot.slane %v3812, 4
      %v3816 = vshrl.u32 %v3506, 16
      %v3818 = vrot.slane %v3816, 6
      %v3819 = vshll.u32 %v3506, 16
      %v3821 = vrot.slane %v3819, 7
      %v3822 = vor.u32 %v3818, %v3821
      %v3823 = vsel %vm3525, %v3814, %v3822
      %v3824 = vrot.slane %v3822, 4
      %v3826 = vshrl.u32 %v3507, 16
      %v3828 = vrot.slane %v3826, 6
      %v3829 = vshll.u32 %v3507, 16
      %v3831 = vrot.slane %v3829, 7
      %v3832 = vor.u32 %v3828, %v3831
      %v3833 = vsel %vm3525, %v3824, %v3832
      %v3834 = vrot.slane %v3832, 4
      %v3836 = vshrl.u32 %v3508, 16
      %v3838 = vrot.slane %v3836, 6
      %v3839 = vshll.u32 %v3508, 16
      %v3841 = vrot.slane %v3839, 7
      %v3842 = vor.u32 %v3838, %v3841
      %v3843 = vsel %vm3525, %v3834, %v3842
      %v3844 = vrot.slane %v3842, 4
      %v3846 = vshrl.u32 %v3509, 16
      %v3848 = vrot.slane %v3846, 6
      %v3849 = vshll.u32 %v3509, 16
      %v3851 = vrot.slane %v3849, 7
      %v3852 = vor.u32 %v3848, %v3851
      %v3853 = vsel %vm3525, %v3844, %v3852
      %v3854 = vrot.slane %v3852, 4
      %v3856 = vshrl.u32 %v3510, 16
      %v3858 = vrot.slane %v3856, 6
      %v3859 = vshll.u32 %v3510, 16
      %v3861 = vrot.slane %v3859, 7
      %v3862 = vor.u32 %v3858, %v3861
      %v3863 = vsel %vm3525, %v3854, %v3862
      %v3864 = vrot.slane %v3862, 4
      %v3866 = vshrl.u32 %v3511, 16
      %v3868 = vrot.slane %v3866, 6
      %v3869 = vshll.u32 %v3511, 16
      %v3871 = vrot.slane %v3869, 7
      %v3872 = vor.u32 %v3868, %v3871
      %v3873 = vsel %vm3525, %v3864, %v3872
      %v3874 = vrot.slane %v3872, 4
      %v3876 = vshrl.u32 %v3512, 16
      %v3878 = vrot.slane %v3876, 6
      %v3879 = vshll.u32 %v3512, 16
      %v3881 = vrot.slane %v3879, 7
      %v3882 = vor.u32 %v3878, %v3881
      %v3883 = vsel %vm3525, %v3874, %v3882
      %v3884 = vrot.slane %v3882, 4
      %v3886 = vshrl.u32 %v3513, 16
      %v3888 = vrot.slane %v3886, 6
      %v3889 = vshll.u32 %v3513, 16
      %v3891 = vrot.slane %v3889, 7
      %v3892 = vor.u32 %v3888, %v3891
      %v3893 = vsel %vm3525, %v3884, %v3892
      %v3894 = vrot.slane %v3892, 4
      %v3896 = vshrl.u32 %v3514, 16
      %v3898 = vrot.slane %v3896, 6
      %v3899 = vshll.u32 %v3514, 16
      %v3901 = vrot.slane %v3899, 7
      %v3902 = vor.u32 %v3898, %v3901
      %v3903 = vsel %vm3525, %v3894, %v3902
      %v3904 = vrot.slane %v3902, 4
      %v3906 = vshrl.u32 %v3515, 16
      %v3908 = vrot.slane %v3906, 6
      %v3909 = vshll.u32 %v3515, 16
      %v3911 = vrot.slane %v3909, 7
      %v3912 = vor.u32 %v3908, %v3911
      %v3913 = vsel %vm3525, %v3904, %v3912
      %v3914 = vrot.slane %v3912, 4
      %v3916 = vshrl.u32 %v3516, 16
      %v3918 = vrot.slane %v3916, 6
      %v3919 = vshll.u32 %v3516, 16
      %v3921 = vrot.slane %v3919, 7
      %v3922 = vor.u32 %v3918, %v3921
      %v3923 = vsel %vm3525, %v3914, %v3922
      %v3924 = vrot.slane %v3922, 4
      %v3926 = vshrl.u32 %v3517, 16
      %v3928 = vrot.slane %v3926, 6
      %v3929 = vshll.u32 %v3517, 16
      %v3931 = vrot.slane %v3929, 7
      %v3932 = vor.u32 %v3928, %v3931
      %v3933 = vsel %vm3525, %v3924, %v3932
      %v3934 = vrot.slane %v3932, 4
      %v3936 = vshrl.u32 %v3518, 16
      %v3938 = vrot.slane %v3936, 6
      %v3939 = vshll.u32 %v3518, 16
      %v3941 = vrot.slane %v3939, 7
      %v3942 = vor.u32 %v3938, %v3941
      %v3943 = vsel %vm3525, %v3934, %v3942
      %v3944 = vrot.slane %v3942, 4
      %v3946 = vshrl.u32 %v3519, 16
      %v3948 = vrot.slane %v3946, 6
      %v3949 = vshll.u32 %v3519, 16
      %v3951 = vrot.slane %v3949, 7
      %v3952 = vor.u32 %v3948, %v3951
      %v3953 = vsel %vm3525, %v3944, %v3952
      %v3954 = vrot.slane %v3952, 4
      %v3956 = vshrl.u32 %v3520, 16
      %v3958 = vrot.slane %v3956, 6
      %v3959 = vshll.u32 %v3520, 16
      %v3961 = vrot.slane %v3959, 7
      %v3962 = vor.u32 %v3958, %v3961
      %v3963 = vsel %vm3525, %v3954, %v3962
      %v3964 = vrot.slane %v3962, 4
      %v3966 = vshrl.u32 %v3521, 16
      %v3968 = vrot.slane %v3966, 6
      %v3969 = vshll.u32 %v3521, 16
      %v3971 = vrot.slane %v3969, 7
      %v3972 = vor.u32 %v3968, %v3971
      %v3973 = vsel %vm3525, %v3964, %v3972
      %v3974 = vrot.slane %v3972, 4
      %v3976 = vshrl.u32 %v3522, 16
      %v3978 = vrot.slane %v3976, 6
      %v3979 = vshll.u32 %v3522, 16
      %v3981 = vrot.slane %v3979, 7
      %v3982 = vor.u32 %v3978, %v3981
      %v3983 = vsel %vm3525, %v3974, %v3982
      %3984 = vrot.lane.b32.xlu0 %v3543, 28
      %v3985 = vpop.permute.xlu0 %3984
      %3986 = vrot.lane.b32.xlu0 %v3553, 28
      %v3987 = vpop.permute.xlu0 %3986
      %3988 = vrot.lane.b32.xlu0 %v3563, 28
      %v3989 = vpop.permute.xlu0 %3988
      %3990 = vrot.lane.b32.xlu0 %v3573, 28
      %v3991 = vpop.permute.xlu0 %3990
      %3992 = vrot.lane.b32.xlu0 %v3583, 28
      %v3993 = vpop.permute.xlu0 %3992
      %3994 = vrot.lane.b32.xlu0 %v3593, 28
      %v3995 = vpop.permute.xlu0 %3994
      %3996 = vrot.lane.b32.xlu0 %v3603, 28
      %v3997 = vpop.permute.xlu0 %3996
      %3998 = vrot.lane.b32.xlu0 %v3613, 28
      %v3999 = vpop.permute.xlu0 %3998
      %4000 = vrot.lane.b32.xlu0 %v3623, 28
      %v4001 = vpop.permute.xlu0 %4000
      %4002 = vrot.lane.b32.xlu0 %v3633, 28
      %v4003 = vpop.permute.xlu0 %4002
      %4004 = vrot.lane.b32.xlu0 %v3643, 28
      %v4005 = vpop.permute.xlu0 %4004
      %4006 = vrot.lane.b32.xlu0 %v3653, 28
      %v4007 = vpop.permute.xlu0 %4006
      %4008 = vrot.lane.b32.xlu0 %v3663, 28
      %v4009 = vpop.permute.xlu0 %4008
      %4010 = vrot.lane.b32.xlu0 %v3673, 28
      %v4011 = vpop.permute.xlu0 %4010
      %4012 = vrot.lane.b32.xlu0 %v3683, 28
      %v4013 = vpop.permute.xlu0 %4012
      %4014 = vrot.lane.b32.xlu0 %v3693, 28
      %v4015 = vpop.permute.xlu0 %4014
      %4016 = vrot.lane.b32.xlu0 %v3703, 28
      %v4017 = vpop.permute.xlu0 %4016
      %4018 = vrot.lane.b32.xlu0 %v3713, 28
      %v4019 = vpop.permute.xlu0 %4018
      %4020 = vrot.lane.b32.xlu0 %v3723, 28
      %v4021 = vpop.permute.xlu0 %4020
      %4022 = vrot.lane.b32.xlu0 %v3733, 28
      %v4023 = vpop.permute.xlu0 %4022
      %4024 = vrot.lane.b32.xlu0 %v3743, 28
      %v4025 = vpop.permute.xlu0 %4024
      %4026 = vrot.lane.b32.xlu0 %v3753, 28
      %v4027 = vpop.permute.xlu0 %4026
      %4028 = vrot.lane.b32.xlu0 %v3763, 28
      %v4029 = vpop.permute.xlu0 %4028
      %4030 = vrot.lane.b32.xlu0 %v3773, 28
      %v4031 = vpop.permute.xlu0 %4030
      %4032 = vrot.lane.b32.xlu0 %v3783, 28
      %v4033 = vpop.permute.xlu0 %4032
      %4034 = vrot.lane.b32.xlu0 %v3793, 28
      %v4035 = vpop.permute.xlu0 %4034
      %4036 = vrot.lane.b32.xlu0 %v3803, 28
      %v4037 = vpop.permute.xlu0 %4036
      %4038 = vrot.lane.b32.xlu0 %v3813, 28
      %v4039 = vpop.permute.xlu0 %4038
      %4040 = vrot.lane.b32.xlu0 %v3823, 28
      %v4041 = vpop.permute.xlu0 %4040
      %4042 = vrot.lane.b32.xlu0 %v3833, 28
      %v4043 = vpop.permute.xlu0 %4042
      %4044 = vrot.lane.b32.xlu0 %v3843, 28
      %v4045 = vpop.permute.xlu0 %4044
      %4046 = vrot.lane.b32.xlu0 %v3853, 28
      %v4047 = vpop.permute.xlu0 %4046
      %4048 = vrot.lane.b32.xlu0 %v3863, 28
      %v4049 = vpop.permute.xlu0 %4048
      %4050 = vrot.lane.b32.xlu0 %v3873, 28
      %v4051 = vpop.permute.xlu0 %4050
      %4052 = vrot.lane.b32.xlu0 %v3883, 28
      %v4053 = vpop.permute.xlu0 %4052
      %4054 = vrot.lane.b32.xlu0 %v3893, 28
      %v4055 = vpop.permute.xlu0 %4054
      %4056 = vrot.lane.b32.xlu0 %v3903, 28
      %v4057 = vpop.permute.xlu0 %4056
      %4058 = vrot.lane.b32.xlu0 %v3913, 28
      %v4059 = vpop.permute.xlu0 %4058
      %4060 = vrot.lane.b32.xlu0 %v3923, 28
      %v4061 = vpop.permute.xlu0 %4060
      %4062 = vrot.lane.b32.xlu0 %v3933, 28
      %v4063 = vpop.permute.xlu0 %4062
      %4064 = vrot.lane.b32.xlu0 %v3943, 28
      %v4065 = vpop.permute.xlu0 %4064
      %4066 = vrot.lane.b32.xlu0 %v3953, 28
      %v4067 = vpop.permute.xlu0 %4066
      %4068 = vrot.lane.b32.xlu0 %v3963, 28
      %v4069 = vpop.permute.xlu0 %4068
      %4070 = vrot.lane.b32.xlu0 %v3973, 28
      %v4071 = vpop.permute.xlu0 %4070
      %4072 = vrot.lane.b32.xlu0 %v3983, 28
      %v4073 = vpop.permute.xlu0 %4072
      %vm4119 = vcmask 257248
      %4120 = vst.msk [vmem:[#allocation3] sm:$0xf] %vm4119, %v3985
      %4121 = vst.msk [vmem:[#allocation3 + $0x4] sm:$0xf] %vm4119, %v3987
      %4122 = vst.msk [vmem:[#allocation3 + $0x8] sm:$0xf] %vm4119, %v3989
      %4123 = vst.msk [vmem:[#allocation3 + $0xc] sm:$0xf] %vm4119, %v3991
      %4124 = vst.msk [vmem:[#allocation3 + $0x10] sm:$0xf] %vm4119, %v3993
      %4125 = vst.msk [vmem:[#allocation3 + $0x14] sm:$0xf] %vm4119, %v3995
      %4126 = vst.msk [vmem:[#allocation3 + $0x18] sm:$0xf] %vm4119, %v3997
      %4127 = vst.msk [vmem:[#allocation3 + $0x1c] sm:$0xf] %vm4119, %v3999
      %4128 = vst.msk [vmem:[#allocation3 + $0x20] sm:$0xf] %vm4119, %v4001
      %4129 = vst.msk [vmem:[#allocation3 + $0x24] sm:$0xf] %vm4119, %v4003
      %4130 = vst.msk [vmem:[#allocation3 + $0x28] sm:$0xf] %vm4119, %v4005
      %4131 = vst.msk [vmem:[#allocation3 + $0x2c] sm:$0xf] %vm4119, %v4007
      %4132 = vst.msk [vmem:[#allocation3 + $0x30] sm:$0xf] %vm4119, %v4009
      %4133 = vst.msk [vmem:[#allocation3 + $0x34] sm:$0xf] %vm4119, %v4011
      %4134 = vst.msk [vmem:[#allocation3 + $0x38] sm:$0xf] %vm4119, %v4013
      %4135 = vst.msk [vmem:[#allocation3 + $0x3c] sm:$0xf] %vm4119, %v4015
      %4136 = vst.msk [vmem:[#allocation3 + $0x40] sm:$0xf] %vm4119, %v4017
      %4137 = vst.msk [vmem:[#allocation3 + $0x44] sm:$0xf] %vm4119, %v4019
      %4138 = vst.msk [vmem:[#allocation3 + $0x48] sm:$0xf] %vm4119, %v4021
      %4139 = vst.msk [vmem:[#allocation3 + $0x4c] sm:$0xf] %vm4119, %v4023
      %4140 = vst.msk [vmem:[#allocation3 + $0x50] sm:$0xf] %vm4119, %v4025
      %4141 = vst.msk [vmem:[#allocation3 + $0x54] sm:$0xf] %vm4119, %v4027
      %4142 = vst.msk [vmem:[#allocation3 + $0x58] sm:$0xf] %vm4119, %v4029
      %4143 = vst.msk [vmem:[#allocation3 + $0x5c] sm:$0xf] %vm4119, %v4031
      %4144 = vst.msk [vmem:[#allocation3 + $0x60] sm:$0xf] %vm4119, %v4033
      %4145 = vst.msk [vmem:[#allocation3 + $0x64] sm:$0xf] %vm4119, %v4035
      %4146 = vst.msk [vmem:[#allocation3 + $0x68] sm:$0xf] %vm4119, %v4037
      %4147 = vst.msk [vmem:[#allocation3 + $0x6c] sm:$0xf] %vm4119, %v4039
      %4148 = vst.msk [vmem:[#allocation3 + $0x70] sm:$0xf] %vm4119, %v4041
      %4149 = vst.msk [vmem:[#allocation3 + $0x74] sm:$0xf] %vm4119, %v4043
      %4150 = vst.msk [vmem:[#allocation3 + $0x78] sm:$0xf] %vm4119, %v4045
      %4151 = vst.msk [vmem:[#allocation3 + $0x7c] sm:$0xf] %vm4119, %v4047
      %4152 = vst.msk [vmem:[#allocation3 + $0x80] sm:$0xf] %vm4119, %v4049
      %4153 = vst.msk [vmem:[#allocation3 + $0x84] sm:$0xf] %vm4119, %v4051
      %4154 = vst.msk [vmem:[#allocation3 + $0x88] sm:$0xf] %vm4119, %v4053
      %4155 = vst.msk [vmem:[#allocation3 + $0x8c] sm:$0xf] %vm4119, %v4055
      %4156 = vst.msk [vmem:[#allocation3 + $0x90] sm:$0xf] %vm4119, %v4057
      %4157 = vst.msk [vmem:[#allocation3 + $0x94] sm:$0xf] %vm4119, %v4059
      %4158 = vst.msk [vmem:[#allocation3 + $0x98] sm:$0xf] %vm4119, %v4061
      %4159 = vst.msk [vmem:[#allocation3 + $0x9c] sm:$0xf] %vm4119, %v4063
      %4160 = vst.msk [vmem:[#allocation3 + $0xa0] sm:$0xf] %vm4119, %v4065
      %4161 = vst.msk [vmem:[#allocation3 + $0xa4] sm:$0xf] %vm4119, %v4067
      %4162 = vst.msk [vmem:[#allocation3 + $0xa8] sm:$0xf] %vm4119, %v4069
      %4163 = vst.msk [vmem:[#allocation3 + $0xac] sm:$0xf] %vm4119, %v4071
      %4164 = vst.msk [vmem:[#allocation3 + $0xb0] sm:$0xf] %vm4119, %v4073
      %v4165 = vld [vmem:[#allocation2 + $0x10] sm:$0x8]
      %v4166 = vld [vmem:[#allocation2 + $0x14] sm:$0xf]
      %v4167 = vld [vmem:[#allocation2 + $0x18] sm:$0xf]
      %v4168 = vld [vmem:[#allocation2 + $0x1c] sm:$0xf]
      %v4169 = vld [vmem:[#allocation2 + $0x20] sm:$0xf]
      %v4170 = vld [vmem:[#allocation2 + $0x24] sm:$0xf]
      %v4171 = vld [vmem:[#allocation2 + $0x28] sm:$0xf]
      %v4172 = vld [vmem:[#allocation2 + $0x2c] sm:$0xf]
      %v4173 = vld [vmem:[#allocation2 + $0x30] sm:$0xf]
      %v4174 = vld [vmem:[#allocation2 + $0x34] sm:$0xf]
      %v4175 = vld [vmem:[#allocation2 + $0x38] sm:$0xf]
      %v4176 = vld [vmem:[#allocation2 + $0x3c] sm:$0xf]
      %v4177 = vld [vmem:[#allocation2 + $0x40] sm:$0xf]
      %v4178 = vld [vmem:[#allocation2 + $0x44] sm:$0xf]
      %v4179 = vld [vmem:[#allocation2 + $0x48] sm:$0xf]
      %v4180 = vld [vmem:[#allocation2 + $0x4c] sm:$0xf]
      %v4181 = vld [vmem:[#allocation2 + $0x50] sm:$0xf]
      %v4182 = vld [vmem:[#allocation2 + $0x54] sm:$0xf]
      %v4183 = vld [vmem:[#allocation2 + $0x58] sm:$0xf]
      %v4184 = vld [vmem:[#allocation2 + $0x5c] sm:$0xf]
      %v4185 = vld [vmem:[#allocation2 + $0x60] sm:$0xf]
      %v4186 = vld [vmem:[#allocation2 + $0x64] sm:$0xf]
      %v4187 = vld [vmem:[#allocation2 + $0x68] sm:$0xf]
      %v4188 = vld [vmem:[#allocation2 + $0x6c] sm:$0xf]
      %v4189 = vld [vmem:[#allocation2 + $0x70] sm:$0xf]
      %v4190 = vld [vmem:[#allocation2 + $0x74] sm:$0xf]
      %v4191 = vld [vmem:[#allocation2 + $0x78] sm:$0xf]
      %v4192 = vld [vmem:[#allocation2 + $0x7c] sm:$0xf]
      %v4193 = vld [vmem:[#allocation2 + $0x80] sm:$0xf]
      %v4194 = vld [vmem:[#allocation2 + $0x84] sm:$0xf]
      %v4195 = vld [vmem:[#allocation2 + $0x88] sm:$0xf]
      %v4196 = vld [vmem:[#allocation2 + $0x8c] sm:$0xf]
      %v4197 = vld [vmem:[#allocation2 + $0x90] sm:$0xf]
      %v4198 = vld [vmem:[#allocation2 + $0x94] sm:$0xf]
      %v4199 = vld [vmem:[#allocation2 + $0x98] sm:$0xf]
      %v4200 = vld [vmem:[#allocation2 + $0x9c] sm:$0xf]
      %v4201 = vld [vmem:[#allocation2 + $0xa0] sm:$0xf]
      %v4202 = vld [vmem:[#allocation2 + $0xa4] sm:$0xf]
      %v4203 = vld [vmem:[#allocation2 + $0xa8] sm:$0xf]
      %v4204 = vld [vmem:[#allocation2 + $0xac] sm:$0xf]
      %v4205 = vld [vmem:[#allocation2 + $0xb0] sm:$0xf]
      %v4206 = vld [vmem:[#allocation2 + $0xb4] sm:$0xf]
      %v4207 = vld [vmem:[#allocation2 + $0xb8] sm:$0xf]
      %v4208 = vld [vmem:[#allocation2 + $0xbc] sm:$0xf]
      %v4209 = vld [vmem:[#allocation2 + $0xc0] sm:$0xf]
      %v4210 = vld [vmem:[#allocation2 + $0xc4] sm:$0x7]
      %vm4257 = vcmask 1040384
      %vm4258 = vcmask 1044484
      %vm4259 = vmor %vm4257, %vm4258
      %v4260 = vrot.slane %v4165, 7
      %v4261 = vrot.slane %v4260, 4
      %v4262 = vrot.slane %v4166, 7
      %v4263 = vsel %vm4259, %v4261, %v4262
      %v4264 = vrot.slane %v4262, 4
      %v4265 = vrot.slane %v4167, 7
      %v4266 = vsel %vm4259, %v4264, %v4265
      %v4267 = vrot.slane %v4265, 4
      %v4268 = vrot.slane %v4168, 7
      %v4269 = vsel %vm4259, %v4267, %v4268
      %v4270 = vrot.slane %v4268, 4
      %v4271 = vrot.slane %v4169, 7
      %v4272 = vsel %vm4259, %v4270, %v4271
      %v4273 = vrot.slane %v4271, 4
      %v4274 = vrot.slane %v4170, 7
      %v4275 = vsel %vm4259, %v4273, %v4274
      %v4276 = vrot.slane %v4274, 4
      %v4277 = vrot.slane %v4171, 7
      %v4278 = vsel %vm4259, %v4276, %v4277
      %v4279 = vrot.slane %v4277, 4
      %v4280 = vrot.slane %v4172, 7
      %v4281 = vsel %vm4259, %v4279, %v4280
      %v4282 = vrot.slane %v4280, 4
      %v4283 = vrot.slane %v4173, 7
      %v4284 = vsel %vm4259, %v4282, %v4283
      %v4285 = vrot.slane %v4283, 4
      %v4286 = vrot.slane %v4174, 7
      %v4287 = vsel %vm4259, %v4285, %v4286
      %v4288 = vrot.slane %v4286, 4
      %v4289 = vrot.slane %v4175, 7
      %v4290 = vsel %vm4259, %v4288, %v4289
      %v4291 = vrot.slane %v4289, 4
      %v4292 = vrot.slane %v4176, 7
      %v4293 = vsel %vm4259, %v4291, %v4292
      %v4294 = vrot.slane %v4292, 4
      %v4295 = vrot.slane %v4177, 7
      %v4296 = vsel %vm4259, %v4294, %v4295
      %v4297 = vrot.slane %v4295, 4
      %v4298 = vrot.slane %v4178, 7
      %v4299 = vsel %vm4259, %v4297, %v4298
      %v4300 = vrot.slane %v4298, 4
      %v4301 = vrot.slane %v4179, 7
      %v4302 = vsel %vm4259, %v4300, %v4301
      %v4303 = vrot.slane %v4301, 4
      %v4304 = vrot.slane %v4180, 7
      %v4305 = vsel %vm4259, %v4303, %v4304
      %v4306 = vrot.slane %v4304, 4
      %v4307 = vrot.slane %v4181, 7
      %v4308 = vsel %vm4259, %v4306, %v4307
      %v4309 = vrot.slane %v4307, 4
      %v4310 = vrot.slane %v4182, 7
      %v4311 = vsel %vm4259, %v4309, %v4310
      %v4312 = vrot.slane %v4310, 4
      %v4313 = vrot.slane %v4183, 7
      %v4314 = vsel %vm4259, %v4312, %v4313
      %v4315 = vrot.slane %v4313, 4
      %v4316 = vrot.slane %v4184, 7
      %v4317 = vsel %vm4259, %v4315, %v4316
      %v4318 = vrot.slane %v4316, 4
      %v4319 = vrot.slane %v4185, 7
      %v4320 = vsel %vm4259, %v4318, %v4319
      %v4321 = vrot.slane %v4319, 4
      %v4322 = vrot.slane %v4186, 7
      %v4323 = vsel %vm4259, %v4321, %v4322
      %v4324 = vrot.slane %v4322, 4
      %v4325 = vrot.slane %v4187, 7
      %v4326 = vsel %vm4259, %v4324, %v4325
      %v4327 = vrot.slane %v4325, 4
      %v4328 = vrot.slane %v4188, 7
      %v4329 = vsel %vm4259, %v4327, %v4328
      %v4330 = vrot.slane %v4328, 4
      %v4331 = vrot.slane %v4189, 7
      %v4332 = vsel %vm4259, %v4330, %v4331
      %v4333 = vrot.slane %v4331, 4
      %v4334 = vrot.slane %v4190, 7
      %v4335 = vsel %vm4259, %v4333, %v4334
      %v4336 = vrot.slane %v4334, 4
      %v4337 = vrot.slane %v4191, 7
      %v4338 = vsel %vm4259, %v4336, %v4337
      %v4339 = vrot.slane %v4337, 4
      %v4340 = vrot.slane %v4192, 7
      %v4341 = vsel %vm4259, %v4339, %v4340
      %v4342 = vrot.slane %v4340, 4
      %v4343 = vrot.slane %v4193, 7
      %v4344 = vsel %vm4259, %v4342, %v4343
      %v4345 = vrot.slane %v4343, 4
      %v4346 = vrot.slane %v4194, 7
      %v4347 = vsel %vm4259, %v4345, %v4346
      %v4348 = vrot.slane %v4346, 4
      %v4349 = vrot.slane %v4195, 7
      %v4350 = vsel %vm4259, %v4348, %v4349
      %v4351 = vrot.slane %v4349, 4
      %v4352 = vrot.slane %v4196, 7
      %v4353 = vsel %vm4259, %v4351, %v4352
      %v4354 = vrot.slane %v4352, 4
      %v4355 = vrot.slane %v4197, 7
      %v4356 = vsel %vm4259, %v4354, %v4355
      %v4357 = vrot.slane %v4355, 4
      %v4358 = vrot.slane %v4198, 7
      %v4359 = vsel %vm4259, %v4357, %v4358
      %v4360 = vrot.slane %v4358, 4
      %v4361 = vrot.slane %v4199, 7
      %v4362 = vsel %vm4259, %v4360, %v4361
      %v4363 = vrot.slane %v4361, 4
      %v4364 = vrot.slane %v4200, 7
      %v4365 = vsel %vm4259, %v4363, %v4364
      %v4366 = vrot.slane %v4364, 4
      %v4367 = vrot.slane %v4201, 7
      %v4368 = vsel %vm4259, %v4366, %v4367
      %v4369 = vrot.slane %v4367, 4
      %v4370 = vrot.slane %v4202, 7
      %v4371 = vsel %vm4259, %v4369, %v4370
      %v4372 = vrot.slane %v4370, 4
      %v4373 = vrot.slane %v4203, 7
      %v4374 = vsel %vm4259, %v4372, %v4373
      %v4375 = vrot.slane %v4373, 4
      %v4376 = vrot.slane %v4204, 7
      %v4377 = vsel %vm4259, %v4375, %v4376
      %v4378 = vrot.slane %v4376, 4
      %v4379 = vrot.slane %v4205, 7
      %v4380 = vsel %vm4259, %v4378, %v4379
      %v4381 = vrot.slane %v4379, 4
      %v4382 = vrot.slane %v4206, 7
      %v4383 = vsel %vm4259, %v4381, %v4382
      %v4384 = vrot.slane %v4382, 4
      %v4385 = vrot.slane %v4207, 7
      %v4386 = vsel %vm4259, %v4384, %v4385
      %v4387 = vrot.slane %v4385, 4
      %v4388 = vrot.slane %v4208, 7
      %v4389 = vsel %vm4259, %v4387, %v4388
      %v4390 = vrot.slane %v4388, 4
      %v4391 = vrot.slane %v4209, 7
      %v4392 = vsel %vm4259, %v4390, %v4391
      %v4393 = vrot.slane %v4391, 4
      %v4394 = vrot.slane %v4210, 7
      %v4395 = vsel %vm4259, %v4393, %v4394
      %4396 = vrot.lane.b32.xlu0 %v4263, 32
      %v4397 = vpop.permute.xlu0 %4396
      %4398 = vrot.lane.b32.xlu0 %v4266, 32
      %v4399 = vpop.permute.xlu0 %4398
      %4400 = vrot.lane.b32.xlu0 %v4269, 32
      %v4401 = vpop.permute.xlu0 %4400
      %4402 = vrot.lane.b32.xlu0 %v4272, 32
      %v4403 = vpop.permute.xlu0 %4402
      %4404 = vrot.lane.b32.xlu0 %v4275, 32
      %v4405 = vpop.permute.xlu0 %4404
      %4406 = vrot.lane.b32.xlu0 %v4278, 32
      %v4407 = vpop.permute.xlu0 %4406
      %4408 = vrot.lane.b32.xlu0 %v4281, 32
      %v4409 = vpop.permute.xlu0 %4408
      %4410 = vrot.lane.b32.xlu0 %v4284, 32
      %v4411 = vpop.permute.xlu0 %4410
      %4412 = vrot.lane.b32.xlu0 %v4287, 32
      %v4413 = vpop.permute.xlu0 %4412
      %4414 = vrot.lane.b32.xlu0 %v4290, 32
      %v4415 = vpop.permute.xlu0 %4414
      %4416 = vrot.lane.b32.xlu0 %v4293, 32
      %v4417 = vpop.permute.xlu0 %4416
      %4418 = vrot.lane.b32.xlu0 %v4296, 32
      %v4419 = vpop.permute.xlu0 %4418
      %4420 = vrot.lane.b32.xlu0 %v4299, 32
      %v4421 = vpop.permute.xlu0 %4420
      %4422 = vrot.lane.b32.xlu0 %v4302, 32
      %v4423 = vpop.permute.xlu0 %4422
      %4424 = vrot.lane.b32.xlu0 %v4305, 32
      %v4425 = vpop.permute.xlu0 %4424
      %4426 = vrot.lane.b32.xlu0 %v4308, 32
      %v4427 = vpop.permute.xlu0 %4426
      %4428 = vrot.lane.b32.xlu0 %v4311, 32
      %v4429 = vpop.permute.xlu0 %4428
      %4430 = vrot.lane.b32.xlu0 %v4314, 32
      %v4431 = vpop.permute.xlu0 %4430
      %4432 = vrot.lane.b32.xlu0 %v4317, 32
      %v4433 = vpop.permute.xlu0 %4432
      %4434 = vrot.lane.b32.xlu0 %v4320, 32
      %v4435 = vpop.permute.xlu0 %4434
      %4436 = vrot.lane.b32.xlu0 %v4323, 32
      %v4437 = vpop.permute.xlu0 %4436
      %4438 = vrot.lane.b32.xlu0 %v4326, 32
      %v4439 = vpop.permute.xlu0 %4438
      %4440 = vrot.lane.b32.xlu0 %v4329, 32
      %v4441 = vpop.permute.xlu0 %4440
      %4442 = vrot.lane.b32.xlu0 %v4332, 32
      %v4443 = vpop.permute.xlu0 %4442
      %4444 = vrot.lane.b32.xlu0 %v4335, 32
      %v4445 = vpop.permute.xlu0 %4444
      %4446 = vrot.lane.b32.xlu0 %v4338, 32
      %v4447 = vpop.permute.xlu0 %4446
      %4448 = vrot.lane.b32.xlu0 %v4341, 32
      %v4449 = vpop.permute.xlu0 %4448
      %4450 = vrot.lane.b32.xlu0 %v4344, 32
      %v4451 = vpop.permute.xlu0 %4450
      %4452 = vrot.lane.b32.xlu0 %v4347, 32
      %v4453 = vpop.permute.xlu0 %4452
      %4454 = vrot.lane.b32.xlu0 %v4350, 32
      %v4455 = vpop.permute.xlu0 %4454
      %4456 = vrot.lane.b32.xlu0 %v4353, 32
      %v4457 = vpop.permute.xlu0 %4456
      %4458 = vrot.lane.b32.xlu0 %v4356, 32
      %v4459 = vpop.permute.xlu0 %4458
      %4460 = vrot.lane.b32.xlu0 %v4359, 32
      %v4461 = vpop.permute.xlu0 %4460
      %4462 = vrot.lane.b32.xlu0 %v4362, 32
      %v4463 = vpop.permute.xlu0 %4462
      %4464 = vrot.lane.b32.xlu0 %v4365, 32
      %v4465 = vpop.permute.xlu0 %4464
      %4466 = vrot.lane.b32.xlu0 %v4368, 32
      %v4467 = vpop.permute.xlu0 %4466
      %4468 = vrot.lane.b32.xlu0 %v4371, 32
      %v4469 = vpop.permute.xlu0 %4468
      %4470 = vrot.lane.b32.xlu0 %v4374, 32
      %v4471 = vpop.permute.xlu0 %4470
      %4472 = vrot.lane.b32.xlu0 %v4377, 32
      %v4473 = vpop.permute.xlu0 %4472
      %4474 = vrot.lane.b32.xlu0 %v4380, 32
      %v4475 = vpop.permute.xlu0 %4474
      %4476 = vrot.lane.b32.xlu0 %v4383, 32
      %v4477 = vpop.permute.xlu0 %4476
      %4478 = vrot.lane.b32.xlu0 %v4386, 32
      %v4479 = vpop.permute.xlu0 %4478
      %4480 = vrot.lane.b32.xlu0 %v4389, 32
      %v4481 = vpop.permute.xlu0 %4480
      %4482 = vrot.lane.b32.xlu0 %v4392, 32
      %v4483 = vpop.permute.xlu0 %4482
      %4484 = vrot.lane.b32.xlu0 %v4395, 32
      %v4485 = vpop.permute.xlu0 %4484
      %vm4531 = vcmask 290048
      %4532 = vst.msk [vmem:[#allocation3] sm:$0xf] %vm4531, %v4397
      %4533 = vst.msk [vmem:[#allocation3 + $0x4] sm:$0xf] %vm4531, %v4399
      %4534 = vst.msk [vmem:[#allocation3 + $0x8] sm:$0xf] %vm4531, %v4401
      %4535 = vst.msk [vmem:[#allocation3 + $0xc] sm:$0xf] %vm4531, %v4403
      %4536 = vst.msk [vmem:[#allocation3 + $0x10] sm:$0xf] %vm4531, %v4405
      %4537 = vst.msk [vmem:[#allocation3 + $0x14] sm:$0xf] %vm4531, %v4407
      %4538 = vst.msk [vmem:[#allocation3 + $0x18] sm:$0xf] %vm4531, %v4409
      %4539 = vst.msk [vmem:[#allocation3 + $0x1c] sm:$0xf] %vm4531, %v4411
      %4540 = vst.msk [vmem:[#allocation3 + $0x20] sm:$0xf] %vm4531, %v4413
      %4541 = vst.msk [vmem:[#allocation3 + $0x24] sm:$0xf] %vm4531, %v4415
      %4542 = vst.msk [vmem:[#allocation3 + $0x28] sm:$0xf] %vm4531, %v4417
      %4543 = vst.msk [vmem:[#allocation3 + $0x2c] sm:$0xf] %vm4531, %v4419
      %4544 = vst.msk [vmem:[#allocation3 + $0x30] sm:$0xf] %vm4531, %v4421
      %4545 = vst.msk [vmem:[#allocation3 + $0x34] sm:$0xf] %vm4531, %v4423
      %4546 = vst.msk [vmem:[#allocation3 + $0x38] sm:$0xf] %vm4531, %v4425
      %4547 = vst.msk [vmem:[#allocation3 + $0x3c] sm:$0xf] %vm4531, %v4427
      %4548 = vst.msk [vmem:[#allocation3 + $0x40] sm:$0xf] %vm4531, %v4429
      %4549 = vst.msk [vmem:[#allocation3 + $0x44] sm:$0xf] %vm4531, %v4431
      %4550 = vst.msk [vmem:[#allocation3 + $0x48] sm:$0xf] %vm4531, %v4433
      %4551 = vst.msk [vmem:[#allocation3 + $0x4c] sm:$0xf] %vm4531, %v4435
      %4552 = vst.msk [vmem:[#allocation3 + $0x50] sm:$0xf] %vm4531, %v4437
      %4553 = vst.msk [vmem:[#allocation3 + $0x54] sm:$0xf] %vm4531, %v4439
      %4554 = vst.msk [vmem:[#allocation3 + $0x58] sm:$0xf] %vm4531, %v4441
      %4555 = vst.msk [vmem:[#allocation3 + $0x5c] sm:$0xf] %vm4531, %v4443
      %4556 = vst.msk [vmem:[#allocation3 + $0x60] sm:$0xf] %vm4531, %v4445
      %4557 = vst.msk [vmem:[#allocation3 + $0x64] sm:$0xf] %vm4531, %v4447
      %4558 = vst.msk [vmem:[#allocation3 + $0x68] sm:$0xf] %vm4531, %v4449
      %4559 = vst.msk [vmem:[#allocation3 + $0x6c] sm:$0xf] %vm4531, %v4451
      %4560 = vst.msk [vmem:[#allocation3 + $0x70] sm:$0xf] %vm4531, %v4453
      %4561 = vst.msk [vmem:[#allocation3 + $0x74] sm:$0xf] %vm4531, %v4455
      %4562 = vst.msk [vmem:[#allocation3 + $0x78] sm:$0xf] %vm4531, %v4457
      %4563 = vst.msk [vmem:[#allocation3 + $0x7c] sm:$0xf] %vm4531, %v4459
      %4564 = vst.msk [vmem:[#allocation3 + $0x80] sm:$0xf] %vm4531, %v4461
      %4565 = vst.msk [vmem:[#allocation3 + $0x84] sm:$0xf] %vm4531, %v4463
      %4566 = vst.msk [vmem:[#allocation3 + $0x88] sm:$0xf] %vm4531, %v4465
      %4567 = vst.msk [vmem:[#allocation3 + $0x8c] sm:$0xf] %vm4531, %v4467
      %4568 = vst.msk [vmem:[#allocation3 + $0x90] sm:$0xf] %vm4531, %v4469
      %4569 = vst.msk [vmem:[#allocation3 + $0x94] sm:$0xf] %vm4531, %v4471
      %4570 = vst.msk [vmem:[#allocation3 + $0x98] sm:$0xf] %vm4531, %v4473
      %4571 = vst.msk [vmem:[#allocation3 + $0x9c] sm:$0xf] %vm4531, %v4475
      %4572 = vst.msk [vmem:[#allocation3 + $0xa0] sm:$0xf] %vm4531, %v4477
      %4573 = vst.msk [vmem:[#allocation3 + $0xa4] sm:$0xf] %vm4531, %v4479
      %4574 = vst.msk [vmem:[#allocation3 + $0xa8] sm:$0xf] %vm4531, %v4481
      %4575 = vst.msk [vmem:[#allocation3 + $0xac] sm:$0xf] %vm4531, %v4483
      %4576 = vst.msk [vmem:[#allocation3 + $0xb0] sm:$0xf] %vm4531, %v4485
      %v4577 = vld [vmem:[#allocation3] sm:$0xf]
      %v4578 = vld [vmem:[#allocation3 + $0x4] sm:$0xf]
      %v4579 = vld [vmem:[#allocation3 + $0x8] sm:$0xf]
      %v4580 = vld [vmem:[#allocation3 + $0xc] sm:$0xf]
      %v4581 = vld [vmem:[#allocation3 + $0x10] sm:$0xf]
      %v4582 = vld [vmem:[#allocation3 + $0x14] sm:$0xf]
      %v4583 = vld [vmem:[#allocation3 + $0x18] sm:$0xf]
      %v4584 = vld [vmem:[#allocation3 + $0x1c] sm:$0xf]
      %v4585 = vld [vmem:[#allocation3 + $0x20] sm:$0xf]
      %v4586 = vld [vmem:[#allocation3 + $0x24] sm:$0xf]
      %v4587 = vld [vmem:[#allocation3 + $0x28] sm:$0xf]
      %v4588 = vld [vmem:[#allocation3 + $0x2c] sm:$0xf]
      %v4589 = vld [vmem:[#allocation3 + $0x30] sm:$0xf]
      %v4590 = vld [vmem:[#allocation3 + $0x34] sm:$0xf]
      %v4591 = vld [vmem:[#allocation3 + $0x38] sm:$0xf]
      %v4592 = vld [vmem:[#allocation3 + $0x3c] sm:$0xf]
      %v4593 = vld [vmem:[#allocation3 + $0x40] sm:$0xf]
      %v4594 = vld [vmem:[#allocation3 + $0x44] sm:$0xf]
      %v4595 = vld [vmem:[#allocation3 + $0x48] sm:$0xf]
      %v4596 = vld [vmem:[#allocation3 + $0x4c] sm:$0xf]
      %v4597 = vld [vmem:[#allocation3 + $0x50] sm:$0xf]
      %v4598 = vld [vmem:[#allocation3 + $0x54] sm:$0xf]
      %v4599 = vld [vmem:[#allocation3 + $0x58] sm:$0xf]
      %v4600 = vld [vmem:[#allocation3 + $0x5c] sm:$0xf]
      %v4601 = vld [vmem:[#allocation3 + $0x60] sm:$0xf]
      %v4602 = vld [vmem:[#allocation3 + $0x64] sm:$0xf]
      %v4603 = vld [vmem:[#allocation3 + $0x68] sm:$0xf]
      %v4604 = vld [vmem:[#allocation3 + $0x6c] sm:$0xf]
      %v4605 = vld [vmem:[#allocation3 + $0x70] sm:$0xf]
      %v4606 = vld [vmem:[#allocation3 + $0x74] sm:$0xf]
      %v4607 = vld [vmem:[#allocation3 + $0x78] sm:$0xf]
      %v4608 = vld [vmem:[#allocation3 + $0x7c] sm:$0xf]
      %v4609 = vld [vmem:[#allocation3 + $0x80] sm:$0xf]
      %v4610 = vld [vmem:[#allocation3 + $0x84] sm:$0xf]
      %v4611 = vld [vmem:[#allocation3 + $0x88] sm:$0xf]
      %v4612 = vld [vmem:[#allocation3 + $0x8c] sm:$0xf]
      %v4613 = vld [vmem:[#allocation3 + $0x90] sm:$0xf]
      %v4614 = vld [vmem:[#allocation3 + $0x94] sm:$0xf]
      %v4615 = vld [vmem:[#allocation3 + $0x98] sm:$0xf]
      %v4616 = vld [vmem:[#allocation3 + $0x9c] sm:$0xf]
      %v4617 = vld [vmem:[#allocation3 + $0xa0] sm:$0xf]
      %v4618 = vld [vmem:[#allocation3 + $0xa4] sm:$0xf]
      %v4619 = vld [vmem:[#allocation3 + $0xa8] sm:$0xf]
      %v4620 = vld [vmem:[#allocation3 + $0xac] sm:$0xf]
      %v4621 = vld [vmem:[#allocation3 + $0xb0] sm:$0xf]
      %v4622 = vld [vmem:[%s2] sm:$0xf]
      %v4623 = vld [vmem:[%s2 + $0x4] sm:$0xf]
      %v4624 = vld [vmem:[%s2 + $0x8] sm:$0xf]
      %v4625 = vld [vmem:[%s2 + $0xc] sm:$0xf]
      %v4626 = vld [vmem:[%s2 + $0x10] sm:$0x3]
      %v4672 = vunpack.c.l.b16 %v4577
      %v4673 = vunpack.c.l.b16 %v4578
      %v4674 = vunpack.c.l.b16 %v4579
      %v4675 = vunpack.c.l.b16 %v4580
      %v4676 = vunpack.c.l.b16 %v4581
      %v4677 = vunpack.c.l.b16 %v4582
      %v4678 = vunpack.c.l.b16 %v4583
      %v4679 = vunpack.c.l.b16 %v4584
      %v4680 = vunpack.c.l.b16 %v4585
      %v4681 = vunpack.c.l.b16 %v4586
      %v4682 = vunpack.c.l.b16 %v4587
      %v4683 = vunpack.c.l.b16 %v4588
      %v4684 = vunpack.c.l.b16 %v4589
      %v4685 = vunpack.c.l.b16 %v4590
      %v4686 = vunpack.c.l.b16 %v4591
      %v4687 = vunpack.c.l.b16 %v4592
      %v4688 = vunpack.c.l.b16 %v4593
      %v4689 = vunpack.c.l.b16 %v4594
      %v4690 = vunpack.c.l.b16 %v4595
      %v4691 = vunpack.c.l.b16 %v4596
      %v4692 = vunpack.c.l.b16 %v4597
      %v4693 = vunpack.c.l.b16 %v4598
      %v4694 = vunpack.c.l.b16 %v4599
      %v4695 = vunpack.c.l.b16 %v4600
      %v4696 = vunpack.c.l.b16 %v4601
      %v4697 = vunpack.c.l.b16 %v4602
      %v4698 = vunpack.c.l.b16 %v4603
      %v4699 = vunpack.c.l.b16 %v4604
      %v4700 = vunpack.c.l.b16 %v4605
      %v4701 = vunpack.c.l.b16 %v4606
      %v4702 = vunpack.c.l.b16 %v4607
      %v4703 = vunpack.c.l.b16 %v4608
      %v4704 = vunpack.c.l.b16 %v4609
      %v4705 = vunpack.c.l.b16 %v4610
      %v4706 = vunpack.c.l.b16 %v4611
      %v4707 = vunpack.c.l.b16 %v4612
      %v4708 = vunpack.c.l.b16 %v4613
      %v4709 = vunpack.c.l.b16 %v4614
      %v4710 = vunpack.c.l.b16 %v4615
      %v4711 = vunpack.c.l.b16 %v4616
      %v4712 = vunpack.c.l.b16 %v4617
      %v4713 = vunpack.c.l.b16 %v4618
      %v4714 = vunpack.c.l.b16 %v4619
      %v4715 = vunpack.c.l.b16 %v4620
      %v4716 = vunpack.c.l.b16 %v4621
      %v4717 = vpack.c.b16 %v4673, %v4672
      %v4718 = vpack.c.b16 %v4675, %v4674
      %v4719 = vpack.c.b16 %v4677, %v4676
      %v4720 = vpack.c.b16 %v4679, %v4678
      %v4721 = vpack.c.b16 %v4681, %v4680
      %v4722 = vpack.c.b16 %v4683, %v4682
      %v4723 = vpack.c.b16 %v4685, %v4684
      %v4724 = vpack.c.b16 %v4687, %v4686
      %v4725 = vpack.c.b16 %v4689, %v4688
      %v4726 = vpack.c.b16 %v4691, %v4690
      %v4727 = vpack.c.b16 %v4693, %v4692
      %v4728 = vpack.c.b16 %v4695, %v4694
      %v4729 = vpack.c.b16 %v4697, %v4696
      %v4730 = vpack.c.b16 %v4699, %v4698
      %v4731 = vpack.c.b16 %v4701, %v4700
      %v4732 = vpack.c.b16 %v4703, %v4702
      %v4733 = vpack.c.b16 %v4705, %v4704
      %v4734 = vpack.c.b16 %v4707, %v4706
      %v4735 = vpack.c.b16 %v4709, %v4708
      %v4736 = vpack.c.b16 %v4711, %v4710
      %v4737 = vpack.c.b16 %v4713, %v4712
      %v4738 = vpack.c.b16 %v4715, %v4714
      %v4739 = vpack.c.b16 %v4716, %v4716
      %v4745 = vunpack.c.l.b16 %v4622
      %v4746 = vunpack.c.l.b16 %v4623
      %v4747 = vunpack.c.l.b16 %v4624
      %v4748 = vunpack.c.l.b16 %v4625
      %v4749 = vunpack.c.l.b16 %v4626
      %v4750 = vpack.c.b16 %v4746, %v4745
      %v4751 = vpack.c.b16 %v4748, %v4747
      %v4752 = vpack.c.b16 %v4749, %v4749
      %vm4755 = vcmask 293888
      %v4757 = vsel %vm4755, %v4717, 0
      %v4760 = vsel %vm4755, %v4718, 0
      %v4763 = vsel %vm4755, %v4719, 0
      %v4766 = vsel %vm4755, %v4720, 0
      %v4769 = vsel %vm4755, %v4721, 0
      %v4772 = vsel %vm4755, %v4722, 0
      %v4775 = vsel %vm4755, %v4723, 0
      %v4778 = vsel %vm4755, %v4724, 0
      %v4781 = vsel %vm4755, %v4725, 0
      %v4784 = vsel %vm4755, %v4726, 0
      %v4787 = vsel %vm4755, %v4727, 0
      %v4790 = vsel %vm4755, %v4728, 0
      %v4793 = vsel %vm4755, %v4729, 0
      %v4796 = vsel %vm4755, %v4730, 0
      %v4799 = vsel %vm4755, %v4731, 0
      %v4802 = vsel %vm4755, %v4732, 0
      %v4805 = vsel %vm4755, %v4733, 0
      %v4808 = vsel %vm4755, %v4734, 0
      %v4811 = vsel %vm4755, %v4735, 0
      %v4814 = vsel %vm4755, %v4736, 0
      %v4817 = vsel %vm4755, %v4737, 0
      %v4820 = vsel %vm4755, %v4738, 0
      %v4823 = vsel %vm4755, %v4739, 0
      %vm4825 = vcmask 1041408
      %v4827 = vsel %vm4825, %v4752, 0
      %4829 = vmatprep.subr.bf16.mxu0 0
      %4830 = vmatpush1.bf16.msra.mxu0 0
      %4831 = vmatprep.subr.bf16.mxu0 0
      %4832 = vmatpush1.bf16.msra.mxu0 0
      %4833 = vmatprep.subr.bf16.mxu0 0
      %4834 = vmatpush1.bf16.msra.mxu0 0
      %4835 = vmatprep.subr.bf16.mxu0 0
      %4836 = vmatpush1.bf16.msra.mxu0 0
      %4837 = vmatprep.subr.bf16.mxu0 0
      %4838 = vmatpush1.bf16.msra.mxu0 0
      %4839 = vmatprep.subr.bf16.mxu0 0
      %4840 = vmatpush1.bf16.msra.mxu0 %v4827
      %4841 = vmatprep.subr.bf16.mxu0 0
      %4842 = vmatpush1.bf16.msra.mxu0 %v4751
      %4843 = vmatprep.subr.bf16.mxu0 0
      %4844 = vmatpush1.bf16.msra.mxu0 %v4750
      %4845 = vmatprep.subr.bf16.mxu0 0
      %4846 = vmatpush2.bf16.msra.mxu0 0
      %4847 = vmatprep.subr.bf16.mxu0 0
      %4848 = vmatpush2.bf16.msra.mxu0 0
      %4849 = vmatprep.subr.bf16.mxu0 0
      %4850 = vmatpush2.bf16.msra.mxu0 0
      %4851 = vmatprep.subr.bf16.mxu0 0
      %4852 = vmatpush2.bf16.msra.mxu0 0
      %4853 = vmatprep.subr.bf16.mxu0 0
      %4854 = vmatpush2.bf16.msra.mxu0 0
      %4855 = vmatprep.subr.bf16.mxu0 0
      %4856 = vmatpush2.bf16.msra.mxu0 0
      %4857 = vmatprep.subr.bf16.mxu0 0
      %4858 = vmatpush2.bf16.msra.mxu0 0
      %4859 = vmatprep.subr.bf16.mxu0 0
      %4860 = vmatpush2.bf16.msra.mxu0 0
      %4861 = vmatprep.mubr.bf16.mxu0 0
      %4862 = vmatmul.mubr.bf16.gmra.mxu0 %v4757
      %v4863 = vpop.f32.mrf.mxu0
      %v4864 = vadd.f32 0.0, %v4863
      %v4865 = vpop.f32.mrf.mxu0
      %v4866 = vpop.f32.mrf.mxu0
      %v4867 = vadd.f32 0.0, %v4866
      %v4868 = vpop.f32.mrf.mxu0
      %4869 = vmatprep.mubr.bf16.mxu0 0
      %4870 = vmatmul.mubr.bf16.gmra.mxu0 %v4760
      %v4871 = vpop.f32.mrf.mxu0
      %v4872 = vadd.f32 0.0, %v4871
      %v4873 = vpop.f32.mrf.mxu0
      %v4874 = vpop.f32.mrf.mxu0
      %v4875 = vadd.f32 0.0, %v4874
      %v4876 = vpop.f32.mrf.mxu0
      %4877 = vmatprep.mubr.bf16.mxu0 0
      %4878 = vmatmul.mubr.bf16.gmra.mxu0 %v4763
      %v4879 = vpop.f32.mrf.mxu0
      %v4880 = vadd.f32 0.0, %v4879
      %v4881 = vpop.f32.mrf.mxu0
      %v4882 = vpop.f32.mrf.mxu0
      %v4883 = vadd.f32 0.0, %v4882
      %v4884 = vpop.f32.mrf.mxu0
      %4885 = vmatprep.mubr.bf16.mxu0 0
      %4886 = vmatmul.mubr.bf16.gmra.mxu0 %v4766
      %v4887 = vpop.f32.mrf.mxu0
      %v4888 = vadd.f32 0.0, %v4887
      %v4889 = vpop.f32.mrf.mxu0
      %v4890 = vpop.f32.mrf.mxu0
      %v4891 = vadd.f32 0.0, %v4890
      %v4892 = vpop.f32.mrf.mxu0
      %4893 = vmatprep.mubr.bf16.mxu0 0
      %4894 = vmatmul.mubr.bf16.gmra.mxu0 %v4769
      %v4895 = vpop.f32.mrf.mxu0
      %v4896 = vadd.f32 0.0, %v4895
      %v4897 = vpop.f32.mrf.mxu0
      %v4898 = vpop.f32.mrf.mxu0
      %v4899 = vadd.f32 0.0, %v4898
      %v4900 = vpop.f32.mrf.mxu0
      %4901 = vmatprep.mubr.bf16.mxu0 0
      %4902 = vmatmul.mubr.bf16.gmra.mxu0 %v4772
      %v4903 = vpop.f32.mrf.mxu0
      %v4904 = vadd.f32 0.0, %v4903
      %v4905 = vpop.f32.mrf.mxu0
      %v4906 = vpop.f32.mrf.mxu0
      %v4907 = vadd.f32 0.0, %v4906
      %v4908 = vpop.f32.mrf.mxu0
      %4909 = vmatprep.mubr.bf16.mxu0 0
      %4910 = vmatmul.mubr.bf16.gmra.mxu0 %v4775
      %v4911 = vpop.f32.mrf.mxu0
      %v4912 = vadd.f32 0.0, %v4911
      %v4913 = vpop.f32.mrf.mxu0
      %v4914 = vpop.f32.mrf.mxu0
      %v4915 = vadd.f32 0.0, %v4914
      %v4916 = vpop.f32.mrf.mxu0
      %4917 = vmatprep.mubr.bf16.mxu0 0
      %4918 = vmatmul.mubr.bf16.gmra.mxu0 %v4778
      %v4919 = vpop.f32.mrf.mxu0
      %v4920 = vadd.f32 0.0, %v4919
      %v4921 = vpop.f32.mrf.mxu0
      %v4922 = vpop.f32.mrf.mxu0
      %v4923 = vadd.f32 0.0, %v4922
      %v4924 = vpop.f32.mrf.mxu0
      %4925 = vmatprep.mubr.bf16.mxu0 0
      %4926 = vmatmul.mubr.bf16.gmra.mxu0 %v4781
      %v4927 = vpop.f32.mrf.mxu0
      %v4928 = vadd.f32 0.0, %v4927
      %v4929 = vpop.f32.mrf.mxu0
      %v4930 = vpop.f32.mrf.mxu0
      %v4931 = vadd.f32 0.0, %v4930
      %v4932 = vpop.f32.mrf.mxu0
      %4933 = vmatprep.mubr.bf16.mxu0 0
      %4934 = vmatmul.mubr.bf16.gmra.mxu0 %v4784
      %v4935 = vpop.f32.mrf.mxu0
      %v4936 = vadd.f32 0.0, %v4935
      %v4937 = vpop.f32.mrf.mxu0
      %v4938 = vpop.f32.mrf.mxu0
      %v4939 = vadd.f32 0.0, %v4938
      %v4940 = vpop.f32.mrf.mxu0
      %4941 = vmatprep.mubr.bf16.mxu0 0
      %4942 = vmatmul.mubr.bf16.gmra.mxu0 %v4787
      %v4943 = vpop.f32.mrf.mxu0
      %v4944 = vadd.f32 0.0, %v4943
      %v4945 = vpop.f32.mrf.mxu0
      %v4946 = vpop.f32.mrf.mxu0
      %v4947 = vadd.f32 0.0, %v4946
      %v4948 = vpop.f32.mrf.mxu0
      %4949 = vmatprep.mubr.bf16.mxu0 0
      %4950 = vmatmul.mubr.bf16.gmra.mxu0 %v4790
      %v4951 = vpop.f32.mrf.mxu0
      %v4952 = vadd.f32 0.0, %v4951
      %v4953 = vpop.f32.mrf.mxu0
      %v4954 = vpop.f32.mrf.mxu0
      %v4955 = vadd.f32 0.0, %v4954
      %v4956 = vpop.f32.mrf.mxu0
      %4957 = vmatprep.mubr.bf16.mxu0 0
      %4958 = vmatmul.mubr.bf16.gmra.mxu0 %v4793
      %v4959 = vpop.f32.mrf.mxu0
      %v4960 = vadd.f32 0.0, %v4959
      %v4961 = vpop.f32.mrf.mxu0
      %v4962 = vpop.f32.mrf.mxu0
      %v4963 = vadd.f32 0.0, %v4962
      %v4964 = vpop.f32.mrf.mxu0
      %4965 = vmatprep.mubr.bf16.mxu0 0
      %4966 = vmatmul.mubr.bf16.gmra.mxu0 %v4796
      %v4967 = vpop.f32.mrf.mxu0
      %v4968 = vadd.f32 0.0, %v4967
      %v4969 = vpop.f32.mrf.mxu0
      %v4970 = vpop.f32.mrf.mxu0
      %v4971 = vadd.f32 0.0, %v4970
      %v4972 = vpop.f32.mrf.mxu0
      %4973 = vmatprep.mubr.bf16.mxu0 0
      %4974 = vmatmul.mubr.bf16.gmra.mxu0 %v4799
      %v4975 = vpop.f32.mrf.mxu0
      %v4976 = vadd.f32 0.0, %v4975
      %v4977 = vpop.f32.mrf.mxu0
      %v4978 = vpop.f32.mrf.mxu0
      %v4979 = vadd.f32 0.0, %v4978
      %v4980 = vpop.f32.mrf.mxu0
      %4981 = vmatprep.mubr.bf16.mxu0 0
      %4982 = vmatmul.mubr.bf16.gmra.mxu0 %v4802
      %v4983 = vpop.f32.mrf.mxu0
      %v4984 = vadd.f32 0.0, %v4983
      %v4985 = vpop.f32.mrf.mxu0
      %v4986 = vpop.f32.mrf.mxu0
      %v4987 = vadd.f32 0.0, %v4986
      %v4988 = vpop.f32.mrf.mxu0
      %4989 = vmatprep.mubr.bf16.mxu0 0
      %4990 = vmatmul.mubr.bf16.gmra.mxu0 %v4805
      %v4991 = vpop.f32.mrf.mxu0
      %v4992 = vadd.f32 0.0, %v4991
      %v4993 = vpop.f32.mrf.mxu0
      %v4994 = vpop.f32.mrf.mxu0
      %v4995 = vadd.f32 0.0, %v4994
      %v4996 = vpop.f32.mrf.mxu0
      %4997 = vmatprep.mubr.bf16.mxu0 0
      %4998 = vmatmul.mubr.bf16.gmra.mxu0 %v4808
      %v4999 = vpop.f32.mrf.mxu0
      %v5000 = vadd.f32 0.0, %v4999
      %v5001 = vpop.f32.mrf.mxu0
      %v5002 = vpop.f32.mrf.mxu0
      %v5003 = vadd.f32 0.0, %v5002
      %v5004 = vpop.f32.mrf.mxu0
      %5005 = vmatprep.mubr.bf16.mxu0 0
      %5006 = vmatmul.mubr.bf16.gmra.mxu0 %v4811
      %v5007 = vpop.f32.mrf.mxu0
      %v5008 = vadd.f32 0.0, %v5007
      %v5009 = vpop.f32.mrf.mxu0
      %v5010 = vpop.f32.mrf.mxu0
      %v5011 = vadd.f32 0.0, %v5010
      %v5012 = vpop.f32.mrf.mxu0
      %5013 = vmatprep.mubr.bf16.mxu0 0
      %5014 = vmatmul.mubr.bf16.gmra.mxu0 %v4814
      %v5015 = vpop.f32.mrf.mxu0
      %v5016 = vadd.f32 0.0, %v5015
      %v5017 = vpop.f32.mrf.mxu0
      %v5018 = vpop.f32.mrf.mxu0
      %v5019 = vadd.f32 0.0, %v5018
      %v5020 = vpop.f32.mrf.mxu0
      %5021 = vmatprep.mubr.bf16.mxu0 0
      %5022 = vmatmul.mubr.bf16.gmra.mxu0 %v4817
      %v5023 = vpop.f32.mrf.mxu0
      %v5024 = vadd.f32 0.0, %v5023
      %v5025 = vpop.f32.mrf.mxu0
      %v5026 = vpop.f32.mrf.mxu0
      %v5027 = vadd.f32 0.0, %v5026
      %v5028 = vpop.f32.mrf.mxu0
      %5029 = vmatprep.mubr.bf16.mxu0 0
      %5030 = vmatmul.mubr.bf16.gmra.mxu0 %v4820
      %v5031 = vpop.f32.mrf.mxu0
      %v5032 = vadd.f32 0.0, %v5031
      %v5033 = vpop.f32.mrf.mxu0
      %v5034 = vpop.f32.mrf.mxu0
      %v5035 = vadd.f32 0.0, %v5034
      %v5036 = vpop.f32.mrf.mxu0
      %5037 = vmatprep.mubr.bf16.mxu0 0
      %5038 = vmatmul.mubr.bf16.gmra.mxu0 %v4823
      %v5039 = vpop.f32.mrf.mxu0
      %v5040 = vadd.f32 0.0, %v5039
      %v5041 = vpop.f32.mrf.mxu0
      %v5042 = vpop.f32.mrf.mxu0
      %v5043 = vpop.f32.mrf.mxu0
      %5044 = vdwg.mxu0
      %v5045 = vld [vmem:[%s266] sm:$0x7]
      %v5047 = vlaneseq
      %v5048 = vshrl.u32 %v5047, 7
      %v5049 = vsub.s32 0, %v5048
      %v5050 = vrot.slane %v5045, %v5049
      %v5051 = vlaneseq
      %v5052 = vshrl.u32 %v5051, 7
      %v5053 = vsub.s32 1, %v5052
      %v5054 = vrot.slane %v5045, %v5053
      %v5055 = vlaneseq
      %v5056 = vshrl.u32 %v5055, 7
      %v5057 = vsub.s32 2, %v5056
      %v5058 = vrot.slane %v5045, %v5057
      %vm5061 = vcmask 850944
      %v5062 = vsel %vm5061, %v5058, 0
      %5064 = vmatprep.subr.mxu0 0.0
      %5065 = vmatpush1.msra.mxu0 %v4923
      %5066 = vmatprep.subr.mxu0 0.0
      %5067 = vmatpush1.msra.mxu0 %v4920
      %5068 = vmatprep.subr.mxu0 0.0
      %5069 = vmatpush1.msra.mxu0 %v4915
      %5070 = vmatprep.subr.mxu0 0.0
      %5071 = vmatpush1.msra.mxu0 %v4912
      %5072 = vmatprep.subr.mxu0 0.0
      %5073 = vmatpush1.msra.mxu0 %v4907
      %5074 = vmatprep.subr.mxu0 0.0
      %5075 = vmatpush1.msra.mxu0 %v4904
      %5076 = vmatprep.subr.mxu0 0.0
      %5077 = vmatpush1.msra.mxu0 %v4899
      %5078 = vmatprep.subr.mxu0 0.0
      %5079 = vmatpush1.msra.mxu0 %v4896
      %5080 = vmatprep.subr.mxu0 0.0
      %5081 = vmatpush1.msra.mxu0 %v4891
      %5082 = vmatprep.subr.mxu0 0.0
      %5083 = vmatpush1.msra.mxu0 %v4888
      %5084 = vmatprep.subr.mxu0 0.0
      %5085 = vmatpush1.msra.mxu0 %v4883
      %5086 = vmatprep.subr.mxu0 0.0
      %5087 = vmatpush1.msra.mxu0 %v4880
      %5088 = vmatprep.subr.mxu0 0.0
      %5089 = vmatpush1.msra.mxu0 %v4875
      %5090 = vmatprep.subr.mxu0 0.0
      %5091 = vmatpush1.msra.mxu0 %v4872
      %5092 = vmatprep.subr.mxu0 0.0
      %5093 = vmatpush1.msra.mxu0 %v4867
      %5094 = vmatprep.subr.mxu0 0.0
      %5095 = vmatpush1.msra.mxu0 %v4864
      %5096 = vmatprep.subr.mxu0 0.0
      %5097 = vmatpush2.msra.mxu0 %v4987
      %5098 = vmatprep.subr.mxu0 0.0
      %5099 = vmatpush2.msra.mxu0 %v4984
      %5100 = vmatprep.subr.mxu0 0.0
      %5101 = vmatpush2.msra.mxu0 %v4979
      %5102 = vmatprep.subr.mxu0 0.0
      %5103 = vmatpush2.msra.mxu0 %v4976
      %5104 = vmatprep.subr.mxu0 0.0
      %5105 = vmatpush2.msra.mxu0 %v4971
      %5106 = vmatprep.subr.mxu0 0.0
      %5107 = vmatpush2.msra.mxu0 %v4968
      %5108 = vmatprep.subr.mxu0 0.0
      %5109 = vmatpush2.msra.mxu0 %v4963
      %5110 = vmatprep.subr.mxu0 0.0
      %5111 = vmatpush2.msra.mxu0 %v4960
      %5112 = vmatprep.subr.mxu0 0.0
      %5113 = vmatpush2.msra.mxu0 %v4955
      %5114 = vmatprep.subr.mxu0 0.0
      %5115 = vmatpush2.msra.mxu0 %v4952
      %5116 = vmatprep.subr.mxu0 0.0
      %5117 = vmatpush2.msra.mxu0 %v4947
      %5118 = vmatprep.subr.mxu0 0.0
      %5119 = vmatpush2.msra.mxu0 %v4944
      %5120 = vmatprep.subr.mxu0 0.0
      %5121 = vmatpush2.msra.mxu0 %v4939
      %5122 = vmatprep.subr.mxu0 0.0
      %5123 = vmatpush2.msra.mxu0 %v4936
      %5124 = vmatprep.subr.mxu0 0.0
      %5125 = vmatpush2.msra.mxu0 %v4931
      %5126 = vmatprep.subr.mxu0 0.0
      %5127 = vmatpush2.msra.mxu0 %v4928
      %5128 = vmatprep.mubr.f32.mxu0 %v5054
      %5129 = vmatmul.mubr.f32.gmra.mxu0 %v5050
      %v5130 = vpop.f32.mrf.mxu0
      %v5131 = vadd.f32 0.0, %v5130
      %v5132 = vpop.f32.mrf.mxu0
      %5133 = vdwg.mxu0
      %5134 = vmatprep.subr.mxu0 0.0
      %5135 = vmatpush1.msra.mxu0 0.0
      %5136 = vmatprep.subr.mxu0 0.0
      %5137 = vmatpush1.msra.mxu0 0.0
      %5138 = vmatprep.subr.mxu0 0.0
      %5139 = vmatpush1.msra.mxu0 0.0
      %5140 = vmatprep.subr.mxu0 0.0
      %5141 = vmatpush1.msra.mxu0 %v5040
      %5142 = vmatprep.subr.mxu0 0.0
      %5143 = vmatpush1.msra.mxu0 %v5035
      %5144 = vmatprep.subr.mxu0 0.0
      %5145 = vmatpush1.msra.mxu0 %v5032
      %5146 = vmatprep.subr.mxu0 0.0
      %5147 = vmatpush1.msra.mxu0 %v5027
      %5148 = vmatprep.subr.mxu0 0.0
      %5149 = vmatpush1.msra.mxu0 %v5024
      %5150 = vmatprep.subr.mxu0 0.0
      %5151 = vmatpush1.msra.mxu0 %v5019
      %5152 = vmatprep.subr.mxu0 0.0
      %5153 = vmatpush1.msra.mxu0 %v5016
      %5154 = vmatprep.subr.mxu0 0.0
      %5155 = vmatpush1.msra.mxu0 %v5011
      %5156 = vmatprep.subr.mxu0 0.0
      %5157 = vmatpush1.msra.mxu0 %v5008
      %5158 = vmatprep.subr.mxu0 0.0
      %5159 = vmatpush1.msra.mxu0 %v5003
      %5160 = vmatprep.subr.mxu0 0.0
      %5161 = vmatpush1.msra.mxu0 %v5000
      %5162 = vmatprep.subr.mxu0 0.0
      %5163 = vmatpush1.msra.mxu0 %v4995
      %5164 = vmatprep.subr.mxu0 0.0
      %5165 = vmatpush1.msra.mxu0 %v4992
      %5166 = vmatprep.subr.mxu0 0.0
      %5167 = vmatpush2.msra.mxu0 0.0
      %5168 = vmatprep.subr.mxu0 0.0
      %5169 = vmatpush2.msra.mxu0 0.0
      %5170 = vmatprep.subr.mxu0 0.0
      %5171 = vmatpush2.msra.mxu0 0.0
      %5172 = vmatprep.subr.mxu0 0.0
      %5173 = vmatpush2.msra.mxu0 0.0
      %5174 = vmatprep.subr.mxu0 0.0
      %5175 = vmatpush2.msra.mxu0 0.0
      %5176 = vmatprep.subr.mxu0 0.0
      %5177 = vmatpush2.msra.mxu0 0.0
      %5178 = vmatprep.subr.mxu0 0.0
      %5179 = vmatpush2.msra.mxu0 0.0
      %5180 = vmatprep.subr.mxu0 0.0
      %5181 = vmatpush2.msra.mxu0 0.0
      %5182 = vmatprep.subr.mxu0 0.0
      %5183 = vmatpush2.msra.mxu0 0.0
      %5184 = vmatprep.subr.mxu0 0.0
      %5185 = vmatpush2.msra.mxu0 0.0
      %5186 = vmatprep.subr.mxu0 0.0
      %5187 = vmatpush2.msra.mxu0 0.0
      %5188 = vmatprep.subr.mxu0 0.0
      %5189 = vmatpush2.msra.mxu0 0.0
      %5190 = vmatprep.subr.mxu0 0.0
      %5191 = vmatpush2.msra.mxu0 0.0
      %5192 = vmatprep.subr.mxu0 0.0
      %5193 = vmatpush2.msra.mxu0 0.0
      %5194 = vmatprep.subr.mxu0 0.0
      %5195 = vmatpush2.msra.mxu0 0.0
      %5196 = vmatprep.subr.mxu0 0.0
      %5197 = vmatpush2.msra.mxu0 0.0
      %5198 = vmatprep.mubr.f32.mxu0 0.0
      %5199 = vmatmul.mubr.f32.gmra.mxu0 %v5062
      %v5200 = vpop.f32.mrf.mxu0
      %v5201 = vadd.f32 %v5131, %v5200
      %v5202 = vpop.f32.mrf.mxu0
      %5203 = vdwg.mxu0
      %v5204 = vmul.f32 %v4864, %v4864
      %v5205 = vmul.f32 %v4867, %v4867
      %v5206 = vmul.f32 %v4872, %v4872
      %v5207 = vmul.f32 %v4875, %v4875
      %v5208 = vmul.f32 %v4880, %v4880
      %v5209 = vmul.f32 %v4883, %v4883
      %v5210 = vmul.f32 %v4888, %v4888
      %v5211 = vmul.f32 %v4891, %v4891
      %v5212 = vmul.f32 %v4896, %v4896
      %v5213 = vmul.f32 %v4899, %v4899
      %v5214 = vmul.f32 %v4904, %v4904
      %v5215 = vmul.f32 %v4907, %v4907
      %v5216 = vmul.f32 %v4912, %v4912
      %v5217 = vmul.f32 %v4915, %v4915
      %v5218 = vmul.f32 %v4920, %v4920
      %v5219 = vmul.f32 %v4923, %v4923
      %v5220 = vmul.f32 %v4928, %v4928
      %v5221 = vmul.f32 %v4931, %v4931
      %v5222 = vmul.f32 %v4936, %v4936
      %v5223 = vmul.f32 %v4939, %v4939
      %v5224 = vmul.f32 %v4944, %v4944
      %v5225 = vmul.f32 %v4947, %v4947
      %v5226 = vmul.f32 %v4952, %v4952
      %v5227 = vmul.f32 %v4955, %v4955
      %v5228 = vmul.f32 %v4960, %v4960
      %v5229 = vmul.f32 %v4963, %v4963
      %v5230 = vmul.f32 %v4968, %v4968
      %v5231 = vmul.f32 %v4971, %v4971
      %v5232 = vmul.f32 %v4976, %v4976
      %v5233 = vmul.f32 %v4979, %v4979
      %v5234 = vmul.f32 %v4984, %v4984
      %v5235 = vmul.f32 %v4987, %v4987
      %v5236 = vmul.f32 %v4992, %v4992
      %v5237 = vmul.f32 %v4995, %v4995
      %v5238 = vmul.f32 %v5000, %v5000
      %v5239 = vmul.f32 %v5003, %v5003
      %v5240 = vmul.f32 %v5008, %v5008
      %v5241 = vmul.f32 %v5011, %v5011
      %v5242 = vmul.f32 %v5016, %v5016
      %v5243 = vmul.f32 %v5019, %v5019
      %v5244 = vmul.f32 %v5024, %v5024
      %v5245 = vmul.f32 %v5027, %v5027
      %v5246 = vmul.f32 %v5032, %v5032
      %v5247 = vmul.f32 %v5035, %v5035
      %v5248 = vmul.f32 %v5040, %v5040
      %5249 = vmatprep.subr.mxu0 0.0
      %5250 = vmatpush1.msra.mxu0 %v5219
      %5251 = vmatprep.subr.mxu0 0.0
      %5252 = vmatpush1.msra.mxu0 %v5218
      %5253 = vmatprep.subr.mxu0 0.0
      %5254 = vmatpush1.msra.mxu0 %v5217
      %5255 = vmatprep.subr.mxu0 0.0
      %5256 = vmatpush1.msra.mxu0 %v5216
      %5257 = vmatprep.subr.mxu0 0.0
      %5258 = vmatpush1.msra.mxu0 %v5215
      %5259 = vmatprep.subr.mxu0 0.0
      %5260 = vmatpush1.msra.mxu0 %v5214
      %5261 = vmatprep.subr.mxu0 0.0
      %5262 = vmatpush1.msra.mxu0 %v5213
      %5263 = vmatprep.subr.mxu0 0.0
      %5264 = vmatpush1.msra.mxu0 %v5212
      %5265 = vmatprep.subr.mxu0 0.0
      %5266 = vmatpush1.msra.mxu0 %v5211
      %5267 = vmatprep.subr.mxu0 0.0
      %5268 = vmatpush1.msra.mxu0 %v5210
      %5269 = vmatprep.subr.mxu0 0.0
      %5270 = vmatpush1.msra.mxu0 %v5209
      %5271 = vmatprep.subr.mxu0 0.0
      %5272 = vmatpush1.msra.mxu0 %v5208
      %5273 = vmatprep.subr.mxu0 0.0
      %5274 = vmatpush1.msra.mxu0 %v5207
      %5275 = vmatprep.subr.mxu0 0.0
      %5276 = vmatpush1.msra.mxu0 %v5206
      %5277 = vmatprep.subr.mxu0 0.0
      %5278 = vmatpush1.msra.mxu0 %v5205
      %5279 = vmatprep.subr.mxu0 0.0
      %5280 = vmatpush1.msra.mxu0 %v5204
      %5281 = vmatprep.subr.mxu0 0.0
      %5282 = vmatpush2.msra.mxu0 %v5235
      %5283 = vmatprep.subr.mxu0 0.0
      %5284 = vmatpush2.msra.mxu0 %v5234
      %5285 = vmatprep.subr.mxu0 0.0
      %5286 = vmatpush2.msra.mxu0 %v5233
      %5287 = vmatprep.subr.mxu0 0.0
      %5288 = vmatpush2.msra.mxu0 %v5232
      %5289 = vmatprep.subr.mxu0 0.0
      %5290 = vmatpush2.msra.mxu0 %v5231
      %5291 = vmatprep.subr.mxu0 0.0
      %5292 = vmatpush2.msra.mxu0 %v5230
      %5293 = vmatprep.subr.mxu0 0.0
      %5294 = vmatpush2.msra.mxu0 %v5229
      %5295 = vmatprep.subr.mxu0 0.0
      %5296 = vmatpush2.msra.mxu0 %v5228
      %5297 = vmatprep.subr.mxu0 0.0
      %5298 = vmatpush2.msra.mxu0 %v5227
      %5299 = vmatprep.subr.mxu0 0.0
      %5300 = vmatpush2.msra.mxu0 %v5226
      %5301 = vmatprep.subr.mxu0 0.0
      %5302 = vmatpush2.msra.mxu0 %v5225
      %5303 = vmatprep.subr.mxu0 0.0
      %5304 = vmatpush2.msra.mxu0 %v5224
      %5305 = vmatprep.subr.mxu0 0.0
      %5306 = vmatpush2.msra.mxu0 %v5223
      %5307 = vmatprep.subr.mxu0 0.0
      %5308 = vmatpush2.msra.mxu0 %v5222
      %5309 = vmatprep.subr.mxu0 0.0
      %5310 = vmatpush2.msra.mxu0 %v5221
      %5311 = vmatprep.subr.mxu0 0.0
      %5312 = vmatpush2.msra.mxu0 %v5220
      %5313 = vmatprep.mubr.f32.mxu0 %v5054
      %5314 = vmatmul.mubr.f32.gmra.mxu0 %v5050
      %v5315 = vpop.f32.mrf.mxu0
      %v5316 = vadd.f32 0.0, %v5315
      %v5317 = vpop.f32.mrf.mxu0
      %5318 = vdwg.mxu0
      %5319 = vmatprep.subr.mxu0 0.0
      %5320 = vmatpush1.msra.mxu0 0.0
      %5321 = vmatprep.subr.mxu0 0.0
      %5322 = vmatpush1.msra.mxu0 0.0
      %5323 = vmatprep.subr.mxu0 0.0
      %5324 = vmatpush1.msra.mxu0 0.0
      %5325 = vmatprep.subr.mxu0 0.0
      %5326 = vmatpush1.msra.mxu0 %v5248
      %5327 = vmatprep.subr.mxu0 0.0
      %5328 = vmatpush1.msra.mxu0 %v5247
      %5329 = vmatprep.subr.mxu0 0.0
      %5330 = vmatpush1.msra.mxu0 %v5246
      %5331 = vmatprep.subr.mxu0 0.0
      %5332 = vmatpush1.msra.mxu0 %v5245
      %5333 = vmatprep.subr.mxu0 0.0
      %5334 = vmatpush1.msra.mxu0 %v5244
      %5335 = vmatprep.subr.mxu0 0.0
      %5336 = vmatpush1.msra.mxu0 %v5243
      %5337 = vmatprep.subr.mxu0 0.0
      %5338 = vmatpush1.msra.mxu0 %v5242
      %5339 = vmatprep.subr.mxu0 0.0
      %5340 = vmatpush1.msra.mxu0 %v5241
      %5341 = vmatprep.subr.mxu0 0.0
      %5342 = vmatpush1.msra.mxu0 %v5240
      %5343 = vmatprep.subr.mxu0 0.0
      %5344 = vmatpush1.msra.mxu0 %v5239
      %5345 = vmatprep.subr.mxu0 0.0
      %5346 = vmatpush1.msra.mxu0 %v5238
      %5347 = vmatprep.subr.mxu0 0.0
      %5348 = vmatpush1.msra.mxu0 %v5237
      %5349 = vmatprep.subr.mxu0 0.0
      %5350 = vmatpush1.msra.mxu0 %v5236
      %5351 = vmatprep.subr.mxu0 0.0
      %5352 = vmatpush2.msra.mxu0 0.0
      %5353 = vmatprep.subr.mxu0 0.0
      %5354 = vmatpush2.msra.mxu0 0.0
      %5355 = vmatprep.subr.mxu0 0.0
      %5356 = vmatpush2.msra.mxu0 0.0
      %5357 = vmatprep.subr.mxu0 0.0
      %5358 = vmatpush2.msra.mxu0 0.0
      %5359 = vmatprep.subr.mxu0 0.0
      %5360 = vmatpush2.msra.mxu0 0.0
      %5361 = vmatprep.subr.mxu0 0.0
      %5362 = vmatpush2.msra.mxu0 0.0
      %5363 = vmatprep.subr.mxu0 0.0
      %5364 = vmatpush2.msra.mxu0 0.0
      %5365 = vmatprep.subr.mxu0 0.0
      %5366 = vmatpush2.msra.mxu0 0.0
      %5367 = vmatprep.subr.mxu0 0.0
      %5368 = vmatpush2.msra.mxu0 0.0
      %5369 = vmatprep.subr.mxu0 0.0
      %5370 = vmatpush2.msra.mxu0 0.0
      %5371 = vmatprep.subr.mxu0 0.0
      %5372 = vmatpush2.msra.mxu0 0.0
      %5373 = vmatprep.subr.mxu0 0.0
      %5374 = vmatpush2.msra.mxu0 0.0
      %5375 = vmatprep.subr.mxu0 0.0
      %5376 = vmatpush2.msra.mxu0 0.0
      %5377 = vmatprep.subr.mxu0 0.0
      %5378 = vmatpush2.msra.mxu0 0.0
      %5379 = vmatprep.subr.mxu0 0.0
      %5380 = vmatpush2.msra.mxu0 0.0
      %5381 = vmatprep.subr.mxu0 0.0
      %5382 = vmatpush2.msra.mxu0 0.0
      %5383 = vmatprep.mubr.f32.mxu0 0.0
      %5384 = vmatmul.mubr.f32.gmra.mxu0 %v5062
      %v5385 = vpop.f32.mrf.mxu0
      %v5386 = vadd.f32 %v5316, %v5385
      %v5387 = vpop.f32.mrf.mxu0
      %5388 = vdwg.mxu0
      %v5389 = vlaneseq
      %v5390 = vshrl.u32 %v5389, 7
      %vm5391 = vcmp.eq.s32.totalorder %v5390, 0
      %v5392 = vsel %vm5391, 1, 0
      %vm5393 = vcmp.eq.s32.totalorder %v5392, 1
      %v5394 = vlaneseq
      %v5395 = vshrl.u32 %v5394, 7
      %v5396 = vsub.s32 0, %v5395
      %v5397 = vrot.slane %v5201, %v5396
      %v5398 = vsel %vm5393, %v5397, 0.0
      %vm5399 = vcmp.eq.s32.totalorder %v5390, 1
      %v5400 = vsel %vm5399, 1, 0
      %vm5401 = vcmp.eq.s32.totalorder %v5400, 1
      %v5402 = vlaneseq
      %v5403 = vshrl.u32 %v5402, 7
      %v5404 = vsub.s32 0, %v5403
      %v5405 = vrot.slane %v5386, %v5404
      %v5406 = vsel %vm5401, %v5405, 0.0
      %v5407 = vadd.f32 %v5398, %v5406
      %5408 = vst [vmem:[%s270] sm:$0xff] %v5407
      %p5409 = scmp.lt.s32.totalorder %s15, 1
      %s5410 = scalar_select %p5409, %s15, 1
      %s5411 = smul.addr %s5410, 8
      %s5412 = scalar_lea.vmem %s4, %s5411
      // Predicated region
      $region37: #{_conv_block_forward.2} parent=35 // pred_check
        %p5413 = pneg %p136
      $region38: #{_conv_block_forward.2} parent=35 // pred_check_branch
        %5415 = sbr.rel (%p5413) target = $region40
      $region39: #{_conv_block_forward.2} parent=35 // pred_region
        _
      $region40: #{_conv_block_forward.2} parent=35 // pred_fallthru
        _
    $region36: #{_conv_block_forward.2} parent=5 // pred_fallthru
      _
    %p5416 = scmp.le.s32.totalorder 2, %s10
    // Predicated region
    $region41: #{_conv_block_forward.2} parent=5 // pred_check
      %p5417 = pneg %p5416
    $region42: #{_conv_block_forward.2} parent=5 // pred_check_branch
      %5419 = sbr.rel (%p5417) target = $region44
    $region43: #{_conv_block_forward.2} parent=5 // pred_region
      %s5420 = ssub.s32 %s10, 2
      // Predicated region
      $region45: #{_conv_block_forward.2} parent=43 // pred_check
        %p5421 = pneg %p142
      $region46: #{_conv_block_forward.2} parent=43 // pred_check_branch
        %5423 = sbr.rel (%p5421) target = $region48
      $region47: #{_conv_block_forward.2} parent=43 // pred_region
        %p5424 = scmp.lt.s32.totalorder %s16, 1
        %s5425 = scalar_select %p5424, %s16, 1
        %s5426 = smul.addr %s5425, 8
        %s5427 = scalar_lea.vmem %s4, %s5426
      $region48: #{_conv_block_forward.2} parent=43 // pred_fallthru
        _
    $region44: #{_conv_block_forward.2} parent=5 // pred_fallthru
      _
  $region6: #{_conv_block_forward.2} parent=0 // loop_footer
    %s14 = sadd.s32 1, %s10
  $region7: #{_conv_block_forward.2} parent=0 // loop_footer_branch
    %9 = sbr.rel target = $region3
  $region8: #{_conv_block_forward.2} parent=0 // loop_exit
    _

</llo_original>
